<compile_context>
chip_gen: v7x
topology: tpu7x:2x2x1
jax: 0.10.0
libtpu: 0.0.40
codegen_flags: <defaults>
</compile_context>

<pallas_src>
import jax
import jax.numpy as jnp
import numpy as np
from jax import lax
from jax.experimental import pallas as pl
from jax.experimental.pallas import tpu as pltpu

# ----------------------------- small config ---------------------------------
# "768-dim ViT-B/16 @ 224" scaled down to a runnable synthetic size.
IMG_SIZE = 32          # raw input H = W
MODEL_IN = 16          # backbone input resolution ("224" analogue)
PATCH = 4              # patch size ("16" analogue)
GRID = MODEL_IN // PATCH         # 4x4 patch grid
GG = GRID * GRID                 # 16 patches
PPC = PATCH * PATCH * 3          # 48 features per patch (flatten order ph,pw,c)
HIDDEN = 32            # hidden dim ("768" analogue)
HEADS = 2
HEAD_DIM = HIDDEN // HEADS
DEPTH = 12
MLP = 4 * HIDDEN
OUT_INDICES = [2, 5, 8, 11]
SIZES = [32, 16, 8, 4]           # multi-scale output spatial sizes (as in module)
S_REAL = 1 + GG                  # 17 tokens (CLS + patches)
S_PAD = 24                       # padded to a multiple of 8
LN_EPS = 1e-6
NEG_INF = -1e9
VMEM_LIMIT = 32 * 1024 * 1024    # safe scoped-VMEM limit on v5e/v6e/v7x


def _cp(sem):
    return pltpu.CompilerParams(dimension_semantics=sem,
                                vmem_limit_bytes=VMEM_LIMIT)


# ----------------------- constant bilinear operators --------------------------
def _bilinear_matrix(out_size, in_size):
    """PyTorch F.interpolate(bilinear, align_corners=False) weights, (out, in)."""
    scale = in_size / out_size
    i = np.arange(out_size, dtype=np.float64)
    src = (i + 0.5) * scale - 0.5
    src = np.maximum(src, 0.0)
    lo = np.minimum(np.floor(src).astype(np.int64), in_size - 1)
    hi = np.minimum(lo + 1, in_size - 1)
    w_hi = src - lo
    w_lo = 1.0 - w_hi
    m = np.zeros((out_size, in_size), dtype=np.float32)
    m[np.arange(out_size), lo] += w_lo
    m[np.arange(out_size), hi] += w_hi
    return m


def _bilinear_2d(out_size, in_size):
    """Full separable 2-D resize operator: (out*out, in*in)."""
    m = _bilinear_matrix(out_size, in_size)
    return np.kron(m, m)


def _patch_perm():
    """Row permutation putting resized pixels in (token, ph, pw) order."""
    perm = []
    for tr in range(GRID):
        for tc in range(GRID):
            for ph in range(PATCH):
                for pw in range(PATCH):
                    perm.append((tr * PATCH + ph) * MODEL_IN + (tc * PATCH + pw))
    return np.asarray(perm, np.int64)


def _input_resize_matrix():
    r = _bilinear_2d(MODEL_IN, IMG_SIZE)          # (256, 1024)
    return r[_patch_perm(), :]                    # patch-major row order


# ----------------------------- Pallas kernels --------------------------------
def _ln(x, g, b, eps=LN_EPS):
    """LayerNorm over the last axis; x (M, D) f32, g/b (1, D) f32."""
    mu = jnp.mean(x, axis=-1, keepdims=True)
    xc = x - mu
    var = jnp.mean(xc * xc, axis=-1, keepdims=True)
    return xc * lax.rsqrt(var + eps) * g + b


# ---- input resize (one constant matmul per image, rows patch-major) ----------
def _img_resize_kernel(x_ref, m_ref, o_ref):
    o_ref[0] = jnp.dot(m_ref[...], x_ref[0].astype(jnp.bfloat16),
                       preferred_element_type=jnp.float32).astype(o_ref.dtype)


def resize_image_to_patch_rows(x_flat, r_perm):
    """x_flat: (B, IMG*IMG, 3) f32 -> (B, MODEL_IN*MODEL_IN, 3) in patch order."""
    B, n_in, c = x_flat.shape
    n_out = r_perm.shape[0]
    return pl.pallas_call(
        _img_resize_kernel,
        out_shape=jax.ShapeDtypeStruct((B, n_out, c), jnp.float32),
        grid=(B,),
        in_specs=[pl.BlockSpec((1, n_in, c), lambda b: (b, 0, 0)),
                  pl.BlockSpec((n_out, n_in), lambda b: (0, 0))],
        out_specs=pl.BlockSpec((1, n_out, c), lambda b: (b, 0, 0)),
        compiler_params=_cp(("parallel",)),
    )(x_flat, r_perm)


# ---- patch embedding + CLS + positional embedding (pre-padded to S_PAD) ------
def _embed_kernel(p_ref, pw_ref, pre_ref, o_ref):
    tok = jnp.dot(p_ref[0].astype(jnp.bfloat16), pw_ref[...],
                  preferred_element_type=jnp.float32)
    o_ref[0] = (tok + pre_ref[...]).astype(o_ref.dtype)


def embed_tokens(patches_padded, patch_w, prefix):
    B = patches_padded.shape[0]
    return pl.pallas_call(
        _embed_kernel,
        out_shape=jax.ShapeDtypeStruct((B, S_PAD, HIDDEN), jnp.float32),
        grid=(B,),
        in_specs=[pl.BlockSpec((1, S_PAD, PPC), lambda b: (b, 0, 0)),
                  pl.BlockSpec((PPC, HIDDEN), lambda b: (0, 0)),
                  pl.BlockSpec((S_PAD, HIDDEN), lambda b: (0, 0))],
        out_specs=pl.BlockSpec((1, S_PAD, HIDDEN), lambda b: (b, 0, 0)),
        compiler_params=_cp(("parallel",)),
    )(patches_padded, patch_w, prefix)


# ---- 12 fused transformer blocks in one pallas_call ---------------------------
def _blocks_kernel(x_ref, ln1g, ln1b, wqkv, bqkv, wo, bo,
                   ln2g, ln2b, w1, b1, w2, b2, lng, lnb,
                   sel_ref, xbuf):
    l = pl.program_id(1)

    @pl.when(l == 0)
    def _():
        xbuf[...] = x_ref[0]                              # load tokens once per b

    x = xbuf[...]                                         # (S_PAD, D) f32, resident

    # key-padding bias: padded key columns never contribute to any softmax row.
    kid = lax.broadcasted_iota(jnp.int32, (1, S_PAD), 1)
    key_bias = jnp.where(kid < S_REAL, 0.0, NEG_INF).astype(jnp.float32)

    # ---- LN1 + fused QKV projection (one wide matmul; scale folded into q) ----
    h = _ln(x, ln1g[0], ln1b[0])
    qkv = jnp.dot(h.astype(jnp.bfloat16), wqkv[0],
                  preferred_element_type=jnp.float32) + bqkv[0]      # (S, 3D)

    head_outs = []
    for hd in range(HEADS):
        q = qkv[:, hd * HEAD_DIM:(hd + 1) * HEAD_DIM]
        k = qkv[:, HIDDEN + hd * HEAD_DIM:HIDDEN + (hd + 1) * HEAD_DIM]
        v = qkv[:, 2 * HIDDEN + hd * HEAD_DIM:2 * HIDDEN + (hd + 1) * HEAD_DIM]
        # scores without an explicit transpose: contract the head dims.
        s = lax.dot_general(q.astype(jnp.bfloat16), k.astype(jnp.bfloat16),
                            (((1,), (1,)), ((), ())),
                            preferred_element_type=jnp.float32)      # (S, S)
        s = s + key_bias
        s = s - jnp.max(s, axis=-1, keepdims=True)
        p = jnp.exp(s)
        p = p * pl.reciprocal(jnp.sum(p, axis=-1, keepdims=True), approx=True)
        head_outs.append(jnp.dot(p.astype(jnp.bfloat16), v.astype(jnp.bfloat16),
                                 preferred_element_type=jnp.float32))  # (S, Dh)
    o = jnp.concatenate(head_outs, axis=-1)                            # (S, D)
    attn = jnp.dot(o.astype(jnp.bfloat16), wo[0],
                   preferred_element_type=jnp.float32) + bo[0]
    x = x + attn                                           # residual fused in VMEM

    # ---- LN2 + MLP ----
    h2 = _ln(x, ln2g[0], ln2b[0])
    h2 = jnp.dot(h2.astype(jnp.bfloat16), w1[0],
                 preferred_element_type=jnp.float32) + b1[0]
    h2 = jax.nn.gelu(h2, approximate=True)   # TODO(synk): torch GELU is exact erf
    h2 = jnp.dot(h2.astype(jnp.bfloat16), w2[0],
                 preferred_element_type=jnp.float32) + b2[0]
    x = x + h2
    xbuf[...] = x                                          # carry to block l+1

    # DINO get_intermediate_layers(norm=True): final LN only for selected blocks.
    selected = (l == OUT_INDICES[0])
    for idx in OUT_INDICES[1:]:
        selected = jnp.logical_or(selected, l == idx)

    @pl.when(selected)
    def _():
        sel_ref[0, 0] = _ln(x, lng[...], lnb[...]).astype(sel_ref.dtype)


def _sel_slot(l):
    slot = 0
    for idx in OUT_INDICES[1:]:
        slot = slot + (l >= idx).astype(jnp.int32)
    return slot


def transformer_blocks(tokens, blk, ln_g, ln_b):
    """tokens: (B, S_PAD, D) f32 -> (len(OUT_INDICES), B, S_PAD, D) f32 (normed)."""
    B = tokens.shape[0]
    D = HIDDEN
    nsel = len(OUT_INDICES)

    tok_map = lambda b, l: (b, 0, 0)          # resident across depth
    dep3 = lambda b, l: (l, 0, 0)             # per-block weight slab
    const2 = lambda b, l: (0, 0)              # final LN params
    sel_map = lambda b, l: (_sel_slot(l), b, 0, 0)

    in_specs = [
        pl.BlockSpec((1, S_PAD, D), tok_map),
        pl.BlockSpec((1, 1, D), dep3),        # ln1_g
        pl.BlockSpec((1, 1, D), dep3),        # ln1_b
        pl.BlockSpec((1, D, 3 * D), dep3),    # wqkv
        pl.BlockSpec((1, 1, 3 * D), dep3),    # bqkv
        pl.BlockSpec((1, D, D), dep3),        # wo
        pl.BlockSpec((1, 1, D), dep3),        # bo
        pl.BlockSpec((1, 1, D), dep3),        # ln2_g
        pl.BlockSpec((1, 1, D), dep3),        # ln2_b
        pl.BlockSpec((1, D, MLP), dep3),      # fc1_w
        pl.BlockSpec((1, 1, MLP), dep3),      # fc1_b
        pl.BlockSpec((1, MLP, D), dep3),      # fc2_w
        pl.BlockSpec((1, 1, D), dep3),        # fc2_b
        pl.BlockSpec((1, D), const2),         # final ln_g
        pl.BlockSpec((1, D), const2),         # final ln_b
    ]
    return pl.pallas_call(
        _blocks_kernel,
        out_shape=jax.ShapeDtypeStruct((nsel, B, S_PAD, D), jnp.float32),
        grid=(B, DEPTH),
        in_specs=in_specs,
        out_specs=pl.BlockSpec((1, 1, S_PAD, D), sel_map),
        scratch_shapes=[pltpu.VMEM((S_PAD, D), jnp.float32)],
        compiler_params=_cp(("parallel", "arbitrary")),
    )(tokens,
      blk["ln1_g"], blk["ln1_b"], blk["wqkv"], blk["bqkv"],
      blk["wo"], blk["bo"], blk["ln2_g"], blk["ln2_b"],
      blk["fc1_w"], blk["fc1_b"], blk["fc2_w"], blk["fc2_b"],
      ln_g, ln_b)


# ---- fused (bilinear resize -> conv1x1 -> ReLU -> conv1x1), channel-first ----
def _scale_adapter_kernel(x_ref, mt_ref, w1t_ref, w2t_ref, o_ref):
    x = x_ref[0, 0][1:1 + GG, :].astype(jnp.bfloat16)        # drop CLS + pad rows
    # channel-first resize: (M @ x)^T == x^T @ M^T, expressed by contracting dim 0.
    r = lax.dot_general(x, mt_ref[...], (((0,), (0,)), ((), ())),
                        preferred_element_type=jnp.float32)   # (D, N) lane-dense
    h = jnp.dot(w1t_ref[...], r.astype(jnp.bfloat16),
                preferred_element_type=jnp.float32)           # (D/4, N)
    h = jnp.maximum(h, 0.0)
    y = jnp.dot(w2t_ref[...], h.astype(jnp.bfloat16),
                preferred_element_type=jnp.float32)           # (D, N)
    o_ref[0] = y.astype(o_ref.dtype)


def scale_and_adapt(sel, slot, size, w1t, w2t):
    """sel: (nsel, B, S_PAD, D). Returns (B, D, size*size) f32 (NCHW-flat)."""
    B = sel.shape[1]
    n = size * size
    mt = jnp.asarray(_bilinear_2d(size, GRID).T, dtype=jnp.bfloat16)   # (GG, N)
    return pl.pallas_call(
        _scale_adapter_kernel,
        out_shape=jax.ShapeDtypeStruct((B, HIDDEN, n), jnp.float32),
        grid=(B,),
        in_specs=[pl.BlockSpec((1, 1, S_PAD, HIDDEN),
                               lambda b, _s=slot: (_s, b, 0, 0)),
                  pl.BlockSpec((GG, n), lambda b: (0, 0)),
                  pl.BlockSpec((HIDDEN // 4, HIDDEN), lambda b: (0, 0)),
                  pl.BlockSpec((HIDDEN, HIDDEN // 4), lambda b: (0, 0))],
        out_specs=pl.BlockSpec((1, HIDDEN, n), lambda b: (b, 0, 0)),
        compiler_params=_cp(("parallel",)),
    )(sel, mt, w1t, w2t)


# ----------------------------- parameters ------------------------------------
def init_params(key):
    keys = iter(jax.random.split(key, 32))

    def nrm(shape, scale=0.02, dtype=jnp.bfloat16):
        return (scale * jax.random.normal(next(keys), shape, jnp.float32)).astype(dtype)

    d, m = HIDDEN, MLP
    wqkv = 0.02 * jax.random.normal(next(keys), (DEPTH, d, 3 * d), jnp.float32)
    # fold the attention scale (Dh^-0.5) into the q slab -> no in-kernel scaling.
    wqkv = wqkv.at[:, :, :d].multiply(HEAD_DIM ** -0.5)

    params = {
        "patch_w": nrm((PPC, d)),                      # flatten order (ph, pw, c)
        "patch_b": jnp.zeros((1, d), jnp.float32),
        "cls": nrm((1, d), dtype=jnp.float32),
        "pos": nrm((S_REAL, d), dtype=jnp.float32),
        "ln_g": jnp.ones((1, d), jnp.float32),
        "ln_b": jnp.zeros((1, d), jnp.float32),
        "blocks": {
            "ln1_g": jnp.ones((DEPTH, 1, d), jnp.float32),
            "ln1_b": jnp.zeros((DEPTH, 1, d), jnp.float32),
            "wqkv": wqkv.astype(jnp.bfloat16),
            "bqkv": jnp.zeros((DEPTH, 1, 3 * d), jnp.float32),  # q part pre-scaled too
            "wo": nrm((DEPTH, d, d)),
            "bo": jnp.zeros((DEPTH, 1, d), jnp.float32),
            "ln2_g": jnp.ones((DEPTH, 1, d), jnp.float32),
            "ln2_b": jnp.zeros((DEPTH, 1, d), jnp.float32),
            "fc1_w": nrm((DEPTH, d, m)),
            "fc1_b": jnp.zeros((DEPTH, 1, m), jnp.float32),
            "fc2_w": nrm((DEPTH, m, d)),
            "fc2_b": jnp.zeros((DEPTH, 1, d), jnp.float32),
        },
        # conv1x1 weights in torch Conv2d layout (out, in) == channel-first matmul.
        "adapters": [{"w1t": nrm((d // 4, d)), "w2t": nrm((d, d // 4))}
                     for _ in range(len(SIZES))],
    }
    return params


# ----------------------------- forward ---------------------------------------
def forward(params, inputs):
    """inputs: (B, 3, IMG_SIZE, IMG_SIZE) NCHW float32 -> list of 4 NCHW maps."""
    B = inputs.shape[0]

    # un-normalize + ImageNet normalize (elementwise glue), -> flat NHWC pixels.
    mean = jnp.array([0.485, 0.456, 0.406], jnp.float32).reshape(1, 3, 1, 1)
    std = jnp.array([0.229, 0.224, 0.225], jnp.float32).reshape(1, 3, 1, 1)
    x = inputs * 0.5 + 0.5
    x = (x - mean) / std
    x = jnp.transpose(x, (0, 2, 3, 1)).reshape(B, IMG_SIZE * IMG_SIZE, 3)

    # resize to backbone resolution, rows already in (token, ph, pw) order.
    r_perm = jnp.asarray(_input_resize_matrix(), dtype=jnp.bfloat16)
    xr = resize_image_to_patch_rows(x, r_perm)                 # (B, 256, 3)

    # patchify is now just a reshape; pad rows to S_PAD (CLS slot + tail zeros).
    patches = xr.reshape(B, GG, PPC)                           # (B, 16, 48)
    patches = jnp.pad(patches, ((0, 0), (1, S_PAD - 1 - GG), (0, 0)))

    # prefix carries cls+pos (row 0), pos+patch_bias (rows 1..16), zeros (pad).
    prefix = jnp.concatenate(
        [params["cls"] + params["pos"][0:1],
         params["pos"][1:] + params["patch_b"],
         jnp.zeros((S_PAD - S_REAL, HIDDEN), jnp.float32)], axis=0)

    tokens = embed_tokens(patches, params["patch_w"], prefix)  # (B, S_PAD, D)

    # all 12 blocks + selective final LayerNorm in a single pallas_call.
    sel = transformer_blocks(tokens, params["blocks"],
                             params["ln_g"], params["ln_b"])   # (4, B, S_PAD, D)

    # multi-scale resize + Adapter, fused per scale; list reversed as in module.
    order = list(range(len(OUT_INDICES)))[::-1]                # [3, 2, 1, 0]
    mapped = []
    for i, j in enumerate(order):
        ad = params["adapters"][i]
        y = scale_and_adapt(sel, j, SIZES[j], ad["w1t"], ad["w2t"])
        mapped.append(y.reshape(B, HIDDEN, SIZES[j], SIZES[j]))   # NCHW
    return mapped


# ----------------------------- main -------------------------------------------
if __name__ == "__main__":
    root = jax.random.PRNGKey(0)
    pkey, xkey = jax.random.split(root)
    params = init_params(pkey)
    x = jax.random.normal(xkey, (2, 3, IMG_SIZE, IMG_SIZE), jnp.float32)

    fwd = jax.jit(forward)
    outs = fwd(params, x)
    outs = [jax.block_until_ready(o) for o in outs]

    expected = [(2, HIDDEN, 4, 4), (2, HIDDEN, 8, 8),
                (2, HIDDEN, 16, 16), (2, HIDDEN, 32, 32)]
    assert [tuple(o.shape) for o in outs] == expected, \
        f"unexpected shapes: {[o.shape for o in outs]}"
    assert all(o.dtype == jnp.float32 for o in outs)
    assert all(bool(jnp.all(jnp.isfinite(o))) for o in outs)
    print("KERNEL_OK")
</pallas_src>

<mosaic_0001>
module attributes {stable_mosaic.version = 11 : i64} {
  func.func @_img_resize_kernel(%arg0: i32, %arg1: memref<1x1024x3xf32, #tpu.memory_space<vmem>>, %arg2: memref<256x1024xbf16, #tpu.memory_space<vmem>>, %arg3: memref<1x256x3xf32, #tpu.memory_space<vmem>>) attributes {dimension_semantics = [#tpu.dimension_semantics<parallel>], iteration_bounds = array<i64: 2>, scalar_prefetch = 0 : i64, scratch_operands = 0 : i64, tpu.core_type = #tpu.core_type<tc>, window_params = [{transform_indices = @transform_0, window_bounds = array<i64: 1, 1024, 3>}, {pipeline_mode = #tpu.pipeline_mode<synchronous>, transform_indices = @transform_1, window_bounds = array<i64: 256, 1024>}, {transform_indices = @transform_2, window_bounds = array<i64: 1, 256, 3>}]} {
    %c0 = arith.constant 0 : index
    %c0_0 = arith.constant 0 : index
    %0 = vector.load %arg2[%c0, %c0_0] : memref<256x1024xbf16, #tpu.memory_space<vmem>>, vector<256x1024xbf16>
    %c0_1 = arith.constant 0 : index
    %c0_2 = arith.constant 0 : index
    %c0_3 = arith.constant 0 : index
    %1 = vector.load %arg1[%c0_1, %c0_2, %c0_3] : memref<1x1024x3xf32, #tpu.memory_space<vmem>>, vector<1x1024x3xf32>
    %2 = vector.shape_cast %1 : vector<1x1024x3xf32> to vector<1024x3xf32>
    %3 = arith.truncf %2 : vector<1024x3xf32> to vector<1024x3xbf16>
    %cst = arith.constant dense<0.000000e+00> : vector<256x3xf32>
    %4 = tpu.matmul %0, %3, %cst {dimension_numbers = #tpu.dot_dimension_numbers<[1], [0], [0], [1], [0, 0, 1, 1], [], []>} : vector<256x1024xbf16>, vector<1024x3xbf16>, vector<256x3xf32> -> vector<256x3xf32>
    %c0_4 = arith.constant 0 : index
    %c0_5 = arith.constant 0 : index
    %c0_6 = arith.constant 0 : index
    %5 = vector.load %arg3[%c0_4, %c0_5, %c0_6] : memref<1x256x3xf32, #tpu.memory_space<vmem>>, vector<1x256x3xf32>
    %6 = vector.shape_cast %5 : vector<1x256x3xf32> to vector<256x3xf32>
    %7 = vector.shape_cast %4 : vector<256x3xf32> to vector<1x256x3xf32>
    tpu.vector_store %arg3[%c0_4, %c0_5, %c0_6], %7 {strides = array<i32>} : memref<1x256x3xf32, #tpu.memory_space<vmem>>, vector<1x256x3xf32>,
    return
  }
  func.func @transform_0(%arg0: i32) -> (i32, i32, i32) {
    %c0_i32 = arith.constant 0 : i32
    %c0_i32_0 = arith.constant 0 : i32
    %c0_i32_1 = arith.constant 0 : i32
    return %arg0, %c0_i32, %c0_i32_0 : i32, i32, i32
  }
  func.func @transform_1(%arg0: i32) -> (i32, i32) {
    %c0_i32 = arith.constant 0 : i32
    %c0_i32_0 = arith.constant 0 : i32
    %c0_i32_1 = arith.constant 0 : i32
    return %c0_i32, %c0_i32_0 : i32, i32
  }
  func.func @transform_2(%arg0: i32) -> (i32, i32, i32) {
    %c0_i32 = arith.constant 0 : i32
    %c0_i32_0 = arith.constant 0 : i32
    %c0_i32_1 = arith.constant 0 : i32
    return %arg0, %c0_i32, %c0_i32_0 : i32, i32, i32
  }
}

module attributes {stable_mosaic.version = 11 : i64} {
  func.func @_blocks_kernel(%arg0: i32, %arg1: i32, %arg2: memref<1x24x32xf32, #tpu.memory_space<vmem>>, %arg3: memref<1x1x32xf32, #tpu.memory_space<vmem>>, %arg4: memref<1x1x32xf32, #tpu.memory_space<vmem>>, %arg5: memref<1x32x96xbf16, #tpu.memory_space<vmem>>, %arg6: memref<1x1x96xf32, #tpu.memory_space<vmem>>, %arg7: memref<1x32x32xbf16, #tpu.memory_space<vmem>>, %arg8: memref<1x1x32xf32, #tpu.memory_space<vmem>>, %arg9: memref<1x1x32xf32, #tpu.memory_space<vmem>>, %arg10: memref<1x1x32xf32, #tpu.memory_space<vmem>>, %arg11: memref<1x32x128xbf16, #tpu.memory_space<vmem>>, %arg12: memref<1x1x128xf32, #tpu.memory_space<vmem>>, %arg13: memref<1x128x32xbf16, #tpu.memory_space<vmem>>, %arg14: memref<1x1x32xf32, #tpu.memory_space<vmem>>, %arg15: memref<1x32xf32, #tpu.memory_space<vmem>>, %arg16: memref<1x32xf32, #tpu.memory_space<vmem>>, %arg17: memref<1x1x24x32xf32, #tpu.memory_space<vmem>>, %arg18: memref<24x32xf32, #tpu.memory_space<vmem>>) attributes {dimension_semantics = [#tpu.dimension_semantics<parallel>, #tpu.dimension_semantics<arbitrary>], iteration_bounds = array<i64: 2, 12>, scalar_prefetch = 0 : i64, scratch_operands = 1 : i64, tpu.core_type = #tpu.core_type<tc>, window_params = [{transform_indices = @transform_0, window_bounds = array<i64: 1, 24, 32>}, {transform_indices = @transform_1, window_bounds = array<i64: 1, 1, 32>}, {transform_indices = @transform_2, window_bounds = array<i64: 1, 1, 32>}, {transform_indices = @transform_3, window_bounds = array<i64: 1, 32, 96>}, {transform_indices = @transform_4, window_bounds = array<i64: 1, 1, 96>}, {transform_indices = @transform_5, window_bounds = array<i64: 1, 32, 32>}, {transform_indices = @transform_6, window_bounds = array<i64: 1, 1, 32>}, {transform_indices = @transform_7, window_bounds = array<i64: 1, 1, 32>}, {transform_indices = @transform_8, window_bounds = array<i64: 1, 1, 32>}, {transform_indices = @transform_9, window_bounds = array<i64: 1, 32, 128>}, {transform_indices = @transform_10, window_bounds = array<i64: 1, 1, 128>}, {transform_indices = @transform_11, window_bounds = array<i64: 1, 128, 32>}, {transform_indices = @transform_12, window_bounds = array<i64: 1, 1, 32>}, {pipeline_mode = #tpu.pipeline_mode<synchronous>, transform_indices = @transform_13, window_bounds = array<i64: 1, 32>}, {pipeline_mode = #tpu.pipeline_mode<synchronous>, transform_indices = @transform_14, window_bounds = array<i64: 1, 32>}, {transform_indices = @transform_15, window_bounds = array<i64: 1, 1, 24, 32>}]} {
    %c0_i32 = arith.constant 0 : i32
    %0 = arith.cmpi eq, %arg1, %c0_i32 : i32
    %1 = arith.extui %0 : i1 to i32
    %c0_i32_0 = arith.constant 0 : i32
    %2 = arith.cmpi ne, %1, %c0_i32_0 : i32
    scf.if %2 {
      %c0_68 = arith.constant 0 : index
      %c0_69 = arith.constant 0 : index
      %c0_70 = arith.constant 0 : index
      %158 = vector.load %arg2[%c0_68, %c0_69, %c0_70] : memref<1x24x32xf32, #tpu.memory_space<vmem>>, vector<1x24x32xf32>
      %159 = vector.shape_cast %158 : vector<1x24x32xf32> to vector<24x32xf32>
      %c0_71 = arith.constant 0 : index
      %c0_72 = arith.constant 0 : index
      %160 = vector.load %arg18[%c0_71, %c0_72] : memref<24x32xf32, #tpu.memory_space<vmem>>, vector<24x32xf32>
      tpu.vector_store %arg18[%c0_71, %c0_72], %159 {strides = array<i32>} : memref<24x32xf32, #tpu.memory_space<vmem>>, vector<24x32xf32>,
    } else {
    }
    %c0 = arith.constant 0 : index
    %c0_1 = arith.constant 0 : index
    %3 = vector.load %arg18[%c0, %c0_1] : memref<24x32xf32, #tpu.memory_space<vmem>>, vector<24x32xf32>
    %4 = tpu.iota {dimensions = array<i32: 1>} : vector<1x24xi32>
    %c17_i32 = arith.constant 17 : i32
    %5 = vector.broadcast %c17_i32 : i32 to vector<1x24xi32>
    %6 = arith.cmpi slt, %4, %5 : vector<1x24xi32>
    %cst = arith.constant 0.000000e+00 : f32
    %cst_2 = arith.constant -1.000000e+09 : f32
    %7 = vector.broadcast %cst : f32 to vector<1x24xf32>
    %8 = vector.broadcast %cst_2 : f32 to vector<1x24xf32>
    %9 = arith.select %6, %7, %8 : vector<1x24xi1>, vector<1x24xf32>
    %c0_3 = arith.constant 0 : index
    %c0_4 = arith.constant 0 : index
    %c0_5 = arith.constant 0 : index
    %10 = vector.load %arg3[%c0_3, %c0_4, %c0_5] : memref<1x1x32xf32, #tpu.memory_space<vmem>>, vector<1x1x32xf32>
    %11 = vector.shape_cast %10 : vector<1x1x32xf32> to vector<1x32xf32>
    %c0_6 = arith.constant 0 : index
    %c0_7 = arith.constant 0 : index
    %c0_8 = arith.constant 0 : index
    %12 = vector.load %arg4[%c0_6, %c0_7, %c0_8] : memref<1x1x32xf32, #tpu.memory_space<vmem>>, vector<1x1x32xf32>
    %13 = vector.shape_cast %12 : vector<1x1x32xf32> to vector<1x32xf32>
    %cst_9 = arith.constant dense<0.000000e+00> : vector<24xf32>
    %14 = vector.multi_reduction <add>, %3, %cst_9 [1] : vector<24x32xf32> to vector<24xf32>
    %15 = vector.shape_cast %14 : vector<24xf32> to vector<24x1xf32>
    %cst_10 = arith.constant 3.200000e+01 : f32
    %16 = vector.broadcast %cst_10 : f32 to vector<24x1xf32>
    %17 = arith.divf %15, %16 : vector<24x1xf32>
    %18 = vector.broadcast %17 : vector<24x1xf32> to vector<24x32xf32>
    %19 = arith.subf %3, %18 : vector<24x32xf32>
    %20 = arith.mulf %19, %19 : vector<24x32xf32>
    %cst_11 = arith.constant dense<0.000000e+00> : vector<24xf32>
    %21 = vector.multi_reduction <add>, %20, %cst_11 [1] : vector<24x32xf32> to vector<24xf32>
    %22 = vector.shape_cast %21 : vector<24xf32> to vector<24x1xf32>
    %cst_12 = arith.constant 3.200000e+01 : f32
    %23 = vector.broadcast %cst_12 : f32 to vector<24x1xf32>
    %24 = arith.divf %22, %23 : vector<24x1xf32>
    %cst_13 = arith.constant 9.99999997E-7 : f32
    %25 = vector.broadcast %cst_13 : f32 to vector<24x1xf32>
    %26 = arith.addf %24, %25 : vector<24x1xf32>
    %27 = math.rsqrt %26 : vector<24x1xf32>
    %28 = vector.broadcast %27 : vector<24x1xf32> to vector<24x32xf32>
    %29 = arith.mulf %19, %28 : vector<24x32xf32>
    %30 = vector.broadcast %11 : vector<1x32xf32> to vector<24x32xf32>
    %31 = arith.mulf %29, %30 : vector<24x32xf32>
    %32 = vector.broadcast %13 : vector<1x32xf32> to vector<24x32xf32>
    %33 = arith.addf %31, %32 : vector<24x32xf32>
    %34 = arith.truncf %33 : vector<24x32xf32> to vector<24x32xbf16>
    %c0_14 = arith.constant 0 : index
    %c0_15 = arith.constant 0 : index
    %c0_16 = arith.constant 0 : index
    %35 = vector.load %arg5[%c0_14, %c0_15, %c0_16] : memref<1x32x96xbf16, #tpu.memory_space<vmem>>, vector<1x32x96xbf16>
    %36 = vector.shape_cast %35 : vector<1x32x96xbf16> to vector<32x96xbf16>
    %cst_17 = arith.constant dense<0.000000e+00> : vector<24x96xf32>
    %37 = tpu.matmul %34, %36, %cst_17 {dimension_numbers = #tpu.dot_dimension_numbers<[1], [0], [0], [1], [0, 0, 1, 1], [], []>} : vector<24x32xbf16>, vector<32x96xbf16>, vector<24x96xf32> -> vector<24x96xf32>
    %c0_18 = arith.constant 0 : index
    %c0_19 = arith.constant 0 : index
    %c0_20 = arith.constant 0 : index
    %38 = vector.load %arg6[%c0_18, %c0_19, %c0_20] : memref<1x1x96xf32, #tpu.memory_space<vmem>>, vector<1x1x96xf32>
    %39 = vector.shape_cast %38 : vector<1x1x96xf32> to vector<1x96xf32>
    %40 = vector.broadcast %39 : vector<1x96xf32> to vector<24x96xf32>
    %41 = arith.addf %37, %40 : vector<24x96xf32>
    %42 = vector.extract_strided_slice %41 {offsets = [0, 0], sizes = [24, 16], strides = [1, 1]} : vector<24x96xf32> to vector<24x16xf32>
    %43 = vector.extract_strided_slice %41 {offsets = [0, 32], sizes = [24, 16], strides = [1, 1]} : vector<24x96xf32> to vector<24x16xf32>
    %44 = vector.extract_strided_slice %41 {offsets = [0, 64], sizes = [24, 16], strides = [1, 1]} : vector<24x96xf32> to vector<24x16xf32>
    %45 = arith.truncf %42 : vector<24x16xf32> to vector<24x16xbf16>
    %46 = arith.truncf %43 : vector<24x16xf32> to vector<24x16xbf16>
    %cst_21 = arith.constant dense<0.000000e+00> : vector<24x24xf32>
    %47 = tpu.matmul %45, %46, %cst_21 {dimension_numbers = #tpu.dot_dimension_numbers<[1], [1], [0], [0], [0, 0, 1, 0], [], []>} : vector<24x16xbf16>, vector<24x16xbf16>, vector<24x24xf32> -> vector<24x24xf32>
    %48 = vector.broadcast %9 : vector<1x24xf32> to vector<24x24xf32>
    %49 = arith.addf %47, %48 : vector<24x24xf32>
    %cst_22 = arith.constant dense<0xFF800000> : vector<24xf32>
    %50 = vector.multi_reduction <maximumf>, %49, %cst_22 [1] : vector<24x24xf32> to vector<24xf32>
    %51 = vector.shape_cast %50 : vector<24xf32> to vector<24x1xf32>
    %52 = vector.broadcast %51 : vector<24x1xf32> to vector<24x24xf32>
    %53 = arith.subf %49, %52 : vector<24x24xf32>
    %54 = math.exp %53 : vector<24x24xf32>
    %cst_23 = arith.constant dense<0.000000e+00> : vector<24xf32>
    %55 = vector.multi_reduction <add>, %54, %cst_23 [1] : vector<24x24xf32> to vector<24xf32>
    %56 = vector.shape_cast %55 : vector<24xf32> to vector<24x1xf32>
    %57 = tpu.reciprocal %56 {approx = true} : vector<24x1xf32> -> vector<24x1xf32>
    %58 = vector.broadcast %57 : vector<24x1xf32> to vector<24x24xf32>
    %59 = arith.mulf %54, %58 : vector<24x24xf32>
    %60 = arith.truncf %59 : vector<24x24xf32> to vector<24x24xbf16>
    %61 = arith.truncf %44 : vector<24x16xf32> to vector<24x16xbf16>
    %cst_24 = arith.constant dense<0.000000e+00> : vector<24x16xf32>
    %62 = tpu.matmul %60, %61, %cst_24 {dimension_numbers = #tpu.dot_dimension_numbers<[1], [0], [0], [1], [0, 0, 1, 1], [], []>} : vector<24x24xbf16>, vector<24x16xbf16>, vector<24x16xf32> -> vector<24x16xf32>
    %63 = vector.extract_strided_slice %41 {offsets = [0, 16], sizes = [24, 16], strides = [1, 1]} : vector<24x96xf32> to vector<24x16xf32>
    %64 = vector.extract_strided_slice %41 {offsets = [0, 48], sizes = [24, 16], strides = [1, 1]} : vector<24x96xf32> to vector<24x16xf32>
    %65 = vector.extract_strided_slice %41 {offsets = [0, 80], sizes = [24, 16], strides = [1, 1]} : vector<24x96xf32> to vector<24x16xf32>
    %66 = arith.truncf %63 : vector<24x16xf32> to vector<24x16xbf16>
    %67 = arith.truncf %64 : vector<24x16xf32> to vector<24x16xbf16>
    %cst_25 = arith.constant dense<0.000000e+00> : vector<24x24xf32>
    %68 = tpu.matmul %66, %67, %cst_25 {dimension_numbers = #tpu.dot_dimension_numbers<[1], [1], [0], [0], [0, 0, 1, 0], [], []>} : vector<24x16xbf16>, vector<24x16xbf16>, vector<24x24xf32> -> vector<24x24xf32>
    %69 = vector.broadcast %9 : vector<1x24xf32> to vector<24x24xf32>
    %70 = arith.addf %68, %69 : vector<24x24xf32>
    %cst_26 = arith.constant dense<0xFF800000> : vector<24xf32>
    %71 = vector.multi_reduction <maximumf>, %70, %cst_26 [1] : vector<24x24xf32> to vector<24xf32>
    %72 = vector.shape_cast %71 : vector<24xf32> to vector<24x1xf32>
    %73 = vector.broadcast %72 : vector<24x1xf32> to vector<24x24xf32>
    %74 = arith.subf %70, %73 : vector<24x24xf32>
    %75 = math.exp %74 : vector<24x24xf32>
    %cst_27 = arith.constant dense<0.000000e+00> : vector<24xf32>
    %76 = vector.multi_reduction <add>, %75, %cst_27 [1] : vector<24x24xf32> to vector<24xf32>
    %77 = vector.shape_cast %76 : vector<24xf32> to vector<24x1xf32>
    %78 = tpu.reciprocal %77 {approx = true} : vector<24x1xf32> -> vector<24x1xf32>
    %79 = vector.broadcast %78 : vector<24x1xf32> to vector<24x24xf32>
    %80 = arith.mulf %75, %79 : vector<24x24xf32>
    %81 = arith.truncf %80 : vector<24x24xf32> to vector<24x24xbf16>
    %82 = arith.truncf %65 : vector<24x16xf32> to vector<24x16xbf16>
    %cst_28 = arith.constant dense<0.000000e+00> : vector<24x16xf32>
    %83 = tpu.matmul %81, %82, %cst_28 {dimension_numbers = #tpu.dot_dimension_numbers<[1], [0], [0], [1], [0, 0, 1, 1], [], []>} : vector<24x24xbf16>, vector<24x16xbf16>, vector<24x16xf32> -> vector<24x16xf32>
    %84 = tpu.concatenate %62, %83 in 1 : vector<24x16xf32>, vector<24x16xf32> -> vector<24x32xf32>
    %85 = arith.truncf %84 : vector<24x32xf32> to vector<24x32xbf16>
    %c0_29 = arith.constant 0 : index
    %c0_30 = arith.constant 0 : index
    %c0_31 = arith.constant 0 : index
    %86 = vector.load %arg7[%c0_29, %c0_30, %c0_31] : memref<1x32x32xbf16, #tpu.memory_space<vmem>>, vector<1x32x32xbf16>
    %87 = vector.shape_cast %86 : vector<1x32x32xbf16> to vector<32x32xbf16>
    %cst_32 = arith.constant dense<0.000000e+00> : vector<24x32xf32>
    %88 = tpu.matmul %85, %87, %cst_32 {dimension_numbers = #tpu.dot_dimension_numbers<[1], [0], [0], [1], [0, 0, 1, 1], [], []>} : vector<24x32xbf16>, vector<32x32xbf16>, vector<24x32xf32> -> vector<24x32xf32>
    %c0_33 = arith.constant 0 : index
    %c0_34 = arith.constant 0 : index
    %c0_35 = arith.constant 0 : index
    %89 = vector.load %arg8[%c0_33, %c0_34, %c0_35] : memref<1x1x32xf32, #tpu.memory_space<vmem>>, vector<1x1x32xf32>
    %90 = vector.shape_cast %89 : vector<1x1x32xf32> to vector<1x32xf32>
    %91 = vector.broadcast %90 : vector<1x32xf32> to vector<24x32xf32>
    %92 = arith.addf %88, %91 : vector<24x32xf32>
    %93 = arith.addf %3, %92 : vector<24x32xf32>
    %c0_36 = arith.constant 0 : index
    %c0_37 = arith.constant 0 : index
    %c0_38 = arith.constant 0 : index
    %94 = vector.load %arg9[%c0_36, %c0_37, %c0_38] : memref<1x1x32xf32, #tpu.memory_space<vmem>>, vector<1x1x32xf32>
    %95 = vector.shape_cast %94 : vector<1x1x32xf32> to vector<1x32xf32>
    %c0_39 = arith.constant 0 : index
    %c0_40 = arith.constant 0 : index
    %c0_41 = arith.constant 0 : index
    %96 = vector.load %arg10[%c0_39, %c0_40, %c0_41] : memref<1x1x32xf32, #tpu.memory_space<vmem>>, vector<1x1x32xf32>
    %97 = vector.shape_cast %96 : vector<1x1x32xf32> to vector<1x32xf32>
    %cst_42 = arith.constant dense<0.000000e+00> : vector<24xf32>
    %98 = vector.multi_reduction <add>, %93, %cst_42 [1] : vector<24x32xf32> to vector<24xf32>
    %99 = vector.shape_cast %98 : vector<24xf32> to vector<24x1xf32>
    %cst_43 = arith.constant 3.200000e+01 : f32
    %100 = vector.broadcast %cst_43 : f32 to vector<24x1xf32>
    %101 = arith.divf %99, %100 : vector<24x1xf32>
    %102 = vector.broadcast %101 : vector<24x1xf32> to vector<24x32xf32>
    %103 = arith.subf %93, %102 : vector<24x32xf32>
    %104 = arith.mulf %103, %103 : vector<24x32xf32>
    %cst_44 = arith.constant dense<0.000000e+00> : vector<24xf32>
    %105 = vector.multi_reduction <add>, %104, %cst_44 [1] : vector<24x32xf32> to vector<24xf32>
    %106 = vector.shape_cast %105 : vector<24xf32> to vector<24x1xf32>
    %cst_45 = arith.constant 3.200000e+01 : f32
    %107 = vector.broadcast %cst_45 : f32 to vector<24x1xf32>
    %108 = arith.divf %106, %107 : vector<24x1xf32>
    %cst_46 = arith.constant 9.99999997E-7 : f32
    %109 = vector.broadcast %cst_46 : f32 to vector<24x1xf32>
    %110 = arith.addf %108, %109 : vector<24x1xf32>
    %111 = math.rsqrt %110 : vector<24x1xf32>
    %112 = vector.broadcast %111 : vector<24x1xf32> to vector<24x32xf32>
    %113 = arith.mulf %103, %112 : vector<24x32xf32>
    %114 = vector.broadcast %95 : vector<1x32xf32> to vector<24x32xf32>
    %115 = arith.mulf %113, %114 : vector<24x32xf32>
    %116 = vector.broadcast %97 : vector<1x32xf32> to vector<24x32xf32>
    %117 = arith.addf %115, %116 : vector<24x32xf32>
    %118 = arith.truncf %117 : vector<24x32xf32> to vector<24x32xbf16>
    %c0_47 = arith.constant 0 : index
    %c0_48 = arith.constant 0 : index
    %c0_49 = arith.constant 0 : index
    %119 = vector.load %arg11[%c0_47, %c0_48, %c0_49] : memref<1x32x128xbf16, #tpu.memory_space<vmem>>, vector<1x32x128xbf16>
    %120 = vector.shape_cast %119 : vector<1x32x128xbf16> to vector<32x128xbf16>
    %cst_50 = arith.constant dense<0.000000e+00> : vector<24x128xf32>
    %121 = tpu.matmul %118, %120, %cst_50 {dimension_numbers = #tpu.dot_dimension_numbers<[1], [0], [0], [1], [0, 0, 1, 1], [], []>} : vector<24x32xbf16>, vector<32x128xbf16>, vector<24x128xf32> -> vector<24x128xf32>
    %c0_51 = arith.constant 0 : index
    %c0_52 = arith.constant 0 : index
    %c0_53 = arith.constant 0 : index
    %122 = vector.load %arg12[%c0_51, %c0_52, %c0_53] : memref<1x1x128xf32, #tpu.memory_space<vmem>>, vector<1x1x128xf32>
    %123 = vector.shape_cast %122 : vector<1x1x128xf32> to vector<1x128xf32>
    %124 = vector.broadcast %123 : vector<1x128xf32> to vector<24x128xf32>
    %125 = arith.addf %121, %124 : vector<24x128xf32>
    %126 = arith.mulf %125, %125 : vector<24x128xf32>
    %127 = arith.mulf %125, %126 : vector<24x128xf32>
    %cst_54 = arith.constant 4.471500e-02 : f32
    %128 = vector.broadcast %cst_54 : f32 to vector<24x128xf32>
    %129 = arith.mulf %128, %127 : vector<24x128xf32>
    %130 = arith.addf %125, %129 : vector<24x128xf32>
    %cst_55 = arith.constant 0.797884583 : f32
    %131 = vector.broadcast %cst_55 : f32 to vector<24x128xf32>
    %132 = arith.mulf %131, %130 : vector<24x128xf32>
    %133 = math.tanh %132 : vector<24x128xf32>
    %cst_56 = arith.constant 1.000000e+00 : f32
    %134 = vector.broadcast %cst_56 : f32 to vector<24x128xf32>
    %135 = arith.addf %134, %133 : vector<24x128xf32>
    %cst_57 = arith.constant 5.000000e-01 : f32
    %136 = vector.broadcast %cst_57 : f32 to vector<24x128xf32>
    %137 = arith.mulf %136, %135 : vector<24x128xf32>
    %138 = arith.mulf %125, %137 : vector<24x128xf32>
    %139 = arith.truncf %138 : vector<24x128xf32> to vector<24x128xbf16>
    %c0_58 = arith.constant 0 : index
    %c0_59 = arith.constant 0 : index
    %c0_60 = arith.constant 0 : index
    %140 = vector.load %arg13[%c0_58, %c0_59, %c0_60] : memref<1x128x32xbf16, #tpu.memory_space<vmem>>, vector<1x128x32xbf16>
    %141 = vector.shape_cast %140 : vector<1x128x32xbf16> to vector<128x32xbf16>
    %cst_61 = arith.constant dense<0.000000e+00> : vector<24x32xf32>
    %142 = tpu.matmul %139, %141, %cst_61 {dimension_numbers = #tpu.dot_dimension_numbers<[1], [0], [0], [1], [0, 0, 1, 1], [], []>} : vector<24x128xbf16>, vector<128x32xbf16>, vector<24x32xf32> -> vector<24x32xf32>
    %c0_62 = arith.constant 0 : index
    %c0_63 = arith.constant 0 : index
    %c0_64 = arith.constant 0 : index
    %143 = vector.load %arg14[%c0_62, %c0_63, %c0_64] : memref<1x1x32xf32, #tpu.memory_space<vmem>>, vector<1x1x32xf32>
    %144 = vector.shape_cast %143 : vector<1x1x32xf32> to vector<1x32xf32>
    %145 = vector.broadcast %144 : vector<1x32xf32> to vector<24x32xf32>
    %146 = arith.addf %142, %145 : vector<24x32xf32>
    %147 = arith.addf %93, %146 : vector<24x32xf32>
    %c0_65 = arith.constant 0 : index
    %c0_66 = arith.constant 0 : index
    %148 = vector.load %arg18[%c0_65, %c0_66] : memref<24x32xf32, #tpu.memory_space<vmem>>, vector<24x32xf32>
    tpu.vector_store %arg18[%c0_65, %c0_66], %147 {strides = array<i32>} : memref<24x32xf32, #tpu.memory_space<vmem>>, vector<24x32xf32>,
    %c2_i32 = arith.constant 2 : i32
    %149 = arith.cmpi eq, %arg1, %c2_i32 : i32
    %c5_i32 = arith.constant 5 : i32
    %150 = arith.cmpi eq, %arg1, %c5_i32 : i32
    %151 = arith.ori %149, %150 : i1
    %c8_i32 = arith.constant 8 : i32
    %152 = arith.cmpi eq, %arg1, %c8_i32 : i32
    %153 = arith.ori %151, %152 : i1
    %c11_i32 = arith.constant 11 : i32
    %154 = arith.cmpi eq, %arg1, %c11_i32 : i32
    %155 = arith.ori %153, %154 : i1
    %156 = arith.extui %155 : i1 to i32
    %c0_i32_67 = arith.constant 0 : i32
    %157 = arith.cmpi ne, %156, %c0_i32_67 : i32
    scf.if %157 {
      %c0_68 = arith.constant 0 : index
      %c0_69 = arith.constant 0 : index
      %158 = vector.load %arg15[%c0_68, %c0_69] : memref<1x32xf32, #tpu.memory_space<vmem>>, vector<1x32xf32>
      %c0_70 = arith.constant 0 : index
      %c0_71 = arith.constant 0 : index
      %159 = vector.load %arg16[%c0_70, %c0_71] : memref<1x32xf32, #tpu.memory_space<vmem>>, vector<1x32xf32>
      %cst_72 = arith.constant dense<0.000000e+00> : vector<24xf32>
      %160 = vector.multi_reduction <add>, %147, %cst_72 [1] : vector<24x32xf32> to vector<24xf32>
      %161 = vector.shape_cast %160 : vector<24xf32> to vector<24x1xf32>
      %cst_73 = arith.constant 3.200000e+01 : f32
      %162 = vector.broadcast %cst_73 : f32 to vector<24x1xf32>
      %163 = arith.divf %161, %162 : vector<24x1xf32>
      %164 = vector.broadcast %163 : vector<24x1xf32> to vector<24x32xf32>
      %165 = arith.subf %147, %164 : vector<24x32xf32>
      %166 = arith.mulf %165, %165 : vector<24x32xf32>
      %cst_74 = arith.constant dense<0.000000e+00> : vector<24xf32>
      %167 = vector.multi_reduction <add>, %166, %cst_74 [1] : vector<24x32xf32> to vector<24xf32>
      %168 = vector.shape_cast %167 : vector<24xf32> to vector<24x1xf32>
      %cst_75 = arith.constant 3.200000e+01 : f32
      %169 = vector.broadcast %cst_75 : f32 to vector<24x1xf32>
      %170 = arith.divf %168, %169 : vector<24x1xf32>
      %cst_76 = arith.constant 9.99999997E-7 : f32
      %171 = vector.broadcast %cst_76 : f32 to vector<24x1xf32>
      %172 = arith.addf %170, %171 : vector<24x1xf32>
      %173 = math.rsqrt %172 : vector<24x1xf32>
      %174 = vector.broadcast %173 : vector<24x1xf32> to vector<24x32xf32>
      %175 = arith.mulf %165, %174 : vector<24x32xf32>
      %176 = vector.broadcast %158 : vector<1x32xf32> to vector<24x32xf32>
      %177 = arith.mulf %175, %176 : vector<24x32xf32>
      %178 = vector.broadcast %159 : vector<1x32xf32> to vector<24x32xf32>
      %179 = arith.addf %177, %178 : vector<24x32xf32>
      %c0_77 = arith.constant 0 : index
      %c0_78 = arith.constant 0 : index
      %c0_79 = arith.constant 0 : index
      %c0_80 = arith.constant 0 : index
      %180 = vector.load %arg17[%c0_77, %c0_78, %c0_79, %c0_80] : memref<1x1x24x32xf32, #tpu.memory_space<vmem>>, vector<1x1x24x32xf32>
      %181 = vector.shape_cast %180 : vector<1x1x24x32xf32> to vector<24x32xf32>
      %182 = vector.shape_cast %179 : vector<24x32xf32> to vector<1x1x24x32xf32>
      tpu.vector_store %arg17[%c0_77, %c0_78, %c0_79, %c0_80], %182 {strides = array<i32>} : memref<1x1x24x32xf32, #tpu.memory_space<vmem>>, vector<1x1x24x32xf32>,
    } else {
    }
    return
  }
  func.func @transform_0(%arg0: i32, %arg1: i32) -> (i32, i32, i32) {
    %c0_i32 = arith.constant 0 : i32
    %c0_i32_0 = arith.constant 0 : i32
    %c0_i32_1 = arith.constant 0 : i32
    return %arg0, %c0_i32, %c0_i32_0 : i32, i32, i32
  }
  func.func @transform_1(%arg0: i32, %arg1: i32) -> (i32, i32, i32) {
    %c0_i32 = arith.constant 0 : i32
    %c0_i32_0 = arith.constant 0 : i32
    %c0_i32_1 = arith.constant 0 : i32
    return %arg1, %c0_i32, %c0_i32_0 : i32, i32, i32
  }
  func.func @transform_2(%arg0: i32, %arg1: i32) -> (i32, i32, i32) {
    %c0_i32 = arith.constant 0 : i32
    %c0_i32_0 = arith.constant 0 : i32
    %c0_i32_1 = arith.constant 0 : i32
    return %arg1, %c0_i32, %c0_i32_0 : i32, i32, i32
  }
  func.func @transform_3(%arg0: i32, %arg1: i32) -> (i32, i32, i32) {
    %c0_i32 = arith.constant 0 : i32
    %c0_i32_0 = arith.constant 0 : i32
    %c0_i32_1 = arith.constant 0 : i32
    return %arg1, %c0_i32, %c0_i32_0 : i32, i32, i32
  }
  func.func @transform_4(%arg0: i32, %arg1: i32) -> (i32, i32, i32) {
    %c0_i32 = arith.constant 0 : i32
    %c0_i32_0 = arith.constant 0 : i32
    %c0_i32_1 = arith.constant 0 : i32
    return %arg1, %c0_i32, %c0_i32_0 : i32, i32, i32
  }
  func.func @transform_5(%arg0: i32, %arg1: i32) -> (i32, i32, i32) {
    %c0_i32 = arith.constant 0 : i32
    %c0_i32_0 = arith.constant 0 : i32
    %c0_i32_1 = arith.constant 0 : i32
    return %arg1, %c0_i32, %c0_i32_0 : i32, i32, i32
  }
  func.func @transform_6(%arg0: i32, %arg1: i32) -> (i32, i32, i32) {
    %c0_i32 = arith.constant 0 : i32
    %c0_i32_0 = arith.constant 0 : i32
    %c0_i32_1 = arith.constant 0 : i32
    return %arg1, %c0_i32, %c0_i32_0 : i32, i32, i32
  }
  func.func @transform_7(%arg0: i32, %arg1: i32) -> (i32, i32, i32) {
    %c0_i32 = arith.constant 0 : i32
    %c0_i32_0 = arith.constant 0 : i32
    %c0_i32_1 = arith.constant 0 : i32
    return %arg1, %c0_i32, %c0_i32_0 : i32, i32, i32
  }
  func.func @transform_8(%arg0: i32, %arg1: i32) -> (i32, i32, i32) {
    %c0_i32 = arith.constant 0 : i32
    %c0_i32_0 = arith.constant 0 : i32
    %c0_i32_1 = arith.constant 0 : i32
    return %arg1, %c0_i32, %c0_i32_0 : i32, i32, i32
  }
  func.func @transform_9(%arg0: i32, %arg1: i32) -> (i32, i32, i32) {
    %c0_i32 = arith.constant 0 : i32
    %c0_i32_0 = arith.constant 0 : i32
    %c0_i32_1 = arith.constant 0 : i32
    return %arg1, %c0_i32, %c0_i32_0 : i32, i32, i32
  }
  func.func @transform_10(%arg0: i32, %arg1: i32) -> (i32, i32, i32) {
    %c0_i32 = arith.constant 0 : i32
    %c0_i32_0 = arith.constant 0 : i32
    %c0_i32_1 = arith.constant 0 : i32
    return %arg1, %c0_i32, %c0_i32_0 : i32, i32, i32
  }
  func.func @transform_11(%arg0: i32, %arg1: i32) -> (i32, i32, i32) {
    %c0_i32 = arith.constant 0 : i32
    %c0_i32_0 = arith.constant 0 : i32
    %c0_i32_1 = arith.constant 0 : i32
    return %arg1, %c0_i32, %c0_i32_0 : i32, i32, i32
  }
  func.func @transform_12(%arg0: i32, %arg1: i32) -> (i32, i32, i32) {
    %c0_i32 = arith.constant 0 : i32
    %c0_i32_0 = arith.constant 0 : i32
    %c0_i32_1 = arith.constant 0 : i32
    return %arg1, %c0_i32, %c0_i32_0 : i32, i32, i32
  }
  func.func @transform_13(%arg0: i32, %arg1: i32) -> (i32, i32) {
    %c0_i32 = arith.constant 0 : i32
    %c0_i32_0 = arith.constant 0 : i32
    %c0_i32_1 = arith.constant 0 : i32
    return %c0_i32, %c0_i32_0 : i32, i32
  }
  func.func @transform_14(%arg0: i32, %arg1: i32) -> (i32, i32) {
    %c0_i32 = arith.constant 0 : i32
    %c0_i32_0 = arith.constant 0 : i32
    %c0_i32_1 = arith.constant 0 : i32
    return %c0_i32, %c0_i32_0 : i32, i32
  }
  func.func @transform_15(%arg0: i32, %arg1: i32) -> (i32, i32, i32, i32) {
    %c5_i32 = arith.constant 5 : i32
    %0 = arith.cmpi sge, %arg1, %c5_i32 : i32
    %1 = arith.extui %0 : i1 to i32
    %c0_i32 = arith.constant 0 : i32
    %2 = arith.addi %c0_i32, %1 : i32
    %c8_i32 = arith.constant 8 : i32
    %3 = arith.cmpi sge, %arg1, %c8_i32 : i32
    %4 = arith.extui %3 : i1 to i32
    %5 = arith.addi %2, %4 : i32
    %c11_i32 = arith.constant 11 : i32
    %6 = arith.cmpi sge, %arg1, %c11_i32 : i32
    %7 = arith.extui %6 : i1 to i32
    %8 = arith.addi %5, %7 : i32
    %c0_i32_0 = arith.constant 0 : i32
    %c0_i32_1 = arith.constant 0 : i32
    %c0_i32_2 = arith.constant 0 : i32
    return %8, %arg0, %c0_i32_0, %c0_i32_1 : i32, i32, i32, i32
  }
}

module attributes {stable_mosaic.version = 11 : i64} {
  func.func @_embed_kernel(%arg0: i32, %arg1: memref<1x24x48xf32, #tpu.memory_space<vmem>>, %arg2: memref<48x32xbf16, #tpu.memory_space<vmem>>, %arg3: memref<24x32xf32, #tpu.memory_space<vmem>>, %arg4: memref<1x24x32xf32, #tpu.memory_space<vmem>>) attributes {dimension_semantics = [#tpu.dimension_semantics<parallel>], iteration_bounds = array<i64: 2>, scalar_prefetch = 0 : i64, scratch_operands = 0 : i64, tpu.core_type = #tpu.core_type<tc>, window_params = [{transform_indices = @transform_0, window_bounds = array<i64: 1, 24, 48>}, {pipeline_mode = #tpu.pipeline_mode<synchronous>, transform_indices = @transform_1, window_bounds = array<i64: 48, 32>}, {pipeline_mode = #tpu.pipeline_mode<synchronous>, transform_indices = @transform_2, window_bounds = array<i64: 24, 32>}, {transform_indices = @transform_3, window_bounds = array<i64: 1, 24, 32>}]} {
    %c0 = arith.constant 0 : index
    %c0_0 = arith.constant 0 : index
    %c0_1 = arith.constant 0 : index
    %0 = vector.load %arg1[%c0, %c0_0, %c0_1] : memref<1x24x48xf32, #tpu.memory_space<vmem>>, vector<1x24x48xf32>
    %1 = vector.shape_cast %0 : vector<1x24x48xf32> to vector<24x48xf32>
    %2 = arith.truncf %1 : vector<24x48xf32> to vector<24x48xbf16>
    %c0_2 = arith.constant 0 : index
    %c0_3 = arith.constant 0 : index
    %3 = vector.load %arg2[%c0_2, %c0_3] : memref<48x32xbf16, #tpu.memory_space<vmem>>, vector<48x32xbf16>
    %cst = arith.constant dense<0.000000e+00> : vector<24x32xf32>
    %4 = tpu.matmul %2, %3, %cst {dimension_numbers = #tpu.dot_dimension_numbers<[1], [0], [0], [1], [0, 0, 1, 1], [], []>} : vector<24x48xbf16>, vector<48x32xbf16>, vector<24x32xf32> -> vector<24x32xf32>
    %c0_4 = arith.constant 0 : index
    %c0_5 = arith.constant 0 : index
    %5 = vector.load %arg3[%c0_4, %c0_5] : memref<24x32xf32, #tpu.memory_space<vmem>>, vector<24x32xf32>
    %6 = arith.addf %4, %5 : vector<24x32xf32>
    %c0_6 = arith.constant 0 : index
    %c0_7 = arith.constant 0 : index
    %c0_8 = arith.constant 0 : index
    %7 = vector.load %arg4[%c0_6, %c0_7, %c0_8] : memref<1x24x32xf32, #tpu.memory_space<vmem>>, vector<1x24x32xf32>
    %8 = vector.shape_cast %7 : vector<1x24x32xf32> to vector<24x32xf32>
    %9 = vector.shape_cast %6 : vector<24x32xf32> to vector<1x24x32xf32>
    tpu.vector_store %arg4[%c0_6, %c0_7, %c0_8], %9 {strides = array<i32>} : memref<1x24x32xf32, #tpu.memory_space<vmem>>, vector<1x24x32xf32>,
    return
  }
  func.func @transform_0(%arg0: i32) -> (i32, i32, i32) {
    %c0_i32 = arith.constant 0 : i32
    %c0_i32_0 = arith.constant 0 : i32
    %c0_i32_1 = arith.constant 0 : i32
    return %arg0, %c0_i32, %c0_i32_0 : i32, i32, i32
  }
  func.func @transform_1(%arg0: i32) -> (i32, i32) {
    %c0_i32 = arith.constant 0 : i32
    %c0_i32_0 = arith.constant 0 : i32
    %c0_i32_1 = arith.constant 0 : i32
    return %c0_i32, %c0_i32_0 : i32, i32
  }
  func.func @transform_2(%arg0: i32) -> (i32, i32) {
    %c0_i32 = arith.constant 0 : i32
    %c0_i32_0 = arith.constant 0 : i32
    %c0_i32_1 = arith.constant 0 : i32
    return %c0_i32, %c0_i32_0 : i32, i32
  }
  func.func @transform_3(%arg0: i32) -> (i32, i32, i32) {
    %c0_i32 = arith.constant 0 : i32
    %c0_i32_0 = arith.constant 0 : i32
    %c0_i32_1 = arith.constant 0 : i32
    return %arg0, %c0_i32, %c0_i32_0 : i32, i32, i32
  }
}

module attributes {stable_mosaic.version = 11 : i64} {
  func.func @_scale_adapter_kernel(%arg0: i32, %arg1: memref<1x1x24x32xf32, #tpu.memory_space<vmem>>, %arg2: memref<16x1024xbf16, #tpu.memory_space<vmem>>, %arg3: memref<8x32xbf16, #tpu.memory_space<vmem>>, %arg4: memref<32x8xbf16, #tpu.memory_space<vmem>>, %arg5: memref<1x32x1024xf32, #tpu.memory_space<vmem>>) attributes {dimension_semantics = [#tpu.dimension_semantics<parallel>], iteration_bounds = array<i64: 2>, scalar_prefetch = 0 : i64, scratch_operands = 0 : i64, tpu.core_type = #tpu.core_type<tc>, window_params = [{transform_indices = @transform_0, window_bounds = array<i64: 1, 1, 24, 32>}, {pipeline_mode = #tpu.pipeline_mode<synchronous>, transform_indices = @transform_1, window_bounds = array<i64: 16, 1024>}, {pipeline_mode = #tpu.pipeline_mode<synchronous>, transform_indices = @transform_2, window_bounds = array<i64: 8, 32>}, {pipeline_mode = #tpu.pipeline_mode<synchronous>, transform_indices = @transform_3, window_bounds = array<i64: 32, 8>}, {transform_indices = @transform_4, window_bounds = array<i64: 1, 32, 1024>}]} {
    %c0 = arith.constant 0 : index
    %c0_0 = arith.constant 0 : index
    %c0_1 = arith.constant 0 : index
    %c0_2 = arith.constant 0 : index
    %0 = vector.load %arg1[%c0, %c0_0, %c0_1, %c0_2] : memref<1x1x24x32xf32, #tpu.memory_space<vmem>>, vector<1x1x24x32xf32>
    %1 = vector.shape_cast %0 : vector<1x1x24x32xf32> to vector<24x32xf32>
    %2 = vector.extract_strided_slice %1 {offsets = [1, 0], sizes = [16, 32], strides = [1, 1]} : vector<24x32xf32> to vector<16x32xf32>
    %3 = arith.truncf %2 : vector<16x32xf32> to vector<16x32xbf16>
    %c0_3 = arith.constant 0 : index
    %c0_4 = arith.constant 0 : index
    %4 = vector.load %arg2[%c0_3, %c0_4] : memref<16x1024xbf16, #tpu.memory_space<vmem>>, vector<16x1024xbf16>
    %cst = arith.constant dense<0.000000e+00> : vector<32x1024xf32>
    %5 = tpu.matmul %3, %4, %cst {dimension_numbers = #tpu.dot_dimension_numbers<[0], [0], [1], [1], [0, 1, 1, 1], [], []>} : vector<16x32xbf16>, vector<16x1024xbf16>, vector<32x1024xf32> -> vector<32x1024xf32>
    %c0_5 = arith.constant 0 : index
    %c0_6 = arith.constant 0 : index
    %6 = vector.load %arg3[%c0_5, %c0_6] : memref<8x32xbf16, #tpu.memory_space<vmem>>, vector<8x32xbf16>
    %7 = arith.truncf %5 : vector<32x1024xf32> to vector<32x1024xbf16>
    %cst_7 = arith.constant dense<0.000000e+00> : vector<8x1024xf32>
    %8 = tpu.matmul %6, %7, %cst_7 {dimension_numbers = #tpu.dot_dimension_numbers<[1], [0], [0], [1], [0, 0, 1, 1], [], []>} : vector<8x32xbf16>, vector<32x1024xbf16>, vector<8x1024xf32> -> vector<8x1024xf32>
    %cst_8 = arith.constant 0.000000e+00 : f32
    %9 = vector.broadcast %cst_8 : f32 to vector<8x1024xf32>
    %10 = arith.maximumf %8, %9 : vector<8x1024xf32>
    %c0_9 = arith.constant 0 : index
    %c0_10 = arith.constant 0 : index
    %11 = vector.load %arg4[%c0_9, %c0_10] : memref<32x8xbf16, #tpu.memory_space<vmem>>, vector<32x8xbf16>
    %12 = arith.truncf %10 : vector<8x1024xf32> to vector<8x1024xbf16>
    %cst_11 = arith.constant dense<0.000000e+00> : vector<32x1024xf32>
    %13 = tpu.matmul %11, %12, %cst_11 {dimension_numbers = #tpu.dot_dimension_numbers<[1], [0], [0], [1], [0, 0, 1, 1], [], []>} : vector<32x8xbf16>, vector<8x1024xbf16>, vector<32x1024xf32> -> vector<32x1024xf32>
    %c0_12 = arith.constant 0 : index
    %c0_13 = arith.constant 0 : index
    %c0_14 = arith.constant 0 : index
    %14 = vector.load %arg5[%c0_12, %c0_13, %c0_14] : memref<1x32x1024xf32, #tpu.memory_space<vmem>>, vector<1x32x1024xf32>
    %15 = vector.shape_cast %14 : vector<1x32x1024xf32> to vector<32x1024xf32>
    %16 = vector.shape_cast %13 : vector<32x1024xf32> to vector<1x32x1024xf32>
    tpu.vector_store %arg5[%c0_12, %c0_13, %c0_14], %16 {strides = array<i32>} : memref<1x32x1024xf32, #tpu.memory_space<vmem>>, vector<1x32x1024xf32>,
    return
  }
  func.func @transform_0(%arg0: i32) -> (i32, i32, i32, i32) {
    %c0_i32 = arith.constant 0 : i32
    %c0_i32_0 = arith.constant 0 : i32
    %c0_i32_1 = arith.constant 0 : i32
    %c0_i32_2 = arith.constant 0 : i32
    return %c0_i32, %arg0, %c0_i32_0, %c0_i32_1 : i32, i32, i32, i32
  }
  func.func @transform_1(%arg0: i32) -> (i32, i32) {
    %c0_i32 = arith.constant 0 : i32
    %c0_i32_0 = arith.constant 0 : i32
    %c0_i32_1 = arith.constant 0 : i32
    return %c0_i32, %c0_i32_0 : i32, i32
  }
  func.func @transform_2(%arg0: i32) -> (i32, i32) {
    %c0_i32 = arith.constant 0 : i32
    %c0_i32_0 = arith.constant 0 : i32
    %c0_i32_1 = arith.constant 0 : i32
    return %c0_i32, %c0_i32_0 : i32, i32
  }
  func.func @transform_3(%arg0: i32) -> (i32, i32) {
    %c0_i32 = arith.constant 0 : i32
    %c0_i32_0 = arith.constant 0 : i32
    %c0_i32_1 = arith.constant 0 : i32
    return %c0_i32, %c0_i32_0 : i32, i32
  }
  func.func @transform_4(%arg0: i32) -> (i32, i32, i32) {
    %c0_i32 = arith.constant 0 : i32
    %c0_i32_0 = arith.constant 0 : i32
    %c0_i32_1 = arith.constant 0 : i32
    return %arg0, %c0_i32, %c0_i32_0 : i32, i32, i32
  }
}

module attributes {stable_mosaic.version = 11 : i64} {
  func.func @_scale_adapter_kernel(%arg0: i32, %arg1: memref<1x1x24x32xf32, #tpu.memory_space<vmem>>, %arg2: memref<16x256xbf16, #tpu.memory_space<vmem>>, %arg3: memref<8x32xbf16, #tpu.memory_space<vmem>>, %arg4: memref<32x8xbf16, #tpu.memory_space<vmem>>, %arg5: memref<1x32x256xf32, #tpu.memory_space<vmem>>) attributes {dimension_semantics = [#tpu.dimension_semantics<parallel>], iteration_bounds = array<i64: 2>, scalar_prefetch = 0 : i64, scratch_operands = 0 : i64, tpu.core_type = #tpu.core_type<tc>, window_params = [{transform_indices = @transform_0, window_bounds = array<i64: 1, 1, 24, 32>}, {pipeline_mode = #tpu.pipeline_mode<synchronous>, transform_indices = @transform_1, window_bounds = array<i64: 16, 256>}, {pipeline_mode = #tpu.pipeline_mode<synchronous>, transform_indices = @transform_2, window_bounds = array<i64: 8, 32>}, {pipeline_mode = #tpu.pipeline_mode<synchronous>, transform_indices = @transform_3, window_bounds = array<i64: 32, 8>}, {transform_indices = @transform_4, window_bounds = array<i64: 1, 32, 256>}]} {
    %c0 = arith.constant 0 : index
    %c0_0 = arith.constant 0 : index
    %c0_1 = arith.constant 0 : index
    %c0_2 = arith.constant 0 : index
    %0 = vector.load %arg1[%c0, %c0_0, %c0_1, %c0_2] : memref<1x1x24x32xf32, #tpu.memory_space<vmem>>, vector<1x1x24x32xf32>
    %1 = vector.shape_cast %0 : vector<1x1x24x32xf32> to vector<24x32xf32>
    %2 = vector.extract_strided_slice %1 {offsets = [1, 0], sizes = [16, 32], strides = [1, 1]} : vector<24x32xf32> to vector<16x32xf32>
    %3 = arith.truncf %2 : vector<16x32xf32> to vector<16x32xbf16>
    %c0_3 = arith.constant 0 : index
    %c0_4 = arith.constant 0 : index
    %4 = vector.load %arg2[%c0_3, %c0_4] : memref<16x256xbf16, #tpu.memory_space<vmem>>, vector<16x256xbf16>
    %cst = arith.constant dense<0.000000e+00> : vector<32x256xf32>
    %5 = tpu.matmul %3, %4, %cst {dimension_numbers = #tpu.dot_dimension_numbers<[0], [0], [1], [1], [0, 1, 1, 1], [], []>} : vector<16x32xbf16>, vector<16x256xbf16>, vector<32x256xf32> -> vector<32x256xf32>
    %c0_5 = arith.constant 0 : index
    %c0_6 = arith.constant 0 : index
    %6 = vector.load %arg3[%c0_5, %c0_6] : memref<8x32xbf16, #tpu.memory_space<vmem>>, vector<8x32xbf16>
    %7 = arith.truncf %5 : vector<32x256xf32> to vector<32x256xbf16>
    %cst_7 = arith.constant dense<0.000000e+00> : vector<8x256xf32>
    %8 = tpu.matmul %6, %7, %cst_7 {dimension_numbers = #tpu.dot_dimension_numbers<[1], [0], [0], [1], [0, 0, 1, 1], [], []>} : vector<8x32xbf16>, vector<32x256xbf16>, vector<8x256xf32> -> vector<8x256xf32>
    %cst_8 = arith.constant 0.000000e+00 : f32
    %9 = vector.broadcast %cst_8 : f32 to vector<8x256xf32>
    %10 = arith.maximumf %8, %9 : vector<8x256xf32>
    %c0_9 = arith.constant 0 : index
    %c0_10 = arith.constant 0 : index
    %11 = vector.load %arg4[%c0_9, %c0_10] : memref<32x8xbf16, #tpu.memory_space<vmem>>, vector<32x8xbf16>
    %12 = arith.truncf %10 : vector<8x256xf32> to vector<8x256xbf16>
    %cst_11 = arith.constant dense<0.000000e+00> : vector<32x256xf32>
    %13 = tpu.matmul %11, %12, %cst_11 {dimension_numbers = #tpu.dot_dimension_numbers<[1], [0], [0], [1], [0, 0, 1, 1], [], []>} : vector<32x8xbf16>, vector<8x256xbf16>, vector<32x256xf32> -> vector<32x256xf32>
    %c0_12 = arith.constant 0 : index
    %c0_13 = arith.constant 0 : index
    %c0_14 = arith.constant 0 : index
    %14 = vector.load %arg5[%c0_12, %c0_13, %c0_14] : memref<1x32x256xf32, #tpu.memory_space<vmem>>, vector<1x32x256xf32>
    %15 = vector.shape_cast %14 : vector<1x32x256xf32> to vector<32x256xf32>
    %16 = vector.shape_cast %13 : vector<32x256xf32> to vector<1x32x256xf32>
    tpu.vector_store %arg5[%c0_12, %c0_13, %c0_14], %16 {strides = array<i32>} : memref<1x32x256xf32, #tpu.memory_space<vmem>>, vector<1x32x256xf32>,
    return
  }
  func.func @transform_0(%arg0: i32) -> (i32, i32, i32, i32) {
    %c1_i32 = arith.constant 1 : i32
    %c0_i32 = arith.constant 0 : i32
    %c0_i32_0 = arith.constant 0 : i32
    %c0_i32_1 = arith.constant 0 : i32
    return %c1_i32, %arg0, %c0_i32, %c0_i32_0 : i32, i32, i32, i32
  }
  func.func @transform_1(%arg0: i32) -> (i32, i32) {
    %c0_i32 = arith.constant 0 : i32
    %c0_i32_0 = arith.constant 0 : i32
    %c0_i32_1 = arith.constant 0 : i32
    return %c0_i32, %c0_i32_0 : i32, i32
  }
  func.func @transform_2(%arg0: i32) -> (i32, i32) {
    %c0_i32 = arith.constant 0 : i32
    %c0_i32_0 = arith.constant 0 : i32
    %c0_i32_1 = arith.constant 0 : i32
    return %c0_i32, %c0_i32_0 : i32, i32
  }
  func.func @transform_3(%arg0: i32) -> (i32, i32) {
    %c0_i32 = arith.constant 0 : i32
    %c0_i32_0 = arith.constant 0 : i32
    %c0_i32_1 = arith.constant 0 : i32
    return %c0_i32, %c0_i32_0 : i32, i32
  }
  func.func @transform_4(%arg0: i32) -> (i32, i32, i32) {
    %c0_i32 = arith.constant 0 : i32
    %c0_i32_0 = arith.constant 0 : i32
    %c0_i32_1 = arith.constant 0 : i32
    return %arg0, %c0_i32, %c0_i32_0 : i32, i32, i32
  }
}

module attributes {stable_mosaic.version = 11 : i64} {
  func.func @_scale_adapter_kernel(%arg0: i32, %arg1: memref<1x1x24x32xf32, #tpu.memory_space<vmem>>, %arg2: memref<16x64xbf16, #tpu.memory_space<vmem>>, %arg3: memref<8x32xbf16, #tpu.memory_space<vmem>>, %arg4: memref<32x8xbf16, #tpu.memory_space<vmem>>, %arg5: memref<1x32x64xf32, #tpu.memory_space<vmem>>) attributes {dimension_semantics = [#tpu.dimension_semantics<parallel>], iteration_bounds = array<i64: 2>, scalar_prefetch = 0 : i64, scratch_operands = 0 : i64, tpu.core_type = #tpu.core_type<tc>, window_params = [{transform_indices = @transform_0, window_bounds = array<i64: 1, 1, 24, 32>}, {pipeline_mode = #tpu.pipeline_mode<synchronous>, transform_indices = @transform_1, window_bounds = array<i64: 16, 64>}, {pipeline_mode = #tpu.pipeline_mode<synchronous>, transform_indices = @transform_2, window_bounds = array<i64: 8, 32>}, {pipeline_mode = #tpu.pipeline_mode<synchronous>, transform_indices = @transform_3, window_bounds = array<i64: 32, 8>}, {transform_indices = @transform_4, window_bounds = array<i64: 1, 32, 64>}]} {
    %c0 = arith.constant 0 : index
    %c0_0 = arith.constant 0 : index
    %c0_1 = arith.constant 0 : index
    %c0_2 = arith.constant 0 : index
    %0 = vector.load %arg1[%c0, %c0_0, %c0_1, %c0_2] : memref<1x1x24x32xf32, #tpu.memory_space<vmem>>, vector<1x1x24x32xf32>
    %1 = vector.shape_cast %0 : vector<1x1x24x32xf32> to vector<24x32xf32>
    %2 = vector.extract_strided_slice %1 {offsets = [1, 0], sizes = [16, 32], strides = [1, 1]} : vector<24x32xf32> to vector<16x32xf32>
    %3 = arith.truncf %2 : vector<16x32xf32> to vector<16x32xbf16>
    %c0_3 = arith.constant 0 : index
    %c0_4 = arith.constant 0 : index
    %4 = vector.load %arg2[%c0_3, %c0_4] : memref<16x64xbf16, #tpu.memory_space<vmem>>, vector<16x64xbf16>
    %cst = arith.constant dense<0.000000e+00> : vector<32x64xf32>
    %5 = tpu.matmul %3, %4, %cst {dimension_numbers = #tpu.dot_dimension_numbers<[0], [0], [1], [1], [0, 1, 1, 1], [], []>} : vector<16x32xbf16>, vector<16x64xbf16>, vector<32x64xf32> -> vector<32x64xf32>
    %c0_5 = arith.constant 0 : index
    %c0_6 = arith.constant 0 : index
    %6 = vector.load %arg3[%c0_5, %c0_6] : memref<8x32xbf16, #tpu.memory_space<vmem>>, vector<8x32xbf16>
    %7 = arith.truncf %5 : vector<32x64xf32> to vector<32x64xbf16>
    %cst_7 = arith.constant dense<0.000000e+00> : vector<8x64xf32>
    %8 = tpu.matmul %6, %7, %cst_7 {dimension_numbers = #tpu.dot_dimension_numbers<[1], [0], [0], [1], [0, 0, 1, 1], [], []>} : vector<8x32xbf16>, vector<32x64xbf16>, vector<8x64xf32> -> vector<8x64xf32>
    %cst_8 = arith.constant 0.000000e+00 : f32
    %9 = vector.broadcast %cst_8 : f32 to vector<8x64xf32>
    %10 = arith.maximumf %8, %9 : vector<8x64xf32>
    %c0_9 = arith.constant 0 : index
    %c0_10 = arith.constant 0 : index
    %11 = vector.load %arg4[%c0_9, %c0_10] : memref<32x8xbf16, #tpu.memory_space<vmem>>, vector<32x8xbf16>
    %12 = arith.truncf %10 : vector<8x64xf32> to vector<8x64xbf16>
    %cst_11 = arith.constant dense<0.000000e+00> : vector<32x64xf32>
    %13 = tpu.matmul %11, %12, %cst_11 {dimension_numbers = #tpu.dot_dimension_numbers<[1], [0], [0], [1], [0, 0, 1, 1], [], []>} : vector<32x8xbf16>, vector<8x64xbf16>, vector<32x64xf32> -> vector<32x64xf32>
    %c0_12 = arith.constant 0 : index
    %c0_13 = arith.constant 0 : index
    %c0_14 = arith.constant 0 : index
    %14 = vector.load %arg5[%c0_12, %c0_13, %c0_14] : memref<1x32x64xf32, #tpu.memory_space<vmem>>, vector<1x32x64xf32>
    %15 = vector.shape_cast %14 : vector<1x32x64xf32> to vector<32x64xf32>
    %16 = vector.shape_cast %13 : vector<32x64xf32> to vector<1x32x64xf32>
    tpu.vector_store %arg5[%c0_12, %c0_13, %c0_14], %16 {strides = array<i32>} : memref<1x32x64xf32, #tpu.memory_space<vmem>>, vector<1x32x64xf32>,
    return
  }
  func.func @transform_0(%arg0: i32) -> (i32, i32, i32, i32) {
    %c2_i32 = arith.constant 2 : i32
    %c0_i32 = arith.constant 0 : i32
    %c0_i32_0 = arith.constant 0 : i32
    %c0_i32_1 = arith.constant 0 : i32
    return %c2_i32, %arg0, %c0_i32, %c0_i32_0 : i32, i32, i32, i32
  }
  func.func @transform_1(%arg0: i32) -> (i32, i32) {
    %c0_i32 = arith.constant 0 : i32
    %c0_i32_0 = arith.constant 0 : i32
    %c0_i32_1 = arith.constant 0 : i32
    return %c0_i32, %c0_i32_0 : i32, i32
  }
  func.func @transform_2(%arg0: i32) -> (i32, i32) {
    %c0_i32 = arith.constant 0 : i32
    %c0_i32_0 = arith.constant 0 : i32
    %c0_i32_1 = arith.constant 0 : i32
    return %c0_i32, %c0_i32_0 : i32, i32
  }
  func.func @transform_3(%arg0: i32) -> (i32, i32) {
    %c0_i32 = arith.constant 0 : i32
    %c0_i32_0 = arith.constant 0 : i32
    %c0_i32_1 = arith.constant 0 : i32
    return %c0_i32, %c0_i32_0 : i32, i32
  }
  func.func @transform_4(%arg0: i32) -> (i32, i32, i32) {
    %c0_i32 = arith.constant 0 : i32
    %c0_i32_0 = arith.constant 0 : i32
    %c0_i32_1 = arith.constant 0 : i32
    return %arg0, %c0_i32, %c0_i32_0 : i32, i32, i32
  }
}

module attributes {stable_mosaic.version = 11 : i64} {
  func.func @_scale_adapter_kernel(%arg0: i32, %arg1: memref<1x1x24x32xf32, #tpu.memory_space<vmem>>, %arg2: memref<16x16xbf16, #tpu.memory_space<vmem>>, %arg3: memref<8x32xbf16, #tpu.memory_space<vmem>>, %arg4: memref<32x8xbf16, #tpu.memory_space<vmem>>, %arg5: memref<1x32x16xf32, #tpu.memory_space<vmem>>) attributes {dimension_semantics = [#tpu.dimension_semantics<parallel>], iteration_bounds = array<i64: 2>, scalar_prefetch = 0 : i64, scratch_operands = 0 : i64, tpu.core_type = #tpu.core_type<tc>, window_params = [{transform_indices = @transform_0, window_bounds = array<i64: 1, 1, 24, 32>}, {pipeline_mode = #tpu.pipeline_mode<synchronous>, transform_indices = @transform_1, window_bounds = array<i64: 16, 16>}, {pipeline_mode = #tpu.pipeline_mode<synchronous>, transform_indices = @transform_2, window_bounds = array<i64: 8, 32>}, {pipeline_mode = #tpu.pipeline_mode<synchronous>, transform_indices = @transform_3, window_bounds = array<i64: 32, 8>}, {transform_indices = @transform_4, window_bounds = array<i64: 1, 32, 16>}]} {
    %c0 = arith.constant 0 : index
    %c0_0 = arith.constant 0 : index
    %c0_1 = arith.constant 0 : index
    %c0_2 = arith.constant 0 : index
    %0 = vector.load %arg1[%c0, %c0_0, %c0_1, %c0_2] : memref<1x1x24x32xf32, #tpu.memory_space<vmem>>, vector<1x1x24x32xf32>
    %1 = vector.shape_cast %0 : vector<1x1x24x32xf32> to vector<24x32xf32>
    %2 = vector.extract_strided_slice %1 {offsets = [1, 0], sizes = [16, 32], strides = [1, 1]} : vector<24x32xf32> to vector<16x32xf32>
    %3 = arith.truncf %2 : vector<16x32xf32> to vector<16x32xbf16>
    %c0_3 = arith.constant 0 : index
    %c0_4 = arith.constant 0 : index
    %4 = vector.load %arg2[%c0_3, %c0_4] : memref<16x16xbf16, #tpu.memory_space<vmem>>, vector<16x16xbf16>
    %cst = arith.constant dense<0.000000e+00> : vector<32x16xf32>
    %5 = tpu.matmul %3, %4, %cst {dimension_numbers = #tpu.dot_dimension_numbers<[0], [0], [1], [1], [0, 1, 1, 1], [], []>} : vector<16x32xbf16>, vector<16x16xbf16>, vector<32x16xf32> -> vector<32x16xf32>
    %c0_5 = arith.constant 0 : index
    %c0_6 = arith.constant 0 : index
    %6 = vector.load %arg3[%c0_5, %c0_6] : memref<8x32xbf16, #tpu.memory_space<vmem>>, vector<8x32xbf16>
    %7 = arith.truncf %5 : vector<32x16xf32> to vector<32x16xbf16>
    %cst_7 = arith.constant dense<0.000000e+00> : vector<8x16xf32>
    %8 = tpu.matmul %6, %7, %cst_7 {dimension_numbers = #tpu.dot_dimension_numbers<[1], [0], [0], [1], [0, 0, 1, 1], [], []>} : vector<8x32xbf16>, vector<32x16xbf16>, vector<8x16xf32> -> vector<8x16xf32>
    %cst_8 = arith.constant 0.000000e+00 : f32
    %9 = vector.broadcast %cst_8 : f32 to vector<8x16xf32>
    %10 = arith.maximumf %8, %9 : vector<8x16xf32>
    %c0_9 = arith.constant 0 : index
    %c0_10 = arith.constant 0 : index
    %11 = vector.load %arg4[%c0_9, %c0_10] : memref<32x8xbf16, #tpu.memory_space<vmem>>, vector<32x8xbf16>
    %12 = arith.truncf %10 : vector<8x16xf32> to vector<8x16xbf16>
    %cst_11 = arith.constant dense<0.000000e+00> : vector<32x16xf32>
    %13 = tpu.matmul %11, %12, %cst_11 {dimension_numbers = #tpu.dot_dimension_numbers<[1], [0], [0], [1], [0, 0, 1, 1], [], []>} : vector<32x8xbf16>, vector<8x16xbf16>, vector<32x16xf32> -> vector<32x16xf32>
    %c0_12 = arith.constant 0 : index
    %c0_13 = arith.constant 0 : index
    %c0_14 = arith.constant 0 : index
    %14 = vector.load %arg5[%c0_12, %c0_13, %c0_14] : memref<1x32x16xf32, #tpu.memory_space<vmem>>, vector<1x32x16xf32>
    %15 = vector.shape_cast %14 : vector<1x32x16xf32> to vector<32x16xf32>
    %16 = vector.shape_cast %13 : vector<32x16xf32> to vector<1x32x16xf32>
    tpu.vector_store %arg5[%c0_12, %c0_13, %c0_14], %16 {strides = array<i32>} : memref<1x32x16xf32, #tpu.memory_space<vmem>>, vector<1x32x16xf32>,
    return
  }
  func.func @transform_0(%arg0: i32) -> (i32, i32, i32, i32) {
    %c3_i32 = arith.constant 3 : i32
    %c0_i32 = arith.constant 0 : i32
    %c0_i32_0 = arith.constant 0 : i32
    %c0_i32_1 = arith.constant 0 : i32
    return %c3_i32, %arg0, %c0_i32, %c0_i32_0 : i32, i32, i32, i32
  }
  func.func @transform_1(%arg0: i32) -> (i32, i32) {
    %c0_i32 = arith.constant 0 : i32
    %c0_i32_0 = arith.constant 0 : i32
    %c0_i32_1 = arith.constant 0 : i32
    return %c0_i32, %c0_i32_0 : i32, i32
  }
  func.func @transform_2(%arg0: i32) -> (i32, i32) {
    %c0_i32 = arith.constant 0 : i32
    %c0_i32_0 = arith.constant 0 : i32
    %c0_i32_1 = arith.constant 0 : i32
    return %c0_i32, %c0_i32_0 : i32, i32
  }
  func.func @transform_3(%arg0: i32) -> (i32, i32) {
    %c0_i32 = arith.constant 0 : i32
    %c0_i32_0 = arith.constant 0 : i32
    %c0_i32_1 = arith.constant 0 : i32
    return %c0_i32, %c0_i32_0 : i32, i32
  }
  func.func @transform_4(%arg0: i32) -> (i32, i32, i32) {
    %c0_i32 = arith.constant 0 : i32
    %c0_i32_0 = arith.constant 0 : i32
    %c0_i32_1 = arith.constant 0 : i32
    return %arg0, %c0_i32, %c0_i32_0 : i32, i32, i32
  }
}

</mosaic_0001>

<llo_original>
// kernel: forward.7
$region0: #{forward.7}
  #allocation0 [shape = 'u32[]', space=smem, size = 0x4, offset = 0x4, fixed_abs, tag = 'smem constant byte address 0x4 - core index']
  #allocation1 [shape = 'u32[144,128]{1,0:T(1,128)}', space=vmem, size = 0x12000, scoped, tag = 'internal scratch']
  %s0 = inlined_call_operand.vmem [shape: f32[2,1024,3], index: 0, kind: input, shape index: {}]
  %s1 = inlined_call_operand.vmem [shape: bf16[256,1024], index: 1, kind: input, shape index: {}]
  %s2 = inlined_call_operand.vmem [shape: f32[2,256,3], index: 2, kind: output, shape index: {}]
  %s3 = sld [smem:[#allocation0]]
  $region41: #{forward.7} parent=0
    _
  %s5 = ssub.s32 1, %s3
  %s6 = scalar_select 0, %s5, %s3
  loop: start=0, step=1, limit=4
  $region2: #{forward.7} parent=0 // loop_pre_header
    _
  $region3: #{forward.7} parent=0 // loop_header
    %s8 = sphi 0, %s12
    %p9 = scmp.ge.s32.totalorder %s8, 4
    %s18 = sphi 0, %s20
    %s21 = sphi 0, %s18
    %s22 = sphi 0, %s21
    %s38 = sphi 0, %s22
    %s42 = sphi 0, %s42
    %s44 = sphi 0, %s42
    %s45 = sphi 0, %s44
    %s59 = sphi 0, %s45
    %s65 = sphi 0, %s67
    %s68 = sphi 0, %s65
    %s69 = sphi 0, %s68
    %s85 = sphi 0, %s69
  $region4: #{forward.7} parent=0 // loop_header_branch
    %11 = sbr.rel (%p9) target = $region8
  $region5: #{forward.7} parent=0 // loop_body
    %s13 = ssub.s32 %s8, 1
    %s14 = ssub.s32 %s8, 2
    %s15 = sadd.s32 %s8, 1
    %s16 = ssub.s32 %s8, %s15
    %p17 = scmp.eq.s32.totalorder %s16, 0
    %s19 = sadd.s32 %s18, 1
    %s20 = scalar_select %p17, %s18, %s19
    %p23 = pneg %p17
    %p24 = scmp.eq.s32.totalorder %s8, 1
    %p25 = por %p23, %p24
    %p26 = scmp.ne.s32.totalorder %s18, %s21
    %p27 = scmp.eq.s32.totalorder %s8, 0
    %p28 = por %p26, %p27
    %p29 = scmp.ne.s32.totalorder %s18, %s21
    %p30 = scmp.eq.s32.totalorder %s13, 1
    %p31 = por %p29, %p30
    %p32 = scmp.ne.s32.totalorder %s21, %s22
    %p33 = scmp.eq.s32.totalorder %s13, 0
    %p34 = por %p32, %p33
    %p35 = scmp.ne.s32.totalorder %s21, %s22
    %p36 = scmp.eq.s32.totalorder %s14, 1
    %p37 = por %p35, %p36
    %p39 = scmp.ne.s32.totalorder %s22, %s38
    %p40 = scmp.eq.s32.totalorder %s14, 0
    %p41 = por %p39, %p40
    %s43 = sadd.s32 %s42, 1
    %p46 = scmp.eq.s32.totalorder %s8, 1
    %p47 = scmp.ne.s32.totalorder %s42, %s44
    %p48 = scmp.eq.s32.totalorder %s8, 0
    %p49 = por %p47, %p48
    %p50 = scmp.ne.s32.totalorder %s42, %s44
    %p51 = scmp.eq.s32.totalorder %s13, 1
    %p52 = por %p50, %p51
    %p53 = scmp.ne.s32.totalorder %s44, %s45
    %p54 = scmp.eq.s32.totalorder %s13, 0
    %p55 = por %p53, %p54
    %p56 = scmp.ne.s32.totalorder %s44, %s45
    %p57 = scmp.eq.s32.totalorder %s14, 1
    %p58 = por %p56, %p57
    %p60 = scmp.ne.s32.totalorder %s45, %s59
    %p61 = scmp.eq.s32.totalorder %s14, 0
    %p62 = por %p60, %p61
    %s63 = ssub.s32 %s8, %s15
    %p64 = scmp.eq.s32.totalorder %s63, 0
    %s66 = sadd.s32 %s65, 1
    %s67 = scalar_select %p64, %s65, %s66
    %p70 = pneg %p64
    %p71 = scmp.eq.s32.totalorder %s8, 1
    %p72 = por %p70, %p71
    %p73 = scmp.ne.s32.totalorder %s65, %s68
    %p74 = scmp.eq.s32.totalorder %s8, 0
    %p75 = por %p73, %p74
    %p76 = scmp.ne.s32.totalorder %s65, %s68
    %p77 = scmp.eq.s32.totalorder %s13, 1
    %p78 = por %p76, %p77
    %p79 = scmp.ne.s32.totalorder %s68, %s69
    %p80 = scmp.eq.s32.totalorder %s13, 0
    %p81 = por %p79, %p80
    %p82 = scmp.ne.s32.totalorder %s68, %s69
    %p83 = scmp.eq.s32.totalorder %s14, 1
    %p84 = por %p82, %p83
    %p86 = scmp.ne.s32.totalorder %s69, %s85
    %p87 = scmp.eq.s32.totalorder %s14, 0
    %p88 = por %p86, %p87
    %p89 = scmp.le.s32.totalorder 1, %s8
    %p90 = scmp.lt.s32.totalorder %s8, 3
    %p91 = pnand %p89, %p90
    %p92 = pneg %p91
    // Predicated region
    $region9: #{forward.7} parent=5 // pred_check
      _
    $region10: #{forward.7} parent=5 // pred_check_branch
      %94 = sbr.rel (%p91) target = $region12
    $region11: #{forward.7} parent=5 // pred_region
      %s95 = ssub.s32 %s8, 1
      // Predicated region
      $region13: #{forward.7} parent=11 // pred_check
        %p96 = pneg %p55
      $region14: #{forward.7} parent=11 // pred_check_branch
        %98 = sbr.rel (%p96) target = $region16
      $region15: #{forward.7} parent=11 // pred_region
        _
      $region16: #{forward.7} parent=11 // pred_fallthru
        _
    $region12: #{forward.7} parent=5 // pred_fallthru
      _
    %p99 = scmp.lt.s32.totalorder %s8, 2
    // Predicated region
    $region17: #{forward.7} parent=5 // pred_check
      %p100 = pneg %p99
    $region18: #{forward.7} parent=5 // pred_check_branch
      %102 = sbr.rel (%p100) target = $region20
    $region19: #{forward.7} parent=5 // pred_region
      // Predicated region
      $region21: #{forward.7} parent=19 // pred_check
        %p103 = pneg %p28
      $region22: #{forward.7} parent=19 // pred_check_branch
        %105 = sbr.rel (%p103) target = $region24
      $region23: #{forward.7} parent=19 // pred_region
        %p106 = scmp.lt.s32.totalorder %s8, 1
        %s107 = scalar_select %p106, %s8, 1
        %s108 = smul.addr %s107, 128
        %s109 = smul.addr %s108, 8
        %s110 = scalar_lea.vmem %s0, %s109
      $region24: #{forward.7} parent=19 // pred_fallthru
        _
    $region20: #{forward.7} parent=5 // pred_fallthru
      _
    %p111 = scmp.le.s32.totalorder 1, %s8
    %p112 = scmp.lt.s32.totalorder %s8, 3
    %p113 = pnand %p111, %p112
    %p114 = pneg %p113
    // Predicated region
    $region25: #{forward.7} parent=5 // pred_check
      _
    $region26: #{forward.7} parent=5 // pred_check_branch
      %116 = sbr.rel (%p113) target = $region28
    $region27: #{forward.7} parent=5 // pred_region
      %s117 = ssub.s32 %s8, 1
      %p118 = scmp.lt.s32.totalorder %s13, 1
      %s119 = scalar_select %p118, %s13, 1
      %s120 = smul.addr %s119, 128
      %s121 = smul.addr %s120, 8
      %s122 = scalar_lea.vmem %s0, %s121
      %p123 = pneg %p34
      %p124 = pneg %p31
      %p125 = pneg %p55
      %p126 = pneg %p52
      %p127 = pneg %p81
      %p128 = pneg %p78
      %p129 = scmp.lt.s32.totalorder %s13, 1
      %s130 = scalar_select %p129, %s13, 1
      %s131 = smul.addr %s130, 32
      %s132 = smul.addr %s131, 8
      %s133 = scalar_lea.vmem %s2, %s132
      %p134 = scmp.lt.s32.totalorder %s13, 1
      %s135 = scalar_select %p134, %s13, 1
      %s136 = smul.addr %s135, 128
      %s137 = smul.addr %s136, 8
      %s138 = scalar_lea.vmem %s0, %s137
      %p139 = scmp.lt.s32.totalorder %s13, 1
      %s140 = scalar_select %p139, %s13, 1
      %s141 = smul.addr %s140, 32
      %s142 = smul.addr %s141, 8
      %s143 = scalar_lea.vmem %s2, %s142
      %v145 = vld [vmem:[%s1] sm:$0xff]
      %v146 = vld [vmem:[%s1 + $0x8] sm:$0xff]
      %v147 = vld [vmem:[%s1 + $0x10] sm:$0xff]
      %v148 = vld [vmem:[%s1 + $0x18] sm:$0xff]
      %v149 = vld [vmem:[%s1 + $0x20] sm:$0xff]
      %v150 = vld [vmem:[%s1 + $0x28] sm:$0xff]
      %v151 = vld [vmem:[%s1 + $0x30] sm:$0xff]
      %v152 = vld [vmem:[%s1 + $0x38] sm:$0xff]
      %v153 = vld [vmem:[%s1 + $0x40] sm:$0xff]
      %v154 = vld [vmem:[%s1 + $0x48] sm:$0xff]
      %v155 = vld [vmem:[%s1 + $0x50] sm:$0xff]
      %v156 = vld [vmem:[%s1 + $0x58] sm:$0xff]
      %v157 = vld [vmem:[%s1 + $0x60] sm:$0xff]
      %v158 = vld [vmem:[%s1 + $0x68] sm:$0xff]
      %v159 = vld [vmem:[%s1 + $0x70] sm:$0xff]
      %v160 = vld [vmem:[%s1 + $0x78] sm:$0xff]
      %v161 = vld [vmem:[%s1 + $0x80] sm:$0xff]
      %v162 = vld [vmem:[%s1 + $0x88] sm:$0xff]
      %v163 = vld [vmem:[%s1 + $0x90] sm:$0xff]
      %v164 = vld [vmem:[%s1 + $0x98] sm:$0xff]
      %v165 = vld [vmem:[%s1 + $0xa0] sm:$0xff]
      %v166 = vld [vmem:[%s1 + $0xa8] sm:$0xff]
      %v167 = vld [vmem:[%s1 + $0xb0] sm:$0xff]
      %v168 = vld [vmem:[%s1 + $0xb8] sm:$0xff]
      %v169 = vld [vmem:[%s1 + $0xc0] sm:$0xff]
      %v170 = vld [vmem:[%s1 + $0xc8] sm:$0xff]
      %v171 = vld [vmem:[%s1 + $0xd0] sm:$0xff]
      %v172 = vld [vmem:[%s1 + $0xd8] sm:$0xff]
      %v173 = vld [vmem:[%s1 + $0xe0] sm:$0xff]
      %v174 = vld [vmem:[%s1 + $0xe8] sm:$0xff]
      %v175 = vld [vmem:[%s1 + $0xf0] sm:$0xff]
      %v176 = vld [vmem:[%s1 + $0xf8] sm:$0xff]
      %v177 = vld [vmem:[%s1 + $0x100] sm:$0xff]
      %v178 = vld [vmem:[%s1 + $0x108] sm:$0xff]
      %v179 = vld [vmem:[%s1 + $0x110] sm:$0xff]
      %v180 = vld [vmem:[%s1 + $0x118] sm:$0xff]
      %v181 = vld [vmem:[%s1 + $0x120] sm:$0xff]
      %v182 = vld [vmem:[%s1 + $0x128] sm:$0xff]
      %v183 = vld [vmem:[%s1 + $0x130] sm:$0xff]
      %v184 = vld [vmem:[%s1 + $0x138] sm:$0xff]
      %v185 = vld [vmem:[%s1 + $0x140] sm:$0xff]
      %v186 = vld [vmem:[%s1 + $0x148] sm:$0xff]
      %v187 = vld [vmem:[%s1 + $0x150] sm:$0xff]
      %v188 = vld [vmem:[%s1 + $0x158] sm:$0xff]
      %v189 = vld [vmem:[%s1 + $0x160] sm:$0xff]
      %v190 = vld [vmem:[%s1 + $0x168] sm:$0xff]
      %v191 = vld [vmem:[%s1 + $0x170] sm:$0xff]
      %v192 = vld [vmem:[%s1 + $0x178] sm:$0xff]
      %v193 = vld [vmem:[%s1 + $0x180] sm:$0xff]
      %v194 = vld [vmem:[%s1 + $0x188] sm:$0xff]
      %v195 = vld [vmem:[%s1 + $0x190] sm:$0xff]
      %v196 = vld [vmem:[%s1 + $0x198] sm:$0xff]
      %v197 = vld [vmem:[%s1 + $0x1a0] sm:$0xff]
      %v198 = vld [vmem:[%s1 + $0x1a8] sm:$0xff]
      %v199 = vld [vmem:[%s1 + $0x1b0] sm:$0xff]
      %v200 = vld [vmem:[%s1 + $0x1b8] sm:$0xff]
      %v201 = vld [vmem:[%s1 + $0x1c0] sm:$0xff]
      %v202 = vld [vmem:[%s1 + $0x1c8] sm:$0xff]
      %v203 = vld [vmem:[%s1 + $0x1d0] sm:$0xff]
      %v204 = vld [vmem:[%s1 + $0x1d8] sm:$0xff]
      %v205 = vld [vmem:[%s1 + $0x1e0] sm:$0xff]
      %v206 = vld [vmem:[%s1 + $0x1e8] sm:$0xff]
      %v207 = vld [vmem:[%s1 + $0x1f0] sm:$0xff]
      %v208 = vld [vmem:[%s1 + $0x1f8] sm:$0xff]
      %v209 = vld [vmem:[%s1 + $0x200] sm:$0xff]
      %v210 = vld [vmem:[%s1 + $0x208] sm:$0xff]
      %v211 = vld [vmem:[%s1 + $0x210] sm:$0xff]
      %v212 = vld [vmem:[%s1 + $0x218] sm:$0xff]
      %v213 = vld [vmem:[%s1 + $0x220] sm:$0xff]
      %v214 = vld [vmem:[%s1 + $0x228] sm:$0xff]
      %v215 = vld [vmem:[%s1 + $0x230] sm:$0xff]
      %v216 = vld [vmem:[%s1 + $0x238] sm:$0xff]
      %v217 = vld [vmem:[%s1 + $0x240] sm:$0xff]
      %v218 = vld [vmem:[%s1 + $0x248] sm:$0xff]
      %v219 = vld [vmem:[%s1 + $0x250] sm:$0xff]
      %v220 = vld [vmem:[%s1 + $0x258] sm:$0xff]
      %v221 = vld [vmem:[%s1 + $0x260] sm:$0xff]
      %v222 = vld [vmem:[%s1 + $0x268] sm:$0xff]
      %v223 = vld [vmem:[%s1 + $0x270] sm:$0xff]
      %v224 = vld [vmem:[%s1 + $0x278] sm:$0xff]
      %v225 = vld [vmem:[%s1 + $0x280] sm:$0xff]
      %v226 = vld [vmem:[%s1 + $0x288] sm:$0xff]
      %v227 = vld [vmem:[%s1 + $0x290] sm:$0xff]
      %v228 = vld [vmem:[%s1 + $0x298] sm:$0xff]
      %v229 = vld [vmem:[%s1 + $0x2a0] sm:$0xff]
      %v230 = vld [vmem:[%s1 + $0x2a8] sm:$0xff]
      %v231 = vld [vmem:[%s1 + $0x2b0] sm:$0xff]
      %v232 = vld [vmem:[%s1 + $0x2b8] sm:$0xff]
      %v233 = vld [vmem:[%s1 + $0x2c0] sm:$0xff]
      %v234 = vld [vmem:[%s1 + $0x2c8] sm:$0xff]
      %v235 = vld [vmem:[%s1 + $0x2d0] sm:$0xff]
      %v236 = vld [vmem:[%s1 + $0x2d8] sm:$0xff]
      %v237 = vld [vmem:[%s1 + $0x2e0] sm:$0xff]
      %v238 = vld [vmem:[%s1 + $0x2e8] sm:$0xff]
      %v239 = vld [vmem:[%s1 + $0x2f0] sm:$0xff]
      %v240 = vld [vmem:[%s1 + $0x2f8] sm:$0xff]
      %v241 = vld [vmem:[%s1 + $0x300] sm:$0xff]
      %v242 = vld [vmem:[%s1 + $0x308] sm:$0xff]
      %v243 = vld [vmem:[%s1 + $0x310] sm:$0xff]
      %v244 = vld [vmem:[%s1 + $0x318] sm:$0xff]
      %v245 = vld [vmem:[%s1 + $0x320] sm:$0xff]
      %v246 = vld [vmem:[%s1 + $0x328] sm:$0xff]
      %v247 = vld [vmem:[%s1 + $0x330] sm:$0xff]
      %v248 = vld [vmem:[%s1 + $0x338] sm:$0xff]
      %v249 = vld [vmem:[%s1 + $0x340] sm:$0xff]
      %v250 = vld [vmem:[%s1 + $0x348] sm:$0xff]
      %v251 = vld [vmem:[%s1 + $0x350] sm:$0xff]
      %v252 = vld [vmem:[%s1 + $0x358] sm:$0xff]
      %v253 = vld [vmem:[%s1 + $0x360] sm:$0xff]
      %v254 = vld [vmem:[%s1 + $0x368] sm:$0xff]
      %v255 = vld [vmem:[%s1 + $0x370] sm:$0xff]
      %v256 = vld [vmem:[%s1 + $0x378] sm:$0xff]
      %v257 = vld [vmem:[%s1 + $0x380] sm:$0xff]
      %v258 = vld [vmem:[%s1 + $0x388] sm:$0xff]
      %v259 = vld [vmem:[%s1 + $0x390] sm:$0xff]
      %v260 = vld [vmem:[%s1 + $0x398] sm:$0xff]
      %v261 = vld [vmem:[%s1 + $0x3a0] sm:$0xff]
      %v262 = vld [vmem:[%s1 + $0x3a8] sm:$0xff]
      %v263 = vld [vmem:[%s1 + $0x3b0] sm:$0xff]
      %v264 = vld [vmem:[%s1 + $0x3b8] sm:$0xff]
      %v265 = vld [vmem:[%s1 + $0x3c0] sm:$0xff]
      %v266 = vld [vmem:[%s1 + $0x3c8] sm:$0xff]
      %v267 = vld [vmem:[%s1 + $0x3d0] sm:$0xff]
      %v268 = vld [vmem:[%s1 + $0x3d8] sm:$0xff]
      %v269 = vld [vmem:[%s1 + $0x3e0] sm:$0xff]
      %v270 = vld [vmem:[%s1 + $0x3e8] sm:$0xff]
      %v271 = vld [vmem:[%s1 + $0x3f0] sm:$0xff]
      %v272 = vld [vmem:[%s1 + $0x3f8] sm:$0xff]
      %v273 = vld [vmem:[%s138] sm:$0xff]
      %v274 = vld [vmem:[%s138 + $0x8] sm:$0xff]
      %v275 = vld [vmem:[%s138 + $0x10] sm:$0xff]
      %v276 = vld [vmem:[%s138 + $0x18] sm:$0xff]
      %v277 = vld [vmem:[%s138 + $0x20] sm:$0xff]
      %v278 = vld [vmem:[%s138 + $0x28] sm:$0xff]
      %v279 = vld [vmem:[%s138 + $0x30] sm:$0xff]
      %v280 = vld [vmem:[%s138 + $0x38] sm:$0xff]
      %v281 = vld [vmem:[%s138 + $0x40] sm:$0xff]
      %v282 = vld [vmem:[%s138 + $0x48] sm:$0xff]
      %v283 = vld [vmem:[%s138 + $0x50] sm:$0xff]
      %v284 = vld [vmem:[%s138 + $0x58] sm:$0xff]
      %v285 = vld [vmem:[%s138 + $0x60] sm:$0xff]
      %v286 = vld [vmem:[%s138 + $0x68] sm:$0xff]
      %v287 = vld [vmem:[%s138 + $0x70] sm:$0xff]
      %v288 = vld [vmem:[%s138 + $0x78] sm:$0xff]
      %v289 = vld [vmem:[%s138 + $0x80] sm:$0xff]
      %v290 = vld [vmem:[%s138 + $0x88] sm:$0xff]
      %v291 = vld [vmem:[%s138 + $0x90] sm:$0xff]
      %v292 = vld [vmem:[%s138 + $0x98] sm:$0xff]
      %v293 = vld [vmem:[%s138 + $0xa0] sm:$0xff]
      %v294 = vld [vmem:[%s138 + $0xa8] sm:$0xff]
      %v295 = vld [vmem:[%s138 + $0xb0] sm:$0xff]
      %v296 = vld [vmem:[%s138 + $0xb8] sm:$0xff]
      %v297 = vld [vmem:[%s138 + $0xc0] sm:$0xff]
      %v298 = vld [vmem:[%s138 + $0xc8] sm:$0xff]
      %v299 = vld [vmem:[%s138 + $0xd0] sm:$0xff]
      %v300 = vld [vmem:[%s138 + $0xd8] sm:$0xff]
      %v301 = vld [vmem:[%s138 + $0xe0] sm:$0xff]
      %v302 = vld [vmem:[%s138 + $0xe8] sm:$0xff]
      %v303 = vld [vmem:[%s138 + $0xf0] sm:$0xff]
      %v304 = vld [vmem:[%s138 + $0xf8] sm:$0xff]
      %v305 = vld [vmem:[%s138 + $0x100] sm:$0xff]
      %v306 = vld [vmem:[%s138 + $0x108] sm:$0xff]
      %v307 = vld [vmem:[%s138 + $0x110] sm:$0xff]
      %v308 = vld [vmem:[%s138 + $0x118] sm:$0xff]
      %v309 = vld [vmem:[%s138 + $0x120] sm:$0xff]
      %v310 = vld [vmem:[%s138 + $0x128] sm:$0xff]
      %v311 = vld [vmem:[%s138 + $0x130] sm:$0xff]
      %v312 = vld [vmem:[%s138 + $0x138] sm:$0xff]
      %v313 = vld [vmem:[%s138 + $0x140] sm:$0xff]
      %v314 = vld [vmem:[%s138 + $0x148] sm:$0xff]
      %v315 = vld [vmem:[%s138 + $0x150] sm:$0xff]
      %v316 = vld [vmem:[%s138 + $0x158] sm:$0xff]
      %v317 = vld [vmem:[%s138 + $0x160] sm:$0xff]
      %v318 = vld [vmem:[%s138 + $0x168] sm:$0xff]
      %v319 = vld [vmem:[%s138 + $0x170] sm:$0xff]
      %v320 = vld [vmem:[%s138 + $0x178] sm:$0xff]
      %v321 = vld [vmem:[%s138 + $0x180] sm:$0xff]
      %v322 = vld [vmem:[%s138 + $0x188] sm:$0xff]
      %v323 = vld [vmem:[%s138 + $0x190] sm:$0xff]
      %v324 = vld [vmem:[%s138 + $0x198] sm:$0xff]
      %v325 = vld [vmem:[%s138 + $0x1a0] sm:$0xff]
      %v326 = vld [vmem:[%s138 + $0x1a8] sm:$0xff]
      %v327 = vld [vmem:[%s138 + $0x1b0] sm:$0xff]
      %v328 = vld [vmem:[%s138 + $0x1b8] sm:$0xff]
      %v329 = vld [vmem:[%s138 + $0x1c0] sm:$0xff]
      %v330 = vld [vmem:[%s138 + $0x1c8] sm:$0xff]
      %v331 = vld [vmem:[%s138 + $0x1d0] sm:$0xff]
      %v332 = vld [vmem:[%s138 + $0x1d8] sm:$0xff]
      %v333 = vld [vmem:[%s138 + $0x1e0] sm:$0xff]
      %v334 = vld [vmem:[%s138 + $0x1e8] sm:$0xff]
      %v335 = vld [vmem:[%s138 + $0x1f0] sm:$0xff]
      %v336 = vld [vmem:[%s138 + $0x1f8] sm:$0xff]
      %v337 = vld [vmem:[%s138 + $0x200] sm:$0xff]
      %v338 = vld [vmem:[%s138 + $0x208] sm:$0xff]
      %v339 = vld [vmem:[%s138 + $0x210] sm:$0xff]
      %v340 = vld [vmem:[%s138 + $0x218] sm:$0xff]
      %v341 = vld [vmem:[%s138 + $0x220] sm:$0xff]
      %v342 = vld [vmem:[%s138 + $0x228] sm:$0xff]
      %v343 = vld [vmem:[%s138 + $0x230] sm:$0xff]
      %v344 = vld [vmem:[%s138 + $0x238] sm:$0xff]
      %v345 = vld [vmem:[%s138 + $0x240] sm:$0xff]
      %v346 = vld [vmem:[%s138 + $0x248] sm:$0xff]
      %v347 = vld [vmem:[%s138 + $0x250] sm:$0xff]
      %v348 = vld [vmem:[%s138 + $0x258] sm:$0xff]
      %v349 = vld [vmem:[%s138 + $0x260] sm:$0xff]
      %v350 = vld [vmem:[%s138 + $0x268] sm:$0xff]
      %v351 = vld [vmem:[%s138 + $0x270] sm:$0xff]
      %v352 = vld [vmem:[%s138 + $0x278] sm:$0xff]
      %v353 = vld [vmem:[%s138 + $0x280] sm:$0xff]
      %v354 = vld [vmem:[%s138 + $0x288] sm:$0xff]
      %v355 = vld [vmem:[%s138 + $0x290] sm:$0xff]
      %v356 = vld [vmem:[%s138 + $0x298] sm:$0xff]
      %v357 = vld [vmem:[%s138 + $0x2a0] sm:$0xff]
      %v358 = vld [vmem:[%s138 + $0x2a8] sm:$0xff]
      %v359 = vld [vmem:[%s138 + $0x2b0] sm:$0xff]
      %v360 = vld [vmem:[%s138 + $0x2b8] sm:$0xff]
      %v361 = vld [vmem:[%s138 + $0x2c0] sm:$0xff]
      %v362 = vld [vmem:[%s138 + $0x2c8] sm:$0xff]
      %v363 = vld [vmem:[%s138 + $0x2d0] sm:$0xff]
      %v364 = vld [vmem:[%s138 + $0x2d8] sm:$0xff]
      %v365 = vld [vmem:[%s138 + $0x2e0] sm:$0xff]
      %v366 = vld [vmem:[%s138 + $0x2e8] sm:$0xff]
      %v367 = vld [vmem:[%s138 + $0x2f0] sm:$0xff]
      %v368 = vld [vmem:[%s138 + $0x2f8] sm:$0xff]
      %v369 = vld [vmem:[%s138 + $0x300] sm:$0xff]
      %v370 = vld [vmem:[%s138 + $0x308] sm:$0xff]
      %v371 = vld [vmem:[%s138 + $0x310] sm:$0xff]
      %v372 = vld [vmem:[%s138 + $0x318] sm:$0xff]
      %v373 = vld [vmem:[%s138 + $0x320] sm:$0xff]
      %v374 = vld [vmem:[%s138 + $0x328] sm:$0xff]
      %v375 = vld [vmem:[%s138 + $0x330] sm:$0xff]
      %v376 = vld [vmem:[%s138 + $0x338] sm:$0xff]
      %v377 = vld [vmem:[%s138 + $0x340] sm:$0xff]
      %v378 = vld [vmem:[%s138 + $0x348] sm:$0xff]
      %v379 = vld [vmem:[%s138 + $0x350] sm:$0xff]
      %v380 = vld [vmem:[%s138 + $0x358] sm:$0xff]
      %v381 = vld [vmem:[%s138 + $0x360] sm:$0xff]
      %v382 = vld [vmem:[%s138 + $0x368] sm:$0xff]
      %v383 = vld [vmem:[%s138 + $0x370] sm:$0xff]
      %v384 = vld [vmem:[%s138 + $0x378] sm:$0xff]
      %v385 = vld [vmem:[%s138 + $0x380] sm:$0xff]
      %v386 = vld [vmem:[%s138 + $0x388] sm:$0xff]
      %v387 = vld [vmem:[%s138 + $0x390] sm:$0xff]
      %v388 = vld [vmem:[%s138 + $0x398] sm:$0xff]
      %v389 = vld [vmem:[%s138 + $0x3a0] sm:$0xff]
      %v390 = vld [vmem:[%s138 + $0x3a8] sm:$0xff]
      %v391 = vld [vmem:[%s138 + $0x3b0] sm:$0xff]
      %v392 = vld [vmem:[%s138 + $0x3b8] sm:$0xff]
      %v393 = vld [vmem:[%s138 + $0x3c0] sm:$0xff]
      %v394 = vld [vmem:[%s138 + $0x3c8] sm:$0xff]
      %v395 = vld [vmem:[%s138 + $0x3d0] sm:$0xff]
      %v396 = vld [vmem:[%s138 + $0x3d8] sm:$0xff]
      %v397 = vld [vmem:[%s138 + $0x3e0] sm:$0xff]
      %v398 = vld [vmem:[%s138 + $0x3e8] sm:$0xff]
      %v399 = vld [vmem:[%s138 + $0x3f0] sm:$0xff]
      %v400 = vld [vmem:[%s138 + $0x3f8] sm:$0xff]
      %v401 = vpack.c.bf16 %v274, %v273
      %v402 = vpack.c.bf16 %v276, %v275
      %v403 = vpack.c.bf16 %v278, %v277
      %v404 = vpack.c.bf16 %v280, %v279
      %v405 = vpack.c.bf16 %v282, %v281
      %v406 = vpack.c.bf16 %v284, %v283
      %v407 = vpack.c.bf16 %v286, %v285
      %v408 = vpack.c.bf16 %v288, %v287
      %v409 = vpack.c.bf16 %v290, %v289
      %v410 = vpack.c.bf16 %v292, %v291
      %v411 = vpack.c.bf16 %v294, %v293
      %v412 = vpack.c.bf16 %v296, %v295
      %v413 = vpack.c.bf16 %v298, %v297
      %v414 = vpack.c.bf16 %v300, %v299
      %v415 = vpack.c.bf16 %v302, %v301
      %v416 = vpack.c.bf16 %v304, %v303
      %v417 = vpack.c.bf16 %v306, %v305
      %v418 = vpack.c.bf16 %v308, %v307
      %v419 = vpack.c.bf16 %v310, %v309
      %v420 = vpack.c.bf16 %v312, %v311
      %v421 = vpack.c.bf16 %v314, %v313
      %v422 = vpack.c.bf16 %v316, %v315
      %v423 = vpack.c.bf16 %v318, %v317
      %v424 = vpack.c.bf16 %v320, %v319
      %v425 = vpack.c.bf16 %v322, %v321
      %v426 = vpack.c.bf16 %v324, %v323
      %v427 = vpack.c.bf16 %v326, %v325
      %v428 = vpack.c.bf16 %v328, %v327
      %v429 = vpack.c.bf16 %v330, %v329
      %v430 = vpack.c.bf16 %v332, %v331
      %v431 = vpack.c.bf16 %v334, %v333
      %v432 = vpack.c.bf16 %v336, %v335
      %v433 = vpack.c.bf16 %v338, %v337
      %v434 = vpack.c.bf16 %v340, %v339
      %v435 = vpack.c.bf16 %v342, %v341
      %v436 = vpack.c.bf16 %v344, %v343
      %v437 = vpack.c.bf16 %v346, %v345
      %v438 = vpack.c.bf16 %v348, %v347
      %v439 = vpack.c.bf16 %v350, %v349
      %v440 = vpack.c.bf16 %v352, %v351
      %v441 = vpack.c.bf16 %v354, %v353
      %v442 = vpack.c.bf16 %v356, %v355
      %v443 = vpack.c.bf16 %v358, %v357
      %v444 = vpack.c.bf16 %v360, %v359
      %v445 = vpack.c.bf16 %v362, %v361
      %v446 = vpack.c.bf16 %v364, %v363
      %v447 = vpack.c.bf16 %v366, %v365
      %v448 = vpack.c.bf16 %v368, %v367
      %v449 = vpack.c.bf16 %v370, %v369
      %v450 = vpack.c.bf16 %v372, %v371
      %v451 = vpack.c.bf16 %v374, %v373
      %v452 = vpack.c.bf16 %v376, %v375
      %v453 = vpack.c.bf16 %v378, %v377
      %v454 = vpack.c.bf16 %v380, %v379
      %v455 = vpack.c.bf16 %v382, %v381
      %v456 = vpack.c.bf16 %v384, %v383
      %v457 = vpack.c.bf16 %v386, %v385
      %v458 = vpack.c.bf16 %v388, %v387
      %v459 = vpack.c.bf16 %v390, %v389
      %v460 = vpack.c.bf16 %v392, %v391
      %v461 = vpack.c.bf16 %v394, %v393
      %v462 = vpack.c.bf16 %v396, %v395
      %v463 = vpack.c.bf16 %v398, %v397
      %v464 = vpack.c.bf16 %v400, %v399
      %v593 = vunpack.c.l.b16 %v145
      %v594 = vunpack.c.h.b16 %v145
      %v595 = vunpack.c.l.b16 %v146
      %v596 = vunpack.c.h.b16 %v146
      %v597 = vunpack.c.l.b16 %v147
      %v598 = vunpack.c.h.b16 %v147
      %v599 = vunpack.c.l.b16 %v148
      %v600 = vunpack.c.h.b16 %v148
      %v601 = vunpack.c.l.b16 %v149
      %v602 = vunpack.c.h.b16 %v149
      %v603 = vunpack.c.l.b16 %v150
      %v604 = vunpack.c.h.b16 %v150
      %v605 = vunpack.c.l.b16 %v151
      %v606 = vunpack.c.h.b16 %v151
      %v607 = vunpack.c.l.b16 %v152
      %v608 = vunpack.c.h.b16 %v152
      %v609 = vunpack.c.l.b16 %v153
      %v610 = vunpack.c.h.b16 %v153
      %v611 = vunpack.c.l.b16 %v154
      %v612 = vunpack.c.h.b16 %v154
      %v613 = vunpack.c.l.b16 %v155
      %v614 = vunpack.c.h.b16 %v155
      %v615 = vunpack.c.l.b16 %v156
      %v616 = vunpack.c.h.b16 %v156
      %v617 = vunpack.c.l.b16 %v157
      %v618 = vunpack.c.h.b16 %v157
      %v619 = vunpack.c.l.b16 %v158
      %v620 = vunpack.c.h.b16 %v158
      %v621 = vunpack.c.l.b16 %v159
      %v622 = vunpack.c.h.b16 %v159
      %v623 = vunpack.c.l.b16 %v160
      %v624 = vunpack.c.h.b16 %v160
      %v625 = vunpack.c.l.b16 %v161
      %v626 = vunpack.c.h.b16 %v161
      %v627 = vunpack.c.l.b16 %v162
      %v628 = vunpack.c.h.b16 %v162
      %v629 = vunpack.c.l.b16 %v163
      %v630 = vunpack.c.h.b16 %v163
      %v631 = vunpack.c.l.b16 %v164
      %v632 = vunpack.c.h.b16 %v164
      %v633 = vunpack.c.l.b16 %v165
      %v634 = vunpack.c.h.b16 %v165
      %v635 = vunpack.c.l.b16 %v166
      %v636 = vunpack.c.h.b16 %v166
      %v637 = vunpack.c.l.b16 %v167
      %v638 = vunpack.c.h.b16 %v167
      %v639 = vunpack.c.l.b16 %v168
      %v640 = vunpack.c.h.b16 %v168
      %v641 = vunpack.c.l.b16 %v169
      %v642 = vunpack.c.h.b16 %v169
      %v643 = vunpack.c.l.b16 %v170
      %v644 = vunpack.c.h.b16 %v170
      %v645 = vunpack.c.l.b16 %v171
      %v646 = vunpack.c.h.b16 %v171
      %v647 = vunpack.c.l.b16 %v172
      %v648 = vunpack.c.h.b16 %v172
      %v649 = vunpack.c.l.b16 %v173
      %v650 = vunpack.c.h.b16 %v173
      %v651 = vunpack.c.l.b16 %v174
      %v652 = vunpack.c.h.b16 %v174
      %v653 = vunpack.c.l.b16 %v175
      %v654 = vunpack.c.h.b16 %v175
      %v655 = vunpack.c.l.b16 %v176
      %v656 = vunpack.c.h.b16 %v176
      %v657 = vunpack.c.l.b16 %v177
      %v658 = vunpack.c.h.b16 %v177
      %v659 = vunpack.c.l.b16 %v178
      %v660 = vunpack.c.h.b16 %v178
      %v661 = vunpack.c.l.b16 %v179
      %v662 = vunpack.c.h.b16 %v179
      %v663 = vunpack.c.l.b16 %v180
      %v664 = vunpack.c.h.b16 %v180
      %v665 = vunpack.c.l.b16 %v181
      %v666 = vunpack.c.h.b16 %v181
      %v667 = vunpack.c.l.b16 %v182
      %v668 = vunpack.c.h.b16 %v182
      %v669 = vunpack.c.l.b16 %v183
      %v670 = vunpack.c.h.b16 %v183
      %v671 = vunpack.c.l.b16 %v184
      %v672 = vunpack.c.h.b16 %v184
      %v673 = vunpack.c.l.b16 %v185
      %v674 = vunpack.c.h.b16 %v185
      %v675 = vunpack.c.l.b16 %v186
      %v676 = vunpack.c.h.b16 %v186
      %v677 = vunpack.c.l.b16 %v187
      %v678 = vunpack.c.h.b16 %v187
      %v679 = vunpack.c.l.b16 %v188
      %v680 = vunpack.c.h.b16 %v188
      %v681 = vunpack.c.l.b16 %v189
      %v682 = vunpack.c.h.b16 %v189
      %v683 = vunpack.c.l.b16 %v190
      %v684 = vunpack.c.h.b16 %v190
      %v685 = vunpack.c.l.b16 %v191
      %v686 = vunpack.c.h.b16 %v191
      %v687 = vunpack.c.l.b16 %v192
      %v688 = vunpack.c.h.b16 %v192
      %v689 = vunpack.c.l.b16 %v193
      %v690 = vunpack.c.h.b16 %v193
      %v691 = vunpack.c.l.b16 %v194
      %v692 = vunpack.c.h.b16 %v194
      %v693 = vunpack.c.l.b16 %v195
      %v694 = vunpack.c.h.b16 %v195
      %v695 = vunpack.c.l.b16 %v196
      %v696 = vunpack.c.h.b16 %v196
      %v697 = vunpack.c.l.b16 %v197
      %v698 = vunpack.c.h.b16 %v197
      %v699 = vunpack.c.l.b16 %v198
      %v700 = vunpack.c.h.b16 %v198
      %v701 = vunpack.c.l.b16 %v199
      %v702 = vunpack.c.h.b16 %v199
      %v703 = vunpack.c.l.b16 %v200
      %v704 = vunpack.c.h.b16 %v200
      %v705 = vunpack.c.l.b16 %v201
      %v706 = vunpack.c.h.b16 %v201
      %v707 = vunpack.c.l.b16 %v202
      %v708 = vunpack.c.h.b16 %v202
      %v709 = vunpack.c.l.b16 %v203
      %v710 = vunpack.c.h.b16 %v203
      %v711 = vunpack.c.l.b16 %v204
      %v712 = vunpack.c.h.b16 %v204
      %v713 = vunpack.c.l.b16 %v205
      %v714 = vunpack.c.h.b16 %v205
      %v715 = vunpack.c.l.b16 %v206
      %v716 = vunpack.c.h.b16 %v206
      %v717 = vunpack.c.l.b16 %v207
      %v718 = vunpack.c.h.b16 %v207
      %v719 = vunpack.c.l.b16 %v208
      %v720 = vunpack.c.h.b16 %v208
      %v721 = vunpack.c.l.b16 %v209
      %v722 = vunpack.c.h.b16 %v209
      %v723 = vunpack.c.l.b16 %v210
      %v724 = vunpack.c.h.b16 %v210
      %v725 = vunpack.c.l.b16 %v211
      %v726 = vunpack.c.h.b16 %v211
      %v727 = vunpack.c.l.b16 %v212
      %v728 = vunpack.c.h.b16 %v212
      %v729 = vunpack.c.l.b16 %v213
      %v730 = vunpack.c.h.b16 %v213
      %v731 = vunpack.c.l.b16 %v214
      %v732 = vunpack.c.h.b16 %v214
      %v733 = vunpack.c.l.b16 %v215
      %v734 = vunpack.c.h.b16 %v215
      %v735 = vunpack.c.l.b16 %v216
      %v736 = vunpack.c.h.b16 %v216
      %v737 = vunpack.c.l.b16 %v217
      %v738 = vunpack.c.h.b16 %v217
      %v739 = vunpack.c.l.b16 %v218
      %v740 = vunpack.c.h.b16 %v218
      %v741 = vunpack.c.l.b16 %v219
      %v742 = vunpack.c.h.b16 %v219
      %v743 = vunpack.c.l.b16 %v220
      %v744 = vunpack.c.h.b16 %v220
      %v745 = vunpack.c.l.b16 %v221
      %v746 = vunpack.c.h.b16 %v221
      %v747 = vunpack.c.l.b16 %v222
      %v748 = vunpack.c.h.b16 %v222
      %v749 = vunpack.c.l.b16 %v223
      %v750 = vunpack.c.h.b16 %v223
      %v751 = vunpack.c.l.b16 %v224
      %v752 = vunpack.c.h.b16 %v224
      %v753 = vunpack.c.l.b16 %v225
      %v754 = vunpack.c.h.b16 %v225
      %v755 = vunpack.c.l.b16 %v226
      %v756 = vunpack.c.h.b16 %v226
      %v757 = vunpack.c.l.b16 %v227
      %v758 = vunpack.c.h.b16 %v227
      %v759 = vunpack.c.l.b16 %v228
      %v760 = vunpack.c.h.b16 %v228
      %v761 = vunpack.c.l.b16 %v229
      %v762 = vunpack.c.h.b16 %v229
      %v763 = vunpack.c.l.b16 %v230
      %v764 = vunpack.c.h.b16 %v230
      %v765 = vunpack.c.l.b16 %v231
      %v766 = vunpack.c.h.b16 %v231
      %v767 = vunpack.c.l.b16 %v232
      %v768 = vunpack.c.h.b16 %v232
      %v769 = vunpack.c.l.b16 %v233
      %v770 = vunpack.c.h.b16 %v233
      %v771 = vunpack.c.l.b16 %v234
      %v772 = vunpack.c.h.b16 %v234
      %v773 = vunpack.c.l.b16 %v235
      %v774 = vunpack.c.h.b16 %v235
      %v775 = vunpack.c.l.b16 %v236
      %v776 = vunpack.c.h.b16 %v236
      %v777 = vunpack.c.l.b16 %v237
      %v778 = vunpack.c.h.b16 %v237
      %v779 = vunpack.c.l.b16 %v238
      %v780 = vunpack.c.h.b16 %v238
      %v781 = vunpack.c.l.b16 %v239
      %v782 = vunpack.c.h.b16 %v239
      %v783 = vunpack.c.l.b16 %v240
      %v784 = vunpack.c.h.b16 %v240
      %v785 = vunpack.c.l.b16 %v241
      %v786 = vunpack.c.h.b16 %v241
      %v787 = vunpack.c.l.b16 %v242
      %v788 = vunpack.c.h.b16 %v242
      %v789 = vunpack.c.l.b16 %v243
      %v790 = vunpack.c.h.b16 %v243
      %v791 = vunpack.c.l.b16 %v244
      %v792 = vunpack.c.h.b16 %v244
      %v793 = vunpack.c.l.b16 %v245
      %v794 = vunpack.c.h.b16 %v245
      %v795 = vunpack.c.l.b16 %v246
      %v796 = vunpack.c.h.b16 %v246
      %v797 = vunpack.c.l.b16 %v247
      %v798 = vunpack.c.h.b16 %v247
      %v799 = vunpack.c.l.b16 %v248
      %v800 = vunpack.c.h.b16 %v248
      %v801 = vunpack.c.l.b16 %v249
      %v802 = vunpack.c.h.b16 %v249
      %v803 = vunpack.c.l.b16 %v250
      %v804 = vunpack.c.h.b16 %v250
      %v805 = vunpack.c.l.b16 %v251
      %v806 = vunpack.c.h.b16 %v251
      %v807 = vunpack.c.l.b16 %v252
      %v808 = vunpack.c.h.b16 %v252
      %v809 = vunpack.c.l.b16 %v253
      %v810 = vunpack.c.h.b16 %v253
      %v811 = vunpack.c.l.b16 %v254
      %v812 = vunpack.c.h.b16 %v254
      %v813 = vunpack.c.l.b16 %v255
      %v814 = vunpack.c.h.b16 %v255
      %v815 = vunpack.c.l.b16 %v256
      %v816 = vunpack.c.h.b16 %v256
      %v817 = vunpack.c.l.b16 %v257
      %v818 = vunpack.c.h.b16 %v257
      %v819 = vunpack.c.l.b16 %v258
      %v820 = vunpack.c.h.b16 %v258
      %v821 = vunpack.c.l.b16 %v259
      %v822 = vunpack.c.h.b16 %v259
      %v823 = vunpack.c.l.b16 %v260
      %v824 = vunpack.c.h.b16 %v260
      %v825 = vunpack.c.l.b16 %v261
      %v826 = vunpack.c.h.b16 %v261
      %v827 = vunpack.c.l.b16 %v262
      %v828 = vunpack.c.h.b16 %v262
      %v829 = vunpack.c.l.b16 %v263
      %v830 = vunpack.c.h.b16 %v263
      %v831 = vunpack.c.l.b16 %v264
      %v832 = vunpack.c.h.b16 %v264
      %v833 = vunpack.c.l.b16 %v265
      %v834 = vunpack.c.h.b16 %v265
      %v835 = vunpack.c.l.b16 %v266
      %v836 = vunpack.c.h.b16 %v266
      %v837 = vunpack.c.l.b16 %v267
      %v838 = vunpack.c.h.b16 %v267
      %v839 = vunpack.c.l.b16 %v268
      %v840 = vunpack.c.h.b16 %v268
      %v841 = vunpack.c.l.b16 %v269
      %v842 = vunpack.c.h.b16 %v269
      %v843 = vunpack.c.l.b16 %v270
      %v844 = vunpack.c.h.b16 %v270
      %v845 = vunpack.c.l.b16 %v271
      %v846 = vunpack.c.h.b16 %v271
      %v847 = vunpack.c.l.b16 %v272
      %v848 = vunpack.c.h.b16 %v272
      %v849 = vpack.c.b16 %v601, %v593
      %v850 = vpack.c.b16 %v602, %v594
      %v851 = vpack.c.b16 %v603, %v595
      %v852 = vpack.c.b16 %v604, %v596
      %v853 = vpack.c.b16 %v605, %v597
      %v854 = vpack.c.b16 %v606, %v598
      %v855 = vpack.c.b16 %v607, %v599
      %v856 = vpack.c.b16 %v608, %v600
      %v857 = vpack.c.b16 %v617, %v609
      %v858 = vpack.c.b16 %v618, %v610
      %v859 = vpack.c.b16 %v619, %v611
      %v860 = vpack.c.b16 %v620, %v612
      %v861 = vpack.c.b16 %v621, %v613
      %v862 = vpack.c.b16 %v622, %v614
      %v863 = vpack.c.b16 %v623, %v615
      %v864 = vpack.c.b16 %v624, %v616
      %v865 = vpack.c.b16 %v633, %v625
      %v866 = vpack.c.b16 %v634, %v626
      %v867 = vpack.c.b16 %v635, %v627
      %v868 = vpack.c.b16 %v636, %v628
      %v869 = vpack.c.b16 %v637, %v629
      %v870 = vpack.c.b16 %v638, %v630
      %v871 = vpack.c.b16 %v639, %v631
      %v872 = vpack.c.b16 %v640, %v632
      %v873 = vpack.c.b16 %v649, %v641
      %v874 = vpack.c.b16 %v650, %v642
      %v875 = vpack.c.b16 %v651, %v643
      %v876 = vpack.c.b16 %v652, %v644
      %v877 = vpack.c.b16 %v653, %v645
      %v878 = vpack.c.b16 %v654, %v646
      %v879 = vpack.c.b16 %v655, %v647
      %v880 = vpack.c.b16 %v656, %v648
      %v881 = vpack.c.b16 %v665, %v657
      %v882 = vpack.c.b16 %v666, %v658
      %v883 = vpack.c.b16 %v667, %v659
      %v884 = vpack.c.b16 %v668, %v660
      %v885 = vpack.c.b16 %v669, %v661
      %v886 = vpack.c.b16 %v670, %v662
      %v887 = vpack.c.b16 %v671, %v663
      %v888 = vpack.c.b16 %v672, %v664
      %v889 = vpack.c.b16 %v681, %v673
      %v890 = vpack.c.b16 %v682, %v674
      %v891 = vpack.c.b16 %v683, %v675
      %v892 = vpack.c.b16 %v684, %v676
      %v893 = vpack.c.b16 %v685, %v677
      %v894 = vpack.c.b16 %v686, %v678
      %v895 = vpack.c.b16 %v687, %v679
      %v896 = vpack.c.b16 %v688, %v680
      %v897 = vpack.c.b16 %v697, %v689
      %v898 = vpack.c.b16 %v698, %v690
      %v899 = vpack.c.b16 %v699, %v691
      %v900 = vpack.c.b16 %v700, %v692
      %v901 = vpack.c.b16 %v701, %v693
      %v902 = vpack.c.b16 %v702, %v694
      %v903 = vpack.c.b16 %v703, %v695
      %v904 = vpack.c.b16 %v704, %v696
      %v905 = vpack.c.b16 %v713, %v705
      %v906 = vpack.c.b16 %v714, %v706
      %v907 = vpack.c.b16 %v715, %v707
      %v908 = vpack.c.b16 %v716, %v708
      %v909 = vpack.c.b16 %v717, %v709
      %v910 = vpack.c.b16 %v718, %v710
      %v911 = vpack.c.b16 %v719, %v711
      %v912 = vpack.c.b16 %v720, %v712
      %v913 = vpack.c.b16 %v729, %v721
      %v914 = vpack.c.b16 %v730, %v722
      %v915 = vpack.c.b16 %v731, %v723
      %v916 = vpack.c.b16 %v732, %v724
      %v917 = vpack.c.b16 %v733, %v725
      %v918 = vpack.c.b16 %v734, %v726
      %v919 = vpack.c.b16 %v735, %v727
      %v920 = vpack.c.b16 %v736, %v728
      %v921 = vpack.c.b16 %v745, %v737
      %v922 = vpack.c.b16 %v746, %v738
      %v923 = vpack.c.b16 %v747, %v739
      %v924 = vpack.c.b16 %v748, %v740
      %v925 = vpack.c.b16 %v749, %v741
      %v926 = vpack.c.b16 %v750, %v742
      %v927 = vpack.c.b16 %v751, %v743
      %v928 = vpack.c.b16 %v752, %v744
      %v929 = vpack.c.b16 %v761, %v753
      %v930 = vpack.c.b16 %v762, %v754
      %v931 = vpack.c.b16 %v763, %v755
      %v932 = vpack.c.b16 %v764, %v756
      %v933 = vpack.c.b16 %v765, %v757
      %v934 = vpack.c.b16 %v766, %v758
      %v935 = vpack.c.b16 %v767, %v759
      %v936 = vpack.c.b16 %v768, %v760
      %v937 = vpack.c.b16 %v777, %v769
      %v938 = vpack.c.b16 %v778, %v770
      %v939 = vpack.c.b16 %v779, %v771
      %v940 = vpack.c.b16 %v780, %v772
      %v941 = vpack.c.b16 %v781, %v773
      %v942 = vpack.c.b16 %v782, %v774
      %v943 = vpack.c.b16 %v783, %v775
      %v944 = vpack.c.b16 %v784, %v776
      %v945 = vpack.c.b16 %v793, %v785
      %v946 = vpack.c.b16 %v794, %v786
      %v947 = vpack.c.b16 %v795, %v787
      %v948 = vpack.c.b16 %v796, %v788
      %v949 = vpack.c.b16 %v797, %v789
      %v950 = vpack.c.b16 %v798, %v790
      %v951 = vpack.c.b16 %v799, %v791
      %v952 = vpack.c.b16 %v800, %v792
      %v953 = vpack.c.b16 %v809, %v801
      %v954 = vpack.c.b16 %v810, %v802
      %v955 = vpack.c.b16 %v811, %v803
      %v956 = vpack.c.b16 %v812, %v804
      %v957 = vpack.c.b16 %v813, %v805
      %v958 = vpack.c.b16 %v814, %v806
      %v959 = vpack.c.b16 %v815, %v807
      %v960 = vpack.c.b16 %v816, %v808
      %v961 = vpack.c.b16 %v825, %v817
      %v962 = vpack.c.b16 %v826, %v818
      %v963 = vpack.c.b16 %v827, %v819
      %v964 = vpack.c.b16 %v828, %v820
      %v965 = vpack.c.b16 %v829, %v821
      %v966 = vpack.c.b16 %v830, %v822
      %v967 = vpack.c.b16 %v831, %v823
      %v968 = vpack.c.b16 %v832, %v824
      %v969 = vpack.c.b16 %v841, %v833
      %v970 = vpack.c.b16 %v842, %v834
      %v971 = vpack.c.b16 %v843, %v835
      %v972 = vpack.c.b16 %v844, %v836
      %v973 = vpack.c.b16 %v845, %v837
      %v974 = vpack.c.b16 %v846, %v838
      %v975 = vpack.c.b16 %v847, %v839
      %v976 = vpack.c.b16 %v848, %v840
      %1105 = vmatprep.subr.bf16.mxu0 0
      %1106 = vmatpush1.bf16.msra.mxu0 %v401
      %1107 = vmatprep.subr.bf16.mxu0 0
      %1108 = vmatpush1.bf16.msra.mxu0 %v402
      %1109 = vmatprep.subr.bf16.mxu0 0
      %1110 = vmatpush1.bf16.msra.mxu0 %v403
      %1111 = vmatprep.subr.bf16.mxu0 0
      %1112 = vmatpush1.bf16.msra.mxu0 %v404
      %1113 = vmatprep.subr.bf16.mxu0 0
      %1114 = vmatpush1.bf16.msra.mxu0 %v405
      %1115 = vmatprep.subr.bf16.mxu0 0
      %1116 = vmatpush1.bf16.msra.mxu0 %v406
      %1117 = vmatprep.subr.bf16.mxu0 0
      %1118 = vmatpush1.bf16.msra.mxu0 %v407
      %1119 = vmatprep.subr.bf16.mxu0 0
      %1120 = vmatpush1.bf16.msra.mxu0 %v408
      %1121 = vmatprep.subr.bf16.mxu0 0
      %1122 = vmatpush1.bf16.msra.mxu0 %v409
      %1123 = vmatprep.subr.bf16.mxu0 0
      %1124 = vmatpush1.bf16.msra.mxu0 %v410
      %1125 = vmatprep.subr.bf16.mxu0 0
      %1126 = vmatpush1.bf16.msra.mxu0 %v411
      %1127 = vmatprep.subr.bf16.mxu0 0
      %1128 = vmatpush1.bf16.msra.mxu0 %v412
      %1129 = vmatprep.subr.bf16.mxu0 0
      %1130 = vmatpush1.bf16.msra.mxu0 %v413
      %1131 = vmatprep.subr.bf16.mxu0 0
      %1132 = vmatpush1.bf16.msra.mxu0 %v414
      %1133 = vmatprep.subr.bf16.mxu0 0
      %1134 = vmatpush1.bf16.msra.mxu0 %v415
      %1135 = vmatprep.subr.bf16.mxu0 0
      %1136 = vmatpush1.bf16.msra.mxu0 %v416
      %1137 = vmatprep.mubr.bf16.mxu0 %v850
      %1138 = vmatmul.mubr.bf16.gmra.mrb[0].mxu0 %v849
      %v1139 = vpop.f32.mrb[0].mxu0
      %v1140 = vadd.f32 0.0, %v1139
      %v1141 = vpop.f32.mrb[0].mxu0
      %v1142 = vpop.f32.mrb[0].mxu0
      %v1143 = vadd.f32 0.0, %v1142
      %v1144 = vpop.f32.mrb[0].mxu0
      %1145 = vmatprep.mubr.bf16.mxu0 %v858
      %1146 = vmatmul.mubr.bf16.gmra.mrb[0].mxu0 %v857
      %v1147 = vpop.f32.mrb[0].mxu0
      %v1148 = vadd.f32 0.0, %v1147
      %v1149 = vpop.f32.mrb[0].mxu0
      %v1150 = vpop.f32.mrb[0].mxu0
      %v1151 = vadd.f32 0.0, %v1150
      %v1152 = vpop.f32.mrb[0].mxu0
      %1153 = vmatprep.mubr.bf16.mxu0 %v866
      %1154 = vmatmul.mubr.bf16.gmra.mrb[0].mxu0 %v865
      %v1155 = vpop.f32.mrb[0].mxu0
      %v1156 = vadd.f32 0.0, %v1155
      %v1157 = vpop.f32.mrb[0].mxu0
      %v1158 = vpop.f32.mrb[0].mxu0
      %v1159 = vadd.f32 0.0, %v1158
      %v1160 = vpop.f32.mrb[0].mxu0
      %1161 = vmatprep.mubr.bf16.mxu0 %v874
      %1162 = vmatmul.mubr.bf16.gmra.mrb[0].mxu0 %v873
      %v1163 = vpop.f32.mrb[0].mxu0
      %v1164 = vadd.f32 0.0, %v1163
      %v1165 = vpop.f32.mrb[0].mxu0
      %v1166 = vpop.f32.mrb[0].mxu0
      %v1167 = vadd.f32 0.0, %v1166
      %v1168 = vpop.f32.mrb[0].mxu0
      %1169 = vmatprep.mubr.bf16.mxu0 %v882
      %1170 = vmatmul.mubr.bf16.gmra.mrb[0].mxu0 %v881
      %v1171 = vpop.f32.mrb[0].mxu0
      %v1172 = vadd.f32 0.0, %v1171
      %v1173 = vpop.f32.mrb[0].mxu0
      %v1174 = vpop.f32.mrb[0].mxu0
      %v1175 = vadd.f32 0.0, %v1174
      %v1176 = vpop.f32.mrb[0].mxu0
      %1177 = vmatprep.mubr.bf16.mxu0 %v890
      %1178 = vmatmul.mubr.bf16.gmra.mrb[0].mxu0 %v889
      %v1179 = vpop.f32.mrb[0].mxu0
      %v1180 = vadd.f32 0.0, %v1179
      %v1181 = vpop.f32.mrb[0].mxu0
      %v1182 = vpop.f32.mrb[0].mxu0
      %v1183 = vadd.f32 0.0, %v1182
      %v1184 = vpop.f32.mrb[0].mxu0
      %1185 = vmatprep.mubr.bf16.mxu0 %v898
      %1186 = vmatmul.mubr.bf16.gmra.mrb[0].mxu0 %v897
      %v1187 = vpop.f32.mrb[0].mxu0
      %v1188 = vadd.f32 0.0, %v1187
      %v1189 = vpop.f32.mrb[0].mxu0
      %v1190 = vpop.f32.mrb[0].mxu0
      %v1191 = vadd.f32 0.0, %v1190
      %v1192 = vpop.f32.mrb[0].mxu0
      %1193 = vmatprep.mubr.bf16.mxu0 %v906
      %1194 = vmatmul.mubr.bf16.gmra.mrb[0].mxu0 %v905
      %v1195 = vpop.f32.mrb[0].mxu0
      %v1196 = vadd.f32 0.0, %v1195
      %v1197 = vpop.f32.mrb[0].mxu0
      %v1198 = vpop.f32.mrb[0].mxu0
      %v1199 = vadd.f32 0.0, %v1198
      %v1200 = vpop.f32.mrb[0].mxu0
      %1201 = vmatprep.mubr.bf16.mxu0 %v914
      %1202 = vmatmul.mubr.bf16.gmra.mrb[0].mxu0 %v913
      %v1203 = vpop.f32.mrb[0].mxu0
      %v1204 = vadd.f32 0.0, %v1203
      %v1205 = vpop.f32.mrb[0].mxu0
      %v1206 = vpop.f32.mrb[0].mxu0
      %v1207 = vadd.f32 0.0, %v1206
      %v1208 = vpop.f32.mrb[0].mxu0
      %1209 = vmatprep.mubr.bf16.mxu0 %v922
      %1210 = vmatmul.mubr.bf16.gmra.mrb[0].mxu0 %v921
      %v1211 = vpop.f32.mrb[0].mxu0
      %v1212 = vadd.f32 0.0, %v1211
      %v1213 = vpop.f32.mrb[0].mxu0
      %v1214 = vpop.f32.mrb[0].mxu0
      %v1215 = vadd.f32 0.0, %v1214
      %v1216 = vpop.f32.mrb[0].mxu0
      %1217 = vmatprep.mubr.bf16.mxu0 %v930
      %1218 = vmatmul.mubr.bf16.gmra.mrb[0].mxu0 %v929
      %v1219 = vpop.f32.mrb[0].mxu0
      %v1220 = vadd.f32 0.0, %v1219
      %v1221 = vpop.f32.mrb[0].mxu0
      %v1222 = vpop.f32.mrb[0].mxu0
      %v1223 = vadd.f32 0.0, %v1222
      %v1224 = vpop.f32.mrb[0].mxu0
      %1225 = vmatprep.mubr.bf16.mxu0 %v938
      %1226 = vmatmul.mubr.bf16.gmra.mrb[0].mxu0 %v937
      %v1227 = vpop.f32.mrb[0].mxu0
      %v1228 = vadd.f32 0.0, %v1227
      %v1229 = vpop.f32.mrb[0].mxu0
      %v1230 = vpop.f32.mrb[0].mxu0
      %v1231 = vadd.f32 0.0, %v1230
      %v1232 = vpop.f32.mrb[0].mxu0
      %1233 = vmatprep.mubr.bf16.mxu0 %v946
      %1234 = vmatmul.mubr.bf16.gmra.mrb[0].mxu0 %v945
      %v1235 = vpop.f32.mrb[0].mxu0
      %v1236 = vadd.f32 0.0, %v1235
      %v1237 = vpop.f32.mrb[0].mxu0
      %v1238 = vpop.f32.mrb[0].mxu0
      %v1239 = vadd.f32 0.0, %v1238
      %v1240 = vpop.f32.mrb[0].mxu0
      %1241 = vmatprep.mubr.bf16.mxu0 %v954
      %1242 = vmatmul.mubr.bf16.gmra.mrb[0].mxu0 %v953
      %v1243 = vpop.f32.mrb[0].mxu0
      %v1244 = vadd.f32 0.0, %v1243
      %v1245 = vpop.f32.mrb[0].mxu0
      %v1246 = vpop.f32.mrb[0].mxu0
      %v1247 = vadd.f32 0.0, %v1246
      %v1248 = vpop.f32.mrb[0].mxu0
      %1249 = vmatprep.mubr.bf16.mxu0 %v962
      %1250 = vmatmul.mubr.bf16.gmra.mrb[0].mxu0 %v961
      %v1251 = vpop.f32.mrb[0].mxu0
      %v1252 = vadd.f32 0.0, %v1251
      %v1253 = vpop.f32.mrb[0].mxu0
      %v1254 = vpop.f32.mrb[0].mxu0
      %v1255 = vadd.f32 0.0, %v1254
      %v1256 = vpop.f32.mrb[0].mxu0
      %1257 = vmatprep.mubr.bf16.mxu0 %v970
      %1258 = vmatmul.mubr.bf16.gmra.mrb[0].mxu0 %v969
      %v1259 = vpop.f32.mrb[0].mxu0
      %v1260 = vadd.f32 0.0, %v1259
      %v1261 = vpop.f32.mrb[0].mxu0
      %v1262 = vpop.f32.mrb[0].mxu0
      %v1263 = vadd.f32 0.0, %v1262
      %v1264 = vpop.f32.mrb[0].mxu0
      %1265 = vdwg.mxu0
      %1266 = vmatprep.subr.bf16.mxu0 0
      %1267 = vmatpush1.bf16.msra.mxu0 %v417
      %1268 = vmatprep.subr.bf16.mxu0 0
      %1269 = vmatpush1.bf16.msra.mxu0 %v418
      %1270 = vmatprep.subr.bf16.mxu0 0
      %1271 = vmatpush1.bf16.msra.mxu0 %v419
      %1272 = vmatprep.subr.bf16.mxu0 0
      %1273 = vmatpush1.bf16.msra.mxu0 %v420
      %1274 = vmatprep.subr.bf16.mxu0 0
      %1275 = vmatpush1.bf16.msra.mxu0 %v421
      %1276 = vmatprep.subr.bf16.mxu0 0
      %1277 = vmatpush1.bf16.msra.mxu0 %v422
      %1278 = vmatprep.subr.bf16.mxu0 0
      %1279 = vmatpush1.bf16.msra.mxu0 %v423
      %1280 = vmatprep.subr.bf16.mxu0 0
      %1281 = vmatpush1.bf16.msra.mxu0 %v424
      %1282 = vmatprep.subr.bf16.mxu0 0
      %1283 = vmatpush1.bf16.msra.mxu0 %v425
      %1284 = vmatprep.subr.bf16.mxu0 0
      %1285 = vmatpush1.bf16.msra.mxu0 %v426
      %1286 = vmatprep.subr.bf16.mxu0 0
      %1287 = vmatpush1.bf16.msra.mxu0 %v427
      %1288 = vmatprep.subr.bf16.mxu0 0
      %1289 = vmatpush1.bf16.msra.mxu0 %v428
      %1290 = vmatprep.subr.bf16.mxu0 0
      %1291 = vmatpush1.bf16.msra.mxu0 %v429
      %1292 = vmatprep.subr.bf16.mxu0 0
      %1293 = vmatpush1.bf16.msra.mxu0 %v430
      %1294 = vmatprep.subr.bf16.mxu0 0
      %1295 = vmatpush1.bf16.msra.mxu0 %v431
      %1296 = vmatprep.subr.bf16.mxu0 0
      %1297 = vmatpush1.bf16.msra.mxu0 %v432
      %1298 = vmatprep.mubr.bf16.mxu0 %v852
      %1299 = vmatmul.mubr.bf16.gmra.mrb[0].mxu0 %v851
      %v1300 = vpop.f32.mrb[0].mxu0
      %v1301 = vadd.f32 %v1140, %v1300
      %v1302 = vpop.f32.mrb[0].mxu0
      %v1303 = vpop.f32.mrb[0].mxu0
      %v1304 = vadd.f32 %v1143, %v1303
      %v1305 = vpop.f32.mrb[0].mxu0
      %1306 = vmatprep.mubr.bf16.mxu0 %v860
      %1307 = vmatmul.mubr.bf16.gmra.mrb[0].mxu0 %v859
      %v1308 = vpop.f32.mrb[0].mxu0
      %v1309 = vadd.f32 %v1148, %v1308
      %v1310 = vpop.f32.mrb[0].mxu0
      %v1311 = vpop.f32.mrb[0].mxu0
      %v1312 = vadd.f32 %v1151, %v1311
      %v1313 = vpop.f32.mrb[0].mxu0
      %1314 = vmatprep.mubr.bf16.mxu0 %v868
      %1315 = vmatmul.mubr.bf16.gmra.mrb[0].mxu0 %v867
      %v1316 = vpop.f32.mrb[0].mxu0
      %v1317 = vadd.f32 %v1156, %v1316
      %v1318 = vpop.f32.mrb[0].mxu0
      %v1319 = vpop.f32.mrb[0].mxu0
      %v1320 = vadd.f32 %v1159, %v1319
      %v1321 = vpop.f32.mrb[0].mxu0
      %1322 = vmatprep.mubr.bf16.mxu0 %v876
      %1323 = vmatmul.mubr.bf16.gmra.mrb[0].mxu0 %v875
      %v1324 = vpop.f32.mrb[0].mxu0
      %v1325 = vadd.f32 %v1164, %v1324
      %v1326 = vpop.f32.mrb[0].mxu0
      %v1327 = vpop.f32.mrb[0].mxu0
      %v1328 = vadd.f32 %v1167, %v1327
      %v1329 = vpop.f32.mrb[0].mxu0
      %1330 = vmatprep.mubr.bf16.mxu0 %v884
      %1331 = vmatmul.mubr.bf16.gmra.mrb[0].mxu0 %v883
      %v1332 = vpop.f32.mrb[0].mxu0
      %v1333 = vadd.f32 %v1172, %v1332
      %v1334 = vpop.f32.mrb[0].mxu0
      %v1335 = vpop.f32.mrb[0].mxu0
      %v1336 = vadd.f32 %v1175, %v1335
      %v1337 = vpop.f32.mrb[0].mxu0
      %1338 = vmatprep.mubr.bf16.mxu0 %v892
      %1339 = vmatmul.mubr.bf16.gmra.mrb[0].mxu0 %v891
      %v1340 = vpop.f32.mrb[0].mxu0
      %v1341 = vadd.f32 %v1180, %v1340
      %v1342 = vpop.f32.mrb[0].mxu0
      %v1343 = vpop.f32.mrb[0].mxu0
      %v1344 = vadd.f32 %v1183, %v1343
      %v1345 = vpop.f32.mrb[0].mxu0
      %1346 = vmatprep.mubr.bf16.mxu0 %v900
      %1347 = vmatmul.mubr.bf16.gmra.mrb[0].mxu0 %v899
      %v1348 = vpop.f32.mrb[0].mxu0
      %v1349 = vadd.f32 %v1188, %v1348
      %v1350 = vpop.f32.mrb[0].mxu0
      %v1351 = vpop.f32.mrb[0].mxu0
      %v1352 = vadd.f32 %v1191, %v1351
      %v1353 = vpop.f32.mrb[0].mxu0
      %1354 = vmatprep.mubr.bf16.mxu0 %v908
      %1355 = vmatmul.mubr.bf16.gmra.mrb[0].mxu0 %v907
      %v1356 = vpop.f32.mrb[0].mxu0
      %v1357 = vadd.f32 %v1196, %v1356
      %v1358 = vpop.f32.mrb[0].mxu0
      %v1359 = vpop.f32.mrb[0].mxu0
      %v1360 = vadd.f32 %v1199, %v1359
      %v1361 = vpop.f32.mrb[0].mxu0
      %1362 = vmatprep.mubr.bf16.mxu0 %v916
      %1363 = vmatmul.mubr.bf16.gmra.mrb[0].mxu0 %v915
      %v1364 = vpop.f32.mrb[0].mxu0
      %v1365 = vadd.f32 %v1204, %v1364
      %v1366 = vpop.f32.mrb[0].mxu0
      %v1367 = vpop.f32.mrb[0].mxu0
      %v1368 = vadd.f32 %v1207, %v1367
      %v1369 = vpop.f32.mrb[0].mxu0
      %1370 = vmatprep.mubr.bf16.mxu0 %v924
      %1371 = vmatmul.mubr.bf16.gmra.mrb[0].mxu0 %v923
      %v1372 = vpop.f32.mrb[0].mxu0
      %v1373 = vadd.f32 %v1212, %v1372
      %v1374 = vpop.f32.mrb[0].mxu0
      %v1375 = vpop.f32.mrb[0].mxu0
      %v1376 = vadd.f32 %v1215, %v1375
      %v1377 = vpop.f32.mrb[0].mxu0
      %1378 = vmatprep.mubr.bf16.mxu0 %v932
      %1379 = vmatmul.mubr.bf16.gmra.mrb[0].mxu0 %v931
      %v1380 = vpop.f32.mrb[0].mxu0
      %v1381 = vadd.f32 %v1220, %v1380
      %v1382 = vpop.f32.mrb[0].mxu0
      %v1383 = vpop.f32.mrb[0].mxu0
      %v1384 = vadd.f32 %v1223, %v1383
      %v1385 = vpop.f32.mrb[0].mxu0
      %1386 = vmatprep.mubr.bf16.mxu0 %v940
      %1387 = vmatmul.mubr.bf16.gmra.mrb[0].mxu0 %v939
      %v1388 = vpop.f32.mrb[0].mxu0
      %v1389 = vadd.f32 %v1228, %v1388
      %v1390 = vpop.f32.mrb[0].mxu0
      %v1391 = vpop.f32.mrb[0].mxu0
      %v1392 = vadd.f32 %v1231, %v1391
      %v1393 = vpop.f32.mrb[0].mxu0
      %1394 = vmatprep.mubr.bf16.mxu0 %v948
      %1395 = vmatmul.mubr.bf16.gmra.mrb[0].mxu0 %v947
      %v1396 = vpop.f32.mrb[0].mxu0
      %v1397 = vadd.f32 %v1236, %v1396
      %v1398 = vpop.f32.mrb[0].mxu0
      %v1399 = vpop.f32.mrb[0].mxu0
      %v1400 = vadd.f32 %v1239, %v1399
      %v1401 = vpop.f32.mrb[0].mxu0
      %1402 = vmatprep.mubr.bf16.mxu0 %v956
      %1403 = vmatmul.mubr.bf16.gmra.mrb[0].mxu0 %v955
      %v1404 = vpop.f32.mrb[0].mxu0
      %v1405 = vadd.f32 %v1244, %v1404
      %v1406 = vpop.f32.mrb[0].mxu0
      %v1407 = vpop.f32.mrb[0].mxu0
      %v1408 = vadd.f32 %v1247, %v1407
      %v1409 = vpop.f32.mrb[0].mxu0
      %1410 = vmatprep.mubr.bf16.mxu0 %v964
      %1411 = vmatmul.mubr.bf16.gmra.mrb[0].mxu0 %v963
      %v1412 = vpop.f32.mrb[0].mxu0
      %v1413 = vadd.f32 %v1252, %v1412
      %v1414 = vpop.f32.mrb[0].mxu0
      %v1415 = vpop.f32.mrb[0].mxu0
      %v1416 = vadd.f32 %v1255, %v1415
      %v1417 = vpop.f32.mrb[0].mxu0
      %1418 = vmatprep.mubr.bf16.mxu0 %v972
      %1419 = vmatmul.mubr.bf16.gmra.mrb[0].mxu0 %v971
      %v1420 = vpop.f32.mrb[0].mxu0
      %v1421 = vadd.f32 %v1260, %v1420
      %v1422 = vpop.f32.mrb[0].mxu0
      %v1423 = vpop.f32.mrb[0].mxu0
      %v1424 = vadd.f32 %v1263, %v1423
      %v1425 = vpop.f32.mrb[0].mxu0
      %1426 = vdwg.mxu0
      %1427 = vmatprep.subr.bf16.mxu0 0
      %1428 = vmatpush1.bf16.msra.mxu0 %v433
      %1429 = vmatprep.subr.bf16.mxu0 0
      %1430 = vmatpush1.bf16.msra.mxu0 %v434
      %1431 = vmatprep.subr.bf16.mxu0 0
      %1432 = vmatpush1.bf16.msra.mxu0 %v435
      %1433 = vmatprep.subr.bf16.mxu0 0
      %1434 = vmatpush1.bf16.msra.mxu0 %v436
      %1435 = vmatprep.subr.bf16.mxu0 0
      %1436 = vmatpush1.bf16.msra.mxu0 %v437
      %1437 = vmatprep.subr.bf16.mxu0 0
      %1438 = vmatpush1.bf16.msra.mxu0 %v438
      %1439 = vmatprep.subr.bf16.mxu0 0
      %1440 = vmatpush1.bf16.msra.mxu0 %v439
      %1441 = vmatprep.subr.bf16.mxu0 0
      %1442 = vmatpush1.bf16.msra.mxu0 %v440
      %1443 = vmatprep.subr.bf16.mxu0 0
      %1444 = vmatpush1.bf16.msra.mxu0 %v441
      %1445 = vmatprep.subr.bf16.mxu0 0
      %1446 = vmatpush1.bf16.msra.mxu0 %v442
      %1447 = vmatprep.subr.bf16.mxu0 0
      %1448 = vmatpush1.bf16.msra.mxu0 %v443
      %1449 = vmatprep.subr.bf16.mxu0 0
      %1450 = vmatpush1.bf16.msra.mxu0 %v444
      %1451 = vmatprep.subr.bf16.mxu0 0
      %1452 = vmatpush1.bf16.msra.mxu0 %v445
      %1453 = vmatprep.subr.bf16.mxu0 0
      %1454 = vmatpush1.bf16.msra.mxu0 %v446
      %1455 = vmatprep.subr.bf16.mxu0 0
      %1456 = vmatpush1.bf16.msra.mxu0 %v447
      %1457 = vmatprep.subr.bf16.mxu0 0
      %1458 = vmatpush1.bf16.msra.mxu0 %v448
      %1459 = vmatprep.mubr.bf16.mxu0 %v854
      %1460 = vmatmul.mubr.bf16.gmra.mrb[0].mxu0 %v853
      %v1461 = vpop.f32.mrb[0].mxu0
      %v1462 = vadd.f32 %v1301, %v1461
      %v1463 = vpop.f32.mrb[0].mxu0
      %v1464 = vpop.f32.mrb[0].mxu0
      %v1465 = vadd.f32 %v1304, %v1464
      %v1466 = vpop.f32.mrb[0].mxu0
      %1467 = vmatprep.mubr.bf16.mxu0 %v862
      %1468 = vmatmul.mubr.bf16.gmra.mrb[0].mxu0 %v861
      %v1469 = vpop.f32.mrb[0].mxu0
      %v1470 = vadd.f32 %v1309, %v1469
      %v1471 = vpop.f32.mrb[0].mxu0
      %v1472 = vpop.f32.mrb[0].mxu0
      %v1473 = vadd.f32 %v1312, %v1472
      %v1474 = vpop.f32.mrb[0].mxu0
      %1475 = vmatprep.mubr.bf16.mxu0 %v870
      %1476 = vmatmul.mubr.bf16.gmra.mrb[0].mxu0 %v869
      %v1477 = vpop.f32.mrb[0].mxu0
      %v1478 = vadd.f32 %v1317, %v1477
      %v1479 = vpop.f32.mrb[0].mxu0
      %v1480 = vpop.f32.mrb[0].mxu0
      %v1481 = vadd.f32 %v1320, %v1480
      %v1482 = vpop.f32.mrb[0].mxu0
      %1483 = vmatprep.mubr.bf16.mxu0 %v878
      %1484 = vmatmul.mubr.bf16.gmra.mrb[0].mxu0 %v877
      %v1485 = vpop.f32.mrb[0].mxu0
      %v1486 = vadd.f32 %v1325, %v1485
      %v1487 = vpop.f32.mrb[0].mxu0
      %v1488 = vpop.f32.mrb[0].mxu0
      %v1489 = vadd.f32 %v1328, %v1488
      %v1490 = vpop.f32.mrb[0].mxu0
      %1491 = vmatprep.mubr.bf16.mxu0 %v886
      %1492 = vmatmul.mubr.bf16.gmra.mrb[0].mxu0 %v885
      %v1493 = vpop.f32.mrb[0].mxu0
      %v1494 = vadd.f32 %v1333, %v1493
      %v1495 = vpop.f32.mrb[0].mxu0
      %v1496 = vpop.f32.mrb[0].mxu0
      %v1497 = vadd.f32 %v1336, %v1496
      %v1498 = vpop.f32.mrb[0].mxu0
      %1499 = vmatprep.mubr.bf16.mxu0 %v894
      %1500 = vmatmul.mubr.bf16.gmra.mrb[0].mxu0 %v893
      %v1501 = vpop.f32.mrb[0].mxu0
      %v1502 = vadd.f32 %v1341, %v1501
      %v1503 = vpop.f32.mrb[0].mxu0
      %v1504 = vpop.f32.mrb[0].mxu0
      %v1505 = vadd.f32 %v1344, %v1504
      %v1506 = vpop.f32.mrb[0].mxu0
      %1507 = vmatprep.mubr.bf16.mxu0 %v902
      %1508 = vmatmul.mubr.bf16.gmra.mrb[0].mxu0 %v901
      %v1509 = vpop.f32.mrb[0].mxu0
      %v1510 = vadd.f32 %v1349, %v1509
      %v1511 = vpop.f32.mrb[0].mxu0
      %v1512 = vpop.f32.mrb[0].mxu0
      %v1513 = vadd.f32 %v1352, %v1512
      %v1514 = vpop.f32.mrb[0].mxu0
      %1515 = vmatprep.mubr.bf16.mxu0 %v910
      %1516 = vmatmul.mubr.bf16.gmra.mrb[0].mxu0 %v909
      %v1517 = vpop.f32.mrb[0].mxu0
      %v1518 = vadd.f32 %v1357, %v1517
      %v1519 = vpop.f32.mrb[0].mxu0
      %v1520 = vpop.f32.mrb[0].mxu0
      %v1521 = vadd.f32 %v1360, %v1520
      %v1522 = vpop.f32.mrb[0].mxu0
      %1523 = vmatprep.mubr.bf16.mxu0 %v918
      %1524 = vmatmul.mubr.bf16.gmra.mrb[0].mxu0 %v917
      %v1525 = vpop.f32.mrb[0].mxu0
      %v1526 = vadd.f32 %v1365, %v1525
      %v1527 = vpop.f32.mrb[0].mxu0
      %v1528 = vpop.f32.mrb[0].mxu0
      %v1529 = vadd.f32 %v1368, %v1528
      %v1530 = vpop.f32.mrb[0].mxu0
      %1531 = vmatprep.mubr.bf16.mxu0 %v926
      %1532 = vmatmul.mubr.bf16.gmra.mrb[0].mxu0 %v925
      %v1533 = vpop.f32.mrb[0].mxu0
      %v1534 = vadd.f32 %v1373, %v1533
      %v1535 = vpop.f32.mrb[0].mxu0
      %v1536 = vpop.f32.mrb[0].mxu0
      %v1537 = vadd.f32 %v1376, %v1536
      %v1538 = vpop.f32.mrb[0].mxu0
      %1539 = vmatprep.mubr.bf16.mxu0 %v934
      %1540 = vmatmul.mubr.bf16.gmra.mrb[0].mxu0 %v933
      %v1541 = vpop.f32.mrb[0].mxu0
      %v1542 = vadd.f32 %v1381, %v1541
      %v1543 = vpop.f32.mrb[0].mxu0
      %v1544 = vpop.f32.mrb[0].mxu0
      %v1545 = vadd.f32 %v1384, %v1544
      %v1546 = vpop.f32.mrb[0].mxu0
      %1547 = vmatprep.mubr.bf16.mxu0 %v942
      %1548 = vmatmul.mubr.bf16.gmra.mrb[0].mxu0 %v941
      %v1549 = vpop.f32.mrb[0].mxu0
      %v1550 = vadd.f32 %v1389, %v1549
      %v1551 = vpop.f32.mrb[0].mxu0
      %v1552 = vpop.f32.mrb[0].mxu0
      %v1553 = vadd.f32 %v1392, %v1552
      %v1554 = vpop.f32.mrb[0].mxu0
      %1555 = vmatprep.mubr.bf16.mxu0 %v950
      %1556 = vmatmul.mubr.bf16.gmra.mrb[0].mxu0 %v949
      %v1557 = vpop.f32.mrb[0].mxu0
      %v1558 = vadd.f32 %v1397, %v1557
      %v1559 = vpop.f32.mrb[0].mxu0
      %v1560 = vpop.f32.mrb[0].mxu0
      %v1561 = vadd.f32 %v1400, %v1560
      %v1562 = vpop.f32.mrb[0].mxu0
      %1563 = vmatprep.mubr.bf16.mxu0 %v958
      %1564 = vmatmul.mubr.bf16.gmra.mrb[0].mxu0 %v957
      %v1565 = vpop.f32.mrb[0].mxu0
      %v1566 = vadd.f32 %v1405, %v1565
      %v1567 = vpop.f32.mrb[0].mxu0
      %v1568 = vpop.f32.mrb[0].mxu0
      %v1569 = vadd.f32 %v1408, %v1568
      %v1570 = vpop.f32.mrb[0].mxu0
      %1571 = vmatprep.mubr.bf16.mxu0 %v966
      %1572 = vmatmul.mubr.bf16.gmra.mrb[0].mxu0 %v965
      %v1573 = vpop.f32.mrb[0].mxu0
      %v1574 = vadd.f32 %v1413, %v1573
      %v1575 = vpop.f32.mrb[0].mxu0
      %v1576 = vpop.f32.mrb[0].mxu0
      %v1577 = vadd.f32 %v1416, %v1576
      %v1578 = vpop.f32.mrb[0].mxu0
      %1579 = vmatprep.mubr.bf16.mxu0 %v974
      %1580 = vmatmul.mubr.bf16.gmra.mrb[0].mxu0 %v973
      %v1581 = vpop.f32.mrb[0].mxu0
      %v1582 = vadd.f32 %v1421, %v1581
      %v1583 = vpop.f32.mrb[0].mxu0
      %v1584 = vpop.f32.mrb[0].mxu0
      %v1585 = vadd.f32 %v1424, %v1584
      %v1586 = vpop.f32.mrb[0].mxu0
      %1587 = vdwg.mxu0
      %1588 = vmatprep.subr.bf16.mxu0 0
      %1589 = vmatpush1.bf16.msra.mxu0 %v449
      %1590 = vmatprep.subr.bf16.mxu0 0
      %1591 = vmatpush1.bf16.msra.mxu0 %v450
      %1592 = vmatprep.subr.bf16.mxu0 0
      %1593 = vmatpush1.bf16.msra.mxu0 %v451
      %1594 = vmatprep.subr.bf16.mxu0 0
      %1595 = vmatpush1.bf16.msra.mxu0 %v452
      %1596 = vmatprep.subr.bf16.mxu0 0
      %1597 = vmatpush1.bf16.msra.mxu0 %v453
      %1598 = vmatprep.subr.bf16.mxu0 0
      %1599 = vmatpush1.bf16.msra.mxu0 %v454
      %1600 = vmatprep.subr.bf16.mxu0 0
      %1601 = vmatpush1.bf16.msra.mxu0 %v455
      %1602 = vmatprep.subr.bf16.mxu0 0
      %1603 = vmatpush1.bf16.msra.mxu0 %v456
      %1604 = vmatprep.subr.bf16.mxu0 0
      %1605 = vmatpush1.bf16.msra.mxu0 %v457
      %1606 = vmatprep.subr.bf16.mxu0 0
      %1607 = vmatpush1.bf16.msra.mxu0 %v458
      %1608 = vmatprep.subr.bf16.mxu0 0
      %1609 = vmatpush1.bf16.msra.mxu0 %v459
      %1610 = vmatprep.subr.bf16.mxu0 0
      %1611 = vmatpush1.bf16.msra.mxu0 %v460
      %1612 = vmatprep.subr.bf16.mxu0 0
      %1613 = vmatpush1.bf16.msra.mxu0 %v461
      %1614 = vmatprep.subr.bf16.mxu0 0
      %1615 = vmatpush1.bf16.msra.mxu0 %v462
      %1616 = vmatprep.subr.bf16.mxu0 0
      %1617 = vmatpush1.bf16.msra.mxu0 %v463
      %1618 = vmatprep.subr.bf16.mxu0 0
      %1619 = vmatpush1.bf16.msra.mxu0 %v464
      %1620 = vmatprep.mubr.bf16.mxu0 %v856
      %1621 = vmatmul.mubr.bf16.gmra.mrb[0].mxu0 %v855
      %v1622 = vpop.f32.mrb[0].mxu0
      %v1623 = vadd.f32 %v1462, %v1622
      %v1624 = vpop.f32.mrb[0].mxu0
      %v1625 = vpop.f32.mrb[0].mxu0
      %v1626 = vadd.f32 %v1465, %v1625
      %v1627 = vpop.f32.mrb[0].mxu0
      %1628 = vmatprep.mubr.bf16.mxu0 %v864
      %1629 = vmatmul.mubr.bf16.gmra.mrb[0].mxu0 %v863
      %v1630 = vpop.f32.mrb[0].mxu0
      %v1631 = vadd.f32 %v1470, %v1630
      %v1632 = vpop.f32.mrb[0].mxu0
      %v1633 = vpop.f32.mrb[0].mxu0
      %v1634 = vadd.f32 %v1473, %v1633
      %v1635 = vpop.f32.mrb[0].mxu0
      %1636 = vmatprep.mubr.bf16.mxu0 %v872
      %1637 = vmatmul.mubr.bf16.gmra.mrb[0].mxu0 %v871
      %v1638 = vpop.f32.mrb[0].mxu0
      %v1639 = vadd.f32 %v1478, %v1638
      %v1640 = vpop.f32.mrb[0].mxu0
      %v1641 = vpop.f32.mrb[0].mxu0
      %v1642 = vadd.f32 %v1481, %v1641
      %v1643 = vpop.f32.mrb[0].mxu0
      %1644 = vmatprep.mubr.bf16.mxu0 %v880
      %1645 = vmatmul.mubr.bf16.gmra.mrb[0].mxu0 %v879
      %v1646 = vpop.f32.mrb[0].mxu0
      %v1647 = vadd.f32 %v1486, %v1646
      %v1648 = vpop.f32.mrb[0].mxu0
      %v1649 = vpop.f32.mrb[0].mxu0
      %v1650 = vadd.f32 %v1489, %v1649
      %v1651 = vpop.f32.mrb[0].mxu0
      %1652 = vmatprep.mubr.bf16.mxu0 %v888
      %1653 = vmatmul.mubr.bf16.gmra.mrb[0].mxu0 %v887
      %v1654 = vpop.f32.mrb[0].mxu0
      %v1655 = vadd.f32 %v1494, %v1654
      %v1656 = vpop.f32.mrb[0].mxu0
      %v1657 = vpop.f32.mrb[0].mxu0
      %v1658 = vadd.f32 %v1497, %v1657
      %v1659 = vpop.f32.mrb[0].mxu0
      %1660 = vmatprep.mubr.bf16.mxu0 %v896
      %1661 = vmatmul.mubr.bf16.gmra.mrb[0].mxu0 %v895
      %v1662 = vpop.f32.mrb[0].mxu0
      %v1663 = vadd.f32 %v1502, %v1662
      %v1664 = vpop.f32.mrb[0].mxu0
      %v1665 = vpop.f32.mrb[0].mxu0
      %v1666 = vadd.f32 %v1505, %v1665
      %v1667 = vpop.f32.mrb[0].mxu0
      %1668 = vmatprep.mubr.bf16.mxu0 %v904
      %1669 = vmatmul.mubr.bf16.gmra.mrb[0].mxu0 %v903
      %v1670 = vpop.f32.mrb[0].mxu0
      %v1671 = vadd.f32 %v1510, %v1670
      %v1672 = vpop.f32.mrb[0].mxu0
      %v1673 = vpop.f32.mrb[0].mxu0
      %v1674 = vadd.f32 %v1513, %v1673
      %v1675 = vpop.f32.mrb[0].mxu0
      %1676 = vmatprep.mubr.bf16.mxu0 %v912
      %1677 = vmatmul.mubr.bf16.gmra.mrb[0].mxu0 %v911
      %v1678 = vpop.f32.mrb[0].mxu0
      %v1679 = vadd.f32 %v1518, %v1678
      %v1680 = vpop.f32.mrb[0].mxu0
      %v1681 = vpop.f32.mrb[0].mxu0
      %v1682 = vadd.f32 %v1521, %v1681
      %v1683 = vpop.f32.mrb[0].mxu0
      %1684 = vmatprep.mubr.bf16.mxu0 %v920
      %1685 = vmatmul.mubr.bf16.gmra.mrb[0].mxu0 %v919
      %v1686 = vpop.f32.mrb[0].mxu0
      %v1687 = vadd.f32 %v1526, %v1686
      %v1688 = vpop.f32.mrb[0].mxu0
      %v1689 = vpop.f32.mrb[0].mxu0
      %v1690 = vadd.f32 %v1529, %v1689
      %v1691 = vpop.f32.mrb[0].mxu0
      %1692 = vmatprep.mubr.bf16.mxu0 %v928
      %1693 = vmatmul.mubr.bf16.gmra.mrb[0].mxu0 %v927
      %v1694 = vpop.f32.mrb[0].mxu0
      %v1695 = vadd.f32 %v1534, %v1694
      %v1696 = vpop.f32.mrb[0].mxu0
      %v1697 = vpop.f32.mrb[0].mxu0
      %v1698 = vadd.f32 %v1537, %v1697
      %v1699 = vpop.f32.mrb[0].mxu0
      %1700 = vmatprep.mubr.bf16.mxu0 %v936
      %1701 = vmatmul.mubr.bf16.gmra.mrb[0].mxu0 %v935
      %v1702 = vpop.f32.mrb[0].mxu0
      %v1703 = vadd.f32 %v1542, %v1702
      %v1704 = vpop.f32.mrb[0].mxu0
      %v1705 = vpop.f32.mrb[0].mxu0
      %v1706 = vadd.f32 %v1545, %v1705
      %v1707 = vpop.f32.mrb[0].mxu0
      %1708 = vmatprep.mubr.bf16.mxu0 %v944
      %1709 = vmatmul.mubr.bf16.gmra.mrb[0].mxu0 %v943
      %v1710 = vpop.f32.mrb[0].mxu0
      %v1711 = vadd.f32 %v1550, %v1710
      %v1712 = vpop.f32.mrb[0].mxu0
      %v1713 = vpop.f32.mrb[0].mxu0
      %v1714 = vadd.f32 %v1553, %v1713
      %v1715 = vpop.f32.mrb[0].mxu0
      %1716 = vmatprep.mubr.bf16.mxu0 %v952
      %1717 = vmatmul.mubr.bf16.gmra.mrb[0].mxu0 %v951
      %v1718 = vpop.f32.mrb[0].mxu0
      %v1719 = vadd.f32 %v1558, %v1718
      %v1720 = vpop.f32.mrb[0].mxu0
      %v1721 = vpop.f32.mrb[0].mxu0
      %v1722 = vadd.f32 %v1561, %v1721
      %v1723 = vpop.f32.mrb[0].mxu0
      %1724 = vmatprep.mubr.bf16.mxu0 %v960
      %1725 = vmatmul.mubr.bf16.gmra.mrb[0].mxu0 %v959
      %v1726 = vpop.f32.mrb[0].mxu0
      %v1727 = vadd.f32 %v1566, %v1726
      %v1728 = vpop.f32.mrb[0].mxu0
      %v1729 = vpop.f32.mrb[0].mxu0
      %v1730 = vadd.f32 %v1569, %v1729
      %v1731 = vpop.f32.mrb[0].mxu0
      %1732 = vmatprep.mubr.bf16.mxu0 %v968
      %1733 = vmatmul.mubr.bf16.gmra.mrb[0].mxu0 %v967
      %v1734 = vpop.f32.mrb[0].mxu0
      %v1735 = vadd.f32 %v1574, %v1734
      %v1736 = vpop.f32.mrb[0].mxu0
      %v1737 = vpop.f32.mrb[0].mxu0
      %v1738 = vadd.f32 %v1577, %v1737
      %v1739 = vpop.f32.mrb[0].mxu0
      %1740 = vmatprep.mubr.bf16.mxu0 %v976
      %1741 = vmatmul.mubr.bf16.gmra.mrb[0].mxu0 %v975
      %v1742 = vpop.f32.mrb[0].mxu0
      %v1743 = vadd.f32 %v1582, %v1742
      %v1744 = vpop.f32.mrb[0].mxu0
      %v1745 = vpop.f32.mrb[0].mxu0
      %v1746 = vadd.f32 %v1585, %v1745
      %v1747 = vpop.f32.mrb[0].mxu0
      %1748 = vdwg.mxu0
      %vm1749 = vcmask 23552
      %1750 = vst.msk [vmem:[%s143] sm:$0xff] %vm1749, %v1623
      %1751 = vst.msk [vmem:[%s143 + $0x8] sm:$0xff] %vm1749, %v1626
      %1752 = vst.msk [vmem:[%s143 + $0x10] sm:$0xff] %vm1749, %v1631
      %1753 = vst.msk [vmem:[%s143 + $0x18] sm:$0xff] %vm1749, %v1634
      %1754 = vst.msk [vmem:[%s143 + $0x20] sm:$0xff] %vm1749, %v1639
      %1755 = vst.msk [vmem:[%s143 + $0x28] sm:$0xff] %vm1749, %v1642
      %1756 = vst.msk [vmem:[%s143 + $0x30] sm:$0xff] %vm1749, %v1647
      %1757 = vst.msk [vmem:[%s143 + $0x38] sm:$0xff] %vm1749, %v1650
      %1758 = vst.msk [vmem:[%s143 + $0x40] sm:$0xff] %vm1749, %v1655
      %1759 = vst.msk [vmem:[%s143 + $0x48] sm:$0xff] %vm1749, %v1658
      %1760 = vst.msk [vmem:[%s143 + $0x50] sm:$0xff] %vm1749, %v1663
      %1761 = vst.msk [vmem:[%s143 + $0x58] sm:$0xff] %vm1749, %v1666
      %1762 = vst.msk [vmem:[%s143 + $0x60] sm:$0xff] %vm1749, %v1671
      %1763 = vst.msk [vmem:[%s143 + $0x68] sm:$0xff] %vm1749, %v1674
      %1764 = vst.msk [vmem:[%s143 + $0x70] sm:$0xff] %vm1749, %v1679
      %1765 = vst.msk [vmem:[%s143 + $0x78] sm:$0xff] %vm1749, %v1682
      %1766 = vst.msk [vmem:[%s143 + $0x80] sm:$0xff] %vm1749, %v1687
      %1767 = vst.msk [vmem:[%s143 + $0x88] sm:$0xff] %vm1749, %v1690
      %1768 = vst.msk [vmem:[%s143 + $0x90] sm:$0xff] %vm1749, %v1695
      %1769 = vst.msk [vmem:[%s143 + $0x98] sm:$0xff] %vm1749, %v1698
      %1770 = vst.msk [vmem:[%s143 + $0xa0] sm:$0xff] %vm1749, %v1703
      %1771 = vst.msk [vmem:[%s143 + $0xa8] sm:$0xff] %vm1749, %v1706
      %1772 = vst.msk [vmem:[%s143 + $0xb0] sm:$0xff] %vm1749, %v1711
      %1773 = vst.msk [vmem:[%s143 + $0xb8] sm:$0xff] %vm1749, %v1714
      %1774 = vst.msk [vmem:[%s143 + $0xc0] sm:$0xff] %vm1749, %v1719
      %1775 = vst.msk [vmem:[%s143 + $0xc8] sm:$0xff] %vm1749, %v1722
      %1776 = vst.msk [vmem:[%s143 + $0xd0] sm:$0xff] %vm1749, %v1727
      %1777 = vst.msk [vmem:[%s143 + $0xd8] sm:$0xff] %vm1749, %v1730
      %1778 = vst.msk [vmem:[%s143 + $0xe0] sm:$0xff] %vm1749, %v1735
      %1779 = vst.msk [vmem:[%s143 + $0xe8] sm:$0xff] %vm1749, %v1738
      %1780 = vst.msk [vmem:[%s143 + $0xf0] sm:$0xff] %vm1749, %v1743
      %1781 = vst.msk [vmem:[%s143 + $0xf8] sm:$0xff] %vm1749, %v1746
      %p1782 = scmp.lt.s32.totalorder %s13, 1
      %s1783 = scalar_select %p1782, %s13, 1
      %s1784 = smul.addr %s1783, 32
      %s1785 = smul.addr %s1784, 8
      %s1786 = scalar_lea.vmem %s2, %s1785
      // Predicated region
      $region29: #{forward.7} parent=27 // pred_check
        %p1787 = pneg %p78
      $region30: #{forward.7} parent=27 // pred_check_branch
        %1789 = sbr.rel (%p1787) target = $region32
      $region31: #{forward.7} parent=27 // pred_region
        _
      $region32: #{forward.7} parent=27 // pred_fallthru
        _
    $region28: #{forward.7} parent=5 // pred_fallthru
      _
    %p1790 = scmp.le.s32.totalorder 2, %s8
    // Predicated region
    $region33: #{forward.7} parent=5 // pred_check
      %p1791 = pneg %p1790
    $region34: #{forward.7} parent=5 // pred_check_branch
      %1793 = sbr.rel (%p1791) target = $region36
    $region35: #{forward.7} parent=5 // pred_region
      %s1794 = ssub.s32 %s8, 2
      // Predicated region
      $region37: #{forward.7} parent=35 // pred_check
        %p1795 = pneg %p84
      $region38: #{forward.7} parent=35 // pred_check_branch
        %1797 = sbr.rel (%p1795) target = $region40
      $region39: #{forward.7} parent=35 // pred_region
        %p1798 = scmp.lt.s32.totalorder %s14, 1
        %s1799 = scalar_select %p1798, %s14, 1
        %s1800 = smul.addr %s1799, 32
        %s1801 = smul.addr %s1800, 8
        %s1802 = scalar_lea.vmem %s2, %s1801
      $region40: #{forward.7} parent=35 // pred_fallthru
        _
    $region36: #{forward.7} parent=5 // pred_fallthru
      _
  $region6: #{forward.7} parent=0 // loop_footer
    %s12 = sadd.s32 1, %s8
  $region7: #{forward.7} parent=0 // loop_footer_branch
    %7 = sbr.rel target = $region3
  $region8: #{forward.7} parent=0 // loop_exit
    _

// kernel: forward.8
$region0: #{forward.8}
  #allocation0 [shape = 'u32[]', space=smem, size = 0x4, offset = 0x4, fixed_abs, tag = 'smem constant byte address 0x4 - core index']
  #allocation1 [shape = 'u32[144,128]{1,0:T(1,128)}', space=vmem, size = 0x12000, scoped, tag = 'internal scratch']
  %s0 = inlined_call_operand.vmem [shape: f32[2,24,48], index: 0, kind: input, shape index: {}]
  %s1 = inlined_call_operand.vmem [shape: bf16[48,32], index: 1, kind: input, shape index: {}]
  %s2 = inlined_call_operand.vmem [shape: f32[24,32], index: 2, kind: input, shape index: {}]
  %s3 = inlined_call_operand.vmem [shape: f32[2,24,32], index: 3, kind: output, shape index: {}]
  %s4 = sld [smem:[#allocation0]]
  $region45: #{forward.8} parent=0
    _
  %s6 = ssub.s32 1, %s4
  %s7 = scalar_select 0, %s6, %s4
  loop: start=0, step=1, limit=4
  $region2: #{forward.8} parent=0 // loop_pre_header
    _
  $region3: #{forward.8} parent=0 // loop_header
    %s9 = sphi 0, %s13
    %p10 = scmp.ge.s32.totalorder %s9, 4
    %s19 = sphi 0, %s21
    %s22 = sphi 0, %s19
    %s23 = sphi 0, %s22
    %s39 = sphi 0, %s23
    %s43 = sphi 0, %s43
    %s45 = sphi 0, %s43
    %s46 = sphi 0, %s45
    %s60 = sphi 0, %s46
    %s64 = sphi 0, %s64
    %s66 = sphi 0, %s64
    %s67 = sphi 0, %s66
    %s81 = sphi 0, %s67
    %s87 = sphi 0, %s89
    %s90 = sphi 0, %s87
    %s91 = sphi 0, %s90
    %s107 = sphi 0, %s91
  $region4: #{forward.8} parent=0 // loop_header_branch
    %12 = sbr.rel (%p10) target = $region8
  $region5: #{forward.8} parent=0 // loop_body
    %s14 = ssub.s32 %s9, 1
    %s15 = ssub.s32 %s9, 2
    %s16 = sadd.s32 %s9, 1
    %s17 = ssub.s32 %s9, %s16
    %p18 = scmp.eq.s32.totalorder %s17, 0
    %s20 = sadd.s32 %s19, 1
    %s21 = scalar_select %p18, %s19, %s20
    %p24 = pneg %p18
    %p25 = scmp.eq.s32.totalorder %s9, 1
    %p26 = por %p24, %p25
    %p27 = scmp.ne.s32.totalorder %s19, %s22
    %p28 = scmp.eq.s32.totalorder %s9, 0
    %p29 = por %p27, %p28
    %p30 = scmp.ne.s32.totalorder %s19, %s22
    %p31 = scmp.eq.s32.totalorder %s14, 1
    %p32 = por %p30, %p31
    %p33 = scmp.ne.s32.totalorder %s22, %s23
    %p34 = scmp.eq.s32.totalorder %s14, 0
    %p35 = por %p33, %p34
    %p36 = scmp.ne.s32.totalorder %s22, %s23
    %p37 = scmp.eq.s32.totalorder %s15, 1
    %p38 = por %p36, %p37
    %p40 = scmp.ne.s32.totalorder %s23, %s39
    %p41 = scmp.eq.s32.totalorder %s15, 0
    %p42 = por %p40, %p41
    %s44 = sadd.s32 %s43, 1
    %p47 = scmp.eq.s32.totalorder %s9, 1
    %p48 = scmp.ne.s32.totalorder %s43, %s45
    %p49 = scmp.eq.s32.totalorder %s9, 0
    %p50 = por %p48, %p49
    %p51 = scmp.ne.s32.totalorder %s43, %s45
    %p52 = scmp.eq.s32.totalorder %s14, 1
    %p53 = por %p51, %p52
    %p54 = scmp.ne.s32.totalorder %s45, %s46
    %p55 = scmp.eq.s32.totalorder %s14, 0
    %p56 = por %p54, %p55
    %p57 = scmp.ne.s32.totalorder %s45, %s46
    %p58 = scmp.eq.s32.totalorder %s15, 1
    %p59 = por %p57, %p58
    %p61 = scmp.ne.s32.totalorder %s46, %s60
    %p62 = scmp.eq.s32.totalorder %s15, 0
    %p63 = por %p61, %p62
    %s65 = sadd.s32 %s64, 1
    %p68 = scmp.eq.s32.totalorder %s9, 1
    %p69 = scmp.ne.s32.totalorder %s64, %s66
    %p70 = scmp.eq.s32.totalorder %s9, 0
    %p71 = por %p69, %p70
    %p72 = scmp.ne.s32.totalorder %s64, %s66
    %p73 = scmp.eq.s32.totalorder %s14, 1
    %p74 = por %p72, %p73
    %p75 = scmp.ne.s32.totalorder %s66, %s67
    %p76 = scmp.eq.s32.totalorder %s14, 0
    %p77 = por %p75, %p76
    %p78 = scmp.ne.s32.totalorder %s66, %s67
    %p79 = scmp.eq.s32.totalorder %s15, 1
    %p80 = por %p78, %p79
    %p82 = scmp.ne.s32.totalorder %s67, %s81
    %p83 = scmp.eq.s32.totalorder %s15, 0
    %p84 = por %p82, %p83
    %s85 = ssub.s32 %s9, %s16
    %p86 = scmp.eq.s32.totalorder %s85, 0
    %s88 = sadd.s32 %s87, 1
    %s89 = scalar_select %p86, %s87, %s88
    %p92 = pneg %p86
    %p93 = scmp.eq.s32.totalorder %s9, 1
    %p94 = por %p92, %p93
    %p95 = scmp.ne.s32.totalorder %s87, %s90
    %p96 = scmp.eq.s32.totalorder %s9, 0
    %p97 = por %p95, %p96
    %p98 = scmp.ne.s32.totalorder %s87, %s90
    %p99 = scmp.eq.s32.totalorder %s14, 1
    %p100 = por %p98, %p99
    %p101 = scmp.ne.s32.totalorder %s90, %s91
    %p102 = scmp.eq.s32.totalorder %s14, 0
    %p103 = por %p101, %p102
    %p104 = scmp.ne.s32.totalorder %s90, %s91
    %p105 = scmp.eq.s32.totalorder %s15, 1
    %p106 = por %p104, %p105
    %p108 = scmp.ne.s32.totalorder %s91, %s107
    %p109 = scmp.eq.s32.totalorder %s15, 0
    %p110 = por %p108, %p109
    %p111 = scmp.le.s32.totalorder 1, %s9
    %p112 = scmp.lt.s32.totalorder %s9, 3
    %p113 = pnand %p111, %p112
    %p114 = pneg %p113
    // Predicated region
    $region9: #{forward.8} parent=5 // pred_check
      _
    $region10: #{forward.8} parent=5 // pred_check_branch
      %116 = sbr.rel (%p113) target = $region12
    $region11: #{forward.8} parent=5 // pred_region
      %s117 = ssub.s32 %s9, 1
      // Predicated region
      $region13: #{forward.8} parent=11 // pred_check
        %p118 = pneg %p56
      $region14: #{forward.8} parent=11 // pred_check_branch
        %120 = sbr.rel (%p118) target = $region16
      $region15: #{forward.8} parent=11 // pred_region
        _
      $region16: #{forward.8} parent=11 // pred_fallthru
        _
      // Predicated region
      $region17: #{forward.8} parent=11 // pred_check
        %p121 = pneg %p77
      $region18: #{forward.8} parent=11 // pred_check_branch
        %123 = sbr.rel (%p121) target = $region20
      $region19: #{forward.8} parent=11 // pred_region
        _
      $region20: #{forward.8} parent=11 // pred_fallthru
        _
    $region12: #{forward.8} parent=5 // pred_fallthru
      _
    %p124 = scmp.lt.s32.totalorder %s9, 2
    // Predicated region
    $region21: #{forward.8} parent=5 // pred_check
      %p125 = pneg %p124
    $region22: #{forward.8} parent=5 // pred_check_branch
      %127 = sbr.rel (%p125) target = $region24
    $region23: #{forward.8} parent=5 // pred_region
      // Predicated region
      $region25: #{forward.8} parent=23 // pred_check
        %p128 = pneg %p29
      $region26: #{forward.8} parent=23 // pred_check_branch
        %130 = sbr.rel (%p128) target = $region28
      $region27: #{forward.8} parent=23 // pred_region
        %p131 = scmp.lt.s32.totalorder %s9, 1
        %s132 = scalar_select %p131, %s9, 1
        %s133 = smul.addr %s132, 3
        %s134 = smul.addr %s133, 8
        %s135 = scalar_lea.vmem %s0, %s134
      $region28: #{forward.8} parent=23 // pred_fallthru
        _
    $region24: #{forward.8} parent=5 // pred_fallthru
      _
    %p136 = scmp.le.s32.totalorder 1, %s9
    %p137 = scmp.lt.s32.totalorder %s9, 3
    %p138 = pnand %p136, %p137
    %p139 = pneg %p138
    // Predicated region
    $region29: #{forward.8} parent=5 // pred_check
      _
    $region30: #{forward.8} parent=5 // pred_check_branch
      %141 = sbr.rel (%p138) target = $region32
    $region31: #{forward.8} parent=5 // pred_region
      %s142 = ssub.s32 %s9, 1
      %p143 = scmp.lt.s32.totalorder %s14, 1
      %s144 = scalar_select %p143, %s14, 1
      %s145 = smul.addr %s144, 3
      %s146 = smul.addr %s145, 8
      %s147 = scalar_lea.vmem %s0, %s146
      %p148 = pneg %p35
      %p149 = pneg %p32
      %p150 = pneg %p56
      %p151 = pneg %p53
      %p152 = pneg %p77
      %p153 = pneg %p74
      %p154 = pneg %p103
      %p155 = pneg %p100
      %p156 = scmp.lt.s32.totalorder %s14, 1
      %s157 = scalar_select %p156, %s14, 1
      %s158 = smul.addr %s157, 3
      %s159 = smul.addr %s158, 8
      %s160 = scalar_lea.vmem %s3, %s159
      %p161 = scmp.lt.s32.totalorder %s14, 1
      %s162 = scalar_select %p161, %s14, 1
      %s163 = smul.addr %s162, 3
      %s164 = smul.addr %s163, 8
      %s165 = scalar_lea.vmem %s0, %s164
      %p166 = scmp.lt.s32.totalorder %s14, 1
      %s167 = scalar_select %p166, %s14, 1
      %s168 = smul.addr %s167, 3
      %s169 = smul.addr %s168, 8
      %s170 = scalar_lea.vmem %s3, %s169
      %v172 = vld [vmem:[%s165] sm:$0xff]
      %v173 = vld [vmem:[%s165 + $0x8] sm:$0xff]
      %v174 = vld [vmem:[%s165 + $0x10] sm:$0xff]
      %v175 = vpack.c.bf16 %v173, %v172
      %v176 = vpack.c.bf16 %v174, %v174
      %v177 = vld [vmem:[%s1] sm:$0xf]
      %v178 = vld [vmem:[%s1 + $0x4] sm:$0xf]
      %v179 = vld [vmem:[%s1 + $0x8] sm:$0xf]
      %v180 = vld [vmem:[%s1 + $0xc] sm:$0xf]
      %v181 = vld [vmem:[%s1 + $0x10] sm:$0xf]
      %v182 = vld [vmem:[%s1 + $0x14] sm:$0xf]
      %v183 = vld [vmem:[%s2] sm:$0xff]
      %v184 = vld [vmem:[%s2 + $0x8] sm:$0xff]
      %v185 = vld [vmem:[%s2 + $0x10] sm:$0xff]
      %v192 = vunpack.c.l.b16 %v177
      %v193 = vunpack.c.l.b16 %v178
      %v194 = vunpack.c.l.b16 %v179
      %v195 = vunpack.c.l.b16 %v180
      %v196 = vunpack.c.l.b16 %v181
      %v197 = vunpack.c.l.b16 %v182
      %v198 = vpack.c.b16 %v193, %v192
      %v199 = vpack.c.b16 %v195, %v194
      %v200 = vpack.c.b16 %v197, %v196
      %vm204 = vcmask 392192
      %v206 = vsel %vm204, %v175, 0
      %v209 = vsel %vm204, %v176, 0
      %211 = vmatprep.subr.bf16.mxu0 0
      %212 = vmatpush1.bf16.msra.mxu0 %v198
      %213 = vmatprep.subr.bf16.mxu0 0
      %214 = vmatpush1.bf16.msra.mxu0 %v199
      %215 = vmatprep.subr.bf16.mxu0 0
      %216 = vmatpush1.bf16.msra.mxu0 %v200
      %217 = vmatprep.subr.bf16.mxu0 0
      %218 = vmatpush1.bf16.msra.mxu0 0
      %219 = vmatprep.subr.bf16.mxu0 0
      %220 = vmatpush1.bf16.msra.mxu0 0
      %221 = vmatprep.subr.bf16.mxu0 0
      %222 = vmatpush1.bf16.msra.mxu0 0
      %223 = vmatprep.subr.bf16.mxu0 0
      %224 = vmatpush1.bf16.msra.mxu0 0
      %225 = vmatprep.subr.bf16.mxu0 0
      %226 = vmatpush1.bf16.msra.mxu0 0
      %227 = vmatprep.subr.bf16.mxu0 0
      %228 = vmatpush1.bf16.msra.mxu0 0
      %229 = vmatprep.subr.bf16.mxu0 0
      %230 = vmatpush1.bf16.msra.mxu0 0
      %231 = vmatprep.subr.bf16.mxu0 0
      %232 = vmatpush1.bf16.msra.mxu0 0
      %233 = vmatprep.subr.bf16.mxu0 0
      %234 = vmatpush1.bf16.msra.mxu0 0
      %235 = vmatprep.subr.bf16.mxu0 0
      %236 = vmatpush1.bf16.msra.mxu0 0
      %237 = vmatprep.subr.bf16.mxu0 0
      %238 = vmatpush1.bf16.msra.mxu0 0
      %239 = vmatprep.subr.bf16.mxu0 0
      %240 = vmatpush1.bf16.msra.mxu0 0
      %241 = vmatprep.subr.bf16.mxu0 0
      %242 = vmatpush1.bf16.msra.mxu0 0
      %243 = vmatprep.mubr.bf16.mxu0 0
      %244 = vmatmul.mubr.bf16.gmra.mrb[0].mxu0 %v206
      %v245 = vpop.f32.mrb[0].mxu0
      %v246 = vadd.f32 %v183, %v245
      %v247 = vpop.f32.mrb[0].mxu0
      %v248 = vpop.f32.mrb[0].mxu0
      %v249 = vadd.f32 %v184, %v248
      %v250 = vpop.f32.mrb[0].mxu0
      %251 = vmatprep.mubr.bf16.mxu0 0
      %252 = vmatmul.mubr.bf16.gmra.mrb[0].mxu0 %v209
      %v253 = vpop.f32.mrb[0].mxu0
      %v254 = vadd.f32 %v185, %v253
      %v255 = vpop.f32.mrb[0].mxu0
      %v256 = vpop.f32.mrb[0].mxu0
      %v257 = vpop.f32.mrb[0].mxu0
      %258 = vdwg.mxu0
      %vm259 = vcmask 261120
      %260 = vst.msk [vmem:[%s170] sm:$0xff] %vm259, %v246
      %261 = vst.msk [vmem:[%s170 + $0x8] sm:$0xff] %vm259, %v249
      %262 = vst.msk [vmem:[%s170 + $0x10] sm:$0xff] %vm259, %v254
      %p263 = scmp.lt.s32.totalorder %s14, 1
      %s264 = scalar_select %p263, %s14, 1
      %s265 = smul.addr %s264, 3
      %s266 = smul.addr %s265, 8
      %s267 = scalar_lea.vmem %s3, %s266
      // Predicated region
      $region33: #{forward.8} parent=31 // pred_check
        %p268 = pneg %p100
      $region34: #{forward.8} parent=31 // pred_check_branch
        %270 = sbr.rel (%p268) target = $region36
      $region35: #{forward.8} parent=31 // pred_region
        _
      $region36: #{forward.8} parent=31 // pred_fallthru
        _
    $region32: #{forward.8} parent=5 // pred_fallthru
      _
    %p271 = scmp.le.s32.totalorder 2, %s9
    // Predicated region
    $region37: #{forward.8} parent=5 // pred_check
      %p272 = pneg %p271
    $region38: #{forward.8} parent=5 // pred_check_branch
      %274 = sbr.rel (%p272) target = $region40
    $region39: #{forward.8} parent=5 // pred_region
      %s275 = ssub.s32 %s9, 2
      // Predicated region
      $region41: #{forward.8} parent=39 // pred_check
        %p276 = pneg %p106
      $region42: #{forward.8} parent=39 // pred_check_branch
        %278 = sbr.rel (%p276) target = $region44
      $region43: #{forward.8} parent=39 // pred_region
        %p279 = scmp.lt.s32.totalorder %s15, 1
        %s280 = scalar_select %p279, %s15, 1
        %s281 = smul.addr %s280, 3
        %s282 = smul.addr %s281, 8
        %s283 = scalar_lea.vmem %s3, %s282
      $region44: #{forward.8} parent=39 // pred_fallthru
        _
    $region40: #{forward.8} parent=5 // pred_fallthru
      _
  $region6: #{forward.8} parent=0 // loop_footer
    %s13 = sadd.s32 1, %s9
  $region7: #{forward.8} parent=0 // loop_footer_branch
    %8 = sbr.rel target = $region3
  $region8: #{forward.8} parent=0 // loop_exit
    _

// kernel: forward.9
$region0: #{forward.9}
  #allocation0 [shape = 'u32[]', space=smem, size = 0x4, offset = 0x4, fixed_abs, tag = 'smem constant byte address 0x4 - core index']
  #allocation1 [shape = 'u32[144,128]{1,0:T(1,128)}', space=vmem, size = 0x12000, scoped, tag = 'internal scratch']
  #allocation2 [shape = 'f32[24,32]{1,0:T(8,128)}', space=vmem, size = 0x3000, scoped, tag = 'scratch operand']
  %s0 = inlined_call_operand.vmem [shape: f32[2,24,32], index: 0, kind: input, shape index: {}]
  %s1 = inlined_call_operand.vmem [shape: f32[12,1,32], index: 1, kind: input, shape index: {}]
  %s2 = inlined_call_operand.vmem [shape: f32[12,1,32], index: 2, kind: input, shape index: {}]
  %s3 = inlined_call_operand.vmem [shape: bf16[12,32,96], index: 3, kind: input, shape index: {}]
  %s4 = inlined_call_operand.vmem [shape: f32[12,1,96], index: 4, kind: input, shape index: {}]
  %s5 = inlined_call_operand.vmem [shape: bf16[12,32,32], index: 5, kind: input, shape index: {}]
  %s6 = inlined_call_operand.vmem [shape: f32[12,1,32], index: 6, kind: input, shape index: {}]
  %s7 = inlined_call_operand.vmem [shape: f32[12,1,32], index: 7, kind: input, shape index: {}]
  %s8 = inlined_call_operand.vmem [shape: f32[12,1,32], index: 8, kind: input, shape index: {}]
  %s9 = inlined_call_operand.vmem [shape: bf16[12,32,128], index: 9, kind: input, shape index: {}]
  %s10 = inlined_call_operand.vmem [shape: f32[12,1,128], index: 10, kind: input, shape index: {}]
  %s11 = inlined_call_operand.vmem [shape: bf16[12,128,32], index: 11, kind: input, shape index: {}]
  %s12 = inlined_call_operand.vmem [shape: f32[12,1,32], index: 12, kind: input, shape index: {}]
  %s13 = inlined_call_operand.vmem [shape: f32[1,32], index: 13, kind: input, shape index: {}]
  %s14 = inlined_call_operand.vmem [shape: f32[1,32], index: 14, kind: input, shape index: {}]
  %s15 = inlined_call_operand.vmem [shape: f32[4,2,24,32], index: 15, kind: output, shape index: {}]
  %s16 = sld [smem:[#allocation0]]
  $region101: #{forward.9} parent=0
    _
  %s18 = ssub.s32 1, %s16
  %s19 = scalar_select 0, %s18, %s16
  loop: start=0, step=1, limit=26
  $region2: #{forward.9} parent=0 // loop_pre_header
    _
  $region3: #{forward.9} parent=0 // loop_header
    %s21 = sphi 0, %s25
    %p22 = scmp.ge.s32.totalorder %s21, 26
    %s28 = sphi 0, %s40
    %s29 = sphi 0, %s36
    %s30 = sphi 0, %s28
    %s31 = sphi 0, %s29
    %s32 = sphi 0, %s30
    %s33 = sphi 0, %s31
    %s43 = sphi 0, %s45
    %s46 = sphi 0, %s43
    %s47 = sphi 0, %s46
    %s63 = sphi 0, %s47
    %s69 = sphi 0, %s71
    %s72 = sphi 0, %s69
    %s73 = sphi 0, %s72
    %s89 = sphi 0, %s73
    %s95 = sphi 0, %s97
    %s98 = sphi 0, %s95
    %s99 = sphi 0, %s98
    %s115 = sphi 0, %s99
    %s121 = sphi 0, %s123
    %s124 = sphi 0, %s121
    %s125 = sphi 0, %s124
    %s141 = sphi 0, %s125
    %s147 = sphi 0, %s149
    %s150 = sphi 0, %s147
    %s151 = sphi 0, %s150
    %s167 = sphi 0, %s151
    %s173 = sphi 0, %s175
    %s176 = sphi 0, %s173
    %s177 = sphi 0, %s176
    %s193 = sphi 0, %s177
    %s199 = sphi 0, %s201
    %s202 = sphi 0, %s199
    %s203 = sphi 0, %s202
    %s219 = sphi 0, %s203
    %s225 = sphi 0, %s227
    %s228 = sphi 0, %s225
    %s229 = sphi 0, %s228
    %s245 = sphi 0, %s229
    %s251 = sphi 0, %s253
    %s254 = sphi 0, %s251
    %s255 = sphi 0, %s254
    %s271 = sphi 0, %s255
    %s277 = sphi 0, %s279
    %s280 = sphi 0, %s277
    %s281 = sphi 0, %s280
    %s297 = sphi 0, %s281
    %s303 = sphi 0, %s305
    %s306 = sphi 0, %s303
    %s307 = sphi 0, %s306
    %s323 = sphi 0, %s307
    %s329 = sphi 0, %s331
    %s332 = sphi 0, %s329
    %s333 = sphi 0, %s332
    %s349 = sphi 0, %s333
    %s355 = sphi 0, %s357
    %s358 = sphi 0, %s355
    %s359 = sphi 0, %s358
    %s375 = sphi 0, %s359
    %s379 = sphi 0, %s379
    %s381 = sphi 0, %s379
    %s382 = sphi 0, %s381
    %s396 = sphi 0, %s382
    %s400 = sphi 0, %s400
    %s402 = sphi 0, %s400
    %s403 = sphi 0, %s402
    %s417 = sphi 0, %s403
    %s441 = sphi 0, %s443
    %s444 = sphi 0, %s441
    %s445 = sphi 0, %s444
    %s461 = sphi 0, %s445
  $region4: #{forward.9} parent=0 // loop_header_branch
    %24 = sbr.rel (%p22) target = $region8
  $region5: #{forward.9} parent=0 // loop_body
    %s26 = ssub.s32 %s21, 1
    %s27 = ssub.s32 %s21, 2
    %s34 = sadd.s32 1, %s29
    %p35 = scmp.ge.s32.totalorder %s34, 12
    %s36 = scalar_select %p35, 0, %s34
    %s37 = sadd.s32 1, %s28
    %s38 = scalar_select %p35, %s37, %s28
    %p39 = scmp.ge.s32.totalorder %s38, 2
    %s40 = scalar_select %p39, 0, %s38
    %s41 = ssub.s32 %s28, %s40
    %p42 = scmp.eq.s32.totalorder %s41, 0
    %s44 = sadd.s32 %s43, 1
    %s45 = scalar_select %p42, %s43, %s44
    %p48 = pneg %p42
    %p49 = scmp.eq.s32.totalorder %s21, 23
    %p50 = por %p48, %p49
    %p51 = scmp.ne.s32.totalorder %s43, %s46
    %p52 = scmp.eq.s32.totalorder %s21, 0
    %p53 = por %p51, %p52
    %p54 = scmp.ne.s32.totalorder %s43, %s46
    %p55 = scmp.eq.s32.totalorder %s26, 23
    %p56 = por %p54, %p55
    %p57 = scmp.ne.s32.totalorder %s46, %s47
    %p58 = scmp.eq.s32.totalorder %s26, 0
    %p59 = por %p57, %p58
    %p60 = scmp.ne.s32.totalorder %s46, %s47
    %p61 = scmp.eq.s32.totalorder %s27, 23
    %p62 = por %p60, %p61
    %p64 = scmp.ne.s32.totalorder %s47, %s63
    %p65 = scmp.eq.s32.totalorder %s27, 0
    %p66 = por %p64, %p65
    %s67 = ssub.s32 %s29, %s36
    %p68 = scmp.eq.s32.totalorder %s67, 0
    %s70 = sadd.s32 %s69, 1
    %s71 = scalar_select %p68, %s69, %s70
    %p74 = pneg %p68
    %p75 = scmp.eq.s32.totalorder %s21, 23
    %p76 = por %p74, %p75
    %p77 = scmp.ne.s32.totalorder %s69, %s72
    %p78 = scmp.eq.s32.totalorder %s21, 0
    %p79 = por %p77, %p78
    %p80 = scmp.ne.s32.totalorder %s69, %s72
    %p81 = scmp.eq.s32.totalorder %s26, 23
    %p82 = por %p80, %p81
    %p83 = scmp.ne.s32.totalorder %s72, %s73
    %p84 = scmp.eq.s32.totalorder %s26, 0
    %p85 = por %p83, %p84
    %p86 = scmp.ne.s32.totalorder %s72, %s73
    %p87 = scmp.eq.s32.totalorder %s27, 23
    %p88 = por %p86, %p87
    %p90 = scmp.ne.s32.totalorder %s73, %s89
    %p91 = scmp.eq.s32.totalorder %s27, 0
    %p92 = por %p90, %p91
    %s93 = ssub.s32 %s29, %s36
    %p94 = scmp.eq.s32.totalorder %s93, 0
    %s96 = sadd.s32 %s95, 1
    %s97 = scalar_select %p94, %s95, %s96
    %p100 = pneg %p94
    %p101 = scmp.eq.s32.totalorder %s21, 23
    %p102 = por %p100, %p101
    %p103 = scmp.ne.s32.totalorder %s95, %s98
    %p104 = scmp.eq.s32.totalorder %s21, 0
    %p105 = por %p103, %p104
    %p106 = scmp.ne.s32.totalorder %s95, %s98
    %p107 = scmp.eq.s32.totalorder %s26, 23
    %p108 = por %p106, %p107
    %p109 = scmp.ne.s32.totalorder %s98, %s99
    %p110 = scmp.eq.s32.totalorder %s26, 0
    %p111 = por %p109, %p110
    %p112 = scmp.ne.s32.totalorder %s98, %s99
    %p113 = scmp.eq.s32.totalorder %s27, 23
    %p114 = por %p112, %p113
    %p116 = scmp.ne.s32.totalorder %s99, %s115
    %p117 = scmp.eq.s32.totalorder %s27, 0
    %p118 = por %p116, %p117
    %s119 = ssub.s32 %s29, %s36
    %p120 = scmp.eq.s32.totalorder %s119, 0
    %s122 = sadd.s32 %s121, 1
    %s123 = scalar_select %p120, %s121, %s122
    %p126 = pneg %p120
    %p127 = scmp.eq.s32.totalorder %s21, 23
    %p128 = por %p126, %p127
    %p129 = scmp.ne.s32.totalorder %s121, %s124
    %p130 = scmp.eq.s32.totalorder %s21, 0
    %p131 = por %p129, %p130
    %p132 = scmp.ne.s32.totalorder %s121, %s124
    %p133 = scmp.eq.s32.totalorder %s26, 23
    %p134 = por %p132, %p133
    %p135 = scmp.ne.s32.totalorder %s124, %s125
    %p136 = scmp.eq.s32.totalorder %s26, 0
    %p137 = por %p135, %p136
    %p138 = scmp.ne.s32.totalorder %s124, %s125
    %p139 = scmp.eq.s32.totalorder %s27, 23
    %p140 = por %p138, %p139
    %p142 = scmp.ne.s32.totalorder %s125, %s141
    %p143 = scmp.eq.s32.totalorder %s27, 0
    %p144 = por %p142, %p143
    %s145 = ssub.s32 %s29, %s36
    %p146 = scmp.eq.s32.totalorder %s145, 0
    %s148 = sadd.s32 %s147, 1
    %s149 = scalar_select %p146, %s147, %s148
    %p152 = pneg %p146
    %p153 = scmp.eq.s32.totalorder %s21, 23
    %p154 = por %p152, %p153
    %p155 = scmp.ne.s32.totalorder %s147, %s150
    %p156 = scmp.eq.s32.totalorder %s21, 0
    %p157 = por %p155, %p156
    %p158 = scmp.ne.s32.totalorder %s147, %s150
    %p159 = scmp.eq.s32.totalorder %s26, 23
    %p160 = por %p158, %p159
    %p161 = scmp.ne.s32.totalorder %s150, %s151
    %p162 = scmp.eq.s32.totalorder %s26, 0
    %p163 = por %p161, %p162
    %p164 = scmp.ne.s32.totalorder %s150, %s151
    %p165 = scmp.eq.s32.totalorder %s27, 23
    %p166 = por %p164, %p165
    %p168 = scmp.ne.s32.totalorder %s151, %s167
    %p169 = scmp.eq.s32.totalorder %s27, 0
    %p170 = por %p168, %p169
    %s171 = ssub.s32 %s29, %s36
    %p172 = scmp.eq.s32.totalorder %s171, 0
    %s174 = sadd.s32 %s173, 1
    %s175 = scalar_select %p172, %s173, %s174
    %p178 = pneg %p172
    %p179 = scmp.eq.s32.totalorder %s21, 23
    %p180 = por %p178, %p179
    %p181 = scmp.ne.s32.totalorder %s173, %s176
    %p182 = scmp.eq.s32.totalorder %s21, 0
    %p183 = por %p181, %p182
    %p184 = scmp.ne.s32.totalorder %s173, %s176
    %p185 = scmp.eq.s32.totalorder %s26, 23
    %p186 = por %p184, %p185
    %p187 = scmp.ne.s32.totalorder %s176, %s177
    %p188 = scmp.eq.s32.totalorder %s26, 0
    %p189 = por %p187, %p188
    %p190 = scmp.ne.s32.totalorder %s176, %s177
    %p191 = scmp.eq.s32.totalorder %s27, 23
    %p192 = por %p190, %p191
    %p194 = scmp.ne.s32.totalorder %s177, %s193
    %p195 = scmp.eq.s32.totalorder %s27, 0
    %p196 = por %p194, %p195
    %s197 = ssub.s32 %s29, %s36
    %p198 = scmp.eq.s32.totalorder %s197, 0
    %s200 = sadd.s32 %s199, 1
    %s201 = scalar_select %p198, %s199, %s200
    %p204 = pneg %p198
    %p205 = scmp.eq.s32.totalorder %s21, 23
    %p206 = por %p204, %p205
    %p207 = scmp.ne.s32.totalorder %s199, %s202
    %p208 = scmp.eq.s32.totalorder %s21, 0
    %p209 = por %p207, %p208
    %p210 = scmp.ne.s32.totalorder %s199, %s202
    %p211 = scmp.eq.s32.totalorder %s26, 23
    %p212 = por %p210, %p211
    %p213 = scmp.ne.s32.totalorder %s202, %s203
    %p214 = scmp.eq.s32.totalorder %s26, 0
    %p215 = por %p213, %p214
    %p216 = scmp.ne.s32.totalorder %s202, %s203
    %p217 = scmp.eq.s32.totalorder %s27, 23
    %p218 = por %p216, %p217
    %p220 = scmp.ne.s32.totalorder %s203, %s219
    %p221 = scmp.eq.s32.totalorder %s27, 0
    %p222 = por %p220, %p221
    %s223 = ssub.s32 %s29, %s36
    %p224 = scmp.eq.s32.totalorder %s223, 0
    %s226 = sadd.s32 %s225, 1
    %s227 = scalar_select %p224, %s225, %s226
    %p230 = pneg %p224
    %p231 = scmp.eq.s32.totalorder %s21, 23
    %p232 = por %p230, %p231
    %p233 = scmp.ne.s32.totalorder %s225, %s228
    %p234 = scmp.eq.s32.totalorder %s21, 0
    %p235 = por %p233, %p234
    %p236 = scmp.ne.s32.totalorder %s225, %s228
    %p237 = scmp.eq.s32.totalorder %s26, 23
    %p238 = por %p236, %p237
    %p239 = scmp.ne.s32.totalorder %s228, %s229
    %p240 = scmp.eq.s32.totalorder %s26, 0
    %p241 = por %p239, %p240
    %p242 = scmp.ne.s32.totalorder %s228, %s229
    %p243 = scmp.eq.s32.totalorder %s27, 23
    %p244 = por %p242, %p243
    %p246 = scmp.ne.s32.totalorder %s229, %s245
    %p247 = scmp.eq.s32.totalorder %s27, 0
    %p248 = por %p246, %p247
    %s249 = ssub.s32 %s29, %s36
    %p250 = scmp.eq.s32.totalorder %s249, 0
    %s252 = sadd.s32 %s251, 1
    %s253 = scalar_select %p250, %s251, %s252
    %p256 = pneg %p250
    %p257 = scmp.eq.s32.totalorder %s21, 23
    %p258 = por %p256, %p257
    %p259 = scmp.ne.s32.totalorder %s251, %s254
    %p260 = scmp.eq.s32.totalorder %s21, 0
    %p261 = por %p259, %p260
    %p262 = scmp.ne.s32.totalorder %s251, %s254
    %p263 = scmp.eq.s32.totalorder %s26, 23
    %p264 = por %p262, %p263
    %p265 = scmp.ne.s32.totalorder %s254, %s255
    %p266 = scmp.eq.s32.totalorder %s26, 0
    %p267 = por %p265, %p266
    %p268 = scmp.ne.s32.totalorder %s254, %s255
    %p269 = scmp.eq.s32.totalorder %s27, 23
    %p270 = por %p268, %p269
    %p272 = scmp.ne.s32.totalorder %s255, %s271
    %p273 = scmp.eq.s32.totalorder %s27, 0
    %p274 = por %p272, %p273
    %s275 = ssub.s32 %s29, %s36
    %p276 = scmp.eq.s32.totalorder %s275, 0
    %s278 = sadd.s32 %s277, 1
    %s279 = scalar_select %p276, %s277, %s278
    %p282 = pneg %p276
    %p283 = scmp.eq.s32.totalorder %s21, 23
    %p284 = por %p282, %p283
    %p285 = scmp.ne.s32.totalorder %s277, %s280
    %p286 = scmp.eq.s32.totalorder %s21, 0
    %p287 = por %p285, %p286
    %p288 = scmp.ne.s32.totalorder %s277, %s280
    %p289 = scmp.eq.s32.totalorder %s26, 23
    %p290 = por %p288, %p289
    %p291 = scmp.ne.s32.totalorder %s280, %s281
    %p292 = scmp.eq.s32.totalorder %s26, 0
    %p293 = por %p291, %p292
    %p294 = scmp.ne.s32.totalorder %s280, %s281
    %p295 = scmp.eq.s32.totalorder %s27, 23
    %p296 = por %p294, %p295
    %p298 = scmp.ne.s32.totalorder %s281, %s297
    %p299 = scmp.eq.s32.totalorder %s27, 0
    %p300 = por %p298, %p299
    %s301 = ssub.s32 %s29, %s36
    %p302 = scmp.eq.s32.totalorder %s301, 0
    %s304 = sadd.s32 %s303, 1
    %s305 = scalar_select %p302, %s303, %s304
    %p308 = pneg %p302
    %p309 = scmp.eq.s32.totalorder %s21, 23
    %p310 = por %p308, %p309
    %p311 = scmp.ne.s32.totalorder %s303, %s306
    %p312 = scmp.eq.s32.totalorder %s21, 0
    %p313 = por %p311, %p312
    %p314 = scmp.ne.s32.totalorder %s303, %s306
    %p315 = scmp.eq.s32.totalorder %s26, 23
    %p316 = por %p314, %p315
    %p317 = scmp.ne.s32.totalorder %s306, %s307
    %p318 = scmp.eq.s32.totalorder %s26, 0
    %p319 = por %p317, %p318
    %p320 = scmp.ne.s32.totalorder %s306, %s307
    %p321 = scmp.eq.s32.totalorder %s27, 23
    %p322 = por %p320, %p321
    %p324 = scmp.ne.s32.totalorder %s307, %s323
    %p325 = scmp.eq.s32.totalorder %s27, 0
    %p326 = por %p324, %p325
    %s327 = ssub.s32 %s29, %s36
    %p328 = scmp.eq.s32.totalorder %s327, 0
    %s330 = sadd.s32 %s329, 1
    %s331 = scalar_select %p328, %s329, %s330
    %p334 = pneg %p328
    %p335 = scmp.eq.s32.totalorder %s21, 23
    %p336 = por %p334, %p335
    %p337 = scmp.ne.s32.totalorder %s329, %s332
    %p338 = scmp.eq.s32.totalorder %s21, 0
    %p339 = por %p337, %p338
    %p340 = scmp.ne.s32.totalorder %s329, %s332
    %p341 = scmp.eq.s32.totalorder %s26, 23
    %p342 = por %p340, %p341
    %p343 = scmp.ne.s32.totalorder %s332, %s333
    %p344 = scmp.eq.s32.totalorder %s26, 0
    %p345 = por %p343, %p344
    %p346 = scmp.ne.s32.totalorder %s332, %s333
    %p347 = scmp.eq.s32.totalorder %s27, 23
    %p348 = por %p346, %p347
    %p350 = scmp.ne.s32.totalorder %s333, %s349
    %p351 = scmp.eq.s32.totalorder %s27, 0
    %p352 = por %p350, %p351
    %s353 = ssub.s32 %s29, %s36
    %p354 = scmp.eq.s32.totalorder %s353, 0
    %s356 = sadd.s32 %s355, 1
    %s357 = scalar_select %p354, %s355, %s356
    %p360 = pneg %p354
    %p361 = scmp.eq.s32.totalorder %s21, 23
    %p362 = por %p360, %p361
    %p363 = scmp.ne.s32.totalorder %s355, %s358
    %p364 = scmp.eq.s32.totalorder %s21, 0
    %p365 = por %p363, %p364
    %p366 = scmp.ne.s32.totalorder %s355, %s358
    %p367 = scmp.eq.s32.totalorder %s26, 23
    %p368 = por %p366, %p367
    %p369 = scmp.ne.s32.totalorder %s358, %s359
    %p370 = scmp.eq.s32.totalorder %s26, 0
    %p371 = por %p369, %p370
    %p372 = scmp.ne.s32.totalorder %s358, %s359
    %p373 = scmp.eq.s32.totalorder %s27, 23
    %p374 = por %p372, %p373
    %p376 = scmp.ne.s32.totalorder %s359, %s375
    %p377 = scmp.eq.s32.totalorder %s27, 0
    %p378 = por %p376, %p377
    %s380 = sadd.s32 %s379, 1
    %p383 = scmp.eq.s32.totalorder %s21, 23
    %p384 = scmp.ne.s32.totalorder %s379, %s381
    %p385 = scmp.eq.s32.totalorder %s21, 0
    %p386 = por %p384, %p385
    %p387 = scmp.ne.s32.totalorder %s379, %s381
    %p388 = scmp.eq.s32.totalorder %s26, 23
    %p389 = por %p387, %p388
    %p390 = scmp.ne.s32.totalorder %s381, %s382
    %p391 = scmp.eq.s32.totalorder %s26, 0
    %p392 = por %p390, %p391
    %p393 = scmp.ne.s32.totalorder %s381, %s382
    %p394 = scmp.eq.s32.totalorder %s27, 23
    %p395 = por %p393, %p394
    %p397 = scmp.ne.s32.totalorder %s382, %s396
    %p398 = scmp.eq.s32.totalorder %s27, 0
    %p399 = por %p397, %p398
    %s401 = sadd.s32 %s400, 1
    %p404 = scmp.eq.s32.totalorder %s21, 23
    %p405 = scmp.ne.s32.totalorder %s400, %s402
    %p406 = scmp.eq.s32.totalorder %s21, 0
    %p407 = por %p405, %p406
    %p408 = scmp.ne.s32.totalorder %s400, %s402
    %p409 = scmp.eq.s32.totalorder %s26, 23
    %p410 = por %p408, %p409
    %p411 = scmp.ne.s32.totalorder %s402, %s403
    %p412 = scmp.eq.s32.totalorder %s26, 0
    %p413 = por %p411, %p412
    %p414 = scmp.ne.s32.totalorder %s402, %s403
    %p415 = scmp.eq.s32.totalorder %s27, 23
    %p416 = por %p414, %p415
    %p418 = scmp.ne.s32.totalorder %s403, %s417
    %p419 = scmp.eq.s32.totalorder %s27, 0
    %p420 = por %p418, %p419
    %p421 = scmp.ge.s32.totalorder %s29, 5
    %s422 = scalar_select %p421, 1, 0
    %p423 = scmp.ge.s32.totalorder %s29, 8
    %s424 = scalar_select %p423, 1, 0
    %s425 = sadd.s32 %s422, %s424
    %p426 = scmp.ge.s32.totalorder %s29, 11
    %s427 = scalar_select %p426, 1, 0
    %s428 = sadd.s32 %s425, %s427
    %p429 = scmp.ge.s32.totalorder %s36, 5
    %s430 = scalar_select %p429, 1, 0
    %p431 = scmp.ge.s32.totalorder %s36, 8
    %s432 = scalar_select %p431, 1, 0
    %s433 = sadd.s32 %s430, %s432
    %p434 = scmp.ge.s32.totalorder %s36, 11
    %s435 = scalar_select %p434, 1, 0
    %s436 = sadd.s32 %s433, %s435
    %s437 = ssub.s32 %s428, %s436
    %s438 = ssub.s32 %s28, %s40
    %s439 = sor.u32 %s437, %s438
    %p440 = scmp.eq.s32.totalorder %s439, 0
    %s442 = sadd.s32 %s441, 1
    %s443 = scalar_select %p440, %s441, %s442
    %p446 = pneg %p440
    %p447 = scmp.eq.s32.totalorder %s21, 23
    %p448 = por %p446, %p447
    %p449 = scmp.ne.s32.totalorder %s441, %s444
    %p450 = scmp.eq.s32.totalorder %s21, 0
    %p451 = por %p449, %p450
    %p452 = scmp.ne.s32.totalorder %s441, %s444
    %p453 = scmp.eq.s32.totalorder %s26, 23
    %p454 = por %p452, %p453
    %p455 = scmp.ne.s32.totalorder %s444, %s445
    %p456 = scmp.eq.s32.totalorder %s26, 0
    %p457 = por %p455, %p456
    %p458 = scmp.ne.s32.totalorder %s444, %s445
    %p459 = scmp.eq.s32.totalorder %s27, 23
    %p460 = por %p458, %p459
    %p462 = scmp.ne.s32.totalorder %s445, %s461
    %p463 = scmp.eq.s32.totalorder %s27, 0
    %p464 = por %p462, %p463
    %p465 = scmp.le.s32.totalorder 1, %s21
    %p466 = scmp.lt.s32.totalorder %s21, 25
    %p467 = pnand %p465, %p466
    %p468 = pneg %p467
    // Predicated region
    $region9: #{forward.9} parent=5 // pred_check
      _
    $region10: #{forward.9} parent=5 // pred_check_branch
      %470 = sbr.rel (%p467) target = $region12
    $region11: #{forward.9} parent=5 // pred_region
      %s471 = ssub.s32 %s21, 1
      // Predicated region
      $region13: #{forward.9} parent=11 // pred_check
        %p472 = pneg %p392
      $region14: #{forward.9} parent=11 // pred_check_branch
        %474 = sbr.rel (%p472) target = $region16
      $region15: #{forward.9} parent=11 // pred_region
        _
      $region16: #{forward.9} parent=11 // pred_fallthru
        _
      // Predicated region
      $region17: #{forward.9} parent=11 // pred_check
        %p475 = pneg %p413
      $region18: #{forward.9} parent=11 // pred_check_branch
        %477 = sbr.rel (%p475) target = $region20
      $region19: #{forward.9} parent=11 // pred_region
        _
      $region20: #{forward.9} parent=11 // pred_fallthru
        _
    $region12: #{forward.9} parent=5 // pred_fallthru
      _
    %p478 = scmp.lt.s32.totalorder %s21, 24
    // Predicated region
    $region21: #{forward.9} parent=5 // pred_check
      %p479 = pneg %p478
    $region22: #{forward.9} parent=5 // pred_check_branch
      %481 = sbr.rel (%p479) target = $region24
    $region23: #{forward.9} parent=5 // pred_region
      // Predicated region
      $region25: #{forward.9} parent=23 // pred_check
        %p482 = pneg %p53
      $region26: #{forward.9} parent=23 // pred_check_branch
        %484 = sbr.rel (%p482) target = $region28
      $region27: #{forward.9} parent=23 // pred_region
        %p485 = scmp.lt.s32.totalorder %s28, 1
        %s486 = scalar_select %p485, %s28, 1
        %s487 = smul.addr %s486, 3
        %s488 = smul.addr %s487, 8
        %s489 = scalar_lea.vmem %s0, %s488
      $region28: #{forward.9} parent=23 // pred_fallthru
        _
      // Predicated region
      $region29: #{forward.9} parent=23 // pred_check
        %p490 = pneg %p79
      $region30: #{forward.9} parent=23 // pred_check_branch
        %492 = sbr.rel (%p490) target = $region32
      $region31: #{forward.9} parent=23 // pred_region
        %p493 = scmp.lt.s32.totalorder %s29, 11
        %s494 = scalar_select %p493, %s29, 11
        %s495 = scalar_lea.vmem %s1, %s494
      $region32: #{forward.9} parent=23 // pred_fallthru
        _
      // Predicated region
      $region33: #{forward.9} parent=23 // pred_check
        %p496 = pneg %p105
      $region34: #{forward.9} parent=23 // pred_check_branch
        %498 = sbr.rel (%p496) target = $region36
      $region35: #{forward.9} parent=23 // pred_region
        %p499 = scmp.lt.s32.totalorder %s29, 11
        %s500 = scalar_select %p499, %s29, 11
        %s501 = scalar_lea.vmem %s2, %s500
      $region36: #{forward.9} parent=23 // pred_fallthru
        _
      // Predicated region
      $region37: #{forward.9} parent=23 // pred_check
        %p502 = pneg %p131
      $region38: #{forward.9} parent=23 // pred_check_branch
        %504 = sbr.rel (%p502) target = $region40
      $region39: #{forward.9} parent=23 // pred_region
        %p505 = scmp.lt.s32.totalorder %s29, 11
        %s506 = scalar_select %p505, %s29, 11
        %s507 = smul.addr %s506, 4
        %s508 = smul.addr %s507, 4
        %s509 = scalar_lea.vmem %s3, %s508
      $region40: #{forward.9} parent=23 // pred_fallthru
        _
      // Predicated region
      $region41: #{forward.9} parent=23 // pred_check
        %p510 = pneg %p157
      $region42: #{forward.9} parent=23 // pred_check_branch
        %512 = sbr.rel (%p510) target = $region44
      $region43: #{forward.9} parent=23 // pred_region
        %p513 = scmp.lt.s32.totalorder %s29, 11
        %s514 = scalar_select %p513, %s29, 11
        %s515 = scalar_lea.vmem %s4, %s514
      $region44: #{forward.9} parent=23 // pred_fallthru
        _
      // Predicated region
      $region45: #{forward.9} parent=23 // pred_check
        %p516 = pneg %p183
      $region46: #{forward.9} parent=23 // pred_check_branch
        %518 = sbr.rel (%p516) target = $region48
      $region47: #{forward.9} parent=23 // pred_region
        %p519 = scmp.lt.s32.totalorder %s29, 11
        %s520 = scalar_select %p519, %s29, 11
        %s521 = smul.addr %s520, 4
        %s522 = smul.addr %s521, 4
        %s523 = scalar_lea.vmem %s5, %s522
      $region48: #{forward.9} parent=23 // pred_fallthru
        _
      // Predicated region
      $region49: #{forward.9} parent=23 // pred_check
        %p524 = pneg %p209
      $region50: #{forward.9} parent=23 // pred_check_branch
        %526 = sbr.rel (%p524) target = $region52
      $region51: #{forward.9} parent=23 // pred_region
        %p527 = scmp.lt.s32.totalorder %s29, 11
        %s528 = scalar_select %p527, %s29, 11
        %s529 = scalar_lea.vmem %s6, %s528
      $region52: #{forward.9} parent=23 // pred_fallthru
        _
      // Predicated region
      $region53: #{forward.9} parent=23 // pred_check
        %p530 = pneg %p235
      $region54: #{forward.9} parent=23 // pred_check_branch
        %532 = sbr.rel (%p530) target = $region56
      $region55: #{forward.9} parent=23 // pred_region
        %p533 = scmp.lt.s32.totalorder %s29, 11
        %s534 = scalar_select %p533, %s29, 11
        %s535 = scalar_lea.vmem %s7, %s534
      $region56: #{forward.9} parent=23 // pred_fallthru
        _
      // Predicated region
      $region57: #{forward.9} parent=23 // pred_check
        %p536 = pneg %p261
      $region58: #{forward.9} parent=23 // pred_check_branch
        %538 = sbr.rel (%p536) target = $region60
      $region59: #{forward.9} parent=23 // pred_region
        %p539 = scmp.lt.s32.totalorder %s29, 11
        %s540 = scalar_select %p539, %s29, 11
        %s541 = scalar_lea.vmem %s8, %s540
      $region60: #{forward.9} parent=23 // pred_fallthru
        _
      // Predicated region
      $region61: #{forward.9} parent=23 // pred_check
        %p542 = pneg %p287
      $region62: #{forward.9} parent=23 // pred_check_branch
        %544 = sbr.rel (%p542) target = $region64
      $region63: #{forward.9} parent=23 // pred_region
        %p545 = scmp.lt.s32.totalorder %s29, 11
        %s546 = scalar_select %p545, %s29, 11
        %s547 = smul.addr %s546, 4
        %s548 = smul.addr %s547, 4
        %s549 = scalar_lea.vmem %s9, %s548
      $region64: #{forward.9} parent=23 // pred_fallthru
        _
      // Predicated region
      $region65: #{forward.9} parent=23 // pred_check
        %p550 = pneg %p313
      $region66: #{forward.9} parent=23 // pred_check_branch
        %552 = sbr.rel (%p550) target = $region68
      $region67: #{forward.9} parent=23 // pred_region
        %p553 = scmp.lt.s32.totalorder %s29, 11
        %s554 = scalar_select %p553, %s29, 11
        %s555 = scalar_lea.vmem %s10, %s554
      $region68: #{forward.9} parent=23 // pred_fallthru
        _
      // Predicated region
      $region69: #{forward.9} parent=23 // pred_check
        %p556 = pneg %p339
      $region70: #{forward.9} parent=23 // pred_check_branch
        %558 = sbr.rel (%p556) target = $region72
      $region71: #{forward.9} parent=23 // pred_region
        %p559 = scmp.lt.s32.totalorder %s29, 11
        %s560 = scalar_select %p559, %s29, 11
        %s561 = smul.addr %s560, 16
        %s562 = smul.addr %s561, 4
        %s563 = scalar_lea.vmem %s11, %s562
      $region72: #{forward.9} parent=23 // pred_fallthru
        _
      // Predicated region
      $region73: #{forward.9} parent=23 // pred_check
        %p564 = pneg %p365
      $region74: #{forward.9} parent=23 // pred_check_branch
        %566 = sbr.rel (%p564) target = $region76
      $region75: #{forward.9} parent=23 // pred_region
        %p567 = scmp.lt.s32.totalorder %s29, 11
        %s568 = scalar_select %p567, %s29, 11
        %s569 = scalar_lea.vmem %s12, %s568
      $region76: #{forward.9} parent=23 // pred_fallthru
        _
    $region24: #{forward.9} parent=5 // pred_fallthru
      _
    %p570 = scmp.le.s32.totalorder 1, %s21
    %p571 = scmp.lt.s32.totalorder %s21, 25
    %p572 = pnand %p570, %p571
    %p573 = pneg %p572
    // Predicated region
    $region77: #{forward.9} parent=5 // pred_check
      _
    $region78: #{forward.9} parent=5 // pred_check_branch
      %575 = sbr.rel (%p572) target = $region80
    $region79: #{forward.9} parent=5 // pred_region
      %s576 = ssub.s32 %s21, 1
      %p577 = scmp.lt.s32.totalorder %s30, 1
      %s578 = scalar_select %p577, %s30, 1
      %s579 = smul.addr %s578, 3
      %s580 = smul.addr %s579, 8
      %s581 = scalar_lea.vmem %s0, %s580
      %p582 = pneg %p59
      %p583 = pneg %p56
      %p584 = scmp.lt.s32.totalorder %s31, 11
      %s585 = scalar_select %p584, %s31, 11
      %s586 = scalar_lea.vmem %s1, %s585
      %p587 = pneg %p85
      %p588 = pneg %p82
      %p589 = scmp.lt.s32.totalorder %s31, 11
      %s590 = scalar_select %p589, %s31, 11
      %s591 = scalar_lea.vmem %s2, %s590
      %p592 = pneg %p111
      %p593 = pneg %p108
      %p594 = scmp.lt.s32.totalorder %s31, 11
      %s595 = scalar_select %p594, %s31, 11
      %s596 = smul.addr %s595, 4
      %s597 = smul.addr %s596, 4
      %s598 = scalar_lea.vmem %s3, %s597
      %p599 = pneg %p137
      %p600 = pneg %p134
      %p601 = scmp.lt.s32.totalorder %s31, 11
      %s602 = scalar_select %p601, %s31, 11
      %s603 = scalar_lea.vmem %s4, %s602
      %p604 = pneg %p163
      %p605 = pneg %p160
      %p606 = scmp.lt.s32.totalorder %s31, 11
      %s607 = scalar_select %p606, %s31, 11
      %s608 = smul.addr %s607, 4
      %s609 = smul.addr %s608, 4
      %s610 = scalar_lea.vmem %s5, %s609
      %p611 = pneg %p189
      %p612 = pneg %p186
      %p613 = scmp.lt.s32.totalorder %s31, 11
      %s614 = scalar_select %p613, %s31, 11
      %s615 = scalar_lea.vmem %s6, %s614
      %p616 = pneg %p215
      %p617 = pneg %p212
      %p618 = scmp.lt.s32.totalorder %s31, 11
      %s619 = scalar_select %p618, %s31, 11
      %s620 = scalar_lea.vmem %s7, %s619
      %p621 = pneg %p241
      %p622 = pneg %p238
      %p623 = scmp.lt.s32.totalorder %s31, 11
      %s624 = scalar_select %p623, %s31, 11
      %s625 = scalar_lea.vmem %s8, %s624
      %p626 = pneg %p267
      %p627 = pneg %p264
      %p628 = scmp.lt.s32.totalorder %s31, 11
      %s629 = scalar_select %p628, %s31, 11
      %s630 = smul.addr %s629, 4
      %s631 = smul.addr %s630, 4
      %s632 = scalar_lea.vmem %s9, %s631
      %p633 = pneg %p293
      %p634 = pneg %p290
      %p635 = scmp.lt.s32.totalorder %s31, 11
      %s636 = scalar_select %p635, %s31, 11
      %s637 = scalar_lea.vmem %s10, %s636
      %p638 = pneg %p319
      %p639 = pneg %p316
      %p640 = scmp.lt.s32.totalorder %s31, 11
      %s641 = scalar_select %p640, %s31, 11
      %s642 = smul.addr %s641, 16
      %s643 = smul.addr %s642, 4
      %s644 = scalar_lea.vmem %s11, %s643
      %p645 = pneg %p345
      %p646 = pneg %p342
      %p647 = scmp.lt.s32.totalorder %s31, 11
      %s648 = scalar_select %p647, %s31, 11
      %s649 = scalar_lea.vmem %s12, %s648
      %p650 = pneg %p371
      %p651 = pneg %p368
      %p652 = pneg %p392
      %p653 = pneg %p389
      %p654 = pneg %p413
      %p655 = pneg %p410
      %p656 = pneg %p457
      %p657 = pneg %p454
      %p658 = scmp.ge.s32.totalorder %s31, 5
      %s659 = scalar_select %p658, 1, 0
      %p660 = scmp.ge.s32.totalorder %s31, 8
      %s661 = scalar_select %p660, 1, 0
      %s662 = sadd.s32 %s659, %s661
      %p663 = scmp.ge.s32.totalorder %s31, 11
      %s664 = scalar_select %p663, 1, 0
      %s665 = sadd.s32 %s662, %s664
      %p666 = scmp.lt.s32.totalorder %s665, 3
      %s667 = scalar_select %p666, %s665, 3
      %p668 = scmp.lt.s32.totalorder %s30, 1
      %s669 = scalar_select %p668, %s30, 1
      %s670 = smul.addr %s669, 3
      %s671 = smul.addr %s667, 6
      %s672 = sadd.s32 %s670, %s671
      %s673 = smul.addr %s672, 8
      %s674 = scalar_lea.vmem %s15, %s673
      %p675 = scmp.lt.s32.totalorder %s30, 1
      %s676 = scalar_select %p675, %s30, 1
      %s677 = smul.addr %s676, 3
      %s678 = smul.addr %s677, 8
      %s679 = scalar_lea.vmem %s0, %s678
      %p680 = scmp.lt.s32.totalorder %s31, 11
      %s681 = scalar_select %p680, %s31, 11
      %s682 = scalar_lea.vmem %s1, %s681
      %p683 = scmp.lt.s32.totalorder %s31, 11
      %s684 = scalar_select %p683, %s31, 11
      %s685 = scalar_lea.vmem %s2, %s684
      %p686 = scmp.lt.s32.totalorder %s31, 11
      %s687 = scalar_select %p686, %s31, 11
      %s688 = smul.addr %s687, 4
      %s689 = smul.addr %s688, 4
      %s690 = scalar_lea.vmem %s3, %s689
      %p691 = scmp.lt.s32.totalorder %s31, 11
      %s692 = scalar_select %p691, %s31, 11
      %s693 = scalar_lea.vmem %s4, %s692
      %p694 = scmp.lt.s32.totalorder %s31, 11
      %s695 = scalar_select %p694, %s31, 11
      %s696 = smul.addr %s695, 4
      %s697 = smul.addr %s696, 4
      %s698 = scalar_lea.vmem %s5, %s697
      %p699 = scmp.lt.s32.totalorder %s31, 11
      %s700 = scalar_select %p699, %s31, 11
      %s701 = scalar_lea.vmem %s6, %s700
      %p702 = scmp.lt.s32.totalorder %s31, 11
      %s703 = scalar_select %p702, %s31, 11
      %s704 = scalar_lea.vmem %s7, %s703
      %p705 = scmp.lt.s32.totalorder %s31, 11
      %s706 = scalar_select %p705, %s31, 11
      %s707 = scalar_lea.vmem %s8, %s706
      %p708 = scmp.lt.s32.totalorder %s31, 11
      %s709 = scalar_select %p708, %s31, 11
      %s710 = smul.addr %s709, 4
      %s711 = smul.addr %s710, 4
      %s712 = scalar_lea.vmem %s9, %s711
      %p713 = scmp.lt.s32.totalorder %s31, 11
      %s714 = scalar_select %p713, %s31, 11
      %s715 = scalar_lea.vmem %s10, %s714
      %p716 = scmp.lt.s32.totalorder %s31, 11
      %s717 = scalar_select %p716, %s31, 11
      %s718 = smul.addr %s717, 16
      %s719 = smul.addr %s718, 4
      %s720 = scalar_lea.vmem %s11, %s719
      %p721 = scmp.lt.s32.totalorder %s31, 11
      %s722 = scalar_select %p721, %s31, 11
      %s723 = scalar_lea.vmem %s12, %s722
      %p724 = scmp.ge.s32.totalorder %s31, 5
      %s725 = scalar_select %p724, 1, 0
      %p726 = scmp.ge.s32.totalorder %s31, 8
      %s727 = scalar_select %p726, 1, 0
      %s728 = sadd.s32 %s725, %s727
      %p729 = scmp.ge.s32.totalorder %s31, 11
      %s730 = scalar_select %p729, 1, 0
      %s731 = sadd.s32 %s728, %s730
      %p732 = scmp.lt.s32.totalorder %s731, 3
      %s733 = scalar_select %p732, %s731, 3
      %p734 = scmp.lt.s32.totalorder %s30, 1
      %s735 = scalar_select %p734, %s30, 1
      %s736 = smul.addr %s735, 3
      %s737 = smul.addr %s733, 6
      %s738 = sadd.s32 %s736, %s737
      %s739 = smul.addr %s738, 8
      %s740 = scalar_lea.vmem %s15, %s739
      %p741 = scmp.ge.s32.totalorder %s31, 5
      %s742 = scalar_select %p741, 1, 0
      %p743 = scmp.ge.s32.totalorder %s31, 8
      %s744 = scalar_select %p743, 1, 0
      %s745 = sadd.s32 %s742, %s744
      %p746 = scmp.ge.s32.totalorder %s31, 11
      %s747 = scalar_select %p746, 1, 0
      %s748 = sadd.s32 %s745, %s747
      %p750 = scmp.eq.s32.totalorder %s31, 0
      // Predicated region
      $region81: #{forward.9} parent=79 // pred_check
        %p751 = pneg %p750
      $region82: #{forward.9} parent=79 // pred_check_branch
        %753 = sbr.rel (%p751) target = $region84
      $region83: #{forward.9} parent=79 // pred_region
        %v754 = vld [vmem:[%s679] sm:$0xff]
        %v755 = vld [vmem:[%s679 + $0x8] sm:$0xff]
        %v756 = vld [vmem:[%s679 + $0x10] sm:$0xff]
        %vm757 = vcmask 261120
        %758 = vst.msk [vmem:[#allocation2] sm:$0xff] %vm757, %v754
        %759 = vst.msk [vmem:[#allocation2 + $0x8] sm:$0xff] %vm757, %v755
        %760 = vst.msk [vmem:[#allocation2 + $0x10] sm:$0xff] %vm757, %v756
      $region84: #{forward.9} parent=79 // pred_fallthru
        _
      %v761 = vld [vmem:[#allocation2] sm:$0xff]
      %v762 = vld [vmem:[#allocation2 + $0x8] sm:$0xff]
      %v763 = vld [vmem:[#allocation2 + $0x10] sm:$0xff]
      %v764 = vlaneseq
      %v765 = vand.u32 %v764, 127
      %vm766 = vcmp.lt.s32.totalorder %v765, 17
      %v767 = vsel %vm766, 0.0, -1e+09
      %v768 = vld [vmem:[%s682] sm:$0x1]
      %v769 = vld [vmem:[%s685] sm:$0x1]
      %vm770 = vcmask 261120
      %v771 = vsel %vm770, %v761, 0.0
      %772 = vadd.xlane.f32.xlu0 %v771
      %v773 = vpop.xlane.xlu0 %772
      %v774 = vsel %vm770, %v762, 0.0
      %775 = vadd.xlane.f32.xlu0 %v774
      %v776 = vpop.xlane.xlu0 %775
      %v777 = vsel %vm770, %v763, 0.0
      %778 = vadd.xlane.f32.xlu0 %v777
      %v779 = vpop.xlane.xlu0 %778
      %v780 = vrcp.pop 32.0
      %v781 = vmul.f32 %v773, %v780
      %v782 = vmul.f32 %v776, %v780
      %v783 = vmul.f32 %v779, %v780
      %v784 = vsub.f32 %v761, %v781
      %v785 = vsub.f32 %v762, %v782
      %v786 = vsub.f32 %v763, %v783
      %v787 = vmul.f32 %v784, %v784
      %v788 = vmul.f32 %v785, %v785
      %v789 = vmul.f32 %v786, %v786
      %v790 = vsel %vm770, %v787, 0.0
      %791 = vadd.xlane.f32.xlu0 %v790
      %v792 = vpop.xlane.xlu0 %791
      %v793 = vsel %vm770, %v788, 0.0
      %794 = vadd.xlane.f32.xlu0 %v793
      %v795 = vpop.xlane.xlu0 %794
      %v796 = vsel %vm770, %v789, 0.0
      %797 = vadd.xlane.f32.xlu0 %v796
      %v798 = vpop.xlane.xlu0 %797
      %v799 = vmul.f32 %v792, %v780
      %v800 = vmul.f32 %v795, %v780
      %v801 = vmul.f32 %v798, %v780
      %v802 = vadd.f32 %v799, 1e-06
      %v803 = vadd.f32 %v800, 1e-06
      %v804 = vadd.f32 %v801, 1e-06
      %v805 = vrsqrt.pop %v802
      %v806 = vrsqrt.pop %v803
      %v807 = vrsqrt.pop %v804
      %v808 = vmul.f32 %v784, %v805
      %v809 = vmul.f32 %v785, %v806
      %v810 = vmul.f32 %v786, %v807
      %v812 = vlaneseq
      %v813 = vshrl.u32 %v812, 7
      %v814 = vsub.s32 0, %v813
      %v815 = vrot.slane %v768, %v814
      %v817 = vmul.f32 %v808, %v815
      %v818 = vmul.f32 %v809, %v815
      %v819 = vmul.f32 %v810, %v815
      %v821 = vlaneseq
      %v822 = vshrl.u32 %v821, 7
      %v823 = vsub.s32 0, %v822
      %v824 = vrot.slane %v769, %v823
      %v826 = vadd.f32 %v817, %v824
      %v827 = vadd.f32 %v818, %v824
      %v828 = vadd.f32 %v819, %v824
      %v829 = vpack.c.bf16 %v827, %v826
      %v830 = vpack.c.bf16 %v828, %v828
      %v831 = vld [vmem:[%s690] sm:$0xf]
      %v832 = vld [vmem:[%s690 + $0x4] sm:$0xf]
      %v833 = vld [vmem:[%s690 + $0x8] sm:$0xf]
      %v834 = vld [vmem:[%s690 + $0xc] sm:$0xf]
      %v835 = vld [vmem:[%s693] sm:$0x1]
      %v837 = vlaneseq
      %v838 = vshrl.u32 %v837, 7
      %v839 = vsub.s32 0, %v838
      %v840 = vrot.slane %v835, %v839
      %v846 = vunpack.c.l.b16 %v831
      %v847 = vunpack.c.l.b16 %v832
      %v848 = vunpack.c.l.b16 %v833
      %v849 = vunpack.c.l.b16 %v834
      %v850 = vpack.c.b16 %v847, %v846
      %v851 = vpack.c.b16 %v849, %v848
      %v855 = vsel %vm770, %v829, 0
      %v858 = vsel %vm770, %v830, 0
      %860 = vmatprep.subr.bf16.mxu0 0
      %861 = vmatpush1.bf16.msra.mxu0 %v850
      %862 = vmatprep.subr.bf16.mxu0 0
      %863 = vmatpush1.bf16.msra.mxu0 %v851
      %864 = vmatprep.subr.bf16.mxu0 0
      %865 = vmatpush1.bf16.msra.mxu0 0
      %866 = vmatprep.subr.bf16.mxu0 0
      %867 = vmatpush1.bf16.msra.mxu0 0
      %868 = vmatprep.subr.bf16.mxu0 0
      %869 = vmatpush1.bf16.msra.mxu0 0
      %870 = vmatprep.subr.bf16.mxu0 0
      %871 = vmatpush1.bf16.msra.mxu0 0
      %872 = vmatprep.subr.bf16.mxu0 0
      %873 = vmatpush1.bf16.msra.mxu0 0
      %874 = vmatprep.subr.bf16.mxu0 0
      %875 = vmatpush1.bf16.msra.mxu0 0
      %876 = vmatprep.subr.bf16.mxu0 0
      %877 = vmatpush1.bf16.msra.mxu0 0
      %878 = vmatprep.subr.bf16.mxu0 0
      %879 = vmatpush1.bf16.msra.mxu0 0
      %880 = vmatprep.subr.bf16.mxu0 0
      %881 = vmatpush1.bf16.msra.mxu0 0
      %882 = vmatprep.subr.bf16.mxu0 0
      %883 = vmatpush1.bf16.msra.mxu0 0
      %884 = vmatprep.subr.bf16.mxu0 0
      %885 = vmatpush1.bf16.msra.mxu0 0
      %886 = vmatprep.subr.bf16.mxu0 0
      %887 = vmatpush1.bf16.msra.mxu0 0
      %888 = vmatprep.subr.bf16.mxu0 0
      %889 = vmatpush1.bf16.msra.mxu0 0
      %890 = vmatprep.subr.bf16.mxu0 0
      %891 = vmatpush1.bf16.msra.mxu0 0
      %892 = vmatprep.mubr.bf16.mxu0 0
      %893 = vmatmul.mubr.bf16.gmra.mrb[0].mxu0 %v855
      %v894 = vpop.f32.mrb[0].mxu0
      %v895 = vadd.f32 %v840, %v894
      %v896 = vpop.f32.mrb[0].mxu0
      %v897 = vpop.f32.mrb[0].mxu0
      %v898 = vadd.f32 %v840, %v897
      %v899 = vpop.f32.mrb[0].mxu0
      %900 = vmatprep.mubr.bf16.mxu0 0
      %901 = vmatmul.mubr.bf16.gmra.mrb[0].mxu0 %v858
      %v902 = vpop.f32.mrb[0].mxu0
      %v903 = vadd.f32 %v840, %v902
      %v904 = vpop.f32.mrb[0].mxu0
      %v905 = vpop.f32.mrb[0].mxu0
      %v906 = vpop.f32.mrb[0].mxu0
      %907 = vdwg.mxu0
      %v908 = vpack.c.bf16 %v898, %v895
      %v909 = vpack.c.bf16 %v903, %v903
      %912 = vrot.lane.b32.xlu0 %v908, 96
      %v913 = vpop.permute.xlu0 %912
      %914 = vrot.lane.b32.xlu0 %v909, 96
      %v915 = vpop.permute.xlu0 %914
      %vm916 = vcmask 130048
      %v918 = vsel %vm916, %v908, 0
      %v921 = vsel %vm916, %v909, 0
      %v924 = vsel %vm916, %v913, 0
      %v927 = vsel %vm916, %v915, 0
      %929 = vmatprep.subr.bf16.mxu0 0
      %930 = vmatpush1.bf16.xpose.msra.mxu0 %v924
      %931 = vmatprep.subr.bf16.mxu0 0
      %932 = vmatpush1.bf16.xpose.msra.mxu0 %v927
      %933 = vmatprep.subr.bf16.mxu0 0
      %934 = vmatpush1.bf16.xpose.msra.mxu0 0
      %935 = vmatprep.subr.bf16.mxu0 0
      %936 = vmatpush1.bf16.xpose.msra.mxu0 0
      %937 = vmatprep.subr.bf16.mxu0 0
      %938 = vmatpush1.bf16.xpose.msra.mxu0 0
      %939 = vmatprep.subr.bf16.mxu0 0
      %940 = vmatpush1.bf16.xpose.msra.mxu0 0
      %941 = vmatprep.subr.bf16.mxu0 0
      %942 = vmatpush1.bf16.xpose.msra.mxu0 0
      %943 = vmatprep.subr.bf16.mxu0 0
      %944 = vmatpush1.bf16.xpose.msra.mxu0 0
      %945 = vmatprep.subr.bf16.mxu0 0
      %946 = vmatpush1.bf16.xpose.msra.mxu0 0
      %947 = vmatprep.subr.bf16.mxu0 0
      %948 = vmatpush1.bf16.xpose.msra.mxu0 0
      %949 = vmatprep.subr.bf16.mxu0 0
      %950 = vmatpush1.bf16.xpose.msra.mxu0 0
      %951 = vmatprep.subr.bf16.mxu0 0
      %952 = vmatpush1.bf16.xpose.msra.mxu0 0
      %953 = vmatprep.subr.bf16.mxu0 0
      %954 = vmatpush1.bf16.xpose.msra.mxu0 0
      %955 = vmatprep.subr.bf16.mxu0 0
      %956 = vmatpush1.bf16.xpose.msra.mxu0 0
      %957 = vmatprep.subr.bf16.mxu0 0
      %958 = vmatpush1.bf16.xpose.msra.mxu0 0
      %959 = vmatprep.subr.bf16.mxu0 0
      %960 = vmatpush1.bf16.xpose.msra.mxu0 0
      %961 = vmatprep.mubr.bf16.mxu0 0
      %962 = vmatmul.mubr.bf16.gmra.mrb[0].mxu0 %v918
      %v963 = vpop.f32.mrb[0].mxu0
      %v964 = vadd.f32 %v767, %v963
      %v965 = vpop.f32.mrb[0].mxu0
      %v966 = vpop.f32.mrb[0].mxu0
      %v967 = vadd.f32 %v767, %v966
      %v968 = vpop.f32.mrb[0].mxu0
      %969 = vmatprep.mubr.bf16.mxu0 0
      %970 = vmatmul.mubr.bf16.gmra.mrb[0].mxu0 %v921
      %v971 = vpop.f32.mrb[0].mxu0
      %v972 = vadd.f32 %v767, %v971
      %v973 = vpop.f32.mrb[0].mxu0
      %v974 = vpop.f32.mrb[0].mxu0
      %v975 = vpop.f32.mrb[0].mxu0
      %976 = vdwg.mxu0
      %vm977 = vcmask 195584
      %v978 = vsel %vm977, %v964, -inf
      %979 = vmax.xlane.f32.xlu0 %v978
      %v980 = vpop.xlane.xlu0 %979
      %v981 = vsel %vm977, %v967, -inf
      %982 = vmax.xlane.f32.xlu0 %v981
      %v983 = vpop.xlane.xlu0 %982
      %v984 = vsel %vm977, %v972, -inf
      %985 = vmax.xlane.f32.xlu0 %v984
      %v986 = vpop.xlane.xlu0 %985
      %v987 = vsub.f32 %v964, %v980
      %v988 = vsub.f32 %v967, %v983
      %v989 = vsub.f32 %v972, %v986
      %v990 = vmul.f32 %v987, 1.442695
      %v991 = vpow.pop %v990
      %v992 = vmul.f32 %v988, 1.442695
      %v993 = vpow.pop %v992
      %v994 = vmul.f32 %v989, 1.442695
      %v995 = vpow.pop %v994
      %v996 = vsel %vm977, %v991, 0.0
      %997 = vadd.xlane.f32.xlu0 %v996
      %v998 = vpop.xlane.xlu0 %997
      %v999 = vsel %vm977, %v993, 0.0
      %1000 = vadd.xlane.f32.xlu0 %v999
      %v1001 = vpop.xlane.xlu0 %1000
      %v1002 = vsel %vm977, %v995, 0.0
      %1003 = vadd.xlane.f32.xlu0 %v1002
      %v1004 = vpop.xlane.xlu0 %1003
      %v1005 = vrcp.pop %v998
      %v1006 = vrcp.pop %v1001
      %v1007 = vrcp.pop %v1004
      %v1008 = vmul.f32 %v991, %v1005
      %v1009 = vmul.f32 %v993, %v1006
      %v1010 = vmul.f32 %v995, %v1007
      %v1011 = vpack.c.bf16 %v1009, %v1008
      %v1012 = vpack.c.bf16 %v1010, %v1010
      %1013 = vrot.lane.b32.xlu0 %v908, 64
      %v1014 = vpop.permute.xlu0 %1013
      %1015 = vrot.lane.b32.xlu0 %v909, 64
      %v1016 = vpop.permute.xlu0 %1015
      %v1019 = vsel %vm977, %v1011, 0
      %v1022 = vsel %vm977, %v1012, 0
      %vm1024 = vcmask 1043456
      %v1026 = vsel %vm1024, %v1016, 0
      %1028 = vmatprep.subr.bf16.mxu0 0
      %1029 = vmatpush1.bf16.msra.mxu0 %v1014
      %1030 = vmatprep.subr.bf16.mxu0 0
      %1031 = vmatpush1.bf16.msra.mxu0 %v1026
      %1032 = vmatprep.subr.bf16.mxu0 0
      %1033 = vmatpush1.bf16.msra.mxu0 0
      %1034 = vmatprep.subr.bf16.mxu0 0
      %1035 = vmatpush1.bf16.msra.mxu0 0
      %1036 = vmatprep.subr.bf16.mxu0 0
      %1037 = vmatpush1.bf16.msra.mxu0 0
      %1038 = vmatprep.subr.bf16.mxu0 0
      %1039 = vmatpush1.bf16.msra.mxu0 0
      %1040 = vmatprep.subr.bf16.mxu0 0
      %1041 = vmatpush1.bf16.msra.mxu0 0
      %1042 = vmatprep.subr.bf16.mxu0 0
      %1043 = vmatpush1.bf16.msra.mxu0 0
      %1044 = vmatprep.subr.bf16.mxu0 0
      %1045 = vmatpush1.bf16.msra.mxu0 0
      %1046 = vmatprep.subr.bf16.mxu0 0
      %1047 = vmatpush1.bf16.msra.mxu0 0
      %1048 = vmatprep.subr.bf16.mxu0 0
      %1049 = vmatpush1.bf16.msra.mxu0 0
      %1050 = vmatprep.subr.bf16.mxu0 0
      %1051 = vmatpush1.bf16.msra.mxu0 0
      %1052 = vmatprep.subr.bf16.mxu0 0
      %1053 = vmatpush1.bf16.msra.mxu0 0
      %1054 = vmatprep.subr.bf16.mxu0 0
      %1055 = vmatpush1.bf16.msra.mxu0 0
      %1056 = vmatprep.subr.bf16.mxu0 0
      %1057 = vmatpush1.bf16.msra.mxu0 0
      %1058 = vmatprep.subr.bf16.mxu0 0
      %1059 = vmatpush1.bf16.msra.mxu0 0
      %1060 = vmatprep.mubr.bf16.mxu0 0
      %1061 = vmatmul.mubr.bf16.gmra.mrb[0].mxu0 %v1019
      %v1062 = vpop.f32.mrb[0].mxu0
      %v1063 = vadd.f32 0.0, %v1062
      %v1064 = vpop.f32.mrb[0].mxu0
      %v1065 = vpop.f32.mrb[0].mxu0
      %v1066 = vadd.f32 0.0, %v1065
      %v1067 = vpop.f32.mrb[0].mxu0
      %1068 = vmatprep.mubr.bf16.mxu0 0
      %1069 = vmatmul.mubr.bf16.gmra.mrb[0].mxu0 %v1022
      %v1070 = vpop.f32.mrb[0].mxu0
      %v1071 = vadd.f32 0.0, %v1070
      %v1072 = vpop.f32.mrb[0].mxu0
      %v1073 = vpop.f32.mrb[0].mxu0
      %v1074 = vpop.f32.mrb[0].mxu0
      %1075 = vdwg.mxu0
      %1076 = vrot.lane.b32.xlu0 %v908, 112
      %v1077 = vpop.permute.xlu0 %1076
      %1078 = vrot.lane.b32.xlu0 %v909, 112
      %v1079 = vpop.permute.xlu0 %1078
      %1080 = vrot.lane.b32.xlu0 %v908, 80
      %v1081 = vpop.permute.xlu0 %1080
      %1082 = vrot.lane.b32.xlu0 %v909, 80
      %v1083 = vpop.permute.xlu0 %1082
      %v1085 = vsel %vm916, %v1077, 0
      %v1088 = vsel %vm916, %v1079, 0
      %v1091 = vsel %vm916, %v1081, 0
      %v1094 = vsel %vm916, %v1083, 0
      %1096 = vmatprep.subr.bf16.mxu0 0
      %1097 = vmatpush1.bf16.xpose.msra.mxu0 %v1091
      %1098 = vmatprep.subr.bf16.mxu0 0
      %1099 = vmatpush1.bf16.xpose.msra.mxu0 %v1094
      %1100 = vmatprep.subr.bf16.mxu0 0
      %1101 = vmatpush1.bf16.xpose.msra.mxu0 0
      %1102 = vmatprep.subr.bf16.mxu0 0
      %1103 = vmatpush1.bf16.xpose.msra.mxu0 0
      %1104 = vmatprep.subr.bf16.mxu0 0
      %1105 = vmatpush1.bf16.xpose.msra.mxu0 0
      %1106 = vmatprep.subr.bf16.mxu0 0
      %1107 = vmatpush1.bf16.xpose.msra.mxu0 0
      %1108 = vmatprep.subr.bf16.mxu0 0
      %1109 = vmatpush1.bf16.xpose.msra.mxu0 0
      %1110 = vmatprep.subr.bf16.mxu0 0
      %1111 = vmatpush1.bf16.xpose.msra.mxu0 0
      %1112 = vmatprep.subr.bf16.mxu0 0
      %1113 = vmatpush1.bf16.xpose.msra.mxu0 0
      %1114 = vmatprep.subr.bf16.mxu0 0
      %1115 = vmatpush1.bf16.xpose.msra.mxu0 0
      %1116 = vmatprep.subr.bf16.mxu0 0
      %1117 = vmatpush1.bf16.xpose.msra.mxu0 0
      %1118 = vmatprep.subr.bf16.mxu0 0
      %1119 = vmatpush1.bf16.xpose.msra.mxu0 0
      %1120 = vmatprep.subr.bf16.mxu0 0
      %1121 = vmatpush1.bf16.xpose.msra.mxu0 0
      %1122 = vmatprep.subr.bf16.mxu0 0
      %1123 = vmatpush1.bf16.xpose.msra.mxu0 0
      %1124 = vmatprep.subr.bf16.mxu0 0
      %1125 = vmatpush1.bf16.xpose.msra.mxu0 0
      %1126 = vmatprep.subr.bf16.mxu0 0
      %1127 = vmatpush1.bf16.xpose.msra.mxu0 0
      %1128 = vmatprep.mubr.bf16.mxu0 0
      %1129 = vmatmul.mubr.bf16.gmra.mrb[0].mxu0 %v1085
      %v1130 = vpop.f32.mrb[0].mxu0
      %v1131 = vadd.f32 %v767, %v1130
      %v1132 = vpop.f32.mrb[0].mxu0
      %v1133 = vpop.f32.mrb[0].mxu0
      %v1134 = vadd.f32 %v767, %v1133
      %v1135 = vpop.f32.mrb[0].mxu0
      %1136 = vmatprep.mubr.bf16.mxu0 0
      %1137 = vmatmul.mubr.bf16.gmra.mrb[0].mxu0 %v1088
      %v1138 = vpop.f32.mrb[0].mxu0
      %v1139 = vadd.f32 %v767, %v1138
      %v1140 = vpop.f32.mrb[0].mxu0
      %v1141 = vpop.f32.mrb[0].mxu0
      %v1142 = vpop.f32.mrb[0].mxu0
      %1143 = vdwg.mxu0
      %v1144 = vsel %vm977, %v1131, -inf
      %1145 = vmax.xlane.f32.xlu0 %v1144
      %v1146 = vpop.xlane.xlu0 %1145
      %v1147 = vsel %vm977, %v1134, -inf
      %1148 = vmax.xlane.f32.xlu0 %v1147
      %v1149 = vpop.xlane.xlu0 %1148
      %v1150 = vsel %vm977, %v1139, -inf
      %1151 = vmax.xlane.f32.xlu0 %v1150
      %v1152 = vpop.xlane.xlu0 %1151
      %v1153 = vsub.f32 %v1131, %v1146
      %v1154 = vsub.f32 %v1134, %v1149
      %v1155 = vsub.f32 %v1139, %v1152
      %v1156 = vmul.f32 %v1153, 1.442695
      %v1157 = vpow.pop %v1156
      %v1158 = vmul.f32 %v1154, 1.442695
      %v1159 = vpow.pop %v1158
      %v1160 = vmul.f32 %v1155, 1.442695
      %v1161 = vpow.pop %v1160
      %v1162 = vsel %vm977, %v1157, 0.0
      %1163 = vadd.xlane.f32.xlu0 %v1162
      %v1164 = vpop.xlane.xlu0 %1163
      %v1165 = vsel %vm977, %v1159, 0.0
      %1166 = vadd.xlane.f32.xlu0 %v1165
      %v1167 = vpop.xlane.xlu0 %1166
      %v1168 = vsel %vm977, %v1161, 0.0
      %1169 = vadd.xlane.f32.xlu0 %v1168
      %v1170 = vpop.xlane.xlu0 %1169
      %v1171 = vrcp.pop %v1164
      %v1172 = vrcp.pop %v1167
      %v1173 = vrcp.pop %v1170
      %v1174 = vmul.f32 %v1157, %v1171
      %v1175 = vmul.f32 %v1159, %v1172
      %v1176 = vmul.f32 %v1161, %v1173
      %v1177 = vpack.c.bf16 %v1175, %v1174
      %v1178 = vpack.c.bf16 %v1176, %v1176
      %1179 = vrot.lane.b32.xlu0 %v908, 48
      %v1180 = vpop.permute.xlu0 %1179
      %1181 = vrot.lane.b32.xlu0 %v909, 48
      %v1182 = vpop.permute.xlu0 %1181
      %v1185 = vsel %vm977, %v1177, 0
      %v1188 = vsel %vm977, %v1178, 0
      %v1191 = vsel %vm1024, %v1182, 0
      %1193 = vmatprep.subr.bf16.mxu0 0
      %1194 = vmatpush1.bf16.msra.mxu0 %v1180
      %1195 = vmatprep.subr.bf16.mxu0 0
      %1196 = vmatpush1.bf16.msra.mxu0 %v1191
      %1197 = vmatprep.subr.bf16.mxu0 0
      %1198 = vmatpush1.bf16.msra.mxu0 0
      %1199 = vmatprep.subr.bf16.mxu0 0
      %1200 = vmatpush1.bf16.msra.mxu0 0
      %1201 = vmatprep.subr.bf16.mxu0 0
      %1202 = vmatpush1.bf16.msra.mxu0 0
      %1203 = vmatprep.subr.bf16.mxu0 0
      %1204 = vmatpush1.bf16.msra.mxu0 0
      %1205 = vmatprep.subr.bf16.mxu0 0
      %1206 = vmatpush1.bf16.msra.mxu0 0
      %1207 = vmatprep.subr.bf16.mxu0 0
      %1208 = vmatpush1.bf16.msra.mxu0 0
      %1209 = vmatprep.subr.bf16.mxu0 0
      %1210 = vmatpush1.bf16.msra.mxu0 0
      %1211 = vmatprep.subr.bf16.mxu0 0
      %1212 = vmatpush1.bf16.msra.mxu0 0
      %1213 = vmatprep.subr.bf16.mxu0 0
      %1214 = vmatpush1.bf16.msra.mxu0 0
      %1215 = vmatprep.subr.bf16.mxu0 0
      %1216 = vmatpush1.bf16.msra.mxu0 0
      %1217 = vmatprep.subr.bf16.mxu0 0
      %1218 = vmatpush1.bf16.msra.mxu0 0
      %1219 = vmatprep.subr.bf16.mxu0 0
      %1220 = vmatpush1.bf16.msra.mxu0 0
      %1221 = vmatprep.subr.bf16.mxu0 0
      %1222 = vmatpush1.bf16.msra.mxu0 0
      %1223 = vmatprep.subr.bf16.mxu0 0
      %1224 = vmatpush1.bf16.msra.mxu0 0
      %1225 = vmatprep.mubr.bf16.mxu0 0
      %1226 = vmatmul.mubr.bf16.gmra.mrb[0].mxu0 %v1185
      %v1227 = vpop.f32.mrb[0].mxu0
      %v1228 = vadd.f32 0.0, %v1227
      %v1229 = vpop.f32.mrb[0].mxu0
      %v1230 = vpop.f32.mrb[0].mxu0
      %v1231 = vadd.f32 0.0, %v1230
      %v1232 = vpop.f32.mrb[0].mxu0
      %1233 = vmatprep.mubr.bf16.mxu0 0
      %1234 = vmatmul.mubr.bf16.gmra.mrb[0].mxu0 %v1188
      %v1235 = vpop.f32.mrb[0].mxu0
      %v1236 = vadd.f32 0.0, %v1235
      %v1237 = vpop.f32.mrb[0].mxu0
      %v1238 = vpop.f32.mrb[0].mxu0
      %v1239 = vpop.f32.mrb[0].mxu0
      %1240 = vdwg.mxu0
      %1244 = vrot.lane.b32.xlu0 %v1228, 16
      %v1245 = vpop.permute.xlu0 %1244
      %1246 = vrot.lane.b32.xlu0 %v1231, 16
      %v1247 = vpop.permute.xlu0 %1246
      %1248 = vrot.lane.b32.xlu0 %v1236, 16
      %v1249 = vpop.permute.xlu0 %1248
      %v1253 = vsel %vm916, %v1063, %v1245
      %v1254 = vsel %vm916, %v1066, %v1247
      %v1255 = vsel %vm916, %v1071, %v1249
      %v1256 = vpack.c.bf16 %v1254, %v1253
      %v1257 = vpack.c.bf16 %v1255, %v1255
      %v1258 = vld [vmem:[%s698] sm:$0xf]
      %v1259 = vld [vmem:[%s698 + $0x4] sm:$0xf]
      %v1260 = vld [vmem:[%s698 + $0x8] sm:$0xf]
      %v1261 = vld [vmem:[%s698 + $0xc] sm:$0xf]
      %v1262 = vld [vmem:[%s701] sm:$0x1]
      %v1264 = vlaneseq
      %v1265 = vshrl.u32 %v1264, 7
      %v1266 = vsub.s32 0, %v1265
      %v1267 = vrot.slane %v1262, %v1266
      %v1273 = vunpack.c.l.b16 %v1258
      %v1274 = vunpack.c.l.b16 %v1259
      %v1275 = vunpack.c.l.b16 %v1260
      %v1276 = vunpack.c.l.b16 %v1261
      %v1277 = vpack.c.b16 %v1274, %v1273
      %v1278 = vpack.c.b16 %v1276, %v1275
      %v1282 = vsel %vm770, %v1256, 0
      %v1285 = vsel %vm770, %v1257, 0
      %1287 = vmatprep.subr.bf16.mxu0 0
      %1288 = vmatpush1.bf16.msra.mxu0 %v1277
      %1289 = vmatprep.subr.bf16.mxu0 0
      %1290 = vmatpush1.bf16.msra.mxu0 %v1278
      %1291 = vmatprep.subr.bf16.mxu0 0
      %1292 = vmatpush1.bf16.msra.mxu0 0
      %1293 = vmatprep.subr.bf16.mxu0 0
      %1294 = vmatpush1.bf16.msra.mxu0 0
      %1295 = vmatprep.subr.bf16.mxu0 0
      %1296 = vmatpush1.bf16.msra.mxu0 0
      %1297 = vmatprep.subr.bf16.mxu0 0
      %1298 = vmatpush1.bf16.msra.mxu0 0
      %1299 = vmatprep.subr.bf16.mxu0 0
      %1300 = vmatpush1.bf16.msra.mxu0 0
      %1301 = vmatprep.subr.bf16.mxu0 0
      %1302 = vmatpush1.bf16.msra.mxu0 0
      %1303 = vmatprep.subr.bf16.mxu0 0
      %1304 = vmatpush1.bf16.msra.mxu0 0
      %1305 = vmatprep.subr.bf16.mxu0 0
      %1306 = vmatpush1.bf16.msra.mxu0 0
      %1307 = vmatprep.subr.bf16.mxu0 0
      %1308 = vmatpush1.bf16.msra.mxu0 0
      %1309 = vmatprep.subr.bf16.mxu0 0
      %1310 = vmatpush1.bf16.msra.mxu0 0
      %1311 = vmatprep.subr.bf16.mxu0 0
      %1312 = vmatpush1.bf16.msra.mxu0 0
      %1313 = vmatprep.subr.bf16.mxu0 0
      %1314 = vmatpush1.bf16.msra.mxu0 0
      %1315 = vmatprep.subr.bf16.mxu0 0
      %1316 = vmatpush1.bf16.msra.mxu0 0
      %1317 = vmatprep.subr.bf16.mxu0 0
      %1318 = vmatpush1.bf16.msra.mxu0 0
      %1319 = vmatprep.mubr.bf16.mxu0 0
      %1320 = vmatmul.mubr.bf16.gmra.mrb[0].mxu0 %v1282
      %v1321 = vpop.f32.mrb[0].mxu0
      %v1322 = vadd.f32 %v1267, %v1321
      %v1323 = vpop.f32.mrb[0].mxu0
      %v1324 = vpop.f32.mrb[0].mxu0
      %v1325 = vadd.f32 %v1267, %v1324
      %v1326 = vpop.f32.mrb[0].mxu0
      %1327 = vmatprep.mubr.bf16.mxu0 0
      %1328 = vmatmul.mubr.bf16.gmra.mrb[0].mxu0 %v1285
      %v1329 = vpop.f32.mrb[0].mxu0
      %v1330 = vadd.f32 %v1267, %v1329
      %v1331 = vpop.f32.mrb[0].mxu0
      %v1332 = vpop.f32.mrb[0].mxu0
      %v1333 = vpop.f32.mrb[0].mxu0
      %1334 = vdwg.mxu0
      %v1335 = vadd.f32 %v761, %v1322
      %v1336 = vadd.f32 %v762, %v1325
      %v1337 = vadd.f32 %v763, %v1330
      %v1338 = vld [vmem:[%s704] sm:$0x1]
      %v1339 = vld [vmem:[%s707] sm:$0x1]
      %v1340 = vsel %vm770, %v1335, 0.0
      %1341 = vadd.xlane.f32.xlu0 %v1340
      %v1342 = vpop.xlane.xlu0 %1341
      %v1343 = vsel %vm770, %v1336, 0.0
      %1344 = vadd.xlane.f32.xlu0 %v1343
      %v1345 = vpop.xlane.xlu0 %1344
      %v1346 = vsel %vm770, %v1337, 0.0
      %1347 = vadd.xlane.f32.xlu0 %v1346
      %v1348 = vpop.xlane.xlu0 %1347
      %v1349 = vmul.f32 %v1342, %v780
      %v1350 = vmul.f32 %v1345, %v780
      %v1351 = vmul.f32 %v1348, %v780
      %v1352 = vsub.f32 %v1335, %v1349
      %v1353 = vsub.f32 %v1336, %v1350
      %v1354 = vsub.f32 %v1337, %v1351
      %v1355 = vmul.f32 %v1352, %v1352
      %v1356 = vmul.f32 %v1353, %v1353
      %v1357 = vmul.f32 %v1354, %v1354
      %v1358 = vsel %vm770, %v1355, 0.0
      %1359 = vadd.xlane.f32.xlu0 %v1358
      %v1360 = vpop.xlane.xlu0 %1359
      %v1361 = vsel %vm770, %v1356, 0.0
      %1362 = vadd.xlane.f32.xlu0 %v1361
      %v1363 = vpop.xlane.xlu0 %1362
      %v1364 = vsel %vm770, %v1357, 0.0
      %1365 = vadd.xlane.f32.xlu0 %v1364
      %v1366 = vpop.xlane.xlu0 %1365
      %v1367 = vmul.f32 %v1360, %v780
      %v1368 = vmul.f32 %v1363, %v780
      %v1369 = vmul.f32 %v1366, %v780
      %v1370 = vadd.f32 %v1367, 1e-06
      %v1371 = vadd.f32 %v1368, 1e-06
      %v1372 = vadd.f32 %v1369, 1e-06
      %v1373 = vrsqrt.pop %v1370
      %v1374 = vrsqrt.pop %v1371
      %v1375 = vrsqrt.pop %v1372
      %v1376 = vmul.f32 %v1352, %v1373
      %v1377 = vmul.f32 %v1353, %v1374
      %v1378 = vmul.f32 %v1354, %v1375
      %v1380 = vlaneseq
      %v1381 = vshrl.u32 %v1380, 7
      %v1382 = vsub.s32 0, %v1381
      %v1383 = vrot.slane %v1338, %v1382
      %v1385 = vmul.f32 %v1376, %v1383
      %v1386 = vmul.f32 %v1377, %v1383
      %v1387 = vmul.f32 %v1378, %v1383
      %v1389 = vlaneseq
      %v1390 = vshrl.u32 %v1389, 7
      %v1391 = vsub.s32 0, %v1390
      %v1392 = vrot.slane %v1339, %v1391
      %v1394 = vadd.f32 %v1385, %v1392
      %v1395 = vadd.f32 %v1386, %v1392
      %v1396 = vadd.f32 %v1387, %v1392
      %v1397 = vpack.c.bf16 %v1395, %v1394
      %v1398 = vpack.c.bf16 %v1396, %v1396
      %v1399 = vld [vmem:[%s712] sm:$0xf]
      %v1400 = vld [vmem:[%s712 + $0x4] sm:$0xf]
      %v1401 = vld [vmem:[%s712 + $0x8] sm:$0xf]
      %v1402 = vld [vmem:[%s712 + $0xc] sm:$0xf]
      %v1403 = vld [vmem:[%s715] sm:$0x1]
      %v1405 = vlaneseq
      %v1406 = vshrl.u32 %v1405, 7
      %v1407 = vsub.s32 0, %v1406
      %v1408 = vrot.slane %v1403, %v1407
      %v1414 = vunpack.c.l.b16 %v1399
      %v1415 = vunpack.c.l.b16 %v1400
      %v1416 = vunpack.c.l.b16 %v1401
      %v1417 = vunpack.c.l.b16 %v1402
      %v1418 = vpack.c.b16 %v1415, %v1414
      %v1419 = vpack.c.b16 %v1417, %v1416
      %v1423 = vsel %vm770, %v1397, 0
      %v1426 = vsel %vm770, %v1398, 0
      %1428 = vmatprep.subr.bf16.mxu0 0
      %1429 = vmatpush1.bf16.msra.mxu0 %v1418
      %1430 = vmatprep.subr.bf16.mxu0 0
      %1431 = vmatpush1.bf16.msra.mxu0 %v1419
      %1432 = vmatprep.subr.bf16.mxu0 0
      %1433 = vmatpush1.bf16.msra.mxu0 0
      %1434 = vmatprep.subr.bf16.mxu0 0
      %1435 = vmatpush1.bf16.msra.mxu0 0
      %1436 = vmatprep.subr.bf16.mxu0 0
      %1437 = vmatpush1.bf16.msra.mxu0 0
      %1438 = vmatprep.subr.bf16.mxu0 0
      %1439 = vmatpush1.bf16.msra.mxu0 0
      %1440 = vmatprep.subr.bf16.mxu0 0
      %1441 = vmatpush1.bf16.msra.mxu0 0
      %1442 = vmatprep.subr.bf16.mxu0 0
      %1443 = vmatpush1.bf16.msra.mxu0 0
      %1444 = vmatprep.subr.bf16.mxu0 0
      %1445 = vmatpush1.bf16.msra.mxu0 0
      %1446 = vmatprep.subr.bf16.mxu0 0
      %1447 = vmatpush1.bf16.msra.mxu0 0
      %1448 = vmatprep.subr.bf16.mxu0 0
      %1449 = vmatpush1.bf16.msra.mxu0 0
      %1450 = vmatprep.subr.bf16.mxu0 0
      %1451 = vmatpush1.bf16.msra.mxu0 0
      %1452 = vmatprep.subr.bf16.mxu0 0
      %1453 = vmatpush1.bf16.msra.mxu0 0
      %1454 = vmatprep.subr.bf16.mxu0 0
      %1455 = vmatpush1.bf16.msra.mxu0 0
      %1456 = vmatprep.subr.bf16.mxu0 0
      %1457 = vmatpush1.bf16.msra.mxu0 0
      %1458 = vmatprep.subr.bf16.mxu0 0
      %1459 = vmatpush1.bf16.msra.mxu0 0
      %1460 = vmatprep.mubr.bf16.mxu0 0
      %1461 = vmatmul.mubr.bf16.gmra.mrb[0].mxu0 %v1423
      %v1462 = vpop.f32.mrb[0].mxu0
      %v1463 = vadd.f32 %v1408, %v1462
      %v1464 = vpop.f32.mrb[0].mxu0
      %v1465 = vpop.f32.mrb[0].mxu0
      %v1466 = vadd.f32 %v1408, %v1465
      %v1467 = vpop.f32.mrb[0].mxu0
      %1468 = vmatprep.mubr.bf16.mxu0 0
      %1469 = vmatmul.mubr.bf16.gmra.mrb[0].mxu0 %v1426
      %v1470 = vpop.f32.mrb[0].mxu0
      %v1471 = vadd.f32 %v1408, %v1470
      %v1472 = vpop.f32.mrb[0].mxu0
      %v1473 = vpop.f32.mrb[0].mxu0
      %v1474 = vpop.f32.mrb[0].mxu0
      %1475 = vdwg.mxu0
      %v1476 = vmul.f32 %v1463, %v1463
      %v1477 = vmul.f32 %v1466, %v1466
      %v1478 = vmul.f32 %v1471, %v1471
      %v1479 = vmul.f32 %v1463, %v1476
      %v1480 = vmul.f32 %v1466, %v1477
      %v1481 = vmul.f32 %v1471, %v1478
      %v1482 = vmul.f32 %v1479, 0.044715
      %v1483 = vmul.f32 %v1480, 0.044715
      %v1484 = vmul.f32 %v1481, 0.044715
      %v1485 = vadd.f32 %v1463, %v1482
      %v1486 = vadd.f32 %v1466, %v1483
      %v1487 = vadd.f32 %v1471, %v1484
      %v1488 = vmul.f32 %v1485, 0.7978846
      %v1489 = vmul.f32 %v1486, 0.7978846
      %v1490 = vmul.f32 %v1487, 0.7978846
      %v1491 = vtanh.pop %v1488
      %v1492 = vtanh.pop %v1489
      %v1493 = vtanh.pop %v1490
      %v1494 = vadd.f32 %v1491, 1.0
      %v1495 = vadd.f32 %v1492, 1.0
      %v1496 = vadd.f32 %v1493, 1.0
      %v1497 = vmul.f32 %v1494, 0.5
      %v1498 = vmul.f32 %v1495, 0.5
      %v1499 = vmul.f32 %v1496, 0.5
      %v1500 = vmul.f32 %v1463, %v1497
      %v1501 = vmul.f32 %v1466, %v1498
      %v1502 = vmul.f32 %v1471, %v1499
      %v1503 = vpack.c.bf16 %v1501, %v1500
      %v1504 = vpack.c.bf16 %v1502, %v1502
      %v1505 = vld [vmem:[%s720] sm:$0xf]
      %v1506 = vld [vmem:[%s720 + $0x4] sm:$0xf]
      %v1507 = vld [vmem:[%s720 + $0x8] sm:$0xf]
      %v1508 = vld [vmem:[%s720 + $0xc] sm:$0xf]
      %v1509 = vld [vmem:[%s720 + $0x10] sm:$0xf]
      %v1510 = vld [vmem:[%s720 + $0x14] sm:$0xf]
      %v1511 = vld [vmem:[%s720 + $0x18] sm:$0xf]
      %v1512 = vld [vmem:[%s720 + $0x1c] sm:$0xf]
      %v1513 = vld [vmem:[%s720 + $0x20] sm:$0xf]
      %v1514 = vld [vmem:[%s720 + $0x24] sm:$0xf]
      %v1515 = vld [vmem:[%s720 + $0x28] sm:$0xf]
      %v1516 = vld [vmem:[%s720 + $0x2c] sm:$0xf]
      %v1517 = vld [vmem:[%s720 + $0x30] sm:$0xf]
      %v1518 = vld [vmem:[%s720 + $0x34] sm:$0xf]
      %v1519 = vld [vmem:[%s720 + $0x38] sm:$0xf]
      %v1520 = vld [vmem:[%s720 + $0x3c] sm:$0xf]
      %v1521 = vld [vmem:[%s723] sm:$0x1]
      %v1523 = vlaneseq
      %v1524 = vshrl.u32 %v1523, 7
      %v1525 = vsub.s32 0, %v1524
      %v1526 = vrot.slane %v1521, %v1525
      %v1544 = vunpack.c.l.b16 %v1505
      %v1545 = vunpack.c.l.b16 %v1506
      %v1546 = vunpack.c.l.b16 %v1507
      %v1547 = vunpack.c.l.b16 %v1508
      %v1548 = vunpack.c.l.b16 %v1509
      %v1549 = vunpack.c.l.b16 %v1510
      %v1550 = vunpack.c.l.b16 %v1511
      %v1551 = vunpack.c.l.b16 %v1512
      %v1552 = vunpack.c.l.b16 %v1513
      %v1553 = vunpack.c.l.b16 %v1514
      %v1554 = vunpack.c.l.b16 %v1515
      %v1555 = vunpack.c.l.b16 %v1516
      %v1556 = vunpack.c.l.b16 %v1517
      %v1557 = vunpack.c.l.b16 %v1518
      %v1558 = vunpack.c.l.b16 %v1519
      %v1559 = vunpack.c.l.b16 %v1520
      %v1560 = vpack.c.b16 %v1545, %v1544
      %v1561 = vpack.c.b16 %v1547, %v1546
      %v1562 = vpack.c.b16 %v1549, %v1548
      %v1563 = vpack.c.b16 %v1551, %v1550
      %v1564 = vpack.c.b16 %v1553, %v1552
      %v1565 = vpack.c.b16 %v1555, %v1554
      %v1566 = vpack.c.b16 %v1557, %v1556
      %v1567 = vpack.c.b16 %v1559, %v1558
      %1576 = vmatprep.subr.bf16.mxu0 0
      %1577 = vmatpush1.bf16.msra.mxu0 %v1560
      %1578 = vmatprep.subr.bf16.mxu0 0
      %1579 = vmatpush1.bf16.msra.mxu0 %v1561
      %1580 = vmatprep.subr.bf16.mxu0 0
      %1581 = vmatpush1.bf16.msra.mxu0 %v1562
      %1582 = vmatprep.subr.bf16.mxu0 0
      %1583 = vmatpush1.bf16.msra.mxu0 %v1563
      %1584 = vmatprep.subr.bf16.mxu0 0
      %1585 = vmatpush1.bf16.msra.mxu0 %v1564
      %1586 = vmatprep.subr.bf16.mxu0 0
      %1587 = vmatpush1.bf16.msra.mxu0 %v1565
      %1588 = vmatprep.subr.bf16.mxu0 0
      %1589 = vmatpush1.bf16.msra.mxu0 %v1566
      %1590 = vmatprep.subr.bf16.mxu0 0
      %1591 = vmatpush1.bf16.msra.mxu0 %v1567
      %1592 = vmatprep.subr.bf16.mxu0 0
      %1593 = vmatpush1.bf16.msra.mxu0 0
      %1594 = vmatprep.subr.bf16.mxu0 0
      %1595 = vmatpush1.bf16.msra.mxu0 0
      %1596 = vmatprep.subr.bf16.mxu0 0
      %1597 = vmatpush1.bf16.msra.mxu0 0
      %1598 = vmatprep.subr.bf16.mxu0 0
      %1599 = vmatpush1.bf16.msra.mxu0 0
      %1600 = vmatprep.subr.bf16.mxu0 0
      %1601 = vmatpush1.bf16.msra.mxu0 0
      %1602 = vmatprep.subr.bf16.mxu0 0
      %1603 = vmatpush1.bf16.msra.mxu0 0
      %1604 = vmatprep.subr.bf16.mxu0 0
      %1605 = vmatpush1.bf16.msra.mxu0 0
      %1606 = vmatprep.subr.bf16.mxu0 0
      %1607 = vmatpush1.bf16.msra.mxu0 0
      %1608 = vmatprep.mubr.bf16.mxu0 0
      %1609 = vmatmul.mubr.bf16.gmra.mrb[0].mxu0 %v1503
      %v1610 = vpop.f32.mrb[0].mxu0
      %v1611 = vadd.f32 %v1526, %v1610
      %v1612 = vpop.f32.mrb[0].mxu0
      %v1613 = vpop.f32.mrb[0].mxu0
      %v1614 = vadd.f32 %v1526, %v1613
      %v1615 = vpop.f32.mrb[0].mxu0
      %1616 = vmatprep.mubr.bf16.mxu0 0
      %1617 = vmatmul.mubr.bf16.gmra.mrb[0].mxu0 %v1504
      %v1618 = vpop.f32.mrb[0].mxu0
      %v1619 = vadd.f32 %v1526, %v1618
      %v1620 = vpop.f32.mrb[0].mxu0
      %v1621 = vpop.f32.mrb[0].mxu0
      %v1622 = vpop.f32.mrb[0].mxu0
      %1623 = vdwg.mxu0
      %v1624 = vadd.f32 %v1335, %v1611
      %v1625 = vadd.f32 %v1336, %v1614
      %v1626 = vadd.f32 %v1337, %v1619
      %1627 = vst.msk [vmem:[#allocation2] sm:$0xff] %vm770, %v1624
      %1628 = vst.msk [vmem:[#allocation2 + $0x8] sm:$0xff] %vm770, %v1625
      %1629 = vst.msk [vmem:[#allocation2 + $0x10] sm:$0xff] %vm770, %v1626
      %p1630 = scmp.eq.s32.totalorder %s31, 2
      %p1631 = scmp.eq.s32.totalorder %s31, 5
      %p1632 = por %p1630, %p1631
      %p1633 = scmp.eq.s32.totalorder %s31, 8
      %p1634 = por %p1632, %p1633
      %p1635 = scmp.eq.s32.totalorder %s31, 11
      %p1636 = por %p1634, %p1635
      // Predicated region
      $region85: #{forward.9} parent=79 // pred_check
        %p1637 = pneg %p1636
      $region86: #{forward.9} parent=79 // pred_check_branch
        %1639 = sbr.rel (%p1637) target = $region88
      $region87: #{forward.9} parent=79 // pred_region
        %v1640 = vld [vmem:[%s13] sm:$0x1]
        %v1641 = vld [vmem:[%s14] sm:$0x1]
        %v1642 = vsel %vm770, %v1624, 0.0
        %1643 = vadd.xlane.f32.xlu0 %v1642
        %v1644 = vpop.xlane.xlu0 %1643
        %v1645 = vsel %vm770, %v1625, 0.0
        %1646 = vadd.xlane.f32.xlu0 %v1645
        %v1647 = vpop.xlane.xlu0 %1646
        %v1648 = vsel %vm770, %v1626, 0.0
        %1649 = vadd.xlane.f32.xlu0 %v1648
        %v1650 = vpop.xlane.xlu0 %1649
        %v1651 = vmul.f32 %v1644, %v780
        %v1652 = vmul.f32 %v1647, %v780
        %v1653 = vmul.f32 %v1650, %v780
        %v1654 = vsub.f32 %v1624, %v1651
        %v1655 = vsub.f32 %v1625, %v1652
        %v1656 = vsub.f32 %v1626, %v1653
        %v1657 = vmul.f32 %v1654, %v1654
        %v1658 = vmul.f32 %v1655, %v1655
        %v1659 = vmul.f32 %v1656, %v1656
        %v1660 = vsel %vm770, %v1657, 0.0
        %1661 = vadd.xlane.f32.xlu0 %v1660
        %v1662 = vpop.xlane.xlu0 %1661
        %v1663 = vsel %vm770, %v1658, 0.0
        %1664 = vadd.xlane.f32.xlu0 %v1663
        %v1665 = vpop.xlane.xlu0 %1664
        %v1666 = vsel %vm770, %v1659, 0.0
        %1667 = vadd.xlane.f32.xlu0 %v1666
        %v1668 = vpop.xlane.xlu0 %1667
        %v1669 = vmul.f32 %v1662, %v780
        %v1670 = vmul.f32 %v1665, %v780
        %v1671 = vmul.f32 %v1668, %v780
        %v1672 = vadd.f32 %v1669, 1e-06
        %v1673 = vadd.f32 %v1670, 1e-06
        %v1674 = vadd.f32 %v1671, 1e-06
        %v1675 = vrsqrt.pop %v1672
        %v1676 = vrsqrt.pop %v1673
        %v1677 = vrsqrt.pop %v1674
        %v1678 = vmul.f32 %v1654, %v1675
        %v1679 = vmul.f32 %v1655, %v1676
        %v1680 = vmul.f32 %v1656, %v1677
        %v1682 = vlaneseq
        %v1683 = vshrl.u32 %v1682, 7
        %v1684 = vsub.s32 0, %v1683
        %v1685 = vrot.slane %v1640, %v1684
        %v1687 = vmul.f32 %v1678, %v1685
        %v1688 = vmul.f32 %v1679, %v1685
        %v1689 = vmul.f32 %v1680, %v1685
        %v1691 = vlaneseq
        %v1692 = vshrl.u32 %v1691, 7
        %v1693 = vsub.s32 0, %v1692
        %v1694 = vrot.slane %v1641, %v1693
        %v1696 = vadd.f32 %v1687, %v1694
        %v1697 = vadd.f32 %v1688, %v1694
        %v1698 = vadd.f32 %v1689, %v1694
        %1699 = vst.msk [vmem:[%s740] sm:$0xff] %vm770, %v1696
        %1700 = vst.msk [vmem:[%s740 + $0x8] sm:$0xff] %vm770, %v1697
        %1701 = vst.msk [vmem:[%s740 + $0x10] sm:$0xff] %vm770, %v1698
      $region88: #{forward.9} parent=79 // pred_fallthru
        _
      %p1702 = scmp.ge.s32.totalorder %s31, 5
      %s1703 = scalar_select %p1702, 1, 0
      %p1704 = scmp.ge.s32.totalorder %s31, 8
      %s1705 = scalar_select %p1704, 1, 0
      %s1706 = sadd.s32 %s1703, %s1705
      %p1707 = scmp.ge.s32.totalorder %s31, 11
      %s1708 = scalar_select %p1707, 1, 0
      %s1709 = sadd.s32 %s1706, %s1708
      %p1710 = scmp.lt.s32.totalorder %s1709, 3
      %s1711 = scalar_select %p1710, %s1709, 3
      %p1712 = scmp.lt.s32.totalorder %s30, 1
      %s1713 = scalar_select %p1712, %s30, 1
      %s1714 = smul.addr %s1713, 3
      %s1715 = smul.addr %s1711, 6
      %s1716 = sadd.s32 %s1714, %s1715
      %s1717 = smul.addr %s1716, 8
      %s1718 = scalar_lea.vmem %s15, %s1717
      // Predicated region
      $region89: #{forward.9} parent=79 // pred_check
        %p1719 = pneg %p454
      $region90: #{forward.9} parent=79 // pred_check_branch
        %1721 = sbr.rel (%p1719) target = $region92
      $region91: #{forward.9} parent=79 // pred_region
        %p1722 = scmp.ge.s32.totalorder %s31, 5
        %s1723 = scalar_select %p1722, 1, 0
        %p1724 = scmp.ge.s32.totalorder %s31, 8
        %s1725 = scalar_select %p1724, 1, 0
        %s1726 = sadd.s32 %s1723, %s1725
        %p1727 = scmp.ge.s32.totalorder %s31, 11
        %s1728 = scalar_select %p1727, 1, 0
        %s1729 = sadd.s32 %s1726, %s1728
      $region92: #{forward.9} parent=79 // pred_fallthru
        _
    $region80: #{forward.9} parent=5 // pred_fallthru
      _
    %p1730 = scmp.le.s32.totalorder 2, %s21
    // Predicated region
    $region93: #{forward.9} parent=5 // pred_check
      %p1731 = pneg %p1730
    $region94: #{forward.9} parent=5 // pred_check_branch
      %1733 = sbr.rel (%p1731) target = $region96
    $region95: #{forward.9} parent=5 // pred_region
      %s1734 = ssub.s32 %s21, 2
      // Predicated region
      $region97: #{forward.9} parent=95 // pred_check
        %p1735 = pneg %p460
      $region98: #{forward.9} parent=95 // pred_check_branch
        %1737 = sbr.rel (%p1735) target = $region100
      $region99: #{forward.9} parent=95 // pred_region
        %p1738 = scmp.ge.s32.totalorder %s33, 5
        %s1739 = scalar_select %p1738, 1, 0
        %p1740 = scmp.ge.s32.totalorder %s33, 8
        %s1741 = scalar_select %p1740, 1, 0
        %s1742 = sadd.s32 %s1739, %s1741
        %p1743 = scmp.ge.s32.totalorder %s33, 11
        %s1744 = scalar_select %p1743, 1, 0
        %s1745 = sadd.s32 %s1742, %s1744
        %p1746 = scmp.lt.s32.totalorder %s1745, 3
        %s1747 = scalar_select %p1746, %s1745, 3
        %p1748 = scmp.lt.s32.totalorder %s32, 1
        %s1749 = scalar_select %p1748, %s32, 1
        %s1750 = smul.addr %s1749, 3
        %s1751 = smul.addr %s1747, 6
        %s1752 = sadd.s32 %s1750, %s1751
        %s1753 = smul.addr %s1752, 8
        %s1754 = scalar_lea.vmem %s15, %s1753
      $region100: #{forward.9} parent=95 // pred_fallthru
        _
    $region96: #{forward.9} parent=5 // pred_fallthru
      _
  $region6: #{forward.9} parent=0 // loop_footer
    %s25 = sadd.s32 1, %s21
  $region7: #{forward.9} parent=0 // loop_footer_branch
    %20 = sbr.rel target = $region3
  $region8: #{forward.9} parent=0 // loop_exit
    _

// kernel: forward.12
$region0: #{forward.12}
  #allocation0 [shape = 'u32[]', space=smem, size = 0x4, offset = 0x4, fixed_abs, tag = 'smem constant byte address 0x4 - core index']
  #allocation1 [shape = 'u32[144,128]{1,0:T(1,128)}', space=vmem, size = 0x12000, scoped, tag = 'internal scratch']
  %s0 = inlined_call_operand.vmem [shape: f32[4,2,24,32], index: 0, kind: input, shape index: {}]
  %s1 = inlined_call_operand.vmem [shape: bf16[16,256], index: 1, kind: input, shape index: {}]
  %s2 = inlined_call_operand.vmem [shape: bf16[8,32], index: 2, kind: input, shape index: {}]
  %s3 = inlined_call_operand.vmem [shape: bf16[32,8], index: 3, kind: input, shape index: {}]
  %s4 = inlined_call_operand.vmem [shape: f32[2,32,256], index: 4, kind: output, shape index: {}]
  %s5 = sld [smem:[#allocation0]]
  $region49: #{forward.12} parent=0
    _
  %s7 = ssub.s32 1, %s5
  %s8 = scalar_select 0, %s7, %s5
  loop: start=0, step=1, limit=4
  $region2: #{forward.12} parent=0 // loop_pre_header
    _
  $region3: #{forward.12} parent=0 // loop_header
    %s10 = sphi 0, %s14
    %p11 = scmp.ge.s32.totalorder %s10, 4
    %s20 = sphi 0, %s22
    %s23 = sphi 0, %s20
    %s24 = sphi 0, %s23
    %s40 = sphi 0, %s24
    %s44 = sphi 0, %s44
    %s46 = sphi 0, %s44
    %s47 = sphi 0, %s46
    %s61 = sphi 0, %s47
    %s65 = sphi 0, %s65
    %s67 = sphi 0, %s65
    %s68 = sphi 0, %s67
    %s82 = sphi 0, %s68
    %s86 = sphi 0, %s86
    %s88 = sphi 0, %s86
    %s89 = sphi 0, %s88
    %s103 = sphi 0, %s89
    %s109 = sphi 0, %s111
    %s112 = sphi 0, %s109
    %s113 = sphi 0, %s112
    %s129 = sphi 0, %s113
  $region4: #{forward.12} parent=0 // loop_header_branch
    %13 = sbr.rel (%p11) target = $region8
  $region5: #{forward.12} parent=0 // loop_body
    %s15 = ssub.s32 %s10, 1
    %s16 = ssub.s32 %s10, 2
    %s17 = sadd.s32 %s10, 1
    %s18 = ssub.s32 %s10, %s17
    %p19 = scmp.eq.s32.totalorder %s18, 0
    %s21 = sadd.s32 %s20, 1
    %s22 = scalar_select %p19, %s20, %s21
    %p25 = pneg %p19
    %p26 = scmp.eq.s32.totalorder %s10, 1
    %p27 = por %p25, %p26
    %p28 = scmp.ne.s32.totalorder %s20, %s23
    %p29 = scmp.eq.s32.totalorder %s10, 0
    %p30 = por %p28, %p29
    %p31 = scmp.ne.s32.totalorder %s20, %s23
    %p32 = scmp.eq.s32.totalorder %s15, 1
    %p33 = por %p31, %p32
    %p34 = scmp.ne.s32.totalorder %s23, %s24
    %p35 = scmp.eq.s32.totalorder %s15, 0
    %p36 = por %p34, %p35
    %p37 = scmp.ne.s32.totalorder %s23, %s24
    %p38 = scmp.eq.s32.totalorder %s16, 1
    %p39 = por %p37, %p38
    %p41 = scmp.ne.s32.totalorder %s24, %s40
    %p42 = scmp.eq.s32.totalorder %s16, 0
    %p43 = por %p41, %p42
    %s45 = sadd.s32 %s44, 1
    %p48 = scmp.eq.s32.totalorder %s10, 1
    %p49 = scmp.ne.s32.totalorder %s44, %s46
    %p50 = scmp.eq.s32.totalorder %s10, 0
    %p51 = por %p49, %p50
    %p52 = scmp.ne.s32.totalorder %s44, %s46
    %p53 = scmp.eq.s32.totalorder %s15, 1
    %p54 = por %p52, %p53
    %p55 = scmp.ne.s32.totalorder %s46, %s47
    %p56 = scmp.eq.s32.totalorder %s15, 0
    %p57 = por %p55, %p56
    %p58 = scmp.ne.s32.totalorder %s46, %s47
    %p59 = scmp.eq.s32.totalorder %s16, 1
    %p60 = por %p58, %p59
    %p62 = scmp.ne.s32.totalorder %s47, %s61
    %p63 = scmp.eq.s32.totalorder %s16, 0
    %p64 = por %p62, %p63
    %s66 = sadd.s32 %s65, 1
    %p69 = scmp.eq.s32.totalorder %s10, 1
    %p70 = scmp.ne.s32.totalorder %s65, %s67
    %p71 = scmp.eq.s32.totalorder %s10, 0
    %p72 = por %p70, %p71
    %p73 = scmp.ne.s32.totalorder %s65, %s67
    %p74 = scmp.eq.s32.totalorder %s15, 1
    %p75 = por %p73, %p74
    %p76 = scmp.ne.s32.totalorder %s67, %s68
    %p77 = scmp.eq.s32.totalorder %s15, 0
    %p78 = por %p76, %p77
    %p79 = scmp.ne.s32.totalorder %s67, %s68
    %p80 = scmp.eq.s32.totalorder %s16, 1
    %p81 = por %p79, %p80
    %p83 = scmp.ne.s32.totalorder %s68, %s82
    %p84 = scmp.eq.s32.totalorder %s16, 0
    %p85 = por %p83, %p84
    %s87 = sadd.s32 %s86, 1
    %p90 = scmp.eq.s32.totalorder %s10, 1
    %p91 = scmp.ne.s32.totalorder %s86, %s88
    %p92 = scmp.eq.s32.totalorder %s10, 0
    %p93 = por %p91, %p92
    %p94 = scmp.ne.s32.totalorder %s86, %s88
    %p95 = scmp.eq.s32.totalorder %s15, 1
    %p96 = por %p94, %p95
    %p97 = scmp.ne.s32.totalorder %s88, %s89
    %p98 = scmp.eq.s32.totalorder %s15, 0
    %p99 = por %p97, %p98
    %p100 = scmp.ne.s32.totalorder %s88, %s89
    %p101 = scmp.eq.s32.totalorder %s16, 1
    %p102 = por %p100, %p101
    %p104 = scmp.ne.s32.totalorder %s89, %s103
    %p105 = scmp.eq.s32.totalorder %s16, 0
    %p106 = por %p104, %p105
    %s107 = ssub.s32 %s10, %s17
    %p108 = scmp.eq.s32.totalorder %s107, 0
    %s110 = sadd.s32 %s109, 1
    %s111 = scalar_select %p108, %s109, %s110
    %p114 = pneg %p108
    %p115 = scmp.eq.s32.totalorder %s10, 1
    %p116 = por %p114, %p115
    %p117 = scmp.ne.s32.totalorder %s109, %s112
    %p118 = scmp.eq.s32.totalorder %s10, 0
    %p119 = por %p117, %p118
    %p120 = scmp.ne.s32.totalorder %s109, %s112
    %p121 = scmp.eq.s32.totalorder %s15, 1
    %p122 = por %p120, %p121
    %p123 = scmp.ne.s32.totalorder %s112, %s113
    %p124 = scmp.eq.s32.totalorder %s15, 0
    %p125 = por %p123, %p124
    %p126 = scmp.ne.s32.totalorder %s112, %s113
    %p127 = scmp.eq.s32.totalorder %s16, 1
    %p128 = por %p126, %p127
    %p130 = scmp.ne.s32.totalorder %s113, %s129
    %p131 = scmp.eq.s32.totalorder %s16, 0
    %p132 = por %p130, %p131
    %p133 = scmp.le.s32.totalorder 1, %s10
    %p134 = scmp.lt.s32.totalorder %s10, 3
    %p135 = pnand %p133, %p134
    %p136 = pneg %p135
    // Predicated region
    $region9: #{forward.12} parent=5 // pred_check
      _
    $region10: #{forward.12} parent=5 // pred_check_branch
      %138 = sbr.rel (%p135) target = $region12
    $region11: #{forward.12} parent=5 // pred_region
      %s139 = ssub.s32 %s10, 1
      // Predicated region
      $region13: #{forward.12} parent=11 // pred_check
        %p140 = pneg %p57
      $region14: #{forward.12} parent=11 // pred_check_branch
        %142 = sbr.rel (%p140) target = $region16
      $region15: #{forward.12} parent=11 // pred_region
        _
      $region16: #{forward.12} parent=11 // pred_fallthru
        _
      // Predicated region
      $region17: #{forward.12} parent=11 // pred_check
        %p143 = pneg %p78
      $region18: #{forward.12} parent=11 // pred_check_branch
        %145 = sbr.rel (%p143) target = $region20
      $region19: #{forward.12} parent=11 // pred_region
        _
      $region20: #{forward.12} parent=11 // pred_fallthru
        _
      // Predicated region
      $region21: #{forward.12} parent=11 // pred_check
        %p146 = pneg %p99
      $region22: #{forward.12} parent=11 // pred_check_branch
        %148 = sbr.rel (%p146) target = $region24
      $region23: #{forward.12} parent=11 // pred_region
        _
      $region24: #{forward.12} parent=11 // pred_fallthru
        _
    $region12: #{forward.12} parent=5 // pred_fallthru
      _
    %p149 = scmp.lt.s32.totalorder %s10, 2
    // Predicated region
    $region25: #{forward.12} parent=5 // pred_check
      %p150 = pneg %p149
    $region26: #{forward.12} parent=5 // pred_check_branch
      %152 = sbr.rel (%p150) target = $region28
    $region27: #{forward.12} parent=5 // pred_region
      // Predicated region
      $region29: #{forward.12} parent=27 // pred_check
        %p153 = pneg %p30
      $region30: #{forward.12} parent=27 // pred_check_branch
        %155 = sbr.rel (%p153) target = $region32
      $region31: #{forward.12} parent=27 // pred_region
        %p156 = scmp.lt.s32.totalorder %s10, 1
        %s157 = scalar_select %p156, %s10, 1
        %s158 = smul.addr %s157, 3
        %s159 = sadd.s32 %s158, 6
        %s160 = smul.addr %s159, 8
        %s161 = scalar_lea.vmem %s0, %s160
      $region32: #{forward.12} parent=27 // pred_fallthru
        _
    $region28: #{forward.12} parent=5 // pred_fallthru
      _
    %p162 = scmp.le.s32.totalorder 1, %s10
    %p163 = scmp.lt.s32.totalorder %s10, 3
    %p164 = pnand %p162, %p163
    %p165 = pneg %p164
    // Predicated region
    $region33: #{forward.12} parent=5 // pred_check
      _
    $region34: #{forward.12} parent=5 // pred_check_branch
      %167 = sbr.rel (%p164) target = $region36
    $region35: #{forward.12} parent=5 // pred_region
      %s168 = ssub.s32 %s10, 1
      %p169 = scmp.lt.s32.totalorder %s15, 1
      %s170 = scalar_select %p169, %s15, 1
      %s171 = smul.addr %s170, 3
      %s172 = sadd.s32 %s171, 6
      %s173 = smul.addr %s172, 8
      %s174 = scalar_lea.vmem %s0, %s173
      %p175 = pneg %p36
      %p176 = pneg %p33
      %p177 = pneg %p57
      %p178 = pneg %p54
      %p179 = pneg %p78
      %p180 = pneg %p75
      %p181 = pneg %p99
      %p182 = pneg %p96
      %p183 = pneg %p125
      %p184 = pneg %p122
      %p185 = scmp.lt.s32.totalorder %s15, 1
      %s186 = scalar_select %p185, %s15, 1
      %s187 = smul.addr %s186, 8
      %s188 = smul.addr %s187, 8
      %s189 = scalar_lea.vmem %s4, %s188
      %p190 = scmp.lt.s32.totalorder %s15, 1
      %s191 = scalar_select %p190, %s15, 1
      %s192 = smul.addr %s191, 3
      %s193 = sadd.s32 %s192, 6
      %s194 = smul.addr %s193, 8
      %s195 = scalar_lea.vmem %s0, %s194
      %p196 = scmp.lt.s32.totalorder %s15, 1
      %s197 = scalar_select %p196, %s15, 1
      %s198 = smul.addr %s197, 8
      %s199 = smul.addr %s198, 8
      %s200 = scalar_lea.vmem %s4, %s199
      %v202 = vld [vmem:[%s195] sm:$0xff]
      %v203 = vld [vmem:[%s195 + $0x8] sm:$0xff]
      %v204 = vld [vmem:[%s195 + $0x10] sm:$0xff]
      %v205 = vpack.c.bf16 %v203, %v202
      %v206 = vpack.c.bf16 %v204, %v204
      %v207 = vld [vmem:[%s1] sm:$0xff]
      %v208 = vld [vmem:[%s1 + $0x8] sm:$0xff]
      %vm209 = vsmask.f32 7424
      %v211 = vshrl.u32 %v205, 16
      %v213 = vshll.u32 %v205, 16
      %v215 = vrot.slane %v213, 1
      %v216 = vor.u32 %v211, %v215
      %v218 = vshll.u32 %v206, 16
      %v220 = vrot.slane %v218, 1
      %v221 = vsel %vm209, %v216, %v220
      %223 = vxpose.xlu0.c.b16.start [1/8] %v221, 128
      %224 = vxpose.xlu0.c.b16.cont [2/8] 0, 128
      %225 = vxpose.xlu0.c.b16.cont [3/8] 0, 128
      %226 = vxpose.xlu0.c.b16.cont [4/8] 0, 128
      %227 = vxpose.xlu0.c.b16.cont [5/8] 0, 128
      %228 = vxpose.xlu0.c.b16.cont [6/8] 0, 128
      %229 = vxpose.xlu0.c.b16.cont [7/8] 0, 128
      %230 = vxpose.xlu0.c.b16.end [8/8] 0, 128
      %v231 = vpop.trf.xlu0
      %v232 = vpop.trf.xlu0
      %v233 = vpop.trf.xlu0
      %v234 = vpop.trf.xlu0
      %v235 = vpop.trf.xlu0
      %v236 = vpop.trf.xlu0
      %v237 = vpop.trf.xlu0
      %v238 = vpop.trf.xlu0
      %v241 = vunpack.c.l.b16 %v207
      %v242 = vunpack.c.h.b16 %v207
      %v243 = vunpack.c.l.b16 %v208
      %v244 = vunpack.c.h.b16 %v208
      %v245 = vpack.c.b16 %v243, %v241
      %v246 = vpack.c.b16 %v244, %v242
      %vm249 = vcmask 130048
      %v251 = vsel %vm249, %v231, 0
      %v254 = vsel %vm249, %v232, 0
      %256 = vmatprep.subr.bf16.mxu0 %v246
      %257 = vmatpush1.bf16.msra.mxu0 %v245
      %258 = vmatprep.subr.bf16.mxu0 0
      %259 = vmatpush1.bf16.msra.mxu0 0
      %260 = vmatprep.subr.bf16.mxu0 0
      %261 = vmatpush1.bf16.msra.mxu0 0
      %262 = vmatprep.subr.bf16.mxu0 0
      %263 = vmatpush1.bf16.msra.mxu0 0
      %264 = vmatprep.subr.bf16.mxu0 0
      %265 = vmatpush1.bf16.msra.mxu0 0
      %266 = vmatprep.subr.bf16.mxu0 0
      %267 = vmatpush1.bf16.msra.mxu0 0
      %268 = vmatprep.subr.bf16.mxu0 0
      %269 = vmatpush1.bf16.msra.mxu0 0
      %270 = vmatprep.subr.bf16.mxu0 0
      %271 = vmatpush1.bf16.msra.mxu0 0
      %272 = vmatprep.subr.bf16.mxu0 0
      %273 = vmatpush1.bf16.msra.mxu0 0
      %274 = vmatprep.subr.bf16.mxu0 0
      %275 = vmatpush1.bf16.msra.mxu0 0
      %276 = vmatprep.subr.bf16.mxu0 0
      %277 = vmatpush1.bf16.msra.mxu0 0
      %278 = vmatprep.subr.bf16.mxu0 0
      %279 = vmatpush1.bf16.msra.mxu0 0
      %280 = vmatprep.subr.bf16.mxu0 0
      %281 = vmatpush1.bf16.msra.mxu0 0
      %282 = vmatprep.subr.bf16.mxu0 0
      %283 = vmatpush1.bf16.msra.mxu0 0
      %284 = vmatprep.subr.bf16.mxu0 0
      %285 = vmatpush1.bf16.msra.mxu0 0
      %286 = vmatprep.subr.bf16.mxu0 0
      %287 = vmatpush1.bf16.msra.mxu0 0
      %288 = vmatprep.mubr.bf16.mxu0 0
      %289 = vmatmul.mubr.bf16.gmra.mrb[0].mxu0 %v251
      %v290 = vpop.f32.mrb[0].mxu0
      %v291 = vadd.f32 0.0, %v290
      %v292 = vpop.f32.mrb[0].mxu0
      %v293 = vadd.f32 0.0, %v292
      %v294 = vpop.f32.mrb[0].mxu0
      %v295 = vadd.f32 0.0, %v294
      %v296 = vpop.f32.mrb[0].mxu0
      %v297 = vadd.f32 0.0, %v296
      %298 = vmatprep.mubr.bf16.mxu0 0
      %299 = vmatmul.mubr.bf16.gmra.mrb[0].mxu0 %v254
      %v300 = vpop.f32.mrb[0].mxu0
      %v301 = vadd.f32 0.0, %v300
      %v302 = vpop.f32.mrb[0].mxu0
      %v303 = vadd.f32 0.0, %v302
      %v304 = vpop.f32.mrb[0].mxu0
      %v305 = vadd.f32 0.0, %v304
      %v306 = vpop.f32.mrb[0].mxu0
      %v307 = vadd.f32 0.0, %v306
      %308 = vdwg.mxu0
      %v309 = vld [vmem:[%s2] sm:$0xf]
      %v310 = vpack.c.bf16 %v295, %v291
      %v311 = vpack.c.bf16 %v297, %v293
      %v312 = vpack.c.bf16 %v305, %v301
      %v313 = vpack.c.bf16 %v307, %v303
      %vm314 = vcmask 261120
      %v316 = vsel %vm314, %v309, 0
      %318 = vmatprep.subr.bf16.mxu0 %v311
      %319 = vmatpush1.bf16.msra.mxu0 %v310
      %320 = vmatprep.subr.bf16.mxu0 %v313
      %321 = vmatpush1.bf16.msra.mxu0 %v312
      %322 = vmatprep.subr.bf16.mxu0 0
      %323 = vmatpush1.bf16.msra.mxu0 0
      %324 = vmatprep.subr.bf16.mxu0 0
      %325 = vmatpush1.bf16.msra.mxu0 0
      %326 = vmatprep.subr.bf16.mxu0 0
      %327 = vmatpush1.bf16.msra.mxu0 0
      %328 = vmatprep.subr.bf16.mxu0 0
      %329 = vmatpush1.bf16.msra.mxu0 0
      %330 = vmatprep.subr.bf16.mxu0 0
      %331 = vmatpush1.bf16.msra.mxu0 0
      %332 = vmatprep.subr.bf16.mxu0 0
      %333 = vmatpush1.bf16.msra.mxu0 0
      %334 = vmatprep.subr.bf16.mxu0 0
      %335 = vmatpush1.bf16.msra.mxu0 0
      %336 = vmatprep.subr.bf16.mxu0 0
      %337 = vmatpush1.bf16.msra.mxu0 0
      %338 = vmatprep.subr.bf16.mxu0 0
      %339 = vmatpush1.bf16.msra.mxu0 0
      %340 = vmatprep.subr.bf16.mxu0 0
      %341 = vmatpush1.bf16.msra.mxu0 0
      %342 = vmatprep.subr.bf16.mxu0 0
      %343 = vmatpush1.bf16.msra.mxu0 0
      %344 = vmatprep.subr.bf16.mxu0 0
      %345 = vmatpush1.bf16.msra.mxu0 0
      %346 = vmatprep.subr.bf16.mxu0 0
      %347 = vmatpush1.bf16.msra.mxu0 0
      %348 = vmatprep.subr.bf16.mxu0 0
      %349 = vmatpush1.bf16.msra.mxu0 0
      %350 = vmatprep.mubr.bf16.mxu0 0
      %351 = vmatmul.mubr.bf16.gmra.mrb[0].mxu0 %v316
      %v352 = vpop.f32.mrb[0].mxu0
      %v353 = vadd.f32 0.0, %v352
      %v354 = vpop.f32.mrb[0].mxu0
      %v355 = vadd.f32 0.0, %v354
      %v356 = vpop.f32.mrb[0].mxu0
      %v357 = vpop.f32.mrb[0].mxu0
      %358 = vdwg.mxu0
      %v359 = vmax.f32 %v353, 0.0
      %v360 = vmax.f32 %v355, 0.0
      %v361 = vld [vmem:[%s3] sm:$0xf]
      %v362 = vld [vmem:[%s3 + $0x4] sm:$0xf]
      %v363 = vld [vmem:[%s3 + $0x8] sm:$0xf]
      %v364 = vld [vmem:[%s3 + $0xc] sm:$0xf]
      %v365 = vpack.c.bf16 %v359, %v359
      %v366 = vpack.c.bf16 %v360, %v360
      %v371 = vunpack.c.l.b16 %v361
      %v372 = vunpack.c.l.b16 %v362
      %v373 = vunpack.c.l.b16 %v363
      %v374 = vunpack.c.l.b16 %v364
      %v375 = vpack.c.b16 %v372, %v371
      %v376 = vpack.c.b16 %v374, %v373
      %vm377 = vcmask 64512
      %v379 = vsel %vm377, %v375, 0
      %v382 = vsel %vm377, %v376, 0
      %vm384 = vcmask 1043456
      %v386 = vsel %vm384, %v365, 0
      %v389 = vsel %vm384, %v366, 0
      %391 = vmatprep.subr.bf16.mxu0 %v389
      %392 = vmatpush1.bf16.msra.mxu0 %v386
      %393 = vmatprep.subr.bf16.mxu0 0
      %394 = vmatpush1.bf16.msra.mxu0 0
      %395 = vmatprep.subr.bf16.mxu0 0
      %396 = vmatpush1.bf16.msra.mxu0 0
      %397 = vmatprep.subr.bf16.mxu0 0
      %398 = vmatpush1.bf16.msra.mxu0 0
      %399 = vmatprep.subr.bf16.mxu0 0
      %400 = vmatpush1.bf16.msra.mxu0 0
      %401 = vmatprep.subr.bf16.mxu0 0
      %402 = vmatpush1.bf16.msra.mxu0 0
      %403 = vmatprep.subr.bf16.mxu0 0
      %404 = vmatpush1.bf16.msra.mxu0 0
      %405 = vmatprep.subr.bf16.mxu0 0
      %406 = vmatpush1.bf16.msra.mxu0 0
      %407 = vmatprep.subr.bf16.mxu0 0
      %408 = vmatpush1.bf16.msra.mxu0 0
      %409 = vmatprep.subr.bf16.mxu0 0
      %410 = vmatpush1.bf16.msra.mxu0 0
      %411 = vmatprep.subr.bf16.mxu0 0
      %412 = vmatpush1.bf16.msra.mxu0 0
      %413 = vmatprep.subr.bf16.mxu0 0
      %414 = vmatpush1.bf16.msra.mxu0 0
      %415 = vmatprep.subr.bf16.mxu0 0
      %416 = vmatpush1.bf16.msra.mxu0 0
      %417 = vmatprep.subr.bf16.mxu0 0
      %418 = vmatpush1.bf16.msra.mxu0 0
      %419 = vmatprep.subr.bf16.mxu0 0
      %420 = vmatpush1.bf16.msra.mxu0 0
      %421 = vmatprep.subr.bf16.mxu0 0
      %422 = vmatpush1.bf16.msra.mxu0 0
      %423 = vmatprep.mubr.bf16.mxu0 0
      %424 = vmatmul.mubr.bf16.gmra.mrb[0].mxu0 %v379
      %v425 = vpop.f32.mrb[0].mxu0
      %v426 = vadd.f32 0.0, %v425
      %v427 = vpop.f32.mrb[0].mxu0
      %v428 = vadd.f32 0.0, %v427
      %v429 = vpop.f32.mrb[0].mxu0
      %v430 = vadd.f32 0.0, %v429
      %v431 = vpop.f32.mrb[0].mxu0
      %v432 = vadd.f32 0.0, %v431
      %433 = vmatprep.mubr.bf16.mxu0 0
      %434 = vmatmul.mubr.bf16.gmra.mrb[0].mxu0 %v382
      %v435 = vpop.f32.mrb[0].mxu0
      %v436 = vadd.f32 0.0, %v435
      %v437 = vpop.f32.mrb[0].mxu0
      %v438 = vadd.f32 0.0, %v437
      %v439 = vpop.f32.mrb[0].mxu0
      %v440 = vadd.f32 0.0, %v439
      %v441 = vpop.f32.mrb[0].mxu0
      %v442 = vadd.f32 0.0, %v441
      %443 = vdwg.mxu0
      %444 = vst [vmem:[%s200] sm:$0xff] %v426
      %445 = vst [vmem:[%s200 + $0x8] sm:$0xff] %v428
      %446 = vst [vmem:[%s200 + $0x10] sm:$0xff] %v430
      %447 = vst [vmem:[%s200 + $0x18] sm:$0xff] %v432
      %448 = vst [vmem:[%s200 + $0x20] sm:$0xff] %v436
      %449 = vst [vmem:[%s200 + $0x28] sm:$0xff] %v438
      %450 = vst [vmem:[%s200 + $0x30] sm:$0xff] %v440
      %451 = vst [vmem:[%s200 + $0x38] sm:$0xff] %v442
      %p452 = scmp.lt.s32.totalorder %s15, 1
      %s453 = scalar_select %p452, %s15, 1
      %s454 = smul.addr %s453, 8
      %s455 = smul.addr %s454, 8
      %s456 = scalar_lea.vmem %s4, %s455
      // Predicated region
      $region37: #{forward.12} parent=35 // pred_check
        %p457 = pneg %p122
      $region38: #{forward.12} parent=35 // pred_check_branch
        %459 = sbr.rel (%p457) target = $region40
      $region39: #{forward.12} parent=35 // pred_region
        _
      $region40: #{forward.12} parent=35 // pred_fallthru
        _
    $region36: #{forward.12} parent=5 // pred_fallthru
      _
    %p460 = scmp.le.s32.totalorder 2, %s10
    // Predicated region
    $region41: #{forward.12} parent=5 // pred_check
      %p461 = pneg %p460
    $region42: #{forward.12} parent=5 // pred_check_branch
      %463 = sbr.rel (%p461) target = $region44
    $region43: #{forward.12} parent=5 // pred_region
      %s464 = ssub.s32 %s10, 2
      // Predicated region
      $region45: #{forward.12} parent=43 // pred_check
        %p465 = pneg %p128
      $region46: #{forward.12} parent=43 // pred_check_branch
        %467 = sbr.rel (%p465) target = $region48
      $region47: #{forward.12} parent=43 // pred_region
        %p468 = scmp.lt.s32.totalorder %s16, 1
        %s469 = scalar_select %p468, %s16, 1
        %s470 = smul.addr %s469, 8
        %s471 = smul.addr %s470, 8
        %s472 = scalar_lea.vmem %s4, %s471
      $region48: #{forward.12} parent=43 // pred_fallthru
        _
    $region44: #{forward.12} parent=5 // pred_fallthru
      _
  $region6: #{forward.12} parent=0 // loop_footer
    %s14 = sadd.s32 1, %s10
  $region7: #{forward.12} parent=0 // loop_footer_branch
    %9 = sbr.rel target = $region3
  $region8: #{forward.12} parent=0 // loop_exit
    _

// kernel: forward.13
$region0: #{forward.13}
  #allocation0 [shape = 'u32[]', space=smem, size = 0x4, offset = 0x4, fixed_abs, tag = 'smem constant byte address 0x4 - core index']
  #allocation1 [shape = 'u32[144,128]{1,0:T(1,128)}', space=vmem, size = 0x12000, scoped, tag = 'internal scratch']
  %s0 = inlined_call_operand.vmem [shape: f32[4,2,24,32], index: 0, kind: input, shape index: {}]
  %s1 = inlined_call_operand.vmem [shape: bf16[16,1024], index: 1, kind: input, shape index: {}]
  %s2 = inlined_call_operand.vmem [shape: bf16[8,32], index: 2, kind: input, shape index: {}]
  %s3 = inlined_call_operand.vmem [shape: bf16[32,8], index: 3, kind: input, shape index: {}]
  %s4 = inlined_call_operand.vmem [shape: f32[2,32,1024], index: 4, kind: output, shape index: {}]
  %s5 = sld [smem:[#allocation0]]
  $region49: #{forward.13} parent=0
    _
  %s7 = ssub.s32 1, %s5
  %s8 = scalar_select 0, %s7, %s5
  loop: start=0, step=1, limit=4
  $region2: #{forward.13} parent=0 // loop_pre_header
    _
  $region3: #{forward.13} parent=0 // loop_header
    %s10 = sphi 0, %s14
    %p11 = scmp.ge.s32.totalorder %s10, 4
    %s20 = sphi 0, %s22
    %s23 = sphi 0, %s20
    %s24 = sphi 0, %s23
    %s40 = sphi 0, %s24
    %s44 = sphi 0, %s44
    %s46 = sphi 0, %s44
    %s47 = sphi 0, %s46
    %s61 = sphi 0, %s47
    %s65 = sphi 0, %s65
    %s67 = sphi 0, %s65
    %s68 = sphi 0, %s67
    %s82 = sphi 0, %s68
    %s86 = sphi 0, %s86
    %s88 = sphi 0, %s86
    %s89 = sphi 0, %s88
    %s103 = sphi 0, %s89
    %s109 = sphi 0, %s111
    %s112 = sphi 0, %s109
    %s113 = sphi 0, %s112
    %s129 = sphi 0, %s113
  $region4: #{forward.13} parent=0 // loop_header_branch
    %13 = sbr.rel (%p11) target = $region8
  $region5: #{forward.13} parent=0 // loop_body
    %s15 = ssub.s32 %s10, 1
    %s16 = ssub.s32 %s10, 2
    %s17 = sadd.s32 %s10, 1
    %s18 = ssub.s32 %s10, %s17
    %p19 = scmp.eq.s32.totalorder %s18, 0
    %s21 = sadd.s32 %s20, 1
    %s22 = scalar_select %p19, %s20, %s21
    %p25 = pneg %p19
    %p26 = scmp.eq.s32.totalorder %s10, 1
    %p27 = por %p25, %p26
    %p28 = scmp.ne.s32.totalorder %s20, %s23
    %p29 = scmp.eq.s32.totalorder %s10, 0
    %p30 = por %p28, %p29
    %p31 = scmp.ne.s32.totalorder %s20, %s23
    %p32 = scmp.eq.s32.totalorder %s15, 1
    %p33 = por %p31, %p32
    %p34 = scmp.ne.s32.totalorder %s23, %s24
    %p35 = scmp.eq.s32.totalorder %s15, 0
    %p36 = por %p34, %p35
    %p37 = scmp.ne.s32.totalorder %s23, %s24
    %p38 = scmp.eq.s32.totalorder %s16, 1
    %p39 = por %p37, %p38
    %p41 = scmp.ne.s32.totalorder %s24, %s40
    %p42 = scmp.eq.s32.totalorder %s16, 0
    %p43 = por %p41, %p42
    %s45 = sadd.s32 %s44, 1
    %p48 = scmp.eq.s32.totalorder %s10, 1
    %p49 = scmp.ne.s32.totalorder %s44, %s46
    %p50 = scmp.eq.s32.totalorder %s10, 0
    %p51 = por %p49, %p50
    %p52 = scmp.ne.s32.totalorder %s44, %s46
    %p53 = scmp.eq.s32.totalorder %s15, 1
    %p54 = por %p52, %p53
    %p55 = scmp.ne.s32.totalorder %s46, %s47
    %p56 = scmp.eq.s32.totalorder %s15, 0
    %p57 = por %p55, %p56
    %p58 = scmp.ne.s32.totalorder %s46, %s47
    %p59 = scmp.eq.s32.totalorder %s16, 1
    %p60 = por %p58, %p59
    %p62 = scmp.ne.s32.totalorder %s47, %s61
    %p63 = scmp.eq.s32.totalorder %s16, 0
    %p64 = por %p62, %p63
    %s66 = sadd.s32 %s65, 1
    %p69 = scmp.eq.s32.totalorder %s10, 1
    %p70 = scmp.ne.s32.totalorder %s65, %s67
    %p71 = scmp.eq.s32.totalorder %s10, 0
    %p72 = por %p70, %p71
    %p73 = scmp.ne.s32.totalorder %s65, %s67
    %p74 = scmp.eq.s32.totalorder %s15, 1
    %p75 = por %p73, %p74
    %p76 = scmp.ne.s32.totalorder %s67, %s68
    %p77 = scmp.eq.s32.totalorder %s15, 0
    %p78 = por %p76, %p77
    %p79 = scmp.ne.s32.totalorder %s67, %s68
    %p80 = scmp.eq.s32.totalorder %s16, 1
    %p81 = por %p79, %p80
    %p83 = scmp.ne.s32.totalorder %s68, %s82
    %p84 = scmp.eq.s32.totalorder %s16, 0
    %p85 = por %p83, %p84
    %s87 = sadd.s32 %s86, 1
    %p90 = scmp.eq.s32.totalorder %s10, 1
    %p91 = scmp.ne.s32.totalorder %s86, %s88
    %p92 = scmp.eq.s32.totalorder %s10, 0
    %p93 = por %p91, %p92
    %p94 = scmp.ne.s32.totalorder %s86, %s88
    %p95 = scmp.eq.s32.totalorder %s15, 1
    %p96 = por %p94, %p95
    %p97 = scmp.ne.s32.totalorder %s88, %s89
    %p98 = scmp.eq.s32.totalorder %s15, 0
    %p99 = por %p97, %p98
    %p100 = scmp.ne.s32.totalorder %s88, %s89
    %p101 = scmp.eq.s32.totalorder %s16, 1
    %p102 = por %p100, %p101
    %p104 = scmp.ne.s32.totalorder %s89, %s103
    %p105 = scmp.eq.s32.totalorder %s16, 0
    %p106 = por %p104, %p105
    %s107 = ssub.s32 %s10, %s17
    %p108 = scmp.eq.s32.totalorder %s107, 0
    %s110 = sadd.s32 %s109, 1
    %s111 = scalar_select %p108, %s109, %s110
    %p114 = pneg %p108
    %p115 = scmp.eq.s32.totalorder %s10, 1
    %p116 = por %p114, %p115
    %p117 = scmp.ne.s32.totalorder %s109, %s112
    %p118 = scmp.eq.s32.totalorder %s10, 0
    %p119 = por %p117, %p118
    %p120 = scmp.ne.s32.totalorder %s109, %s112
    %p121 = scmp.eq.s32.totalorder %s15, 1
    %p122 = por %p120, %p121
    %p123 = scmp.ne.s32.totalorder %s112, %s113
    %p124 = scmp.eq.s32.totalorder %s15, 0
    %p125 = por %p123, %p124
    %p126 = scmp.ne.s32.totalorder %s112, %s113
    %p127 = scmp.eq.s32.totalorder %s16, 1
    %p128 = por %p126, %p127
    %p130 = scmp.ne.s32.totalorder %s113, %s129
    %p131 = scmp.eq.s32.totalorder %s16, 0
    %p132 = por %p130, %p131
    %p133 = scmp.le.s32.totalorder 1, %s10
    %p134 = scmp.lt.s32.totalorder %s10, 3
    %p135 = pnand %p133, %p134
    %p136 = pneg %p135
    // Predicated region
    $region9: #{forward.13} parent=5 // pred_check
      _
    $region10: #{forward.13} parent=5 // pred_check_branch
      %138 = sbr.rel (%p135) target = $region12
    $region11: #{forward.13} parent=5 // pred_region
      %s139 = ssub.s32 %s10, 1
      // Predicated region
      $region13: #{forward.13} parent=11 // pred_check
        %p140 = pneg %p57
      $region14: #{forward.13} parent=11 // pred_check_branch
        %142 = sbr.rel (%p140) target = $region16
      $region15: #{forward.13} parent=11 // pred_region
        _
      $region16: #{forward.13} parent=11 // pred_fallthru
        _
      // Predicated region
      $region17: #{forward.13} parent=11 // pred_check
        %p143 = pneg %p78
      $region18: #{forward.13} parent=11 // pred_check_branch
        %145 = sbr.rel (%p143) target = $region20
      $region19: #{forward.13} parent=11 // pred_region
        _
      $region20: #{forward.13} parent=11 // pred_fallthru
        _
      // Predicated region
      $region21: #{forward.13} parent=11 // pred_check
        %p146 = pneg %p99
      $region22: #{forward.13} parent=11 // pred_check_branch
        %148 = sbr.rel (%p146) target = $region24
      $region23: #{forward.13} parent=11 // pred_region
        _
      $region24: #{forward.13} parent=11 // pred_fallthru
        _
    $region12: #{forward.13} parent=5 // pred_fallthru
      _
    %p149 = scmp.lt.s32.totalorder %s10, 2
    // Predicated region
    $region25: #{forward.13} parent=5 // pred_check
      %p150 = pneg %p149
    $region26: #{forward.13} parent=5 // pred_check_branch
      %152 = sbr.rel (%p150) target = $region28
    $region27: #{forward.13} parent=5 // pred_region
      // Predicated region
      $region29: #{forward.13} parent=27 // pred_check
        %p153 = pneg %p30
      $region30: #{forward.13} parent=27 // pred_check_branch
        %155 = sbr.rel (%p153) target = $region32
      $region31: #{forward.13} parent=27 // pred_region
        %p156 = scmp.lt.s32.totalorder %s10, 1
        %s157 = scalar_select %p156, %s10, 1
        %s158 = smul.addr %s157, 3
        %s159 = smul.addr %s158, 8
        %s160 = scalar_lea.vmem %s0, %s159
      $region32: #{forward.13} parent=27 // pred_fallthru
        _
    $region28: #{forward.13} parent=5 // pred_fallthru
      _
    %p161 = scmp.le.s32.totalorder 1, %s10
    %p162 = scmp.lt.s32.totalorder %s10, 3
    %p163 = pnand %p161, %p162
    %p164 = pneg %p163
    // Predicated region
    $region33: #{forward.13} parent=5 // pred_check
      _
    $region34: #{forward.13} parent=5 // pred_check_branch
      %166 = sbr.rel (%p163) target = $region36
    $region35: #{forward.13} parent=5 // pred_region
      %s167 = ssub.s32 %s10, 1
      %p168 = scmp.lt.s32.totalorder %s15, 1
      %s169 = scalar_select %p168, %s15, 1
      %s170 = smul.addr %s169, 3
      %s171 = smul.addr %s170, 8
      %s172 = scalar_lea.vmem %s0, %s171
      %p173 = pneg %p36
      %p174 = pneg %p33
      %p175 = pneg %p57
      %p176 = pneg %p54
      %p177 = pneg %p78
      %p178 = pneg %p75
      %p179 = pneg %p99
      %p180 = pneg %p96
      %p181 = pneg %p125
      %p182 = pneg %p122
      %p183 = scmp.lt.s32.totalorder %s15, 1
      %s184 = scalar_select %p183, %s15, 1
      %s185 = smul.addr %s184, 32
      %s186 = smul.addr %s185, 8
      %s187 = scalar_lea.vmem %s4, %s186
      %p188 = scmp.lt.s32.totalorder %s15, 1
      %s189 = scalar_select %p188, %s15, 1
      %s190 = smul.addr %s189, 3
      %s191 = smul.addr %s190, 8
      %s192 = scalar_lea.vmem %s0, %s191
      %p193 = scmp.lt.s32.totalorder %s15, 1
      %s194 = scalar_select %p193, %s15, 1
      %s195 = smul.addr %s194, 32
      %s196 = smul.addr %s195, 8
      %s197 = scalar_lea.vmem %s4, %s196
      %v199 = vld [vmem:[%s192] sm:$0xff]
      %v200 = vld [vmem:[%s192 + $0x8] sm:$0xff]
      %v201 = vld [vmem:[%s192 + $0x10] sm:$0xff]
      %v202 = vpack.c.bf16 %v200, %v199
      %v203 = vpack.c.bf16 %v201, %v201
      %v204 = vld [vmem:[%s1] sm:$0xff]
      %v205 = vld [vmem:[%s1 + $0x8] sm:$0xff]
      %v206 = vld [vmem:[%s1 + $0x10] sm:$0xff]
      %v207 = vld [vmem:[%s1 + $0x18] sm:$0xff]
      %v208 = vld [vmem:[%s1 + $0x20] sm:$0xff]
      %v209 = vld [vmem:[%s1 + $0x28] sm:$0xff]
      %v210 = vld [vmem:[%s1 + $0x30] sm:$0xff]
      %v211 = vld [vmem:[%s1 + $0x38] sm:$0xff]
      %vm212 = vsmask.f32 7424
      %v214 = vshrl.u32 %v202, 16
      %v216 = vshll.u32 %v202, 16
      %v218 = vrot.slane %v216, 1
      %v219 = vor.u32 %v214, %v218
      %v221 = vshll.u32 %v203, 16
      %v223 = vrot.slane %v221, 1
      %v224 = vsel %vm212, %v219, %v223
      %226 = vxpose.xlu0.c.b16.start [1/8] %v224, 128
      %227 = vxpose.xlu0.c.b16.cont [2/8] 0, 128
      %228 = vxpose.xlu0.c.b16.cont [3/8] 0, 128
      %229 = vxpose.xlu0.c.b16.cont [4/8] 0, 128
      %230 = vxpose.xlu0.c.b16.cont [5/8] 0, 128
      %231 = vxpose.xlu0.c.b16.cont [6/8] 0, 128
      %232 = vxpose.xlu0.c.b16.cont [7/8] 0, 128
      %233 = vxpose.xlu0.c.b16.end [8/8] 0, 128
      %v234 = vpop.trf.xlu0
      %v235 = vpop.trf.xlu0
      %v236 = vpop.trf.xlu0
      %v237 = vpop.trf.xlu0
      %v238 = vpop.trf.xlu0
      %v239 = vpop.trf.xlu0
      %v240 = vpop.trf.xlu0
      %v241 = vpop.trf.xlu0
      %v250 = vunpack.c.l.b16 %v204
      %v251 = vunpack.c.h.b16 %v204
      %v252 = vunpack.c.l.b16 %v205
      %v253 = vunpack.c.h.b16 %v205
      %v254 = vunpack.c.l.b16 %v206
      %v255 = vunpack.c.h.b16 %v206
      %v256 = vunpack.c.l.b16 %v207
      %v257 = vunpack.c.h.b16 %v207
      %v258 = vunpack.c.l.b16 %v208
      %v259 = vunpack.c.h.b16 %v208
      %v260 = vunpack.c.l.b16 %v209
      %v261 = vunpack.c.h.b16 %v209
      %v262 = vunpack.c.l.b16 %v210
      %v263 = vunpack.c.h.b16 %v210
      %v264 = vunpack.c.l.b16 %v211
      %v265 = vunpack.c.h.b16 %v211
      %v266 = vpack.c.b16 %v258, %v250
      %v267 = vpack.c.b16 %v259, %v251
      %v268 = vpack.c.b16 %v260, %v252
      %v269 = vpack.c.b16 %v261, %v253
      %v270 = vpack.c.b16 %v262, %v254
      %v271 = vpack.c.b16 %v263, %v255
      %v272 = vpack.c.b16 %v264, %v256
      %v273 = vpack.c.b16 %v265, %v257
      %vm282 = vcmask 130048
      %v284 = vsel %vm282, %v234, 0
      %v287 = vsel %vm282, %v235, 0
      %289 = vmatprep.subr.bf16.mxu0 %v267
      %290 = vmatpush1.bf16.msra.mxu0 %v266
      %291 = vmatprep.subr.bf16.mxu0 0
      %292 = vmatpush1.bf16.msra.mxu0 0
      %293 = vmatprep.subr.bf16.mxu0 0
      %294 = vmatpush1.bf16.msra.mxu0 0
      %295 = vmatprep.subr.bf16.mxu0 0
      %296 = vmatpush1.bf16.msra.mxu0 0
      %297 = vmatprep.subr.bf16.mxu0 0
      %298 = vmatpush1.bf16.msra.mxu0 0
      %299 = vmatprep.subr.bf16.mxu0 0
      %300 = vmatpush1.bf16.msra.mxu0 0
      %301 = vmatprep.subr.bf16.mxu0 0
      %302 = vmatpush1.bf16.msra.mxu0 0
      %303 = vmatprep.subr.bf16.mxu0 0
      %304 = vmatpush1.bf16.msra.mxu0 0
      %305 = vmatprep.subr.bf16.mxu0 0
      %306 = vmatpush1.bf16.msra.mxu0 0
      %307 = vmatprep.subr.bf16.mxu0 0
      %308 = vmatpush1.bf16.msra.mxu0 0
      %309 = vmatprep.subr.bf16.mxu0 0
      %310 = vmatpush1.bf16.msra.mxu0 0
      %311 = vmatprep.subr.bf16.mxu0 0
      %312 = vmatpush1.bf16.msra.mxu0 0
      %313 = vmatprep.subr.bf16.mxu0 0
      %314 = vmatpush1.bf16.msra.mxu0 0
      %315 = vmatprep.subr.bf16.mxu0 0
      %316 = vmatpush1.bf16.msra.mxu0 0
      %317 = vmatprep.subr.bf16.mxu0 0
      %318 = vmatpush1.bf16.msra.mxu0 0
      %319 = vmatprep.subr.bf16.mxu0 0
      %320 = vmatpush1.bf16.msra.mxu0 0
      %321 = vmatprep.mubr.bf16.mxu0 0
      %322 = vmatmul.mubr.bf16.gmra.mrb[0].mxu0 %v284
      %v323 = vpop.f32.mrb[0].mxu0
      %v324 = vadd.f32 0.0, %v323
      %v325 = vpop.f32.mrb[0].mxu0
      %v326 = vadd.f32 0.0, %v325
      %v327 = vpop.f32.mrb[0].mxu0
      %v328 = vadd.f32 0.0, %v327
      %v329 = vpop.f32.mrb[0].mxu0
      %v330 = vadd.f32 0.0, %v329
      %331 = vmatprep.mubr.bf16.mxu0 0
      %332 = vmatmul.mubr.bf16.gmra.mrb[0].mxu0 %v287
      %v333 = vpop.f32.mrb[0].mxu0
      %v334 = vadd.f32 0.0, %v333
      %v335 = vpop.f32.mrb[0].mxu0
      %v336 = vadd.f32 0.0, %v335
      %v337 = vpop.f32.mrb[0].mxu0
      %v338 = vadd.f32 0.0, %v337
      %v339 = vpop.f32.mrb[0].mxu0
      %v340 = vadd.f32 0.0, %v339
      %341 = vdwg.mxu0
      %342 = vmatprep.subr.bf16.mxu0 %v269
      %343 = vmatpush1.bf16.msra.mxu0 %v268
      %344 = vmatprep.subr.bf16.mxu0 0
      %345 = vmatpush1.bf16.msra.mxu0 0
      %346 = vmatprep.subr.bf16.mxu0 0
      %347 = vmatpush1.bf16.msra.mxu0 0
      %348 = vmatprep.subr.bf16.mxu0 0
      %349 = vmatpush1.bf16.msra.mxu0 0
      %350 = vmatprep.subr.bf16.mxu0 0
      %351 = vmatpush1.bf16.msra.mxu0 0
      %352 = vmatprep.subr.bf16.mxu0 0
      %353 = vmatpush1.bf16.msra.mxu0 0
      %354 = vmatprep.subr.bf16.mxu0 0
      %355 = vmatpush1.bf16.msra.mxu0 0
      %356 = vmatprep.subr.bf16.mxu0 0
      %357 = vmatpush1.bf16.msra.mxu0 0
      %358 = vmatprep.subr.bf16.mxu0 0
      %359 = vmatpush1.bf16.msra.mxu0 0
      %360 = vmatprep.subr.bf16.mxu0 0
      %361 = vmatpush1.bf16.msra.mxu0 0
      %362 = vmatprep.subr.bf16.mxu0 0
      %363 = vmatpush1.bf16.msra.mxu0 0
      %364 = vmatprep.subr.bf16.mxu0 0
      %365 = vmatpush1.bf16.msra.mxu0 0
      %366 = vmatprep.subr.bf16.mxu0 0
      %367 = vmatpush1.bf16.msra.mxu0 0
      %368 = vmatprep.subr.bf16.mxu0 0
      %369 = vmatpush1.bf16.msra.mxu0 0
      %370 = vmatprep.subr.bf16.mxu0 0
      %371 = vmatpush1.bf16.msra.mxu0 0
      %372 = vmatprep.subr.bf16.mxu0 0
      %373 = vmatpush1.bf16.msra.mxu0 0
      %374 = vmatprep.mubr.bf16.mxu0 0
      %375 = vmatmul.mubr.bf16.gmra.mrb[0].mxu0 %v284
      %v376 = vpop.f32.mrb[0].mxu0
      %v377 = vadd.f32 0.0, %v376
      %v378 = vpop.f32.mrb[0].mxu0
      %v379 = vadd.f32 0.0, %v378
      %v380 = vpop.f32.mrb[0].mxu0
      %v381 = vadd.f32 0.0, %v380
      %v382 = vpop.f32.mrb[0].mxu0
      %v383 = vadd.f32 0.0, %v382
      %384 = vmatprep.mubr.bf16.mxu0 0
      %385 = vmatmul.mubr.bf16.gmra.mrb[0].mxu0 %v287
      %v386 = vpop.f32.mrb[0].mxu0
      %v387 = vadd.f32 0.0, %v386
      %v388 = vpop.f32.mrb[0].mxu0
      %v389 = vadd.f32 0.0, %v388
      %v390 = vpop.f32.mrb[0].mxu0
      %v391 = vadd.f32 0.0, %v390
      %v392 = vpop.f32.mrb[0].mxu0
      %v393 = vadd.f32 0.0, %v392
      %394 = vdwg.mxu0
      %395 = vmatprep.subr.bf16.mxu0 %v271
      %396 = vmatpush1.bf16.msra.mxu0 %v270
      %397 = vmatprep.subr.bf16.mxu0 0
      %398 = vmatpush1.bf16.msra.mxu0 0
      %399 = vmatprep.subr.bf16.mxu0 0
      %400 = vmatpush1.bf16.msra.mxu0 0
      %401 = vmatprep.subr.bf16.mxu0 0
      %402 = vmatpush1.bf16.msra.mxu0 0
      %403 = vmatprep.subr.bf16.mxu0 0
      %404 = vmatpush1.bf16.msra.mxu0 0
      %405 = vmatprep.subr.bf16.mxu0 0
      %406 = vmatpush1.bf16.msra.mxu0 0
      %407 = vmatprep.subr.bf16.mxu0 0
      %408 = vmatpush1.bf16.msra.mxu0 0
      %409 = vmatprep.subr.bf16.mxu0 0
      %410 = vmatpush1.bf16.msra.mxu0 0
      %411 = vmatprep.subr.bf16.mxu0 0
      %412 = vmatpush1.bf16.msra.mxu0 0
      %413 = vmatprep.subr.bf16.mxu0 0
      %414 = vmatpush1.bf16.msra.mxu0 0
      %415 = vmatprep.subr.bf16.mxu0 0
      %416 = vmatpush1.bf16.msra.mxu0 0
      %417 = vmatprep.subr.bf16.mxu0 0
      %418 = vmatpush1.bf16.msra.mxu0 0
      %419 = vmatprep.subr.bf16.mxu0 0
      %420 = vmatpush1.bf16.msra.mxu0 0
      %421 = vmatprep.subr.bf16.mxu0 0
      %422 = vmatpush1.bf16.msra.mxu0 0
      %423 = vmatprep.subr.bf16.mxu0 0
      %424 = vmatpush1.bf16.msra.mxu0 0
      %425 = vmatprep.subr.bf16.mxu0 0
      %426 = vmatpush1.bf16.msra.mxu0 0
      %427 = vmatprep.mubr.bf16.mxu0 0
      %428 = vmatmul.mubr.bf16.gmra.mrb[0].mxu0 %v284
      %v429 = vpop.f32.mrb[0].mxu0
      %v430 = vadd.f32 0.0, %v429
      %v431 = vpop.f32.mrb[0].mxu0
      %v432 = vadd.f32 0.0, %v431
      %v433 = vpop.f32.mrb[0].mxu0
      %v434 = vadd.f32 0.0, %v433
      %v435 = vpop.f32.mrb[0].mxu0
      %v436 = vadd.f32 0.0, %v435
      %437 = vmatprep.mubr.bf16.mxu0 0
      %438 = vmatmul.mubr.bf16.gmra.mrb[0].mxu0 %v287
      %v439 = vpop.f32.mrb[0].mxu0
      %v440 = vadd.f32 0.0, %v439
      %v441 = vpop.f32.mrb[0].mxu0
      %v442 = vadd.f32 0.0, %v441
      %v443 = vpop.f32.mrb[0].mxu0
      %v444 = vadd.f32 0.0, %v443
      %v445 = vpop.f32.mrb[0].mxu0
      %v446 = vadd.f32 0.0, %v445
      %447 = vdwg.mxu0
      %448 = vmatprep.subr.bf16.mxu0 %v273
      %449 = vmatpush1.bf16.msra.mxu0 %v272
      %450 = vmatprep.subr.bf16.mxu0 0
      %451 = vmatpush1.bf16.msra.mxu0 0
      %452 = vmatprep.subr.bf16.mxu0 0
      %453 = vmatpush1.bf16.msra.mxu0 0
      %454 = vmatprep.subr.bf16.mxu0 0
      %455 = vmatpush1.bf16.msra.mxu0 0
      %456 = vmatprep.subr.bf16.mxu0 0
      %457 = vmatpush1.bf16.msra.mxu0 0
      %458 = vmatprep.subr.bf16.mxu0 0
      %459 = vmatpush1.bf16.msra.mxu0 0
      %460 = vmatprep.subr.bf16.mxu0 0
      %461 = vmatpush1.bf16.msra.mxu0 0
      %462 = vmatprep.subr.bf16.mxu0 0
      %463 = vmatpush1.bf16.msra.mxu0 0
      %464 = vmatprep.subr.bf16.mxu0 0
      %465 = vmatpush1.bf16.msra.mxu0 0
      %466 = vmatprep.subr.bf16.mxu0 0
      %467 = vmatpush1.bf16.msra.mxu0 0
      %468 = vmatprep.subr.bf16.mxu0 0
      %469 = vmatpush1.bf16.msra.mxu0 0
      %470 = vmatprep.subr.bf16.mxu0 0
      %471 = vmatpush1.bf16.msra.mxu0 0
      %472 = vmatprep.subr.bf16.mxu0 0
      %473 = vmatpush1.bf16.msra.mxu0 0
      %474 = vmatprep.subr.bf16.mxu0 0
      %475 = vmatpush1.bf16.msra.mxu0 0
      %476 = vmatprep.subr.bf16.mxu0 0
      %477 = vmatpush1.bf16.msra.mxu0 0
      %478 = vmatprep.subr.bf16.mxu0 0
      %479 = vmatpush1.bf16.msra.mxu0 0
      %480 = vmatprep.mubr.bf16.mxu0 0
      %481 = vmatmul.mubr.bf16.gmra.mrb[0].mxu0 %v284
      %v482 = vpop.f32.mrb[0].mxu0
      %v483 = vadd.f32 0.0, %v482
      %v484 = vpop.f32.mrb[0].mxu0
      %v485 = vadd.f32 0.0, %v484
      %v486 = vpop.f32.mrb[0].mxu0
      %v487 = vadd.f32 0.0, %v486
      %v488 = vpop.f32.mrb[0].mxu0
      %v489 = vadd.f32 0.0, %v488
      %490 = vmatprep.mubr.bf16.mxu0 0
      %491 = vmatmul.mubr.bf16.gmra.mrb[0].mxu0 %v287
      %v492 = vpop.f32.mrb[0].mxu0
      %v493 = vadd.f32 0.0, %v492
      %v494 = vpop.f32.mrb[0].mxu0
      %v495 = vadd.f32 0.0, %v494
      %v496 = vpop.f32.mrb[0].mxu0
      %v497 = vadd.f32 0.0, %v496
      %v498 = vpop.f32.mrb[0].mxu0
      %v499 = vadd.f32 0.0, %v498
      %500 = vdwg.mxu0
      %v501 = vld [vmem:[%s2] sm:$0xf]
      %v502 = vpack.c.bf16 %v328, %v324
      %v503 = vpack.c.bf16 %v330, %v326
      %v504 = vpack.c.bf16 %v381, %v377
      %v505 = vpack.c.bf16 %v383, %v379
      %v506 = vpack.c.bf16 %v434, %v430
      %v507 = vpack.c.bf16 %v436, %v432
      %v508 = vpack.c.bf16 %v487, %v483
      %v509 = vpack.c.bf16 %v489, %v485
      %v510 = vpack.c.bf16 %v338, %v334
      %v511 = vpack.c.bf16 %v340, %v336
      %v512 = vpack.c.bf16 %v391, %v387
      %v513 = vpack.c.bf16 %v393, %v389
      %v514 = vpack.c.bf16 %v444, %v440
      %v515 = vpack.c.bf16 %v446, %v442
      %v516 = vpack.c.bf16 %v497, %v493
      %v517 = vpack.c.bf16 %v499, %v495
      %vm518 = vcmask 261120
      %v520 = vsel %vm518, %v501, 0
      %522 = vmatprep.subr.bf16.mxu0 %v503
      %523 = vmatpush1.bf16.msra.mxu0 %v502
      %524 = vmatprep.subr.bf16.mxu0 %v511
      %525 = vmatpush1.bf16.msra.mxu0 %v510
      %526 = vmatprep.subr.bf16.mxu0 0
      %527 = vmatpush1.bf16.msra.mxu0 0
      %528 = vmatprep.subr.bf16.mxu0 0
      %529 = vmatpush1.bf16.msra.mxu0 0
      %530 = vmatprep.subr.bf16.mxu0 0
      %531 = vmatpush1.bf16.msra.mxu0 0
      %532 = vmatprep.subr.bf16.mxu0 0
      %533 = vmatpush1.bf16.msra.mxu0 0
      %534 = vmatprep.subr.bf16.mxu0 0
      %535 = vmatpush1.bf16.msra.mxu0 0
      %536 = vmatprep.subr.bf16.mxu0 0
      %537 = vmatpush1.bf16.msra.mxu0 0
      %538 = vmatprep.subr.bf16.mxu0 0
      %539 = vmatpush1.bf16.msra.mxu0 0
      %540 = vmatprep.subr.bf16.mxu0 0
      %541 = vmatpush1.bf16.msra.mxu0 0
      %542 = vmatprep.subr.bf16.mxu0 0
      %543 = vmatpush1.bf16.msra.mxu0 0
      %544 = vmatprep.subr.bf16.mxu0 0
      %545 = vmatpush1.bf16.msra.mxu0 0
      %546 = vmatprep.subr.bf16.mxu0 0
      %547 = vmatpush1.bf16.msra.mxu0 0
      %548 = vmatprep.subr.bf16.mxu0 0
      %549 = vmatpush1.bf16.msra.mxu0 0
      %550 = vmatprep.subr.bf16.mxu0 0
      %551 = vmatpush1.bf16.msra.mxu0 0
      %552 = vmatprep.subr.bf16.mxu0 0
      %553 = vmatpush1.bf16.msra.mxu0 0
      %554 = vmatprep.mubr.bf16.mxu0 0
      %555 = vmatmul.mubr.bf16.gmra.mrb[0].mxu0 %v520
      %v556 = vpop.f32.mrb[0].mxu0
      %v557 = vadd.f32 0.0, %v556
      %v558 = vpop.f32.mrb[0].mxu0
      %v559 = vadd.f32 0.0, %v558
      %v560 = vpop.f32.mrb[0].mxu0
      %v561 = vpop.f32.mrb[0].mxu0
      %562 = vdwg.mxu0
      %563 = vmatprep.subr.bf16.mxu0 %v505
      %564 = vmatpush1.bf16.msra.mxu0 %v504
      %565 = vmatprep.subr.bf16.mxu0 %v513
      %566 = vmatpush1.bf16.msra.mxu0 %v512
      %567 = vmatprep.subr.bf16.mxu0 0
      %568 = vmatpush1.bf16.msra.mxu0 0
      %569 = vmatprep.subr.bf16.mxu0 0
      %570 = vmatpush1.bf16.msra.mxu0 0
      %571 = vmatprep.subr.bf16.mxu0 0
      %572 = vmatpush1.bf16.msra.mxu0 0
      %573 = vmatprep.subr.bf16.mxu0 0
      %574 = vmatpush1.bf16.msra.mxu0 0
      %575 = vmatprep.subr.bf16.mxu0 0
      %576 = vmatpush1.bf16.msra.mxu0 0
      %577 = vmatprep.subr.bf16.mxu0 0
      %578 = vmatpush1.bf16.msra.mxu0 0
      %579 = vmatprep.subr.bf16.mxu0 0
      %580 = vmatpush1.bf16.msra.mxu0 0
      %581 = vmatprep.subr.bf16.mxu0 0
      %582 = vmatpush1.bf16.msra.mxu0 0
      %583 = vmatprep.subr.bf16.mxu0 0
      %584 = vmatpush1.bf16.msra.mxu0 0
      %585 = vmatprep.subr.bf16.mxu0 0
      %586 = vmatpush1.bf16.msra.mxu0 0
      %587 = vmatprep.subr.bf16.mxu0 0
      %588 = vmatpush1.bf16.msra.mxu0 0
      %589 = vmatprep.subr.bf16.mxu0 0
      %590 = vmatpush1.bf16.msra.mxu0 0
      %591 = vmatprep.subr.bf16.mxu0 0
      %592 = vmatpush1.bf16.msra.mxu0 0
      %593 = vmatprep.subr.bf16.mxu0 0
      %594 = vmatpush1.bf16.msra.mxu0 0
      %595 = vmatprep.mubr.bf16.mxu0 0
      %596 = vmatmul.mubr.bf16.gmra.mrb[0].mxu0 %v520
      %v597 = vpop.f32.mrb[0].mxu0
      %v598 = vadd.f32 0.0, %v597
      %v599 = vpop.f32.mrb[0].mxu0
      %v600 = vadd.f32 0.0, %v599
      %v601 = vpop.f32.mrb[0].mxu0
      %v602 = vpop.f32.mrb[0].mxu0
      %603 = vdwg.mxu0
      %604 = vmatprep.subr.bf16.mxu0 %v507
      %605 = vmatpush1.bf16.msra.mxu0 %v506
      %606 = vmatprep.subr.bf16.mxu0 %v515
      %607 = vmatpush1.bf16.msra.mxu0 %v514
      %608 = vmatprep.subr.bf16.mxu0 0
      %609 = vmatpush1.bf16.msra.mxu0 0
      %610 = vmatprep.subr.bf16.mxu0 0
      %611 = vmatpush1.bf16.msra.mxu0 0
      %612 = vmatprep.subr.bf16.mxu0 0
      %613 = vmatpush1.bf16.msra.mxu0 0
      %614 = vmatprep.subr.bf16.mxu0 0
      %615 = vmatpush1.bf16.msra.mxu0 0
      %616 = vmatprep.subr.bf16.mxu0 0
      %617 = vmatpush1.bf16.msra.mxu0 0
      %618 = vmatprep.subr.bf16.mxu0 0
      %619 = vmatpush1.bf16.msra.mxu0 0
      %620 = vmatprep.subr.bf16.mxu0 0
      %621 = vmatpush1.bf16.msra.mxu0 0
      %622 = vmatprep.subr.bf16.mxu0 0
      %623 = vmatpush1.bf16.msra.mxu0 0
      %624 = vmatprep.subr.bf16.mxu0 0
      %625 = vmatpush1.bf16.msra.mxu0 0
      %626 = vmatprep.subr.bf16.mxu0 0
      %627 = vmatpush1.bf16.msra.mxu0 0
      %628 = vmatprep.subr.bf16.mxu0 0
      %629 = vmatpush1.bf16.msra.mxu0 0
      %630 = vmatprep.subr.bf16.mxu0 0
      %631 = vmatpush1.bf16.msra.mxu0 0
      %632 = vmatprep.subr.bf16.mxu0 0
      %633 = vmatpush1.bf16.msra.mxu0 0
      %634 = vmatprep.subr.bf16.mxu0 0
      %635 = vmatpush1.bf16.msra.mxu0 0
      %636 = vmatprep.mubr.bf16.mxu0 0
      %637 = vmatmul.mubr.bf16.gmra.mrb[0].mxu0 %v520
      %v638 = vpop.f32.mrb[0].mxu0
      %v639 = vadd.f32 0.0, %v638
      %v640 = vpop.f32.mrb[0].mxu0
      %v641 = vadd.f32 0.0, %v640
      %v642 = vpop.f32.mrb[0].mxu0
      %v643 = vpop.f32.mrb[0].mxu0
      %644 = vdwg.mxu0
      %645 = vmatprep.subr.bf16.mxu0 %v509
      %646 = vmatpush1.bf16.msra.mxu0 %v508
      %647 = vmatprep.subr.bf16.mxu0 %v517
      %648 = vmatpush1.bf16.msra.mxu0 %v516
      %649 = vmatprep.subr.bf16.mxu0 0
      %650 = vmatpush1.bf16.msra.mxu0 0
      %651 = vmatprep.subr.bf16.mxu0 0
      %652 = vmatpush1.bf16.msra.mxu0 0
      %653 = vmatprep.subr.bf16.mxu0 0
      %654 = vmatpush1.bf16.msra.mxu0 0
      %655 = vmatprep.subr.bf16.mxu0 0
      %656 = vmatpush1.bf16.msra.mxu0 0
      %657 = vmatprep.subr.bf16.mxu0 0
      %658 = vmatpush1.bf16.msra.mxu0 0
      %659 = vmatprep.subr.bf16.mxu0 0
      %660 = vmatpush1.bf16.msra.mxu0 0
      %661 = vmatprep.subr.bf16.mxu0 0
      %662 = vmatpush1.bf16.msra.mxu0 0
      %663 = vmatprep.subr.bf16.mxu0 0
      %664 = vmatpush1.bf16.msra.mxu0 0
      %665 = vmatprep.subr.bf16.mxu0 0
      %666 = vmatpush1.bf16.msra.mxu0 0
      %667 = vmatprep.subr.bf16.mxu0 0
      %668 = vmatpush1.bf16.msra.mxu0 0
      %669 = vmatprep.subr.bf16.mxu0 0
      %670 = vmatpush1.bf16.msra.mxu0 0
      %671 = vmatprep.subr.bf16.mxu0 0
      %672 = vmatpush1.bf16.msra.mxu0 0
      %673 = vmatprep.subr.bf16.mxu0 0
      %674 = vmatpush1.bf16.msra.mxu0 0
      %675 = vmatprep.subr.bf16.mxu0 0
      %676 = vmatpush1.bf16.msra.mxu0 0
      %677 = vmatprep.mubr.bf16.mxu0 0
      %678 = vmatmul.mubr.bf16.gmra.mrb[0].mxu0 %v520
      %v679 = vpop.f32.mrb[0].mxu0
      %v680 = vadd.f32 0.0, %v679
      %v681 = vpop.f32.mrb[0].mxu0
      %v682 = vadd.f32 0.0, %v681
      %v683 = vpop.f32.mrb[0].mxu0
      %v684 = vpop.f32.mrb[0].mxu0
      %685 = vdwg.mxu0
      %v686 = vmax.f32 %v557, 0.0
      %v687 = vmax.f32 %v559, 0.0
      %v688 = vmax.f32 %v598, 0.0
      %v689 = vmax.f32 %v600, 0.0
      %v690 = vmax.f32 %v639, 0.0
      %v691 = vmax.f32 %v641, 0.0
      %v692 = vmax.f32 %v680, 0.0
      %v693 = vmax.f32 %v682, 0.0
      %v694 = vld [vmem:[%s3] sm:$0xf]
      %v695 = vld [vmem:[%s3 + $0x4] sm:$0xf]
      %v696 = vld [vmem:[%s3 + $0x8] sm:$0xf]
      %v697 = vld [vmem:[%s3 + $0xc] sm:$0xf]
      %v698 = vpack.c.bf16 %v686, %v686
      %v699 = vpack.c.bf16 %v687, %v687
      %v700 = vpack.c.bf16 %v688, %v688
      %v701 = vpack.c.bf16 %v689, %v689
      %v702 = vpack.c.bf16 %v690, %v690
      %v703 = vpack.c.bf16 %v691, %v691
      %v704 = vpack.c.bf16 %v692, %v692
      %v705 = vpack.c.bf16 %v693, %v693
      %v710 = vunpack.c.l.b16 %v694
      %v711 = vunpack.c.l.b16 %v695
      %v712 = vunpack.c.l.b16 %v696
      %v713 = vunpack.c.l.b16 %v697
      %v714 = vpack.c.b16 %v711, %v710
      %v715 = vpack.c.b16 %v713, %v712
      %vm716 = vcmask 64512
      %v718 = vsel %vm716, %v714, 0
      %v721 = vsel %vm716, %v715, 0
      %vm723 = vcmask 1043456
      %v725 = vsel %vm723, %v698, 0
      %v728 = vsel %vm723, %v699, 0
      %v731 = vsel %vm723, %v700, 0
      %v734 = vsel %vm723, %v701, 0
      %v737 = vsel %vm723, %v702, 0
      %v740 = vsel %vm723, %v703, 0
      %v743 = vsel %vm723, %v704, 0
      %v746 = vsel %vm723, %v705, 0
      %748 = vmatprep.subr.bf16.mxu0 %v728
      %749 = vmatpush1.bf16.msra.mxu0 %v725
      %750 = vmatprep.subr.bf16.mxu0 0
      %751 = vmatpush1.bf16.msra.mxu0 0
      %752 = vmatprep.subr.bf16.mxu0 0
      %753 = vmatpush1.bf16.msra.mxu0 0
      %754 = vmatprep.subr.bf16.mxu0 0
      %755 = vmatpush1.bf16.msra.mxu0 0
      %756 = vmatprep.subr.bf16.mxu0 0
      %757 = vmatpush1.bf16.msra.mxu0 0
      %758 = vmatprep.subr.bf16.mxu0 0
      %759 = vmatpush1.bf16.msra.mxu0 0
      %760 = vmatprep.subr.bf16.mxu0 0
      %761 = vmatpush1.bf16.msra.mxu0 0
      %762 = vmatprep.subr.bf16.mxu0 0
      %763 = vmatpush1.bf16.msra.mxu0 0
      %764 = vmatprep.subr.bf16.mxu0 0
      %765 = vmatpush1.bf16.msra.mxu0 0
      %766 = vmatprep.subr.bf16.mxu0 0
      %767 = vmatpush1.bf16.msra.mxu0 0
      %768 = vmatprep.subr.bf16.mxu0 0
      %769 = vmatpush1.bf16.msra.mxu0 0
      %770 = vmatprep.subr.bf16.mxu0 0
      %771 = vmatpush1.bf16.msra.mxu0 0
      %772 = vmatprep.subr.bf16.mxu0 0
      %773 = vmatpush1.bf16.msra.mxu0 0
      %774 = vmatprep.subr.bf16.mxu0 0
      %775 = vmatpush1.bf16.msra.mxu0 0
      %776 = vmatprep.subr.bf16.mxu0 0
      %777 = vmatpush1.bf16.msra.mxu0 0
      %778 = vmatprep.subr.bf16.mxu0 0
      %779 = vmatpush1.bf16.msra.mxu0 0
      %780 = vmatprep.mubr.bf16.mxu0 0
      %781 = vmatmul.mubr.bf16.gmra.mrb[0].mxu0 %v718
      %v782 = vpop.f32.mrb[0].mxu0
      %v783 = vadd.f32 0.0, %v782
      %v784 = vpop.f32.mrb[0].mxu0
      %v785 = vadd.f32 0.0, %v784
      %v786 = vpop.f32.mrb[0].mxu0
      %v787 = vadd.f32 0.0, %v786
      %v788 = vpop.f32.mrb[0].mxu0
      %v789 = vadd.f32 0.0, %v788
      %790 = vmatprep.mubr.bf16.mxu0 0
      %791 = vmatmul.mubr.bf16.gmra.mrb[0].mxu0 %v721
      %v792 = vpop.f32.mrb[0].mxu0
      %v793 = vadd.f32 0.0, %v792
      %v794 = vpop.f32.mrb[0].mxu0
      %v795 = vadd.f32 0.0, %v794
      %v796 = vpop.f32.mrb[0].mxu0
      %v797 = vadd.f32 0.0, %v796
      %v798 = vpop.f32.mrb[0].mxu0
      %v799 = vadd.f32 0.0, %v798
      %800 = vdwg.mxu0
      %801 = vmatprep.subr.bf16.mxu0 %v734
      %802 = vmatpush1.bf16.msra.mxu0 %v731
      %803 = vmatprep.subr.bf16.mxu0 0
      %804 = vmatpush1.bf16.msra.mxu0 0
      %805 = vmatprep.subr.bf16.mxu0 0
      %806 = vmatpush1.bf16.msra.mxu0 0
      %807 = vmatprep.subr.bf16.mxu0 0
      %808 = vmatpush1.bf16.msra.mxu0 0
      %809 = vmatprep.subr.bf16.mxu0 0
      %810 = vmatpush1.bf16.msra.mxu0 0
      %811 = vmatprep.subr.bf16.mxu0 0
      %812 = vmatpush1.bf16.msra.mxu0 0
      %813 = vmatprep.subr.bf16.mxu0 0
      %814 = vmatpush1.bf16.msra.mxu0 0
      %815 = vmatprep.subr.bf16.mxu0 0
      %816 = vmatpush1.bf16.msra.mxu0 0
      %817 = vmatprep.subr.bf16.mxu0 0
      %818 = vmatpush1.bf16.msra.mxu0 0
      %819 = vmatprep.subr.bf16.mxu0 0
      %820 = vmatpush1.bf16.msra.mxu0 0
      %821 = vmatprep.subr.bf16.mxu0 0
      %822 = vmatpush1.bf16.msra.mxu0 0
      %823 = vmatprep.subr.bf16.mxu0 0
      %824 = vmatpush1.bf16.msra.mxu0 0
      %825 = vmatprep.subr.bf16.mxu0 0
      %826 = vmatpush1.bf16.msra.mxu0 0
      %827 = vmatprep.subr.bf16.mxu0 0
      %828 = vmatpush1.bf16.msra.mxu0 0
      %829 = vmatprep.subr.bf16.mxu0 0
      %830 = vmatpush1.bf16.msra.mxu0 0
      %831 = vmatprep.subr.bf16.mxu0 0
      %832 = vmatpush1.bf16.msra.mxu0 0
      %833 = vmatprep.mubr.bf16.mxu0 0
      %834 = vmatmul.mubr.bf16.gmra.mrb[0].mxu0 %v718
      %v835 = vpop.f32.mrb[0].mxu0
      %v836 = vadd.f32 0.0, %v835
      %v837 = vpop.f32.mrb[0].mxu0
      %v838 = vadd.f32 0.0, %v837
      %v839 = vpop.f32.mrb[0].mxu0
      %v840 = vadd.f32 0.0, %v839
      %v841 = vpop.f32.mrb[0].mxu0
      %v842 = vadd.f32 0.0, %v841
      %843 = vmatprep.mubr.bf16.mxu0 0
      %844 = vmatmul.mubr.bf16.gmra.mrb[0].mxu0 %v721
      %v845 = vpop.f32.mrb[0].mxu0
      %v846 = vadd.f32 0.0, %v845
      %v847 = vpop.f32.mrb[0].mxu0
      %v848 = vadd.f32 0.0, %v847
      %v849 = vpop.f32.mrb[0].mxu0
      %v850 = vadd.f32 0.0, %v849
      %v851 = vpop.f32.mrb[0].mxu0
      %v852 = vadd.f32 0.0, %v851
      %853 = vdwg.mxu0
      %854 = vmatprep.subr.bf16.mxu0 %v740
      %855 = vmatpush1.bf16.msra.mxu0 %v737
      %856 = vmatprep.subr.bf16.mxu0 0
      %857 = vmatpush1.bf16.msra.mxu0 0
      %858 = vmatprep.subr.bf16.mxu0 0
      %859 = vmatpush1.bf16.msra.mxu0 0
      %860 = vmatprep.subr.bf16.mxu0 0
      %861 = vmatpush1.bf16.msra.mxu0 0
      %862 = vmatprep.subr.bf16.mxu0 0
      %863 = vmatpush1.bf16.msra.mxu0 0
      %864 = vmatprep.subr.bf16.mxu0 0
      %865 = vmatpush1.bf16.msra.mxu0 0
      %866 = vmatprep.subr.bf16.mxu0 0
      %867 = vmatpush1.bf16.msra.mxu0 0
      %868 = vmatprep.subr.bf16.mxu0 0
      %869 = vmatpush1.bf16.msra.mxu0 0
      %870 = vmatprep.subr.bf16.mxu0 0
      %871 = vmatpush1.bf16.msra.mxu0 0
      %872 = vmatprep.subr.bf16.mxu0 0
      %873 = vmatpush1.bf16.msra.mxu0 0
      %874 = vmatprep.subr.bf16.mxu0 0
      %875 = vmatpush1.bf16.msra.mxu0 0
      %876 = vmatprep.subr.bf16.mxu0 0
      %877 = vmatpush1.bf16.msra.mxu0 0
      %878 = vmatprep.subr.bf16.mxu0 0
      %879 = vmatpush1.bf16.msra.mxu0 0
      %880 = vmatprep.subr.bf16.mxu0 0
      %881 = vmatpush1.bf16.msra.mxu0 0
      %882 = vmatprep.subr.bf16.mxu0 0
      %883 = vmatpush1.bf16.msra.mxu0 0
      %884 = vmatprep.subr.bf16.mxu0 0
      %885 = vmatpush1.bf16.msra.mxu0 0
      %886 = vmatprep.mubr.bf16.mxu0 0
      %887 = vmatmul.mubr.bf16.gmra.mrb[0].mxu0 %v718
      %v888 = vpop.f32.mrb[0].mxu0
      %v889 = vadd.f32 0.0, %v888
      %v890 = vpop.f32.mrb[0].mxu0
      %v891 = vadd.f32 0.0, %v890
      %v892 = vpop.f32.mrb[0].mxu0
      %v893 = vadd.f32 0.0, %v892
      %v894 = vpop.f32.mrb[0].mxu0
      %v895 = vadd.f32 0.0, %v894
      %896 = vmatprep.mubr.bf16.mxu0 0
      %897 = vmatmul.mubr.bf16.gmra.mrb[0].mxu0 %v721
      %v898 = vpop.f32.mrb[0].mxu0
      %v899 = vadd.f32 0.0, %v898
      %v900 = vpop.f32.mrb[0].mxu0
      %v901 = vadd.f32 0.0, %v900
      %v902 = vpop.f32.mrb[0].mxu0
      %v903 = vadd.f32 0.0, %v902
      %v904 = vpop.f32.mrb[0].mxu0
      %v905 = vadd.f32 0.0, %v904
      %906 = vdwg.mxu0
      %907 = vmatprep.subr.bf16.mxu0 %v746
      %908 = vmatpush1.bf16.msra.mxu0 %v743
      %909 = vmatprep.subr.bf16.mxu0 0
      %910 = vmatpush1.bf16.msra.mxu0 0
      %911 = vmatprep.subr.bf16.mxu0 0
      %912 = vmatpush1.bf16.msra.mxu0 0
      %913 = vmatprep.subr.bf16.mxu0 0
      %914 = vmatpush1.bf16.msra.mxu0 0
      %915 = vmatprep.subr.bf16.mxu0 0
      %916 = vmatpush1.bf16.msra.mxu0 0
      %917 = vmatprep.subr.bf16.mxu0 0
      %918 = vmatpush1.bf16.msra.mxu0 0
      %919 = vmatprep.subr.bf16.mxu0 0
      %920 = vmatpush1.bf16.msra.mxu0 0
      %921 = vmatprep.subr.bf16.mxu0 0
      %922 = vmatpush1.bf16.msra.mxu0 0
      %923 = vmatprep.subr.bf16.mxu0 0
      %924 = vmatpush1.bf16.msra.mxu0 0
      %925 = vmatprep.subr.bf16.mxu0 0
      %926 = vmatpush1.bf16.msra.mxu0 0
      %927 = vmatprep.subr.bf16.mxu0 0
      %928 = vmatpush1.bf16.msra.mxu0 0
      %929 = vmatprep.subr.bf16.mxu0 0
      %930 = vmatpush1.bf16.msra.mxu0 0
      %931 = vmatprep.subr.bf16.mxu0 0
      %932 = vmatpush1.bf16.msra.mxu0 0
      %933 = vmatprep.subr.bf16.mxu0 0
      %934 = vmatpush1.bf16.msra.mxu0 0
      %935 = vmatprep.subr.bf16.mxu0 0
      %936 = vmatpush1.bf16.msra.mxu0 0
      %937 = vmatprep.subr.bf16.mxu0 0
      %938 = vmatpush1.bf16.msra.mxu0 0
      %939 = vmatprep.mubr.bf16.mxu0 0
      %940 = vmatmul.mubr.bf16.gmra.mrb[0].mxu0 %v718
      %v941 = vpop.f32.mrb[0].mxu0
      %v942 = vadd.f32 0.0, %v941
      %v943 = vpop.f32.mrb[0].mxu0
      %v944 = vadd.f32 0.0, %v943
      %v945 = vpop.f32.mrb[0].mxu0
      %v946 = vadd.f32 0.0, %v945
      %v947 = vpop.f32.mrb[0].mxu0
      %v948 = vadd.f32 0.0, %v947
      %949 = vmatprep.mubr.bf16.mxu0 0
      %950 = vmatmul.mubr.bf16.gmra.mrb[0].mxu0 %v721
      %v951 = vpop.f32.mrb[0].mxu0
      %v952 = vadd.f32 0.0, %v951
      %v953 = vpop.f32.mrb[0].mxu0
      %v954 = vadd.f32 0.0, %v953
      %v955 = vpop.f32.mrb[0].mxu0
      %v956 = vadd.f32 0.0, %v955
      %v957 = vpop.f32.mrb[0].mxu0
      %v958 = vadd.f32 0.0, %v957
      %959 = vdwg.mxu0
      %960 = vst [vmem:[%s197] sm:$0xff] %v783
      %961 = vst [vmem:[%s197 + $0x8] sm:$0xff] %v785
      %962 = vst [vmem:[%s197 + $0x10] sm:$0xff] %v836
      %963 = vst [vmem:[%s197 + $0x18] sm:$0xff] %v838
      %964 = vst [vmem:[%s197 + $0x20] sm:$0xff] %v889
      %965 = vst [vmem:[%s197 + $0x28] sm:$0xff] %v891
      %966 = vst [vmem:[%s197 + $0x30] sm:$0xff] %v942
      %967 = vst [vmem:[%s197 + $0x38] sm:$0xff] %v944
      %968 = vst [vmem:[%s197 + $0x40] sm:$0xff] %v787
      %969 = vst [vmem:[%s197 + $0x48] sm:$0xff] %v789
      %970 = vst [vmem:[%s197 + $0x50] sm:$0xff] %v840
      %971 = vst [vmem:[%s197 + $0x58] sm:$0xff] %v842
      %972 = vst [vmem:[%s197 + $0x60] sm:$0xff] %v893
      %973 = vst [vmem:[%s197 + $0x68] sm:$0xff] %v895
      %974 = vst [vmem:[%s197 + $0x70] sm:$0xff] %v946
      %975 = vst [vmem:[%s197 + $0x78] sm:$0xff] %v948
      %976 = vst [vmem:[%s197 + $0x80] sm:$0xff] %v793
      %977 = vst [vmem:[%s197 + $0x88] sm:$0xff] %v795
      %978 = vst [vmem:[%s197 + $0x90] sm:$0xff] %v846
      %979 = vst [vmem:[%s197 + $0x98] sm:$0xff] %v848
      %980 = vst [vmem:[%s197 + $0xa0] sm:$0xff] %v899
      %981 = vst [vmem:[%s197 + $0xa8] sm:$0xff] %v901
      %982 = vst [vmem:[%s197 + $0xb0] sm:$0xff] %v952
      %983 = vst [vmem:[%s197 + $0xb8] sm:$0xff] %v954
      %984 = vst [vmem:[%s197 + $0xc0] sm:$0xff] %v797
      %985 = vst [vmem:[%s197 + $0xc8] sm:$0xff] %v799
      %986 = vst [vmem:[%s197 + $0xd0] sm:$0xff] %v850
      %987 = vst [vmem:[%s197 + $0xd8] sm:$0xff] %v852
      %988 = vst [vmem:[%s197 + $0xe0] sm:$0xff] %v903
      %989 = vst [vmem:[%s197 + $0xe8] sm:$0xff] %v905
      %990 = vst [vmem:[%s197 + $0xf0] sm:$0xff] %v956
      %991 = vst [vmem:[%s197 + $0xf8] sm:$0xff] %v958
      %p992 = scmp.lt.s32.totalorder %s15, 1
      %s993 = scalar_select %p992, %s15, 1
      %s994 = smul.addr %s993, 32
      %s995 = smul.addr %s994, 8
      %s996 = scalar_lea.vmem %s4, %s995
      // Predicated region
      $region37: #{forward.13} parent=35 // pred_check
        %p997 = pneg %p122
      $region38: #{forward.13} parent=35 // pred_check_branch
        %999 = sbr.rel (%p997) target = $region40
      $region39: #{forward.13} parent=35 // pred_region
        _
      $region40: #{forward.13} parent=35 // pred_fallthru
        _
    $region36: #{forward.13} parent=5 // pred_fallthru
      _
    %p1000 = scmp.le.s32.totalorder 2, %s10
    // Predicated region
    $region41: #{forward.13} parent=5 // pred_check
      %p1001 = pneg %p1000
    $region42: #{forward.13} parent=5 // pred_check_branch
      %1003 = sbr.rel (%p1001) target = $region44
    $region43: #{forward.13} parent=5 // pred_region
      %s1004 = ssub.s32 %s10, 2
      // Predicated region
      $region45: #{forward.13} parent=43 // pred_check
        %p1005 = pneg %p128
      $region46: #{forward.13} parent=43 // pred_check_branch
        %1007 = sbr.rel (%p1005) target = $region48
      $region47: #{forward.13} parent=43 // pred_region
        %p1008 = scmp.lt.s32.totalorder %s16, 1
        %s1009 = scalar_select %p1008, %s16, 1
        %s1010 = smul.addr %s1009, 32
        %s1011 = smul.addr %s1010, 8
        %s1012 = scalar_lea.vmem %s4, %s1011
      $region48: #{forward.13} parent=43 // pred_fallthru
        _
    $region44: #{forward.13} parent=5 // pred_fallthru
      _
  $region6: #{forward.13} parent=0 // loop_footer
    %s14 = sadd.s32 1, %s10
  $region7: #{forward.13} parent=0 // loop_footer_branch
    %9 = sbr.rel target = $region3
  $region8: #{forward.13} parent=0 // loop_exit
    _

// kernel: forward.11
$region0: #{forward.11}
  #allocation0 [shape = 'u32[]', space=smem, size = 0x4, offset = 0x4, fixed_abs, tag = 'smem constant byte address 0x4 - core index']
  #allocation1 [shape = 'u32[144,128]{1,0:T(1,128)}', space=vmem, size = 0x12000, scoped, tag = 'internal scratch']
  %s0 = inlined_call_operand.vmem [shape: f32[4,2,24,32], index: 0, kind: input, shape index: {}]
  %s1 = inlined_call_operand.vmem [shape: bf16[16,64], index: 1, kind: input, shape index: {}]
  %s2 = inlined_call_operand.vmem [shape: bf16[8,32], index: 2, kind: input, shape index: {}]
  %s3 = inlined_call_operand.vmem [shape: bf16[32,8], index: 3, kind: input, shape index: {}]
  %s4 = inlined_call_operand.vmem [shape: f32[2,32,64], index: 4, kind: output, shape index: {}]
  %s5 = sld [smem:[#allocation0]]
  $region49: #{forward.11} parent=0
    _
  %s7 = ssub.s32 1, %s5
  %s8 = scalar_select 0, %s7, %s5
  loop: start=0, step=1, limit=4
  $region2: #{forward.11} parent=0 // loop_pre_header
    _
  $region3: #{forward.11} parent=0 // loop_header
    %s10 = sphi 0, %s14
    %p11 = scmp.ge.s32.totalorder %s10, 4
    %s20 = sphi 0, %s22
    %s23 = sphi 0, %s20
    %s24 = sphi 0, %s23
    %s40 = sphi 0, %s24
    %s44 = sphi 0, %s44
    %s46 = sphi 0, %s44
    %s47 = sphi 0, %s46
    %s61 = sphi 0, %s47
    %s65 = sphi 0, %s65
    %s67 = sphi 0, %s65
    %s68 = sphi 0, %s67
    %s82 = sphi 0, %s68
    %s86 = sphi 0, %s86
    %s88 = sphi 0, %s86
    %s89 = sphi 0, %s88
    %s103 = sphi 0, %s89
    %s109 = sphi 0, %s111
    %s112 = sphi 0, %s109
    %s113 = sphi 0, %s112
    %s129 = sphi 0, %s113
  $region4: #{forward.11} parent=0 // loop_header_branch
    %13 = sbr.rel (%p11) target = $region8
  $region5: #{forward.11} parent=0 // loop_body
    %s15 = ssub.s32 %s10, 1
    %s16 = ssub.s32 %s10, 2
    %s17 = sadd.s32 %s10, 1
    %s18 = ssub.s32 %s10, %s17
    %p19 = scmp.eq.s32.totalorder %s18, 0
    %s21 = sadd.s32 %s20, 1
    %s22 = scalar_select %p19, %s20, %s21
    %p25 = pneg %p19
    %p26 = scmp.eq.s32.totalorder %s10, 1
    %p27 = por %p25, %p26
    %p28 = scmp.ne.s32.totalorder %s20, %s23
    %p29 = scmp.eq.s32.totalorder %s10, 0
    %p30 = por %p28, %p29
    %p31 = scmp.ne.s32.totalorder %s20, %s23
    %p32 = scmp.eq.s32.totalorder %s15, 1
    %p33 = por %p31, %p32
    %p34 = scmp.ne.s32.totalorder %s23, %s24
    %p35 = scmp.eq.s32.totalorder %s15, 0
    %p36 = por %p34, %p35
    %p37 = scmp.ne.s32.totalorder %s23, %s24
    %p38 = scmp.eq.s32.totalorder %s16, 1
    %p39 = por %p37, %p38
    %p41 = scmp.ne.s32.totalorder %s24, %s40
    %p42 = scmp.eq.s32.totalorder %s16, 0
    %p43 = por %p41, %p42
    %s45 = sadd.s32 %s44, 1
    %p48 = scmp.eq.s32.totalorder %s10, 1
    %p49 = scmp.ne.s32.totalorder %s44, %s46
    %p50 = scmp.eq.s32.totalorder %s10, 0
    %p51 = por %p49, %p50
    %p52 = scmp.ne.s32.totalorder %s44, %s46
    %p53 = scmp.eq.s32.totalorder %s15, 1
    %p54 = por %p52, %p53
    %p55 = scmp.ne.s32.totalorder %s46, %s47
    %p56 = scmp.eq.s32.totalorder %s15, 0
    %p57 = por %p55, %p56
    %p58 = scmp.ne.s32.totalorder %s46, %s47
    %p59 = scmp.eq.s32.totalorder %s16, 1
    %p60 = por %p58, %p59
    %p62 = scmp.ne.s32.totalorder %s47, %s61
    %p63 = scmp.eq.s32.totalorder %s16, 0
    %p64 = por %p62, %p63
    %s66 = sadd.s32 %s65, 1
    %p69 = scmp.eq.s32.totalorder %s10, 1
    %p70 = scmp.ne.s32.totalorder %s65, %s67
    %p71 = scmp.eq.s32.totalorder %s10, 0
    %p72 = por %p70, %p71
    %p73 = scmp.ne.s32.totalorder %s65, %s67
    %p74 = scmp.eq.s32.totalorder %s15, 1
    %p75 = por %p73, %p74
    %p76 = scmp.ne.s32.totalorder %s67, %s68
    %p77 = scmp.eq.s32.totalorder %s15, 0
    %p78 = por %p76, %p77
    %p79 = scmp.ne.s32.totalorder %s67, %s68
    %p80 = scmp.eq.s32.totalorder %s16, 1
    %p81 = por %p79, %p80
    %p83 = scmp.ne.s32.totalorder %s68, %s82
    %p84 = scmp.eq.s32.totalorder %s16, 0
    %p85 = por %p83, %p84
    %s87 = sadd.s32 %s86, 1
    %p90 = scmp.eq.s32.totalorder %s10, 1
    %p91 = scmp.ne.s32.totalorder %s86, %s88
    %p92 = scmp.eq.s32.totalorder %s10, 0
    %p93 = por %p91, %p92
    %p94 = scmp.ne.s32.totalorder %s86, %s88
    %p95 = scmp.eq.s32.totalorder %s15, 1
    %p96 = por %p94, %p95
    %p97 = scmp.ne.s32.totalorder %s88, %s89
    %p98 = scmp.eq.s32.totalorder %s15, 0
    %p99 = por %p97, %p98
    %p100 = scmp.ne.s32.totalorder %s88, %s89
    %p101 = scmp.eq.s32.totalorder %s16, 1
    %p102 = por %p100, %p101
    %p104 = scmp.ne.s32.totalorder %s89, %s103
    %p105 = scmp.eq.s32.totalorder %s16, 0
    %p106 = por %p104, %p105
    %s107 = ssub.s32 %s10, %s17
    %p108 = scmp.eq.s32.totalorder %s107, 0
    %s110 = sadd.s32 %s109, 1
    %s111 = scalar_select %p108, %s109, %s110
    %p114 = pneg %p108
    %p115 = scmp.eq.s32.totalorder %s10, 1
    %p116 = por %p114, %p115
    %p117 = scmp.ne.s32.totalorder %s109, %s112
    %p118 = scmp.eq.s32.totalorder %s10, 0
    %p119 = por %p117, %p118
    %p120 = scmp.ne.s32.totalorder %s109, %s112
    %p121 = scmp.eq.s32.totalorder %s15, 1
    %p122 = por %p120, %p121
    %p123 = scmp.ne.s32.totalorder %s112, %s113
    %p124 = scmp.eq.s32.totalorder %s15, 0
    %p125 = por %p123, %p124
    %p126 = scmp.ne.s32.totalorder %s112, %s113
    %p127 = scmp.eq.s32.totalorder %s16, 1
    %p128 = por %p126, %p127
    %p130 = scmp.ne.s32.totalorder %s113, %s129
    %p131 = scmp.eq.s32.totalorder %s16, 0
    %p132 = por %p130, %p131
    %p133 = scmp.le.s32.totalorder 1, %s10
    %p134 = scmp.lt.s32.totalorder %s10, 3
    %p135 = pnand %p133, %p134
    %p136 = pneg %p135
    // Predicated region
    $region9: #{forward.11} parent=5 // pred_check
      _
    $region10: #{forward.11} parent=5 // pred_check_branch
      %138 = sbr.rel (%p135) target = $region12
    $region11: #{forward.11} parent=5 // pred_region
      %s139 = ssub.s32 %s10, 1
      // Predicated region
      $region13: #{forward.11} parent=11 // pred_check
        %p140 = pneg %p57
      $region14: #{forward.11} parent=11 // pred_check_branch
        %142 = sbr.rel (%p140) target = $region16
      $region15: #{forward.11} parent=11 // pred_region
        _
      $region16: #{forward.11} parent=11 // pred_fallthru
        _
      // Predicated region
      $region17: #{forward.11} parent=11 // pred_check
        %p143 = pneg %p78
      $region18: #{forward.11} parent=11 // pred_check_branch
        %145 = sbr.rel (%p143) target = $region20
      $region19: #{forward.11} parent=11 // pred_region
        _
      $region20: #{forward.11} parent=11 // pred_fallthru
        _
      // Predicated region
      $region21: #{forward.11} parent=11 // pred_check
        %p146 = pneg %p99
      $region22: #{forward.11} parent=11 // pred_check_branch
        %148 = sbr.rel (%p146) target = $region24
      $region23: #{forward.11} parent=11 // pred_region
        _
      $region24: #{forward.11} parent=11 // pred_fallthru
        _
    $region12: #{forward.11} parent=5 // pred_fallthru
      _
    %p149 = scmp.lt.s32.totalorder %s10, 2
    // Predicated region
    $region25: #{forward.11} parent=5 // pred_check
      %p150 = pneg %p149
    $region26: #{forward.11} parent=5 // pred_check_branch
      %152 = sbr.rel (%p150) target = $region28
    $region27: #{forward.11} parent=5 // pred_region
      // Predicated region
      $region29: #{forward.11} parent=27 // pred_check
        %p153 = pneg %p30
      $region30: #{forward.11} parent=27 // pred_check_branch
        %155 = sbr.rel (%p153) target = $region32
      $region31: #{forward.11} parent=27 // pred_region
        %p156 = scmp.lt.s32.totalorder %s10, 1
        %s157 = scalar_select %p156, %s10, 1
        %s158 = smul.addr %s157, 3
        %s159 = sadd.s32 %s158, 12
        %s160 = smul.addr %s159, 8
        %s161 = scalar_lea.vmem %s0, %s160
      $region32: #{forward.11} parent=27 // pred_fallthru
        _
    $region28: #{forward.11} parent=5 // pred_fallthru
      _
    %p162 = scmp.le.s32.totalorder 1, %s10
    %p163 = scmp.lt.s32.totalorder %s10, 3
    %p164 = pnand %p162, %p163
    %p165 = pneg %p164
    // Predicated region
    $region33: #{forward.11} parent=5 // pred_check
      _
    $region34: #{forward.11} parent=5 // pred_check_branch
      %167 = sbr.rel (%p164) target = $region36
    $region35: #{forward.11} parent=5 // pred_region
      %s168 = ssub.s32 %s10, 1
      %p169 = scmp.lt.s32.totalorder %s15, 1
      %s170 = scalar_select %p169, %s15, 1
      %s171 = smul.addr %s170, 3
      %s172 = sadd.s32 %s171, 12
      %s173 = smul.addr %s172, 8
      %s174 = scalar_lea.vmem %s0, %s173
      %p175 = pneg %p36
      %p176 = pneg %p33
      %p177 = pneg %p57
      %p178 = pneg %p54
      %p179 = pneg %p78
      %p180 = pneg %p75
      %p181 = pneg %p99
      %p182 = pneg %p96
      %p183 = pneg %p125
      %p184 = pneg %p122
      %p185 = scmp.lt.s32.totalorder %s15, 1
      %s186 = scalar_select %p185, %s15, 1
      %s187 = smul.addr %s186, 4
      %s188 = smul.addr %s187, 8
      %s189 = scalar_lea.vmem %s4, %s188
      %p190 = scmp.lt.s32.totalorder %s15, 1
      %s191 = scalar_select %p190, %s15, 1
      %s192 = smul.addr %s191, 3
      %s193 = sadd.s32 %s192, 12
      %s194 = smul.addr %s193, 8
      %s195 = scalar_lea.vmem %s0, %s194
      %p196 = scmp.lt.s32.totalorder %s15, 1
      %s197 = scalar_select %p196, %s15, 1
      %s198 = smul.addr %s197, 4
      %s199 = smul.addr %s198, 8
      %s200 = scalar_lea.vmem %s4, %s199
      %v202 = vld [vmem:[%s195] sm:$0xff]
      %v203 = vld [vmem:[%s195 + $0x8] sm:$0xff]
      %v204 = vld [vmem:[%s195 + $0x10] sm:$0xff]
      %v205 = vpack.c.bf16 %v203, %v202
      %v206 = vpack.c.bf16 %v204, %v204
      %v207 = vld [vmem:[%s1] sm:$0xf]
      %v208 = vld [vmem:[%s1 + $0x4] sm:$0xf]
      %vm209 = vsmask.f32 7424
      %v211 = vshrl.u32 %v205, 16
      %v213 = vshll.u32 %v205, 16
      %v215 = vrot.slane %v213, 1
      %v216 = vor.u32 %v211, %v215
      %v218 = vshll.u32 %v206, 16
      %v220 = vrot.slane %v218, 1
      %v221 = vsel %vm209, %v216, %v220
      %223 = vxpose.xlu0.c.b16.start [1/8] %v221, 128
      %224 = vxpose.xlu0.c.b16.cont [2/8] 0, 128
      %225 = vxpose.xlu0.c.b16.cont [3/8] 0, 128
      %226 = vxpose.xlu0.c.b16.cont [4/8] 0, 128
      %227 = vxpose.xlu0.c.b16.cont [5/8] 0, 128
      %228 = vxpose.xlu0.c.b16.cont [6/8] 0, 128
      %229 = vxpose.xlu0.c.b16.cont [7/8] 0, 128
      %230 = vxpose.xlu0.c.b16.end [8/8] 0, 128
      %v231 = vpop.trf.xlu0
      %v232 = vpop.trf.xlu0
      %v233 = vpop.trf.xlu0
      %v234 = vpop.trf.xlu0
      %v235 = vpop.trf.xlu0
      %v236 = vpop.trf.xlu0
      %v237 = vpop.trf.xlu0
      %v238 = vpop.trf.xlu0
      %v241 = vunpack.c.l.b16 %v207
      %v242 = vunpack.c.l.b16 %v208
      %v243 = vpack.c.b16 %v242, %v241
      %vm245 = vcmask 130048
      %v247 = vsel %vm245, %v231, 0
      %v250 = vsel %vm245, %v232, 0
      %252 = vmatprep.subr.bf16.mxu0 0
      %253 = vmatpush1.bf16.msra.mxu0 %v243
      %254 = vmatprep.subr.bf16.mxu0 0
      %255 = vmatpush1.bf16.msra.mxu0 0
      %256 = vmatprep.subr.bf16.mxu0 0
      %257 = vmatpush1.bf16.msra.mxu0 0
      %258 = vmatprep.subr.bf16.mxu0 0
      %259 = vmatpush1.bf16.msra.mxu0 0
      %260 = vmatprep.subr.bf16.mxu0 0
      %261 = vmatpush1.bf16.msra.mxu0 0
      %262 = vmatprep.subr.bf16.mxu0 0
      %263 = vmatpush1.bf16.msra.mxu0 0
      %264 = vmatprep.subr.bf16.mxu0 0
      %265 = vmatpush1.bf16.msra.mxu0 0
      %266 = vmatprep.subr.bf16.mxu0 0
      %267 = vmatpush1.bf16.msra.mxu0 0
      %268 = vmatprep.subr.bf16.mxu0 0
      %269 = vmatpush1.bf16.msra.mxu0 0
      %270 = vmatprep.subr.bf16.mxu0 0
      %271 = vmatpush1.bf16.msra.mxu0 0
      %272 = vmatprep.subr.bf16.mxu0 0
      %273 = vmatpush1.bf16.msra.mxu0 0
      %274 = vmatprep.subr.bf16.mxu0 0
      %275 = vmatpush1.bf16.msra.mxu0 0
      %276 = vmatprep.subr.bf16.mxu0 0
      %277 = vmatpush1.bf16.msra.mxu0 0
      %278 = vmatprep.subr.bf16.mxu0 0
      %279 = vmatpush1.bf16.msra.mxu0 0
      %280 = vmatprep.subr.bf16.mxu0 0
      %281 = vmatpush1.bf16.msra.mxu0 0
      %282 = vmatprep.subr.bf16.mxu0 0
      %283 = vmatpush1.bf16.msra.mxu0 0
      %284 = vmatprep.mubr.bf16.mxu0 0
      %285 = vmatmul.mubr.bf16.gmra.mrb[0].mxu0 %v247
      %v286 = vpop.f32.mrb[0].mxu0
      %v287 = vadd.f32 0.0, %v286
      %v288 = vpop.f32.mrb[0].mxu0
      %v289 = vpop.f32.mrb[0].mxu0
      %v290 = vadd.f32 0.0, %v289
      %v291 = vpop.f32.mrb[0].mxu0
      %292 = vmatprep.mubr.bf16.mxu0 0
      %293 = vmatmul.mubr.bf16.gmra.mrb[0].mxu0 %v250
      %v294 = vpop.f32.mrb[0].mxu0
      %v295 = vadd.f32 0.0, %v294
      %v296 = vpop.f32.mrb[0].mxu0
      %v297 = vpop.f32.mrb[0].mxu0
      %v298 = vadd.f32 0.0, %v297
      %v299 = vpop.f32.mrb[0].mxu0
      %300 = vdwg.mxu0
      %v301 = vld [vmem:[%s2] sm:$0xf]
      %v302 = vpack.c.bf16 %v290, %v287
      %v303 = vpack.c.bf16 %v298, %v295
      %vm304 = vcmask 261120
      %v306 = vsel %vm304, %v301, 0
      %308 = vmatprep.subr.bf16.mxu0 0
      %309 = vmatpush1.bf16.msra.mxu0 %v302
      %310 = vmatprep.subr.bf16.mxu0 0
      %311 = vmatpush1.bf16.msra.mxu0 %v303
      %312 = vmatprep.subr.bf16.mxu0 0
      %313 = vmatpush1.bf16.msra.mxu0 0
      %314 = vmatprep.subr.bf16.mxu0 0
      %315 = vmatpush1.bf16.msra.mxu0 0
      %316 = vmatprep.subr.bf16.mxu0 0
      %317 = vmatpush1.bf16.msra.mxu0 0
      %318 = vmatprep.subr.bf16.mxu0 0
      %319 = vmatpush1.bf16.msra.mxu0 0
      %320 = vmatprep.subr.bf16.mxu0 0
      %321 = vmatpush1.bf16.msra.mxu0 0
      %322 = vmatprep.subr.bf16.mxu0 0
      %323 = vmatpush1.bf16.msra.mxu0 0
      %324 = vmatprep.subr.bf16.mxu0 0
      %325 = vmatpush1.bf16.msra.mxu0 0
      %326 = vmatprep.subr.bf16.mxu0 0
      %327 = vmatpush1.bf16.msra.mxu0 0
      %328 = vmatprep.subr.bf16.mxu0 0
      %329 = vmatpush1.bf16.msra.mxu0 0
      %330 = vmatprep.subr.bf16.mxu0 0
      %331 = vmatpush1.bf16.msra.mxu0 0
      %332 = vmatprep.subr.bf16.mxu0 0
      %333 = vmatpush1.bf16.msra.mxu0 0
      %334 = vmatprep.subr.bf16.mxu0 0
      %335 = vmatpush1.bf16.msra.mxu0 0
      %336 = vmatprep.subr.bf16.mxu0 0
      %337 = vmatpush1.bf16.msra.mxu0 0
      %338 = vmatprep.subr.bf16.mxu0 0
      %339 = vmatpush1.bf16.msra.mxu0 0
      %340 = vmatprep.mubr.bf16.mxu0 0
      %341 = vmatmul.mubr.bf16.gmra.mrb[0].mxu0 %v306
      %v342 = vpop.f32.mrb[0].mxu0
      %v343 = vadd.f32 0.0, %v342
      %v344 = vpop.f32.mrb[0].mxu0
      %v345 = vpop.f32.mrb[0].mxu0
      %v346 = vpop.f32.mrb[0].mxu0
      %347 = vdwg.mxu0
      %v348 = vmax.f32 %v343, 0.0
      %v349 = vld [vmem:[%s3] sm:$0xf]
      %v350 = vld [vmem:[%s3 + $0x4] sm:$0xf]
      %v351 = vld [vmem:[%s3 + $0x8] sm:$0xf]
      %v352 = vld [vmem:[%s3 + $0xc] sm:$0xf]
      %v353 = vpack.c.bf16 %v348, %v348
      %v358 = vunpack.c.l.b16 %v349
      %v359 = vunpack.c.l.b16 %v350
      %v360 = vunpack.c.l.b16 %v351
      %v361 = vunpack.c.l.b16 %v352
      %v362 = vpack.c.b16 %v359, %v358
      %v363 = vpack.c.b16 %v361, %v360
      %vm364 = vcmask 64512
      %v366 = vsel %vm364, %v362, 0
      %v369 = vsel %vm364, %v363, 0
      %vm371 = vcmask 1043456
      %v373 = vsel %vm371, %v353, 0
      %375 = vmatprep.subr.bf16.mxu0 0
      %376 = vmatpush1.bf16.msra.mxu0 %v373
      %377 = vmatprep.subr.bf16.mxu0 0
      %378 = vmatpush1.bf16.msra.mxu0 0
      %379 = vmatprep.subr.bf16.mxu0 0
      %380 = vmatpush1.bf16.msra.mxu0 0
      %381 = vmatprep.subr.bf16.mxu0 0
      %382 = vmatpush1.bf16.msra.mxu0 0
      %383 = vmatprep.subr.bf16.mxu0 0
      %384 = vmatpush1.bf16.msra.mxu0 0
      %385 = vmatprep.subr.bf16.mxu0 0
      %386 = vmatpush1.bf16.msra.mxu0 0
      %387 = vmatprep.subr.bf16.mxu0 0
      %388 = vmatpush1.bf16.msra.mxu0 0
      %389 = vmatprep.subr.bf16.mxu0 0
      %390 = vmatpush1.bf16.msra.mxu0 0
      %391 = vmatprep.subr.bf16.mxu0 0
      %392 = vmatpush1.bf16.msra.mxu0 0
      %393 = vmatprep.subr.bf16.mxu0 0
      %394 = vmatpush1.bf16.msra.mxu0 0
      %395 = vmatprep.subr.bf16.mxu0 0
      %396 = vmatpush1.bf16.msra.mxu0 0
      %397 = vmatprep.subr.bf16.mxu0 0
      %398 = vmatpush1.bf16.msra.mxu0 0
      %399 = vmatprep.subr.bf16.mxu0 0
      %400 = vmatpush1.bf16.msra.mxu0 0
      %401 = vmatprep.subr.bf16.mxu0 0
      %402 = vmatpush1.bf16.msra.mxu0 0
      %403 = vmatprep.subr.bf16.mxu0 0
      %404 = vmatpush1.bf16.msra.mxu0 0
      %405 = vmatprep.subr.bf16.mxu0 0
      %406 = vmatpush1.bf16.msra.mxu0 0
      %407 = vmatprep.mubr.bf16.mxu0 0
      %408 = vmatmul.mubr.bf16.gmra.mrb[0].mxu0 %v366
      %v409 = vpop.f32.mrb[0].mxu0
      %v410 = vadd.f32 0.0, %v409
      %v411 = vpop.f32.mrb[0].mxu0
      %v412 = vpop.f32.mrb[0].mxu0
      %v413 = vadd.f32 0.0, %v412
      %v414 = vpop.f32.mrb[0].mxu0
      %415 = vmatprep.mubr.bf16.mxu0 0
      %416 = vmatmul.mubr.bf16.gmra.mrb[0].mxu0 %v369
      %v417 = vpop.f32.mrb[0].mxu0
      %v418 = vadd.f32 0.0, %v417
      %v419 = vpop.f32.mrb[0].mxu0
      %v420 = vpop.f32.mrb[0].mxu0
      %v421 = vadd.f32 0.0, %v420
      %v422 = vpop.f32.mrb[0].mxu0
      %423 = vdwg.mxu0
      %vm424 = vcmask 523264
      %425 = vst.msk [vmem:[%s200] sm:$0xff] %vm424, %v410
      %426 = vst.msk [vmem:[%s200 + $0x8] sm:$0xff] %vm424, %v413
      %427 = vst.msk [vmem:[%s200 + $0x10] sm:$0xff] %vm424, %v418
      %428 = vst.msk [vmem:[%s200 + $0x18] sm:$0xff] %vm424, %v421
      %p429 = scmp.lt.s32.totalorder %s15, 1
      %s430 = scalar_select %p429, %s15, 1
      %s431 = smul.addr %s430, 4
      %s432 = smul.addr %s431, 8
      %s433 = scalar_lea.vmem %s4, %s432
      // Predicated region
      $region37: #{forward.11} parent=35 // pred_check
        %p434 = pneg %p122
      $region38: #{forward.11} parent=35 // pred_check_branch
        %436 = sbr.rel (%p434) target = $region40
      $region39: #{forward.11} parent=35 // pred_region
        _
      $region40: #{forward.11} parent=35 // pred_fallthru
        _
    $region36: #{forward.11} parent=5 // pred_fallthru
      _
    %p437 = scmp.le.s32.totalorder 2, %s10
    // Predicated region
    $region41: #{forward.11} parent=5 // pred_check
      %p438 = pneg %p437
    $region42: #{forward.11} parent=5 // pred_check_branch
      %440 = sbr.rel (%p438) target = $region44
    $region43: #{forward.11} parent=5 // pred_region
      %s441 = ssub.s32 %s10, 2
      // Predicated region
      $region45: #{forward.11} parent=43 // pred_check
        %p442 = pneg %p128
      $region46: #{forward.11} parent=43 // pred_check_branch
        %444 = sbr.rel (%p442) target = $region48
      $region47: #{forward.11} parent=43 // pred_region
        %p445 = scmp.lt.s32.totalorder %s16, 1
        %s446 = scalar_select %p445, %s16, 1
        %s447 = smul.addr %s446, 4
        %s448 = smul.addr %s447, 8
        %s449 = scalar_lea.vmem %s4, %s448
      $region48: #{forward.11} parent=43 // pred_fallthru
        _
    $region44: #{forward.11} parent=5 // pred_fallthru
      _
  $region6: #{forward.11} parent=0 // loop_footer
    %s14 = sadd.s32 1, %s10
  $region7: #{forward.11} parent=0 // loop_footer_branch
    %9 = sbr.rel target = $region3
  $region8: #{forward.11} parent=0 // loop_exit
    _

// kernel: forward.10
$region0: #{forward.10}
  #allocation0 [shape = 'u32[]', space=smem, size = 0x4, offset = 0x4, fixed_abs, tag = 'smem constant byte address 0x4 - core index']
  #allocation1 [shape = 'u32[144,128]{1,0:T(1,128)}', space=vmem, size = 0x12000, scoped, tag = 'internal scratch']
  %s0 = inlined_call_operand.vmem [shape: f32[4,2,24,32], index: 0, kind: input, shape index: {}]
  %s1 = inlined_call_operand.vmem [shape: bf16[16,16], index: 1, kind: input, shape index: {}]
  %s2 = inlined_call_operand.vmem [shape: bf16[8,32], index: 2, kind: input, shape index: {}]
  %s3 = inlined_call_operand.vmem [shape: bf16[32,8], index: 3, kind: input, shape index: {}]
  %s4 = inlined_call_operand.vmem [shape: f32[2,32,16], index: 4, kind: output, shape index: {}]
  %s5 = sld [smem:[#allocation0]]
  $region49: #{forward.10} parent=0
    _
  %s7 = ssub.s32 1, %s5
  %s8 = scalar_select 0, %s7, %s5
  loop: start=0, step=1, limit=4
  $region2: #{forward.10} parent=0 // loop_pre_header
    _
  $region3: #{forward.10} parent=0 // loop_header
    %s10 = sphi 0, %s14
    %p11 = scmp.ge.s32.totalorder %s10, 4
    %s20 = sphi 0, %s22
    %s23 = sphi 0, %s20
    %s24 = sphi 0, %s23
    %s40 = sphi 0, %s24
    %s44 = sphi 0, %s44
    %s46 = sphi 0, %s44
    %s47 = sphi 0, %s46
    %s61 = sphi 0, %s47
    %s65 = sphi 0, %s65
    %s67 = sphi 0, %s65
    %s68 = sphi 0, %s67
    %s82 = sphi 0, %s68
    %s86 = sphi 0, %s86
    %s88 = sphi 0, %s86
    %s89 = sphi 0, %s88
    %s103 = sphi 0, %s89
    %s109 = sphi 0, %s111
    %s112 = sphi 0, %s109
    %s113 = sphi 0, %s112
    %s129 = sphi 0, %s113
  $region4: #{forward.10} parent=0 // loop_header_branch
    %13 = sbr.rel (%p11) target = $region8
  $region5: #{forward.10} parent=0 // loop_body
    %s15 = ssub.s32 %s10, 1
    %s16 = ssub.s32 %s10, 2
    %s17 = sadd.s32 %s10, 1
    %s18 = ssub.s32 %s10, %s17
    %p19 = scmp.eq.s32.totalorder %s18, 0
    %s21 = sadd.s32 %s20, 1
    %s22 = scalar_select %p19, %s20, %s21
    %p25 = pneg %p19
    %p26 = scmp.eq.s32.totalorder %s10, 1
    %p27 = por %p25, %p26
    %p28 = scmp.ne.s32.totalorder %s20, %s23
    %p29 = scmp.eq.s32.totalorder %s10, 0
    %p30 = por %p28, %p29
    %p31 = scmp.ne.s32.totalorder %s20, %s23
    %p32 = scmp.eq.s32.totalorder %s15, 1
    %p33 = por %p31, %p32
    %p34 = scmp.ne.s32.totalorder %s23, %s24
    %p35 = scmp.eq.s32.totalorder %s15, 0
    %p36 = por %p34, %p35
    %p37 = scmp.ne.s32.totalorder %s23, %s24
    %p38 = scmp.eq.s32.totalorder %s16, 1
    %p39 = por %p37, %p38
    %p41 = scmp.ne.s32.totalorder %s24, %s40
    %p42 = scmp.eq.s32.totalorder %s16, 0
    %p43 = por %p41, %p42
    %s45 = sadd.s32 %s44, 1
    %p48 = scmp.eq.s32.totalorder %s10, 1
    %p49 = scmp.ne.s32.totalorder %s44, %s46
    %p50 = scmp.eq.s32.totalorder %s10, 0
    %p51 = por %p49, %p50
    %p52 = scmp.ne.s32.totalorder %s44, %s46
    %p53 = scmp.eq.s32.totalorder %s15, 1
    %p54 = por %p52, %p53
    %p55 = scmp.ne.s32.totalorder %s46, %s47
    %p56 = scmp.eq.s32.totalorder %s15, 0
    %p57 = por %p55, %p56
    %p58 = scmp.ne.s32.totalorder %s46, %s47
    %p59 = scmp.eq.s32.totalorder %s16, 1
    %p60 = por %p58, %p59
    %p62 = scmp.ne.s32.totalorder %s47, %s61
    %p63 = scmp.eq.s32.totalorder %s16, 0
    %p64 = por %p62, %p63
    %s66 = sadd.s32 %s65, 1
    %p69 = scmp.eq.s32.totalorder %s10, 1
    %p70 = scmp.ne.s32.totalorder %s65, %s67
    %p71 = scmp.eq.s32.totalorder %s10, 0
    %p72 = por %p70, %p71
    %p73 = scmp.ne.s32.totalorder %s65, %s67
    %p74 = scmp.eq.s32.totalorder %s15, 1
    %p75 = por %p73, %p74
    %p76 = scmp.ne.s32.totalorder %s67, %s68
    %p77 = scmp.eq.s32.totalorder %s15, 0
    %p78 = por %p76, %p77
    %p79 = scmp.ne.s32.totalorder %s67, %s68
    %p80 = scmp.eq.s32.totalorder %s16, 1
    %p81 = por %p79, %p80
    %p83 = scmp.ne.s32.totalorder %s68, %s82
    %p84 = scmp.eq.s32.totalorder %s16, 0
    %p85 = por %p83, %p84
    %s87 = sadd.s32 %s86, 1
    %p90 = scmp.eq.s32.totalorder %s10, 1
    %p91 = scmp.ne.s32.totalorder %s86, %s88
    %p92 = scmp.eq.s32.totalorder %s10, 0
    %p93 = por %p91, %p92
    %p94 = scmp.ne.s32.totalorder %s86, %s88
    %p95 = scmp.eq.s32.totalorder %s15, 1
    %p96 = por %p94, %p95
    %p97 = scmp.ne.s32.totalorder %s88, %s89
    %p98 = scmp.eq.s32.totalorder %s15, 0
    %p99 = por %p97, %p98
    %p100 = scmp.ne.s32.totalorder %s88, %s89
    %p101 = scmp.eq.s32.totalorder %s16, 1
    %p102 = por %p100, %p101
    %p104 = scmp.ne.s32.totalorder %s89, %s103
    %p105 = scmp.eq.s32.totalorder %s16, 0
    %p106 = por %p104, %p105
    %s107 = ssub.s32 %s10, %s17
    %p108 = scmp.eq.s32.totalorder %s107, 0
    %s110 = sadd.s32 %s109, 1
    %s111 = scalar_select %p108, %s109, %s110
    %p114 = pneg %p108
    %p115 = scmp.eq.s32.totalorder %s10, 1
    %p116 = por %p114, %p115
    %p117 = scmp.ne.s32.totalorder %s109, %s112
    %p118 = scmp.eq.s32.totalorder %s10, 0
    %p119 = por %p117, %p118
    %p120 = scmp.ne.s32.totalorder %s109, %s112
    %p121 = scmp.eq.s32.totalorder %s15, 1
    %p122 = por %p120, %p121
    %p123 = scmp.ne.s32.totalorder %s112, %s113
    %p124 = scmp.eq.s32.totalorder %s15, 0
    %p125 = por %p123, %p124
    %p126 = scmp.ne.s32.totalorder %s112, %s113
    %p127 = scmp.eq.s32.totalorder %s16, 1
    %p128 = por %p126, %p127
    %p130 = scmp.ne.s32.totalorder %s113, %s129
    %p131 = scmp.eq.s32.totalorder %s16, 0
    %p132 = por %p130, %p131
    %p133 = scmp.le.s32.totalorder 1, %s10
    %p134 = scmp.lt.s32.totalorder %s10, 3
    %p135 = pnand %p133, %p134
    %p136 = pneg %p135
    // Predicated region
    $region9: #{forward.10} parent=5 // pred_check
      _
    $region10: #{forward.10} parent=5 // pred_check_branch
      %138 = sbr.rel (%p135) target = $region12
    $region11: #{forward.10} parent=5 // pred_region
      %s139 = ssub.s32 %s10, 1
      // Predicated region
      $region13: #{forward.10} parent=11 // pred_check
        %p140 = pneg %p57
      $region14: #{forward.10} parent=11 // pred_check_branch
        %142 = sbr.rel (%p140) target = $region16
      $region15: #{forward.10} parent=11 // pred_region
        _
      $region16: #{forward.10} parent=11 // pred_fallthru
        _
      // Predicated region
      $region17: #{forward.10} parent=11 // pred_check
        %p143 = pneg %p78
      $region18: #{forward.10} parent=11 // pred_check_branch
        %145 = sbr.rel (%p143) target = $region20
      $region19: #{forward.10} parent=11 // pred_region
        _
      $region20: #{forward.10} parent=11 // pred_fallthru
        _
      // Predicated region
      $region21: #{forward.10} parent=11 // pred_check
        %p146 = pneg %p99
      $region22: #{forward.10} parent=11 // pred_check_branch
        %148 = sbr.rel (%p146) target = $region24
      $region23: #{forward.10} parent=11 // pred_region
        _
      $region24: #{forward.10} parent=11 // pred_fallthru
        _
    $region12: #{forward.10} parent=5 // pred_fallthru
      _
    %p149 = scmp.lt.s32.totalorder %s10, 2
    // Predicated region
    $region25: #{forward.10} parent=5 // pred_check
      %p150 = pneg %p149
    $region26: #{forward.10} parent=5 // pred_check_branch
      %152 = sbr.rel (%p150) target = $region28
    $region27: #{forward.10} parent=5 // pred_region
      // Predicated region
      $region29: #{forward.10} parent=27 // pred_check
        %p153 = pneg %p30
      $region30: #{forward.10} parent=27 // pred_check_branch
        %155 = sbr.rel (%p153) target = $region32
      $region31: #{forward.10} parent=27 // pred_region
        %p156 = scmp.lt.s32.totalorder %s10, 1
        %s157 = scalar_select %p156, %s10, 1
        %s158 = smul.addr %s157, 3
        %s159 = sadd.s32 %s158, 18
        %s160 = smul.addr %s159, 8
        %s161 = scalar_lea.vmem %s0, %s160
      $region32: #{forward.10} parent=27 // pred_fallthru
        _
    $region28: #{forward.10} parent=5 // pred_fallthru
      _
    %p162 = scmp.le.s32.totalorder 1, %s10
    %p163 = scmp.lt.s32.totalorder %s10, 3
    %p164 = pnand %p162, %p163
    %p165 = pneg %p164
    // Predicated region
    $region33: #{forward.10} parent=5 // pred_check
      _
    $region34: #{forward.10} parent=5 // pred_check_branch
      %167 = sbr.rel (%p164) target = $region36
    $region35: #{forward.10} parent=5 // pred_region
      %s168 = ssub.s32 %s10, 1
      %p169 = scmp.lt.s32.totalorder %s15, 1
      %s170 = scalar_select %p169, %s15, 1
      %s171 = smul.addr %s170, 3
      %s172 = sadd.s32 %s171, 18
      %s173 = smul.addr %s172, 8
      %s174 = scalar_lea.vmem %s0, %s173
      %p175 = pneg %p36
      %p176 = pneg %p33
      %p177 = pneg %p57
      %p178 = pneg %p54
      %p179 = pneg %p78
      %p180 = pneg %p75
      %p181 = pneg %p99
      %p182 = pneg %p96
      %p183 = pneg %p125
      %p184 = pneg %p122
      %p185 = scmp.lt.s32.totalorder %s15, 1
      %s186 = scalar_select %p185, %s15, 1
      %s187 = smul.addr %s186, 4
      %s188 = smul.addr %s187, 8
      %s189 = scalar_lea.vmem %s4, %s188
      %p190 = scmp.lt.s32.totalorder %s15, 1
      %s191 = scalar_select %p190, %s15, 1
      %s192 = smul.addr %s191, 3
      %s193 = sadd.s32 %s192, 18
      %s194 = smul.addr %s193, 8
      %s195 = scalar_lea.vmem %s0, %s194
      %p196 = scmp.lt.s32.totalorder %s15, 1
      %s197 = scalar_select %p196, %s15, 1
      %s198 = smul.addr %s197, 4
      %s199 = smul.addr %s198, 8
      %s200 = scalar_lea.vmem %s4, %s199
      %v202 = vld [vmem:[%s195] sm:$0xff]
      %v203 = vld [vmem:[%s195 + $0x8] sm:$0xff]
      %v204 = vld [vmem:[%s195 + $0x10] sm:$0xff]
      %v205 = vpack.c.bf16 %v203, %v202
      %v206 = vpack.c.bf16 %v204, %v204
      %v207 = vld [vmem:[%s1] sm:$0xf]
      %v208 = vld [vmem:[%s1 + $0x4] sm:$0xf]
      %vm209 = vsmask.f32 7424
      %v211 = vshrl.u32 %v205, 16
      %v213 = vshll.u32 %v205, 16
      %v215 = vrot.slane %v213, 1
      %v216 = vor.u32 %v211, %v215
      %v218 = vshll.u32 %v206, 16
      %v220 = vrot.slane %v218, 1
      %v221 = vsel %vm209, %v216, %v220
      %223 = vxpose.xlu0.c.b16.start [1/8] %v221, 128
      %224 = vxpose.xlu0.c.b16.cont [2/8] 0, 128
      %225 = vxpose.xlu0.c.b16.cont [3/8] 0, 128
      %226 = vxpose.xlu0.c.b16.cont [4/8] 0, 128
      %227 = vxpose.xlu0.c.b16.cont [5/8] 0, 128
      %228 = vxpose.xlu0.c.b16.cont [6/8] 0, 128
      %229 = vxpose.xlu0.c.b16.cont [7/8] 0, 128
      %230 = vxpose.xlu0.c.b16.end [8/8] 0, 128
      %v231 = vpop.trf.xlu0
      %v232 = vpop.trf.xlu0
      %v233 = vpop.trf.xlu0
      %v234 = vpop.trf.xlu0
      %v235 = vpop.trf.xlu0
      %v236 = vpop.trf.xlu0
      %v237 = vpop.trf.xlu0
      %v238 = vpop.trf.xlu0
      %v241 = vunpack.c.l.b16 %v207
      %v242 = vunpack.c.l.b16 %v208
      %v243 = vpack.c.b16 %v242, %v241
      %vm245 = vcmask 130048
      %v247 = vsel %vm245, %v231, 0
      %v250 = vsel %vm245, %v232, 0
      %252 = vmatprep.subr.bf16.mxu0 0
      %253 = vmatpush1.bf16.msra.mxu0 %v243
      %254 = vmatprep.subr.bf16.mxu0 0
      %255 = vmatpush1.bf16.msra.mxu0 0
      %256 = vmatprep.subr.bf16.mxu0 0
      %257 = vmatpush1.bf16.msra.mxu0 0
      %258 = vmatprep.subr.bf16.mxu0 0
      %259 = vmatpush1.bf16.msra.mxu0 0
      %260 = vmatprep.subr.bf16.mxu0 0
      %261 = vmatpush1.bf16.msra.mxu0 0
      %262 = vmatprep.subr.bf16.mxu0 0
      %263 = vmatpush1.bf16.msra.mxu0 0
      %264 = vmatprep.subr.bf16.mxu0 0
      %265 = vmatpush1.bf16.msra.mxu0 0
      %266 = vmatprep.subr.bf16.mxu0 0
      %267 = vmatpush1.bf16.msra.mxu0 0
      %268 = vmatprep.subr.bf16.mxu0 0
      %269 = vmatpush1.bf16.msra.mxu0 0
      %270 = vmatprep.subr.bf16.mxu0 0
      %271 = vmatpush1.bf16.msra.mxu0 0
      %272 = vmatprep.subr.bf16.mxu0 0
      %273 = vmatpush1.bf16.msra.mxu0 0
      %274 = vmatprep.subr.bf16.mxu0 0
      %275 = vmatpush1.bf16.msra.mxu0 0
      %276 = vmatprep.subr.bf16.mxu0 0
      %277 = vmatpush1.bf16.msra.mxu0 0
      %278 = vmatprep.subr.bf16.mxu0 0
      %279 = vmatpush1.bf16.msra.mxu0 0
      %280 = vmatprep.subr.bf16.mxu0 0
      %281 = vmatpush1.bf16.msra.mxu0 0
      %282 = vmatprep.subr.bf16.mxu0 0
      %283 = vmatpush1.bf16.msra.mxu0 0
      %284 = vmatprep.mubr.bf16.mxu0 0
      %285 = vmatmul.mubr.bf16.gmra.mrb[0].mxu0 %v247
      %v286 = vpop.f32.mrb[0].mxu0
      %v287 = vadd.f32 0.0, %v286
      %v288 = vpop.f32.mrb[0].mxu0
      %v289 = vpop.f32.mrb[0].mxu0
      %v290 = vadd.f32 0.0, %v289
      %v291 = vpop.f32.mrb[0].mxu0
      %292 = vmatprep.mubr.bf16.mxu0 0
      %293 = vmatmul.mubr.bf16.gmra.mrb[0].mxu0 %v250
      %v294 = vpop.f32.mrb[0].mxu0
      %v295 = vadd.f32 0.0, %v294
      %v296 = vpop.f32.mrb[0].mxu0
      %v297 = vpop.f32.mrb[0].mxu0
      %v298 = vadd.f32 0.0, %v297
      %v299 = vpop.f32.mrb[0].mxu0
      %300 = vdwg.mxu0
      %v301 = vld [vmem:[%s2] sm:$0xf]
      %v302 = vpack.c.bf16 %v290, %v287
      %v303 = vpack.c.bf16 %v298, %v295
      %vm304 = vcmask 261120
      %v306 = vsel %vm304, %v301, 0
      %308 = vmatprep.subr.bf16.mxu0 0
      %309 = vmatpush1.bf16.msra.mxu0 %v302
      %310 = vmatprep.subr.bf16.mxu0 0
      %311 = vmatpush1.bf16.msra.mxu0 %v303
      %312 = vmatprep.subr.bf16.mxu0 0
      %313 = vmatpush1.bf16.msra.mxu0 0
      %314 = vmatprep.subr.bf16.mxu0 0
      %315 = vmatpush1.bf16.msra.mxu0 0
      %316 = vmatprep.subr.bf16.mxu0 0
      %317 = vmatpush1.bf16.msra.mxu0 0
      %318 = vmatprep.subr.bf16.mxu0 0
      %319 = vmatpush1.bf16.msra.mxu0 0
      %320 = vmatprep.subr.bf16.mxu0 0
      %321 = vmatpush1.bf16.msra.mxu0 0
      %322 = vmatprep.subr.bf16.mxu0 0
      %323 = vmatpush1.bf16.msra.mxu0 0
      %324 = vmatprep.subr.bf16.mxu0 0
      %325 = vmatpush1.bf16.msra.mxu0 0
      %326 = vmatprep.subr.bf16.mxu0 0
      %327 = vmatpush1.bf16.msra.mxu0 0
      %328 = vmatprep.subr.bf16.mxu0 0
      %329 = vmatpush1.bf16.msra.mxu0 0
      %330 = vmatprep.subr.bf16.mxu0 0
      %331 = vmatpush1.bf16.msra.mxu0 0
      %332 = vmatprep.subr.bf16.mxu0 0
      %333 = vmatpush1.bf16.msra.mxu0 0
      %334 = vmatprep.subr.bf16.mxu0 0
      %335 = vmatpush1.bf16.msra.mxu0 0
      %336 = vmatprep.subr.bf16.mxu0 0
      %337 = vmatpush1.bf16.msra.mxu0 0
      %338 = vmatprep.subr.bf16.mxu0 0
      %339 = vmatpush1.bf16.msra.mxu0 0
      %340 = vmatprep.mubr.bf16.mxu0 0
      %341 = vmatmul.mubr.bf16.gmra.mrb[0].mxu0 %v306
      %v342 = vpop.f32.mrb[0].mxu0
      %v343 = vadd.f32 0.0, %v342
      %v344 = vpop.f32.mrb[0].mxu0
      %v345 = vpop.f32.mrb[0].mxu0
      %v346 = vpop.f32.mrb[0].mxu0
      %347 = vdwg.mxu0
      %v348 = vmax.f32 %v343, 0.0
      %v349 = vld [vmem:[%s3] sm:$0xf]
      %v350 = vld [vmem:[%s3 + $0x4] sm:$0xf]
      %v351 = vld [vmem:[%s3 + $0x8] sm:$0xf]
      %v352 = vld [vmem:[%s3 + $0xc] sm:$0xf]
      %v353 = vpack.c.bf16 %v348, %v348
      %v358 = vunpack.c.l.b16 %v349
      %v359 = vunpack.c.l.b16 %v350
      %v360 = vunpack.c.l.b16 %v351
      %v361 = vunpack.c.l.b16 %v352
      %v362 = vpack.c.b16 %v359, %v358
      %v363 = vpack.c.b16 %v361, %v360
      %vm364 = vcmask 64512
      %v366 = vsel %vm364, %v362, 0
      %v369 = vsel %vm364, %v363, 0
      %vm371 = vcmask 1043456
      %v373 = vsel %vm371, %v353, 0
      %375 = vmatprep.subr.bf16.mxu0 0
      %376 = vmatpush1.bf16.msra.mxu0 %v373
      %377 = vmatprep.subr.bf16.mxu0 0
      %378 = vmatpush1.bf16.msra.mxu0 0
      %379 = vmatprep.subr.bf16.mxu0 0
      %380 = vmatpush1.bf16.msra.mxu0 0
      %381 = vmatprep.subr.bf16.mxu0 0
      %382 = vmatpush1.bf16.msra.mxu0 0
      %383 = vmatprep.subr.bf16.mxu0 0
      %384 = vmatpush1.bf16.msra.mxu0 0
      %385 = vmatprep.subr.bf16.mxu0 0
      %386 = vmatpush1.bf16.msra.mxu0 0
      %387 = vmatprep.subr.bf16.mxu0 0
      %388 = vmatpush1.bf16.msra.mxu0 0
      %389 = vmatprep.subr.bf16.mxu0 0
      %390 = vmatpush1.bf16.msra.mxu0 0
      %391 = vmatprep.subr.bf16.mxu0 0
      %392 = vmatpush1.bf16.msra.mxu0 0
      %393 = vmatprep.subr.bf16.mxu0 0
      %394 = vmatpush1.bf16.msra.mxu0 0
      %395 = vmatprep.subr.bf16.mxu0 0
      %396 = vmatpush1.bf16.msra.mxu0 0
      %397 = vmatprep.subr.bf16.mxu0 0
      %398 = vmatpush1.bf16.msra.mxu0 0
      %399 = vmatprep.subr.bf16.mxu0 0
      %400 = vmatpush1.bf16.msra.mxu0 0
      %401 = vmatprep.subr.bf16.mxu0 0
      %402 = vmatpush1.bf16.msra.mxu0 0
      %403 = vmatprep.subr.bf16.mxu0 0
      %404 = vmatpush1.bf16.msra.mxu0 0
      %405 = vmatprep.subr.bf16.mxu0 0
      %406 = vmatpush1.bf16.msra.mxu0 0
      %407 = vmatprep.mubr.bf16.mxu0 0
      %408 = vmatmul.mubr.bf16.gmra.mrb[0].mxu0 %v366
      %v409 = vpop.f32.mrb[0].mxu0
      %v410 = vadd.f32 0.0, %v409
      %v411 = vpop.f32.mrb[0].mxu0
      %v412 = vpop.f32.mrb[0].mxu0
      %v413 = vadd.f32 0.0, %v412
      %v414 = vpop.f32.mrb[0].mxu0
      %415 = vmatprep.mubr.bf16.mxu0 0
      %416 = vmatmul.mubr.bf16.gmra.mrb[0].mxu0 %v369
      %v417 = vpop.f32.mrb[0].mxu0
      %v418 = vadd.f32 0.0, %v417
      %v419 = vpop.f32.mrb[0].mxu0
      %v420 = vpop.f32.mrb[0].mxu0
      %v421 = vadd.f32 0.0, %v420
      %v422 = vpop.f32.mrb[0].mxu0
      %423 = vdwg.mxu0
      %424 = vst.msk [vmem:[%s200] sm:$0xff] %vm245, %v410
      %425 = vst.msk [vmem:[%s200 + $0x8] sm:$0xff] %vm245, %v413
      %426 = vst.msk [vmem:[%s200 + $0x10] sm:$0xff] %vm245, %v418
      %427 = vst.msk [vmem:[%s200 + $0x18] sm:$0xff] %vm245, %v421
      %p428 = scmp.lt.s32.totalorder %s15, 1
      %s429 = scalar_select %p428, %s15, 1
      %s430 = smul.addr %s429, 4
      %s431 = smul.addr %s430, 8
      %s432 = scalar_lea.vmem %s4, %s431
      // Predicated region
      $region37: #{forward.10} parent=35 // pred_check
        %p433 = pneg %p122
      $region38: #{forward.10} parent=35 // pred_check_branch
        %435 = sbr.rel (%p433) target = $region40
      $region39: #{forward.10} parent=35 // pred_region
        _
      $region40: #{forward.10} parent=35 // pred_fallthru
        _
    $region36: #{forward.10} parent=5 // pred_fallthru
      _
    %p436 = scmp.le.s32.totalorder 2, %s10
    // Predicated region
    $region41: #{forward.10} parent=5 // pred_check
      %p437 = pneg %p436
    $region42: #{forward.10} parent=5 // pred_check_branch
      %439 = sbr.rel (%p437) target = $region44
    $region43: #{forward.10} parent=5 // pred_region
      %s440 = ssub.s32 %s10, 2
      // Predicated region
      $region45: #{forward.10} parent=43 // pred_check
        %p441 = pneg %p128
      $region46: #{forward.10} parent=43 // pred_check_branch
        %443 = sbr.rel (%p441) target = $region48
      $region47: #{forward.10} parent=43 // pred_region
        %p444 = scmp.lt.s32.totalorder %s16, 1
        %s445 = scalar_select %p444, %s16, 1
        %s446 = smul.addr %s445, 4
        %s447 = smul.addr %s446, 8
        %s448 = scalar_lea.vmem %s4, %s447
      $region48: #{forward.10} parent=43 // pred_fallthru
        _
    $region44: #{forward.10} parent=5 // pred_fallthru
      _
  $region6: #{forward.10} parent=0 // loop_footer
    %s14 = sadd.s32 1, %s10
  $region7: #{forward.10} parent=0 // loop_footer_branch
    %9 = sbr.rel target = $region3
  $region8: #{forward.10} parent=0 // loop_exit
    _

</llo_original>
